<compile_context>
chip_gen: v5e
topology: v5e:2x2
jax: 0.10.0
libtpu: 0.0.40
codegen_flags: <defaults>
</compile_context>

<pallas_src>
import functools

import jax
import jax.numpy as jnp
from jax.experimental import pallas as pl
from jax.experimental.pallas import tpu as pltpu

EPS = 1e-5


# ------------------------------ fused kernel -------------------------------

def _legm_kernel(x_ref, rpb_ref, mask_ref, vecs_ref, wqkv_ref, bqkv_ref,
                 wproj_ref, w1_ref, b1_ref, w2_ref, out_ref,
                 *, n_win, N, C, num_heads):
    """Whole LEGM block for one sample; input rows are window-ordered."""
    bf16 = jnp.bfloat16
    f32 = jnp.float32
    NH = num_heads
    HW = n_win * N

    # vecs rows: [ln_w, ln_b, meta1_w, meta1_b, meta2_w, meta2_b, b_proj, b_mlp2]
    x = x_ref[0]                                        # (HW, C) f32

    # ---- LayNormal: scalar mean/std over the whole sample, per-channel affine
    mean = jnp.mean(x)
    var = jnp.mean(jnp.square(x - mean))
    std = jnp.sqrt(var + EPS)
    inv_std = 1.0 / std
    xn = (x - mean) * inv_std * vecs_ref[0:1, :] + vecs_ref[1:2, :]
    rescale = vecs_ref[2:3, :] * std + vecs_ref[3:4, :]   # meta1(std)
    rebias = vecs_ref[4:5, :] * mean + vecs_ref[5:6, :]   # meta2(mean)

    # ---- fused QKV 1x1 (attention scale pre-folded into Q columns) ---------
    qkv = jnp.dot(xn.astype(bf16), wqkv_ref[...],
                  preferred_element_type=f32) + bqkv_ref[...]
    qkv = qkv.astype(bf16).reshape(n_win, N, 3 * C)     # single bf16 cast
    q = qkv[:, :, :C]
    k = qkv[:, :, C:2 * C]
    v = qkv[:, :, 2 * C:]

    # ---- window attention, all windows & heads batched ----------------------
    # mask[h*N+m, c] = 1 iff channel c belongs to head h: tiling K/V along the
    # key axis and masking makes the per-head contraction a block-diagonal
    # matmul, so scores / outputs for every head come from one einsum each.
    mask = mask_ref[...]                                # (NH*N, C) bf16 {0,1}
    kexp = jnp.concatenate([k] * NH, axis=1) * mask     # (n_win, NH*N, C)
    s = jnp.einsum('wnc,wmc->wnm', q, kexp,
                   preferred_element_type=f32)          # (n_win, N, NH*N)
    s = s + rpb_ref[...][None]                          # rel-pos bias per head
    # one shared max per query row is a valid softmax shift for every head
    p = jnp.exp(s - jnp.max(s, axis=-1, keepdims=True))
    pb = p.astype(bf16)

    vexp = jnp.concatenate([v] * NH, axis=1) * mask     # (n_win, NH*N, C)
    o_un = jnp.einsum('wnm,wmc->wnc', pb, vexp,
                      preferred_element_type=f32).reshape(HW, C)
    den = jnp.dot(pb.reshape(HW, NH * N), mask,         # per-head softmax sums
                  preferred_element_type=f32)           # (HW, C)
    o = o_un * pl.reciprocal(den, approx=True)

    # ---- proj 1x1 + rescale/rebias modulation + residual (f32 path) ---------
    y = jnp.dot(o.astype(bf16), wproj_ref[...],
                preferred_element_type=f32) + vecs_ref[6:7, :]
    y = y * rescale + rebias + x

    # ---- MLP (1x1 -> ReLU -> 1x1) + residual ---------------------------------
    h1 = jnp.maximum(jnp.dot(y.astype(bf16), w1_ref[...],
                             preferred_element_type=f32) + b1_ref[...], 0.0)
    out = y + jnp.dot(h1.astype(bf16), w2_ref[...],
                      preferred_element_type=f32) + vecs_ref[7:8, :]
    out_ref[0] = out.astype(out_ref.dtype)              # one contiguous store


# ------------------------------ wrapper (JAX) -------------------------------

def get_relative_positions(window_size):
    coords = jnp.stack(jnp.meshgrid(jnp.arange(window_size),
                                    jnp.arange(window_size), indexing="ij"))
    flat = coords.reshape(2, -1)
    rel = flat[:, :, None] - flat[:, None, :]
    rel = jnp.transpose(rel, (1, 2, 0)).astype(jnp.float32)
    return jnp.sign(rel) * jnp.log1p(jnp.abs(rel))


def legm_forward(x_nchw, params, *, num_heads=8, window_size=8):
    B, C, H, W = x_nchw.shape
    ws = window_size
    # TODO(synk): shift_size>0 (reflect pad + shifted windows), conv_type
    # branches and the inc != dim Conv stem are not used by the default LEGM
    # config and are not implemented here.
    assert H % ws == 0 and W % ws == 0 and C % num_heads == 0
    N = ws * ws
    nW = (H // ws) * (W // ws)
    hd = C // num_heads
    hid = params["mlp_w1"].shape[1]
    scale = float(hd) ** (-0.5)
    bf16 = jnp.bfloat16

    # NCHW -> window-partitioned (B, nW*N, C): one XLA transpose that replaces
    # the plain NCHW->NHWC transpose the reference does anyway.
    xw = x_nchw.reshape(B, C, H // ws, ws, W // ws, ws)
    xw = jnp.transpose(xw, (0, 2, 4, 3, 5, 1)).reshape(B, nW * N, C)

    # relative-position bias (parameter-only, tiny) in plain JAX, laid out as
    # rpb_row[n, h*N + m] = bias[h, n, m]
    rel = get_relative_positions(ws)                                   # (N,N,2)
    rpb = jnp.maximum(rel @ params["meta_w1"] + params["meta_b1"], 0.0)
    rpb = rpb @ params["meta_w2"] + params["meta_b2"]                  # (N,N,nh)
    rpb_row = jnp.transpose(rpb, (0, 2, 1)).reshape(N, num_heads * N)

    # head block-diagonal mask: mask[h*N+m, c] = 1 iff c // hd == h
    jj = jnp.arange(num_heads * N)[:, None] // N
    cc = jnp.arange(C)[None, :] // hd
    mask = (jj == cc).astype(bf16)                                     # (nh*N,C)

    # fold 1/sqrt(head_dim) into the Q part of the fused QKV conv
    colscale = jnp.concatenate(
        [jnp.full((C,), scale, jnp.float32), jnp.ones((2 * C,), jnp.float32)])
    w_qkv = (params["w_qkv"] * colscale[None, :]).astype(bf16)
    b_qkv = params["b_qkv"] * colscale[None, :]

    # pack per-channel row vectors into one (8, C) block (fewer DMA descriptors)
    vecs = jnp.concatenate(
        [params["norm1"], params["b_proj"], params["mlp_b2"]], axis=0)  # (8, C)

    kernel = functools.partial(_legm_kernel, n_win=nW, N=N, C=C,
                               num_heads=num_heads)
    rep = lambda b: (0, 0)
    out = pl.pallas_call(
        kernel,
        out_shape=jax.ShapeDtypeStruct((B, nW * N, C), x_nchw.dtype),
        grid=(B,),
        in_specs=[
            pl.BlockSpec((1, nW * N, C), lambda b: (b, 0, 0)),
            pl.BlockSpec((N, num_heads * N), rep),
            pl.BlockSpec((num_heads * N, C), rep),
            pl.BlockSpec((8, C), rep),
            pl.BlockSpec((C, 3 * C), rep),
            pl.BlockSpec((1, 3 * C), rep),
            pl.BlockSpec((C, C), rep),
            pl.BlockSpec((C, hid), rep),
            pl.BlockSpec((1, hid), rep),
            pl.BlockSpec((hid, C), rep),
        ],
        out_specs=pl.BlockSpec((1, nW * N, C), lambda b: (b, 0, 0)),
        compiler_params=pltpu.CompilerParams(
            dimension_semantics=("parallel",),
            vmem_limit_bytes=32 * 1024 * 1024),
    )(xw, rpb_row, mask, vecs, w_qkv, b_qkv,
      params["w_proj"].astype(bf16),
      params["mlp_w1"].astype(bf16), params["mlp_b1"],
      params["mlp_w2"].astype(bf16))

    # window reverse + NHWC->NCHW, fused by XLA into one transpose
    out = out.reshape(B, H // ws, W // ws, ws, ws, C)
    out = jnp.transpose(out, (0, 5, 1, 3, 2, 4)).reshape(B, C, H, W)
    return out


def init_params(key, dim, num_heads, mlp_ratio=4.0):
    hid = int(dim * mlp_ratio)
    ks = jax.random.split(key, 8)
    n = lambda k, s: 0.02 * jax.random.normal(k, s, jnp.float32)
    return {
        # LayNormal rows: [weight, bias, meta1_w, meta1_b(=1), meta2_w, meta2_b(=0)]
        "norm1": jnp.stack([
            jnp.ones((dim,), jnp.float32),
            jnp.zeros((dim,), jnp.float32),
            n(ks[0], (dim,)),
            jnp.ones((dim,), jnp.float32),
            n(ks[1], (dim,)),
            jnp.zeros((dim,), jnp.float32),
        ]),
        # Att: QK (dim->2dim) and V (dim->dim) 1x1 convs fused -> (dim, 3dim)
        "w_qkv": n(ks[2], (dim, 3 * dim)),
        "b_qkv": jnp.zeros((1, 3 * dim), jnp.float32),
        # Att.proj 1x1 conv
        "w_proj": n(ks[3], (dim, dim)),
        "b_proj": jnp.zeros((1, dim), jnp.float32),
        # WATT.meta: Linear(2,256) -> ReLU -> Linear(256,num_heads)
        "meta_w1": n(ks[4], (2, 256)),
        "meta_b1": jnp.zeros((256,), jnp.float32),
        "meta_w2": n(ks[5], (256, num_heads)),
        "meta_b2": jnp.zeros((num_heads,), jnp.float32),
        # Mlp: 1x1(dim->hid) -> ReLU -> 1x1(hid->dim)
        "mlp_w1": n(ks[6], (dim, hid)),
        "mlp_b1": jnp.zeros((1, hid), jnp.float32),
        "mlp_w2": n(ks[7], (hid, dim)),
        "mlp_b2": jnp.zeros((1, dim), jnp.float32),
    }


if __name__ == "__main__":
    key = jax.random.PRNGKey(0)
    kx, kp = jax.random.split(key)

    B, C, H, W = 2, 64, 16, 16          # inc == dim == 64, head_dim = 8
    num_heads, window_size = 8, 8

    x = jax.random.normal(kx, (B, C, H, W), jnp.float32)
    params = init_params(kp, C, num_heads)

    fwd = jax.jit(functools.partial(legm_forward, num_heads=num_heads,
                                    window_size=window_size))
    out = fwd(x, params)
    jax.block_until_ready(out)
    assert out.shape == (B, C, H, W) and out.dtype == jnp.float32
    print("KERNEL_OK")
</pallas_src>

<mosaic_0001>
module attributes {stable_mosaic.version = 11 : i64} {
  func.func @_legm_kernel(%arg0: i32, %arg1: memref<1x256x64xf32, #tpu.memory_space<vmem>>, %arg2: memref<64x512xf32, #tpu.memory_space<vmem>>, %arg3: memref<512x64xbf16, #tpu.memory_space<vmem>>, %arg4: memref<8x64xf32, #tpu.memory_space<vmem>>, %arg5: memref<64x192xbf16, #tpu.memory_space<vmem>>, %arg6: memref<1x192xf32, #tpu.memory_space<vmem>>, %arg7: memref<64x64xbf16, #tpu.memory_space<vmem>>, %arg8: memref<64x256xbf16, #tpu.memory_space<vmem>>, %arg9: memref<1x256xf32, #tpu.memory_space<vmem>>, %arg10: memref<256x64xbf16, #tpu.memory_space<vmem>>, %arg11: memref<1x256x64xf32, #tpu.memory_space<vmem>>) attributes {dimension_semantics = [#tpu.dimension_semantics<parallel>], iteration_bounds = array<i64: 2>, scalar_prefetch = 0 : i64, scratch_operands = 0 : i64, tpu.core_type = #tpu.core_type<tc>, window_params = [{transform_indices = @transform_0, window_bounds = array<i64: 1, 256, 64>}, {pipeline_mode = #tpu.pipeline_mode<synchronous>, transform_indices = @transform_1, window_bounds = array<i64: 64, 512>}, {pipeline_mode = #tpu.pipeline_mode<synchronous>, transform_indices = @transform_2, window_bounds = array<i64: 512, 64>}, {pipeline_mode = #tpu.pipeline_mode<synchronous>, transform_indices = @transform_3, window_bounds = array<i64: 8, 64>}, {pipeline_mode = #tpu.pipeline_mode<synchronous>, transform_indices = @transform_4, window_bounds = array<i64: 64, 192>}, {pipeline_mode = #tpu.pipeline_mode<synchronous>, transform_indices = @transform_5, window_bounds = array<i64: 1, 192>}, {pipeline_mode = #tpu.pipeline_mode<synchronous>, transform_indices = @transform_6, window_bounds = array<i64: 64, 64>}, {pipeline_mode = #tpu.pipeline_mode<synchronous>, transform_indices = @transform_7, window_bounds = array<i64: 64, 256>}, {pipeline_mode = #tpu.pipeline_mode<synchronous>, transform_indices = @transform_8, window_bounds = array<i64: 1, 256>}, {pipeline_mode = #tpu.pipeline_mode<synchronous>, transform_indices = @transform_9, window_bounds = array<i64: 256, 64>}, {transform_indices = @transform_10, window_bounds = array<i64: 1, 256, 64>}]} {
    %c0 = arith.constant 0 : index
    %c0_0 = arith.constant 0 : index
    %c0_1 = arith.constant 0 : index
    %0 = vector.load %arg1[%c0, %c0_0, %c0_1] : memref<1x256x64xf32, #tpu.memory_space<vmem>>, vector<1x256x64xf32>
    %1 = vector.shape_cast %0 : vector<1x256x64xf32> to vector<256x64xf32>
    %2 = vector.shape_cast %1 : vector<256x64xf32> to vector<1x256x64xf32>
    %cst = arith.constant dense<0.000000e+00> : vector<1xf32>
    %3 = vector.multi_reduction <add>, %2, %cst [1, 2] : vector<1x256x64xf32> to vector<1xf32>
    %4 = vector.shape_cast %3 : vector<1xf32> to vector<1x1x1xf32>
    %5 = vector.extract %4[0, 0, 0] : f32 from vector<1x1x1xf32>
    %cst_2 = arith.constant 1.638400e+04 : f32
    %6 = arith.divf %5, %cst_2 : f32
    %7 = vector.broadcast %6 : f32 to vector<256x64xf32>
    %8 = arith.subf %1, %7 : vector<256x64xf32>
    %9 = arith.mulf %8, %8 : vector<256x64xf32>
    %10 = vector.shape_cast %9 : vector<256x64xf32> to vector<1x256x64xf32>
    %cst_3 = arith.constant dense<0.000000e+00> : vector<1xf32>
    %11 = vector.multi_reduction <add>, %10, %cst_3 [1, 2] : vector<1x256x64xf32> to vector<1xf32>
    %12 = vector.shape_cast %11 : vector<1xf32> to vector<1x1x1xf32>
    %13 = vector.extract %12[0, 0, 0] : f32 from vector<1x1x1xf32>
    %cst_4 = arith.constant 1.638400e+04 : f32
    %14 = arith.divf %13, %cst_4 : f32
    %cst_5 = arith.constant 9.99999974E-6 : f32
    %15 = arith.addf %14, %cst_5 : f32
    %16 = math.sqrt %15 : f32
    %cst_6 = arith.constant 1.000000e+00 : f32
    %17 = arith.divf %cst_6, %16 : f32
    %18 = vector.broadcast %6 : f32 to vector<256x64xf32>
    %19 = arith.subf %1, %18 : vector<256x64xf32>
    %20 = vector.broadcast %17 : f32 to vector<256x64xf32>
    %21 = arith.mulf %19, %20 : vector<256x64xf32>
    %c0_7 = arith.constant 0 : index
    %c0_8 = arith.constant 0 : index
    %22 = vector.load %arg4[%c0_7, %c0_8] : memref<8x64xf32, #tpu.memory_space<vmem>>, vector<1x64xf32>
    %23 = vector.broadcast %22 : vector<1x64xf32> to vector<256x64xf32>
    %24 = arith.mulf %21, %23 : vector<256x64xf32>
    %c1 = arith.constant 1 : index
    %c0_9 = arith.constant 0 : index
    %25 = vector.load %arg4[%c1, %c0_9] : memref<8x64xf32, #tpu.memory_space<vmem>>, vector<1x64xf32>
    %26 = vector.broadcast %25 : vector<1x64xf32> to vector<256x64xf32>
    %27 = arith.addf %24, %26 : vector<256x64xf32>
    %c2 = arith.constant 2 : index
    %c0_10 = arith.constant 0 : index
    %28 = vector.load %arg4[%c2, %c0_10] : memref<8x64xf32, #tpu.memory_space<vmem>>, vector<1x64xf32>
    %29 = vector.broadcast %16 : f32 to vector<1x64xf32>
    %30 = arith.mulf %28, %29 : vector<1x64xf32>
    %c3 = arith.constant 3 : index
    %c0_11 = arith.constant 0 : index
    %31 = vector.load %arg4[%c3, %c0_11] : memref<8x64xf32, #tpu.memory_space<vmem>>, vector<1x64xf32>
    %32 = arith.addf %30, %31 : vector<1x64xf32>
    %c4 = arith.constant 4 : index
    %c0_12 = arith.constant 0 : index
    %33 = vector.load %arg4[%c4, %c0_12] : memref<8x64xf32, #tpu.memory_space<vmem>>, vector<1x64xf32>
    %34 = vector.broadcast %6 : f32 to vector<1x64xf32>
    %35 = arith.mulf %33, %34 : vector<1x64xf32>
    %c5 = arith.constant 5 : index
    %c0_13 = arith.constant 0 : index
    %36 = vector.load %arg4[%c5, %c0_13] : memref<8x64xf32, #tpu.memory_space<vmem>>, vector<1x64xf32>
    %37 = arith.addf %35, %36 : vector<1x64xf32>
    %38 = arith.truncf %27 : vector<256x64xf32> to vector<256x64xbf16>
    %c0_14 = arith.constant 0 : index
    %c0_15 = arith.constant 0 : index
    %39 = vector.load %arg5[%c0_14, %c0_15] : memref<64x192xbf16, #tpu.memory_space<vmem>>, vector<64x192xbf16>
    %cst_16 = arith.constant dense<0.000000e+00> : vector<256x192xf32>
    %40 = tpu.matmul %38, %39, %cst_16 {dimension_numbers = #tpu.dot_dimension_numbers<[1], [0], [0], [1], [0, 0, 1, 1], [], []>} : vector<256x64xbf16>, vector<64x192xbf16>, vector<256x192xf32> -> vector<256x192xf32>
    %c0_17 = arith.constant 0 : index
    %c0_18 = arith.constant 0 : index
    %41 = vector.load %arg6[%c0_17, %c0_18] : memref<1x192xf32, #tpu.memory_space<vmem>>, vector<1x192xf32>
    %42 = vector.broadcast %41 : vector<1x192xf32> to vector<256x192xf32>
    %43 = arith.addf %40, %42 : vector<256x192xf32>
    %44 = arith.truncf %43 : vector<256x192xf32> to vector<256x192xbf16>
    %45 = vector.shape_cast %44 : vector<256x192xbf16> to vector<4x64x192xbf16>
    %46 = vector.extract_strided_slice %45 {offsets = [0, 0, 0], sizes = [4, 64, 64], strides = [1, 1, 1]} : vector<4x64x192xbf16> to vector<4x64x64xbf16>
    %47 = vector.extract_strided_slice %45 {offsets = [0, 0, 64], sizes = [4, 64, 64], strides = [1, 1, 1]} : vector<4x64x192xbf16> to vector<4x64x64xbf16>
    %48 = vector.extract_strided_slice %45 {offsets = [0, 0, 128], sizes = [4, 64, 64], strides = [1, 1, 1]} : vector<4x64x192xbf16> to vector<4x64x64xbf16>
    %c0_19 = arith.constant 0 : index
    %c0_20 = arith.constant 0 : index
    %49 = vector.load %arg3[%c0_19, %c0_20] : memref<512x64xbf16, #tpu.memory_space<vmem>>, vector<512x64xbf16>
    %50 = tpu.concatenate %47, %47, %47, %47, %47, %47, %47, %47 in 1 : vector<4x64x64xbf16>, vector<4x64x64xbf16>, vector<4x64x64xbf16>, vector<4x64x64xbf16>, vector<4x64x64xbf16>, vector<4x64x64xbf16>, vector<4x64x64xbf16>, vector<4x64x64xbf16> -> vector<4x512x64xbf16>
    %51 = vector.shape_cast %49 : vector<512x64xbf16> to vector<1x512x64xbf16>
    %52 = vector.broadcast %51 : vector<1x512x64xbf16> to vector<4x512x64xbf16>
    %53 = arith.mulf %50, %52 : vector<4x512x64xbf16>
    "tpu.trace_start"() <{level = 10 : i32, message = "wnc,wmc->wnm"}> : () -> ()
    %cst_21 = arith.constant dense<0.000000e+00> : vector<4x64x512xf32>
    %54 = tpu.matmul %46, %53, %cst_21 {dimension_numbers = #tpu.dot_dimension_numbers<[2], [2], [1], [1], [0, 0, 0, 1, 1, 1], [0], [0]>} : vector<4x64x64xbf16>, vector<4x512x64xbf16>, vector<4x64x512xf32> -> vector<4x64x512xf32>
    "tpu.trace_stop"() : () -> ()
    %c0_22 = arith.constant 0 : index
    %c0_23 = arith.constant 0 : index
    %55 = vector.load %arg2[%c0_22, %c0_23] : memref<64x512xf32, #tpu.memory_space<vmem>>, vector<64x512xf32>
    %56 = vector.shape_cast %55 : vector<64x512xf32> to vector<1x64x512xf32>
    %57 = vector.broadcast %56 : vector<1x64x512xf32> to vector<4x64x512xf32>
    %58 = arith.addf %54, %57 : vector<4x64x512xf32>
    %cst_24 = arith.constant dense<0xFF800000> : vector<4x64xf32>
    %59 = vector.multi_reduction <maximumf>, %58, %cst_24 [2] : vector<4x64x512xf32> to vector<4x64xf32>
    %60 = vector.shape_cast %59 : vector<4x64xf32> to vector<4x64x1xf32>
    %61 = vector.broadcast %60 : vector<4x64x1xf32> to vector<4x64x512xf32>
    %62 = arith.subf %58, %61 : vector<4x64x512xf32>
    %63 = math.exp %62 : vector<4x64x512xf32>
    %64 = arith.truncf %63 : vector<4x64x512xf32> to vector<4x64x512xbf16>
    %65 = tpu.concatenate %48, %48, %48, %48, %48, %48, %48, %48 in 1 : vector<4x64x64xbf16>, vector<4x64x64xbf16>, vector<4x64x64xbf16>, vector<4x64x64xbf16>, vector<4x64x64xbf16>, vector<4x64x64xbf16>, vector<4x64x64xbf16>, vector<4x64x64xbf16> -> vector<4x512x64xbf16>
    %66 = vector.shape_cast %49 : vector<512x64xbf16> to vector<1x512x64xbf16>
    %67 = vector.broadcast %66 : vector<1x512x64xbf16> to vector<4x512x64xbf16>
    %68 = arith.mulf %65, %67 : vector<4x512x64xbf16>
    "tpu.trace_start"() <{level = 10 : i32, message = "wnm,wmc->wnc"}> : () -> ()
    %cst_25 = arith.constant dense<0.000000e+00> : vector<4x64x64xf32>
    %69 = tpu.matmul %64, %68, %cst_25 {dimension_numbers = #tpu.dot_dimension_numbers<[2], [1], [1], [2], [0, 0, 0, 1, 1, 2], [0], [0]>} : vector<4x64x512xbf16>, vector<4x512x64xbf16>, vector<4x64x64xf32> -> vector<4x64x64xf32>
    "tpu.trace_stop"() : () -> ()
    %70 = vector.shape_cast %69 : vector<4x64x64xf32> to vector<256x64xf32>
    %71 = vector.shape_cast %64 : vector<4x64x512xbf16> to vector<256x512xbf16>
    %cst_26 = arith.constant dense<0.000000e+00> : vector<256x64xf32>
    %72 = tpu.matmul %71, %49, %cst_26 {dimension_numbers = #tpu.dot_dimension_numbers<[1], [0], [0], [1], [0, 0, 1, 1], [], []>} : vector<256x512xbf16>, vector<512x64xbf16>, vector<256x64xf32> -> vector<256x64xf32>
    %73 = tpu.reciprocal %72 {approx = true} : vector<256x64xf32> -> vector<256x64xf32>
    %74 = arith.mulf %70, %73 : vector<256x64xf32>
    %75 = arith.truncf %74 : vector<256x64xf32> to vector<256x64xbf16>
    %c0_27 = arith.constant 0 : index
    %c0_28 = arith.constant 0 : index
    %76 = vector.load %arg7[%c0_27, %c0_28] : memref<64x64xbf16, #tpu.memory_space<vmem>>, vector<64x64xbf16>
    %cst_29 = arith.constant dense<0.000000e+00> : vector<256x64xf32>
    %77 = tpu.matmul %75, %76, %cst_29 {dimension_numbers = #tpu.dot_dimension_numbers<[1], [0], [0], [1], [0, 0, 1, 1], [], []>} : vector<256x64xbf16>, vector<64x64xbf16>, vector<256x64xf32> -> vector<256x64xf32>
    %c6 = arith.constant 6 : index
    %c0_30 = arith.constant 0 : index
    %78 = vector.load %arg4[%c6, %c0_30] : memref<8x64xf32, #tpu.memory_space<vmem>>, vector<1x64xf32>
    %79 = vector.broadcast %78 : vector<1x64xf32> to vector<256x64xf32>
    %80 = arith.addf %77, %79 : vector<256x64xf32>
    %81 = vector.broadcast %32 : vector<1x64xf32> to vector<256x64xf32>
    %82 = arith.mulf %80, %81 : vector<256x64xf32>
    %83 = vector.broadcast %37 : vector<1x64xf32> to vector<256x64xf32>
    %84 = arith.addf %82, %83 : vector<256x64xf32>
    %85 = arith.addf %84, %1 : vector<256x64xf32>
    %86 = arith.truncf %85 : vector<256x64xf32> to vector<256x64xbf16>
    %c0_31 = arith.constant 0 : index
    %c0_32 = arith.constant 0 : index
    %87 = vector.load %arg8[%c0_31, %c0_32] : memref<64x256xbf16, #tpu.memory_space<vmem>>, vector<64x256xbf16>
    %cst_33 = arith.constant dense<0.000000e+00> : vector<256x256xf32>
    %88 = tpu.matmul %86, %87, %cst_33 {dimension_numbers = #tpu.dot_dimension_numbers<[1], [0], [0], [1], [0, 0, 1, 1], [], []>} : vector<256x64xbf16>, vector<64x256xbf16>, vector<256x256xf32> -> vector<256x256xf32>
    %c0_34 = arith.constant 0 : index
    %c0_35 = arith.constant 0 : index
    %89 = vector.load %arg9[%c0_34, %c0_35] : memref<1x256xf32, #tpu.memory_space<vmem>>, vector<1x256xf32>
    %90 = vector.broadcast %89 : vector<1x256xf32> to vector<256x256xf32>
    %91 = arith.addf %88, %90 : vector<256x256xf32>
    %cst_36 = arith.constant 0.000000e+00 : f32
    %92 = vector.broadcast %cst_36 : f32 to vector<256x256xf32>
    %93 = arith.maximumf %91, %92 : vector<256x256xf32>
    %94 = arith.truncf %93 : vector<256x256xf32> to vector<256x256xbf16>
    %c0_37 = arith.constant 0 : index
    %c0_38 = arith.constant 0 : index
    %95 = vector.load %arg10[%c0_37, %c0_38] : memref<256x64xbf16, #tpu.memory_space<vmem>>, vector<256x64xbf16>
    %cst_39 = arith.constant dense<0.000000e+00> : vector<256x64xf32>
    %96 = tpu.matmul %94, %95, %cst_39 {dimension_numbers = #tpu.dot_dimension_numbers<[1], [0], [0], [1], [0, 0, 1, 1], [], []>} : vector<256x256xbf16>, vector<256x64xbf16>, vector<256x64xf32> -> vector<256x64xf32>
    %97 = arith.addf %85, %96 : vector<256x64xf32>
    %c7 = arith.constant 7 : index
    %c0_40 = arith.constant 0 : index
    %98 = vector.load %arg4[%c7, %c0_40] : memref<8x64xf32, #tpu.memory_space<vmem>>, vector<1x64xf32>
    %99 = vector.broadcast %98 : vector<1x64xf32> to vector<256x64xf32>
    %100 = arith.addf %97, %99 : vector<256x64xf32>
    %c0_41 = arith.constant 0 : index
    %c0_42 = arith.constant 0 : index
    %c0_43 = arith.constant 0 : index
    %101 = vector.load %arg11[%c0_41, %c0_42, %c0_43] : memref<1x256x64xf32, #tpu.memory_space<vmem>>, vector<1x256x64xf32>
    %102 = vector.shape_cast %101 : vector<1x256x64xf32> to vector<256x64xf32>
    %103 = vector.shape_cast %100 : vector<256x64xf32> to vector<1x256x64xf32>
    tpu.vector_store %arg11[%c0_41, %c0_42, %c0_43], %103 {strides = array<i32>} : memref<1x256x64xf32, #tpu.memory_space<vmem>>, vector<1x256x64xf32>,
    return
  }
  func.func @transform_0(%arg0: i32) -> (i32, i32, i32) {
    %c0_i32 = arith.constant 0 : i32
    %c0_i32_0 = arith.constant 0 : i32
    %c0_i32_1 = arith.constant 0 : i32
    return %arg0, %c0_i32, %c0_i32_0 : i32, i32, i32
  }
  func.func @transform_1(%arg0: i32) -> (i32, i32) {
    %c0_i32 = arith.constant 0 : i32
    %c0_i32_0 = arith.constant 0 : i32
    %c0_i32_1 = arith.constant 0 : i32
    return %c0_i32, %c0_i32_0 : i32, i32
  }
  func.func @transform_2(%arg0: i32) -> (i32, i32) {
    %c0_i32 = arith.constant 0 : i32
    %c0_i32_0 = arith.constant 0 : i32
    %c0_i32_1 = arith.constant 0 : i32
    return %c0_i32, %c0_i32_0 : i32, i32
  }
  func.func @transform_3(%arg0: i32) -> (i32, i32) {
    %c0_i32 = arith.constant 0 : i32
    %c0_i32_0 = arith.constant 0 : i32
    %c0_i32_1 = arith.constant 0 : i32
    return %c0_i32, %c0_i32_0 : i32, i32
  }
  func.func @transform_4(%arg0: i32) -> (i32, i32) {
    %c0_i32 = arith.constant 0 : i32
    %c0_i32_0 = arith.constant 0 : i32
    %c0_i32_1 = arith.constant 0 : i32
    return %c0_i32, %c0_i32_0 : i32, i32
  }
  func.func @transform_5(%arg0: i32) -> (i32, i32) {
    %c0_i32 = arith.constant 0 : i32
    %c0_i32_0 = arith.constant 0 : i32
    %c0_i32_1 = arith.constant 0 : i32
    return %c0_i32, %c0_i32_0 : i32, i32
  }
  func.func @transform_6(%arg0: i32) -> (i32, i32) {
    %c0_i32 = arith.constant 0 : i32
    %c0_i32_0 = arith.constant 0 : i32
    %c0_i32_1 = arith.constant 0 : i32
    return %c0_i32, %c0_i32_0 : i32, i32
  }
  func.func @transform_7(%arg0: i32) -> (i32, i32) {
    %c0_i32 = arith.constant 0 : i32
    %c0_i32_0 = arith.constant 0 : i32
    %c0_i32_1 = arith.constant 0 : i32
    return %c0_i32, %c0_i32_0 : i32, i32
  }
  func.func @transform_8(%arg0: i32) -> (i32, i32) {
    %c0_i32 = arith.constant 0 : i32
    %c0_i32_0 = arith.constant 0 : i32
    %c0_i32_1 = arith.constant 0 : i32
    return %c0_i32, %c0_i32_0 : i32, i32
  }
  func.func @transform_9(%arg0: i32) -> (i32, i32) {
    %c0_i32 = arith.constant 0 : i32
    %c0_i32_0 = arith.constant 0 : i32
    %c0_i32_1 = arith.constant 0 : i32
    return %c0_i32, %c0_i32_0 : i32, i32
  }
  func.func @transform_10(%arg0: i32) -> (i32, i32, i32) {
    %c0_i32 = arith.constant 0 : i32
    %c0_i32_0 = arith.constant 0 : i32
    %c0_i32_1 = arith.constant 0 : i32
    return %arg0, %c0_i32, %c0_i32_0 : i32, i32, i32
  }
}

</mosaic_0001>

<llo_original>
// kernel: sub.16
$region0: #{sub.16}
  %s0 = inlined_call_operand.vmem [shape: s32[2,8,8], index: 0, kind: input, shape index: {}]
  %s1 = inlined_call_operand.vmem [shape: s32[2,64], index: 1, kind: output, shape index: {}]
  $region1: #{sub.16} parent=0
    #allocation0 [shape = 'u8[4096]{0}', space=vmem, size = 0x1000, scoped, tag = 'scoped mem for output reshape']
    %s2 = smov 3
    %v3 = vld [vmem:[%s0] ss:$8 sm:%s2]
    %vm4 = vcmask 64512
    %5 = vst.msk [vmem:[#allocation0] sm:$0x3] %vm4, %v3
    %s6 = scalar_lea.vmem %s0, 7
    %s7 = smov 3
    %v8 = vld [vmem:[%s6] ss:$8 sm:%s7]
    %9 = vrot.lane.b32.xlu0 %v8, 56
    %v10 = vpop.permute.xlu0 %9
    %vm11 = vcmask 523712
    %12 = vst.msk [vmem:[#allocation0] sm:$0x3] %vm11, %v10
    %s13 = scalar_lea.vmem %s0, 6
    %s14 = smov 3
    %v15 = vld [vmem:[%s13] ss:$8 sm:%s14]
    %16 = vrot.lane.b32.xlu0 %v15, 48
    %v17 = vpop.permute.xlu0 %16
    %vm18 = vcmask 458112
    %19 = vst.msk [vmem:[#allocation0] sm:$0x3] %vm18, %v17
    %s20 = scalar_lea.vmem %s0, 5
    %s21 = smov 3
    %v22 = vld [vmem:[%s20] ss:$8 sm:%s21]
    %23 = vrot.lane.b32.xlu0 %v22, 40
    %v24 = vpop.permute.xlu0 %23
    %vm25 = vcmask 392512
    %26 = vst.msk [vmem:[#allocation0] sm:$0x3] %vm25, %v24
    %s27 = scalar_lea.vmem %s0, 4
    %s28 = smov 3
    %v29 = vld [vmem:[%s27] ss:$8 sm:%s28]
    %30 = vrot.lane.b32.xlu0 %v29, 32
    %v31 = vpop.permute.xlu0 %30
    %vm32 = vcmask 326912
    %33 = vst.msk [vmem:[#allocation0] sm:$0x3] %vm32, %v31
    %s34 = scalar_lea.vmem %s0, 3
    %s35 = smov 3
    %v36 = vld [vmem:[%s34] ss:$8 sm:%s35]
    %37 = vrot.lane.b32.xlu0 %v36, 24
    %v38 = vpop.permute.xlu0 %37
    %vm39 = vcmask 261312
    %40 = vst.msk [vmem:[#allocation0] sm:$0x3] %vm39, %v38
    %s41 = scalar_lea.vmem %s0, 2
    %s42 = smov 3
    %v43 = vld [vmem:[%s41] ss:$8 sm:%s42]
    %44 = vrot.lane.b32.xlu0 %v43, 16
    %v45 = vpop.permute.xlu0 %44
    %vm46 = vcmask 195712
    %47 = vst.msk [vmem:[#allocation0] sm:$0x3] %vm46, %v45
    %s48 = scalar_lea.vmem %s0, 1
    %s49 = smov 3
    %v50 = vld [vmem:[%s48] ss:$8 sm:%s49]
    %51 = vrot.lane.b32.xlu0 %v50, 8
    %v52 = vpop.permute.xlu0 %51
    %vm53 = vcmask 130112
    %54 = vst.msk [vmem:[#allocation0] sm:$0x3] %vm53, %v52
    %s56 = ssub.s32 4, 1
    %v57 = vld [vmem:[#allocation0] sm:%s56]
    %s59 = ssub.s32 4, 1
    %60 = vst [vmem:[%s1] sm:%s59] %v57

// kernel: mul.11
$region0: #{mul.11}
  #allocation0 [shape = 's32[1]{0}', space=sflag, size = 0x4, scoped, tag = 'scoped memory for mul.11']
  %s0 = inlined_call_operand.vmem [shape: f32[1,192], index: 0, kind: input, shape index: {}]
  %s1 = inlined_call_operand.vmem [shape: f32[1,192], index: 1, kind: input, shape index: {}]
  %s2 = inlined_call_operand.vmem [shape: f32[1,192], index: 2, kind: output, shape index: {}]
  %v3 = vld [vmem:[%s0] sm:$0x1]
  %v4 = vld [vmem:[%s1] sm:$0x1]
  %5 = xla_tuple %v3, %v4
  %6 = xla_tuple %5
  %v7 = vmul.f32 %v3, %v4
  %8 = xla_tuple %v7
  %9 = vst [vmem:[%s2] sm:$0x1] %v7
  %s10 = scalar_lea.vmem %s0, 1
  %v11 = vld [vmem:[%s10] sm:$0x1]
  %s12 = scalar_lea.vmem %s1, 1
  %v13 = vld [vmem:[%s12] sm:$0x1]
  %14 = xla_tuple %v11, %v13
  %15 = xla_tuple %14
  %v16 = vmul.f32 %v11, %v13
  %17 = xla_tuple %v16
  %s18 = scalar_lea.vmem %s2, 1
  %19 = vst [vmem:[%s18] sm:$0x1] %v16

// kernel: legm_forward.1
$region0: #{legm_forward.1}
  #allocation0 [shape = 'u32[]', space=smem, size = 0x4, offset = 0x4, fixed_abs, tag = 'smem constant byte address 0x4 - core index']
  #allocation1 [shape = 'u32[72,128]{1,0:T(1,128)}', space=vmem, size = 0x9000, scoped, tag = 'internal scratch']
  %s0 = inlined_call_operand.vmem [shape: f32[2,256,64], index: 0, kind: input, shape index: {}]
  %s1 = inlined_call_operand.vmem [shape: f32[64,512], index: 1, kind: input, shape index: {}]
  %s2 = inlined_call_operand.vmem [shape: bf16[512,64], index: 2, kind: input, shape index: {}]
  %s3 = inlined_call_operand.vmem [shape: f32[8,64], index: 3, kind: input, shape index: {}]
  %s4 = inlined_call_operand.vmem [shape: bf16[64,192], index: 4, kind: input, shape index: {}]
  %s5 = inlined_call_operand.vmem [shape: f32[1,192], index: 5, kind: input, shape index: {}]
  %s6 = inlined_call_operand.vmem [shape: bf16[64,64], index: 6, kind: input, shape index: {}]
  %s7 = inlined_call_operand.vmem [shape: bf16[64,256], index: 7, kind: input, shape index: {}]
  %s8 = inlined_call_operand.vmem [shape: f32[1,256], index: 8, kind: input, shape index: {}]
  %s9 = inlined_call_operand.vmem [shape: bf16[256,64], index: 9, kind: input, shape index: {}]
  %s10 = inlined_call_operand.vmem [shape: f32[2,256,64], index: 10, kind: output, shape index: {}]
  %s11 = sld [smem:[#allocation0]]
  $region73: #{legm_forward.1} parent=0
    _
  %s13 = ssub.s32 1, %s11
  %s14 = scalar_select 0, %s13, %s11
  loop: start=0, step=1, limit=4
  $region2: #{legm_forward.1} parent=0 // loop_pre_header
    _
  $region3: #{legm_forward.1} parent=0 // loop_header
    %s16 = sphi 0, %s20
    %p17 = scmp.ge.s32.totalorder %s16, 4
    %s26 = sphi 0, %s28
    %s29 = sphi 0, %s26
    %s30 = sphi 0, %s29
    %s46 = sphi 0, %s30
    %s50 = sphi 0, %s50
    %s52 = sphi 0, %s50
    %s53 = sphi 0, %s52
    %s67 = sphi 0, %s53
    %s71 = sphi 0, %s71
    %s73 = sphi 0, %s71
    %s74 = sphi 0, %s73
    %s88 = sphi 0, %s74
    %s92 = sphi 0, %s92
    %s94 = sphi 0, %s92
    %s95 = sphi 0, %s94
    %s109 = sphi 0, %s95
    %s113 = sphi 0, %s113
    %s115 = sphi 0, %s113
    %s116 = sphi 0, %s115
    %s130 = sphi 0, %s116
    %s134 = sphi 0, %s134
    %s136 = sphi 0, %s134
    %s137 = sphi 0, %s136
    %s151 = sphi 0, %s137
    %s155 = sphi 0, %s155
    %s157 = sphi 0, %s155
    %s158 = sphi 0, %s157
    %s172 = sphi 0, %s158
    %s176 = sphi 0, %s176
    %s178 = sphi 0, %s176
    %s179 = sphi 0, %s178
    %s193 = sphi 0, %s179
    %s197 = sphi 0, %s197
    %s199 = sphi 0, %s197
    %s200 = sphi 0, %s199
    %s214 = sphi 0, %s200
    %s218 = sphi 0, %s218
    %s220 = sphi 0, %s218
    %s221 = sphi 0, %s220
    %s235 = sphi 0, %s221
    %s241 = sphi 0, %s243
    %s244 = sphi 0, %s241
    %s245 = sphi 0, %s244
    %s261 = sphi 0, %s245
  $region4: #{legm_forward.1} parent=0 // loop_header_branch
    %19 = sbr.rel (%p17) target = $region8
  $region5: #{legm_forward.1} parent=0 // loop_body
    %s21 = ssub.s32 %s16, 1
    %s22 = ssub.s32 %s16, 2
    %s23 = sadd.s32 %s16, 1
    %s24 = ssub.s32 %s16, %s23
    %p25 = scmp.eq.s32.totalorder %s24, 0
    %s27 = sadd.s32 %s26, 1
    %s28 = scalar_select %p25, %s26, %s27
    %p31 = pneg %p25
    %p32 = scmp.eq.s32.totalorder %s16, 1
    %p33 = por %p31, %p32
    %p34 = scmp.ne.s32.totalorder %s26, %s29
    %p35 = scmp.eq.s32.totalorder %s16, 0
    %p36 = por %p34, %p35
    %p37 = scmp.ne.s32.totalorder %s26, %s29
    %p38 = scmp.eq.s32.totalorder %s21, 1
    %p39 = por %p37, %p38
    %p40 = scmp.ne.s32.totalorder %s29, %s30
    %p41 = scmp.eq.s32.totalorder %s21, 0
    %p42 = por %p40, %p41
    %p43 = scmp.ne.s32.totalorder %s29, %s30
    %p44 = scmp.eq.s32.totalorder %s22, 1
    %p45 = por %p43, %p44
    %p47 = scmp.ne.s32.totalorder %s30, %s46
    %p48 = scmp.eq.s32.totalorder %s22, 0
    %p49 = por %p47, %p48
    %s51 = sadd.s32 %s50, 1
    %p54 = scmp.eq.s32.totalorder %s16, 1
    %p55 = scmp.ne.s32.totalorder %s50, %s52
    %p56 = scmp.eq.s32.totalorder %s16, 0
    %p57 = por %p55, %p56
    %p58 = scmp.ne.s32.totalorder %s50, %s52
    %p59 = scmp.eq.s32.totalorder %s21, 1
    %p60 = por %p58, %p59
    %p61 = scmp.ne.s32.totalorder %s52, %s53
    %p62 = scmp.eq.s32.totalorder %s21, 0
    %p63 = por %p61, %p62
    %p64 = scmp.ne.s32.totalorder %s52, %s53
    %p65 = scmp.eq.s32.totalorder %s22, 1
    %p66 = por %p64, %p65
    %p68 = scmp.ne.s32.totalorder %s53, %s67
    %p69 = scmp.eq.s32.totalorder %s22, 0
    %p70 = por %p68, %p69
    %s72 = sadd.s32 %s71, 1
    %p75 = scmp.eq.s32.totalorder %s16, 1
    %p76 = scmp.ne.s32.totalorder %s71, %s73
    %p77 = scmp.eq.s32.totalorder %s16, 0
    %p78 = por %p76, %p77
    %p79 = scmp.ne.s32.totalorder %s71, %s73
    %p80 = scmp.eq.s32.totalorder %s21, 1
    %p81 = por %p79, %p80
    %p82 = scmp.ne.s32.totalorder %s73, %s74
    %p83 = scmp.eq.s32.totalorder %s21, 0
    %p84 = por %p82, %p83
    %p85 = scmp.ne.s32.totalorder %s73, %s74
    %p86 = scmp.eq.s32.totalorder %s22, 1
    %p87 = por %p85, %p86
    %p89 = scmp.ne.s32.totalorder %s74, %s88
    %p90 = scmp.eq.s32.totalorder %s22, 0
    %p91 = por %p89, %p90
    %s93 = sadd.s32 %s92, 1
    %p96 = scmp.eq.s32.totalorder %s16, 1
    %p97 = scmp.ne.s32.totalorder %s92, %s94
    %p98 = scmp.eq.s32.totalorder %s16, 0
    %p99 = por %p97, %p98
    %p100 = scmp.ne.s32.totalorder %s92, %s94
    %p101 = scmp.eq.s32.totalorder %s21, 1
    %p102 = por %p100, %p101
    %p103 = scmp.ne.s32.totalorder %s94, %s95
    %p104 = scmp.eq.s32.totalorder %s21, 0
    %p105 = por %p103, %p104
    %p106 = scmp.ne.s32.totalorder %s94, %s95
    %p107 = scmp.eq.s32.totalorder %s22, 1
    %p108 = por %p106, %p107
    %p110 = scmp.ne.s32.totalorder %s95, %s109
    %p111 = scmp.eq.s32.totalorder %s22, 0
    %p112 = por %p110, %p111
    %s114 = sadd.s32 %s113, 1
    %p117 = scmp.eq.s32.totalorder %s16, 1
    %p118 = scmp.ne.s32.totalorder %s113, %s115
    %p119 = scmp.eq.s32.totalorder %s16, 0
    %p120 = por %p118, %p119
    %p121 = scmp.ne.s32.totalorder %s113, %s115
    %p122 = scmp.eq.s32.totalorder %s21, 1
    %p123 = por %p121, %p122
    %p124 = scmp.ne.s32.totalorder %s115, %s116
    %p125 = scmp.eq.s32.totalorder %s21, 0
    %p126 = por %p124, %p125
    %p127 = scmp.ne.s32.totalorder %s115, %s116
    %p128 = scmp.eq.s32.totalorder %s22, 1
    %p129 = por %p127, %p128
    %p131 = scmp.ne.s32.totalorder %s116, %s130
    %p132 = scmp.eq.s32.totalorder %s22, 0
    %p133 = por %p131, %p132
    %s135 = sadd.s32 %s134, 1
    %p138 = scmp.eq.s32.totalorder %s16, 1
    %p139 = scmp.ne.s32.totalorder %s134, %s136
    %p140 = scmp.eq.s32.totalorder %s16, 0
    %p141 = por %p139, %p140
    %p142 = scmp.ne.s32.totalorder %s134, %s136
    %p143 = scmp.eq.s32.totalorder %s21, 1
    %p144 = por %p142, %p143
    %p145 = scmp.ne.s32.totalorder %s136, %s137
    %p146 = scmp.eq.s32.totalorder %s21, 0
    %p147 = por %p145, %p146
    %p148 = scmp.ne.s32.totalorder %s136, %s137
    %p149 = scmp.eq.s32.totalorder %s22, 1
    %p150 = por %p148, %p149
    %p152 = scmp.ne.s32.totalorder %s137, %s151
    %p153 = scmp.eq.s32.totalorder %s22, 0
    %p154 = por %p152, %p153
    %s156 = sadd.s32 %s155, 1
    %p159 = scmp.eq.s32.totalorder %s16, 1
    %p160 = scmp.ne.s32.totalorder %s155, %s157
    %p161 = scmp.eq.s32.totalorder %s16, 0
    %p162 = por %p160, %p161
    %p163 = scmp.ne.s32.totalorder %s155, %s157
    %p164 = scmp.eq.s32.totalorder %s21, 1
    %p165 = por %p163, %p164
    %p166 = scmp.ne.s32.totalorder %s157, %s158
    %p167 = scmp.eq.s32.totalorder %s21, 0
    %p168 = por %p166, %p167
    %p169 = scmp.ne.s32.totalorder %s157, %s158
    %p170 = scmp.eq.s32.totalorder %s22, 1
    %p171 = por %p169, %p170
    %p173 = scmp.ne.s32.totalorder %s158, %s172
    %p174 = scmp.eq.s32.totalorder %s22, 0
    %p175 = por %p173, %p174
    %s177 = sadd.s32 %s176, 1
    %p180 = scmp.eq.s32.totalorder %s16, 1
    %p181 = scmp.ne.s32.totalorder %s176, %s178
    %p182 = scmp.eq.s32.totalorder %s16, 0
    %p183 = por %p181, %p182
    %p184 = scmp.ne.s32.totalorder %s176, %s178
    %p185 = scmp.eq.s32.totalorder %s21, 1
    %p186 = por %p184, %p185
    %p187 = scmp.ne.s32.totalorder %s178, %s179
    %p188 = scmp.eq.s32.totalorder %s21, 0
    %p189 = por %p187, %p188
    %p190 = scmp.ne.s32.totalorder %s178, %s179
    %p191 = scmp.eq.s32.totalorder %s22, 1
    %p192 = por %p190, %p191
    %p194 = scmp.ne.s32.totalorder %s179, %s193
    %p195 = scmp.eq.s32.totalorder %s22, 0
    %p196 = por %p194, %p195
    %s198 = sadd.s32 %s197, 1
    %p201 = scmp.eq.s32.totalorder %s16, 1
    %p202 = scmp.ne.s32.totalorder %s197, %s199
    %p203 = scmp.eq.s32.totalorder %s16, 0
    %p204 = por %p202, %p203
    %p205 = scmp.ne.s32.totalorder %s197, %s199
    %p206 = scmp.eq.s32.totalorder %s21, 1
    %p207 = por %p205, %p206
    %p208 = scmp.ne.s32.totalorder %s199, %s200
    %p209 = scmp.eq.s32.totalorder %s21, 0
    %p210 = por %p208, %p209
    %p211 = scmp.ne.s32.totalorder %s199, %s200
    %p212 = scmp.eq.s32.totalorder %s22, 1
    %p213 = por %p211, %p212
    %p215 = scmp.ne.s32.totalorder %s200, %s214
    %p216 = scmp.eq.s32.totalorder %s22, 0
    %p217 = por %p215, %p216
    %s219 = sadd.s32 %s218, 1
    %p222 = scmp.eq.s32.totalorder %s16, 1
    %p223 = scmp.ne.s32.totalorder %s218, %s220
    %p224 = scmp.eq.s32.totalorder %s16, 0
    %p225 = por %p223, %p224
    %p226 = scmp.ne.s32.totalorder %s218, %s220
    %p227 = scmp.eq.s32.totalorder %s21, 1
    %p228 = por %p226, %p227
    %p229 = scmp.ne.s32.totalorder %s220, %s221
    %p230 = scmp.eq.s32.totalorder %s21, 0
    %p231 = por %p229, %p230
    %p232 = scmp.ne.s32.totalorder %s220, %s221
    %p233 = scmp.eq.s32.totalorder %s22, 1
    %p234 = por %p232, %p233
    %p236 = scmp.ne.s32.totalorder %s221, %s235
    %p237 = scmp.eq.s32.totalorder %s22, 0
    %p238 = por %p236, %p237
    %s239 = ssub.s32 %s16, %s23
    %p240 = scmp.eq.s32.totalorder %s239, 0
    %s242 = sadd.s32 %s241, 1
    %s243 = scalar_select %p240, %s241, %s242
    %p246 = pneg %p240
    %p247 = scmp.eq.s32.totalorder %s16, 1
    %p248 = por %p246, %p247
    %p249 = scmp.ne.s32.totalorder %s241, %s244
    %p250 = scmp.eq.s32.totalorder %s16, 0
    %p251 = por %p249, %p250
    %p252 = scmp.ne.s32.totalorder %s241, %s244
    %p253 = scmp.eq.s32.totalorder %s21, 1
    %p254 = por %p252, %p253
    %p255 = scmp.ne.s32.totalorder %s244, %s245
    %p256 = scmp.eq.s32.totalorder %s21, 0
    %p257 = por %p255, %p256
    %p258 = scmp.ne.s32.totalorder %s244, %s245
    %p259 = scmp.eq.s32.totalorder %s22, 1
    %p260 = por %p258, %p259
    %p262 = scmp.ne.s32.totalorder %s245, %s261
    %p263 = scmp.eq.s32.totalorder %s22, 0
    %p264 = por %p262, %p263
    %p265 = scmp.le.s32.totalorder 1, %s16
    %p266 = scmp.lt.s32.totalorder %s16, 3
    %p267 = pnand %p265, %p266
    %p268 = pneg %p267
    // Predicated region
    $region9: #{legm_forward.1} parent=5 // pred_check
      _
    $region10: #{legm_forward.1} parent=5 // pred_check_branch
      %270 = sbr.rel (%p267) target = $region12
    $region11: #{legm_forward.1} parent=5 // pred_region
      %s271 = ssub.s32 %s16, 1
      // Predicated region
      $region13: #{legm_forward.1} parent=11 // pred_check
        %p272 = pneg %p63
      $region14: #{legm_forward.1} parent=11 // pred_check_branch
        %274 = sbr.rel (%p272) target = $region16
      $region15: #{legm_forward.1} parent=11 // pred_region
        _
      $region16: #{legm_forward.1} parent=11 // pred_fallthru
        _
      // Predicated region
      $region17: #{legm_forward.1} parent=11 // pred_check
        %p275 = pneg %p84
      $region18: #{legm_forward.1} parent=11 // pred_check_branch
        %277 = sbr.rel (%p275) target = $region20
      $region19: #{legm_forward.1} parent=11 // pred_region
        _
      $region20: #{legm_forward.1} parent=11 // pred_fallthru
        _
      // Predicated region
      $region21: #{legm_forward.1} parent=11 // pred_check
        %p278 = pneg %p105
      $region22: #{legm_forward.1} parent=11 // pred_check_branch
        %280 = sbr.rel (%p278) target = $region24
      $region23: #{legm_forward.1} parent=11 // pred_region
        _
      $region24: #{legm_forward.1} parent=11 // pred_fallthru
        _
      // Predicated region
      $region25: #{legm_forward.1} parent=11 // pred_check
        %p281 = pneg %p126
      $region26: #{legm_forward.1} parent=11 // pred_check_branch
        %283 = sbr.rel (%p281) target = $region28
      $region27: #{legm_forward.1} parent=11 // pred_region
        _
      $region28: #{legm_forward.1} parent=11 // pred_fallthru
        _
      // Predicated region
      $region29: #{legm_forward.1} parent=11 // pred_check
        %p284 = pneg %p147
      $region30: #{legm_forward.1} parent=11 // pred_check_branch
        %286 = sbr.rel (%p284) target = $region32
      $region31: #{legm_forward.1} parent=11 // pred_region
        _
      $region32: #{legm_forward.1} parent=11 // pred_fallthru
        _
      // Predicated region
      $region33: #{legm_forward.1} parent=11 // pred_check
        %p287 = pneg %p168
      $region34: #{legm_forward.1} parent=11 // pred_check_branch
        %289 = sbr.rel (%p287) target = $region36
      $region35: #{legm_forward.1} parent=11 // pred_region
        _
      $region36: #{legm_forward.1} parent=11 // pred_fallthru
        _
      // Predicated region
      $region37: #{legm_forward.1} parent=11 // pred_check
        %p290 = pneg %p189
      $region38: #{legm_forward.1} parent=11 // pred_check_branch
        %292 = sbr.rel (%p290) target = $region40
      $region39: #{legm_forward.1} parent=11 // pred_region
        _
      $region40: #{legm_forward.1} parent=11 // pred_fallthru
        _
      // Predicated region
      $region41: #{legm_forward.1} parent=11 // pred_check
        %p293 = pneg %p210
      $region42: #{legm_forward.1} parent=11 // pred_check_branch
        %295 = sbr.rel (%p293) target = $region44
      $region43: #{legm_forward.1} parent=11 // pred_region
        _
      $region44: #{legm_forward.1} parent=11 // pred_fallthru
        _
      // Predicated region
      $region45: #{legm_forward.1} parent=11 // pred_check
        %p296 = pneg %p231
      $region46: #{legm_forward.1} parent=11 // pred_check_branch
        %298 = sbr.rel (%p296) target = $region48
      $region47: #{legm_forward.1} parent=11 // pred_region
        _
      $region48: #{legm_forward.1} parent=11 // pred_fallthru
        _
    $region12: #{legm_forward.1} parent=5 // pred_fallthru
      _
    %p299 = scmp.lt.s32.totalorder %s16, 2
    // Predicated region
    $region49: #{legm_forward.1} parent=5 // pred_check
      %p300 = pneg %p299
    $region50: #{legm_forward.1} parent=5 // pred_check_branch
      %302 = sbr.rel (%p300) target = $region52
    $region51: #{legm_forward.1} parent=5 // pred_region
      // Predicated region
      $region53: #{legm_forward.1} parent=51 // pred_check
        %p303 = pneg %p36
      $region54: #{legm_forward.1} parent=51 // pred_check_branch
        %305 = sbr.rel (%p303) target = $region56
      $region55: #{legm_forward.1} parent=51 // pred_region
        %p306 = scmp.lt.s32.totalorder %s16, 1
        %s307 = scalar_select %p306, %s16, 1
        %s308 = smul.addr %s307, 32
        %s309 = smul.addr %s308, 8
        %s310 = scalar_lea.vmem %s0, %s309
      $region56: #{legm_forward.1} parent=51 // pred_fallthru
        _
    $region52: #{legm_forward.1} parent=5 // pred_fallthru
      _
    %p311 = scmp.le.s32.totalorder 1, %s16
    %p312 = scmp.lt.s32.totalorder %s16, 3
    %p313 = pnand %p311, %p312
    %p314 = pneg %p313
    // Predicated region
    $region57: #{legm_forward.1} parent=5 // pred_check
      _
    $region58: #{legm_forward.1} parent=5 // pred_check_branch
      %316 = sbr.rel (%p313) target = $region60
    $region59: #{legm_forward.1} parent=5 // pred_region
      %s317 = ssub.s32 %s16, 1
      %p318 = scmp.lt.s32.totalorder %s21, 1
      %s319 = scalar_select %p318, %s21, 1
      %s320 = smul.addr %s319, 32
      %s321 = smul.addr %s320, 8
      %s322 = scalar_lea.vmem %s0, %s321
      %p323 = pneg %p42
      %p324 = pneg %p39
      %p325 = pneg %p63
      %p326 = pneg %p60
      %p327 = pneg %p84
      %p328 = pneg %p81
      %p329 = pneg %p105
      %p330 = pneg %p102
      %p331 = pneg %p126
      %p332 = pneg %p123
      %p333 = pneg %p147
      %p334 = pneg %p144
      %p335 = pneg %p168
      %p336 = pneg %p165
      %p337 = pneg %p189
      %p338 = pneg %p186
      %p339 = pneg %p210
      %p340 = pneg %p207
      %p341 = pneg %p231
      %p342 = pneg %p228
      %p343 = pneg %p257
      %p344 = pneg %p254
      %p345 = scmp.lt.s32.totalorder %s21, 1
      %s346 = scalar_select %p345, %s21, 1
      %s347 = smul.addr %s346, 32
      %s348 = smul.addr %s347, 8
      %s349 = scalar_lea.vmem %s10, %s348
      %p350 = scmp.lt.s32.totalorder %s21, 1
      %s351 = scalar_select %p350, %s21, 1
      %s352 = smul.addr %s351, 32
      %s353 = smul.addr %s352, 8
      %s354 = scalar_lea.vmem %s0, %s353
      %p355 = scmp.lt.s32.totalorder %s21, 1
      %s356 = scalar_select %p355, %s21, 1
      %s357 = smul.addr %s356, 32
      %s358 = smul.addr %s357, 8
      %s359 = scalar_lea.vmem %s10, %s358
      %v361 = vld [vmem:[%s354] sm:$0xff]
      %v362 = vld [vmem:[%s354 + $0x8] sm:$0xff]
      %v363 = vld [vmem:[%s354 + $0x10] sm:$0xff]
      %v364 = vld [vmem:[%s354 + $0x18] sm:$0xff]
      %v365 = vld [vmem:[%s354 + $0x20] sm:$0xff]
      %v366 = vld [vmem:[%s354 + $0x28] sm:$0xff]
      %v367 = vld [vmem:[%s354 + $0x30] sm:$0xff]
      %v368 = vld [vmem:[%s354 + $0x38] sm:$0xff]
      %v369 = vld [vmem:[%s354 + $0x40] sm:$0xff]
      %v370 = vld [vmem:[%s354 + $0x48] sm:$0xff]
      %v371 = vld [vmem:[%s354 + $0x50] sm:$0xff]
      %v372 = vld [vmem:[%s354 + $0x58] sm:$0xff]
      %v373 = vld [vmem:[%s354 + $0x60] sm:$0xff]
      %v374 = vld [vmem:[%s354 + $0x68] sm:$0xff]
      %v375 = vld [vmem:[%s354 + $0x70] sm:$0xff]
      %v376 = vld [vmem:[%s354 + $0x78] sm:$0xff]
      %v377 = vld [vmem:[%s354 + $0x80] sm:$0xff]
      %v378 = vld [vmem:[%s354 + $0x88] sm:$0xff]
      %v379 = vld [vmem:[%s354 + $0x90] sm:$0xff]
      %v380 = vld [vmem:[%s354 + $0x98] sm:$0xff]
      %v381 = vld [vmem:[%s354 + $0xa0] sm:$0xff]
      %v382 = vld [vmem:[%s354 + $0xa8] sm:$0xff]
      %v383 = vld [vmem:[%s354 + $0xb0] sm:$0xff]
      %v384 = vld [vmem:[%s354 + $0xb8] sm:$0xff]
      %v385 = vld [vmem:[%s354 + $0xc0] sm:$0xff]
      %v386 = vld [vmem:[%s354 + $0xc8] sm:$0xff]
      %v387 = vld [vmem:[%s354 + $0xd0] sm:$0xff]
      %v388 = vld [vmem:[%s354 + $0xd8] sm:$0xff]
      %v389 = vld [vmem:[%s354 + $0xe0] sm:$0xff]
      %v390 = vld [vmem:[%s354 + $0xe8] sm:$0xff]
      %v391 = vld [vmem:[%s354 + $0xf0] sm:$0xff]
      %v392 = vld [vmem:[%s354 + $0xf8] sm:$0xff]
      %vm393 = vcmask 523264
      %v394 = vsel %vm393, %v361, 0.0
      %v395 = vsel %vm393, %v362, 0.0
      %v396 = vadd.f32 %v394, %v395
      %v397 = vsel %vm393, %v363, 0.0
      %v398 = vadd.f32 %v396, %v397
      %v399 = vsel %vm393, %v364, 0.0
      %v400 = vadd.f32 %v398, %v399
      %v401 = vsel %vm393, %v365, 0.0
      %v402 = vadd.f32 %v400, %v401
      %v403 = vsel %vm393, %v366, 0.0
      %v404 = vadd.f32 %v402, %v403
      %v405 = vsel %vm393, %v367, 0.0
      %v406 = vadd.f32 %v404, %v405
      %v407 = vsel %vm393, %v368, 0.0
      %v408 = vadd.f32 %v406, %v407
      %v409 = vsel %vm393, %v369, 0.0
      %v410 = vadd.f32 %v408, %v409
      %v411 = vsel %vm393, %v370, 0.0
      %v412 = vadd.f32 %v410, %v411
      %v413 = vsel %vm393, %v371, 0.0
      %v414 = vadd.f32 %v412, %v413
      %v415 = vsel %vm393, %v372, 0.0
      %v416 = vadd.f32 %v414, %v415
      %v417 = vsel %vm393, %v373, 0.0
      %v418 = vadd.f32 %v416, %v417
      %v419 = vsel %vm393, %v374, 0.0
      %v420 = vadd.f32 %v418, %v419
      %v421 = vsel %vm393, %v375, 0.0
      %v422 = vadd.f32 %v420, %v421
      %v423 = vsel %vm393, %v376, 0.0
      %v424 = vadd.f32 %v422, %v423
      %v425 = vsel %vm393, %v377, 0.0
      %v426 = vadd.f32 %v424, %v425
      %v427 = vsel %vm393, %v378, 0.0
      %v428 = vadd.f32 %v426, %v427
      %v429 = vsel %vm393, %v379, 0.0
      %v430 = vadd.f32 %v428, %v429
      %v431 = vsel %vm393, %v380, 0.0
      %v432 = vadd.f32 %v430, %v431
      %v433 = vsel %vm393, %v381, 0.0
      %v434 = vadd.f32 %v432, %v433
      %v435 = vsel %vm393, %v382, 0.0
      %v436 = vadd.f32 %v434, %v435
      %v437 = vsel %vm393, %v383, 0.0
      %v438 = vadd.f32 %v436, %v437
      %v439 = vsel %vm393, %v384, 0.0
      %v440 = vadd.f32 %v438, %v439
      %v441 = vsel %vm393, %v385, 0.0
      %v442 = vadd.f32 %v440, %v441
      %v443 = vsel %vm393, %v386, 0.0
      %v444 = vadd.f32 %v442, %v443
      %v445 = vsel %vm393, %v387, 0.0
      %v446 = vadd.f32 %v444, %v445
      %v447 = vsel %vm393, %v388, 0.0
      %v448 = vadd.f32 %v446, %v447
      %v449 = vsel %vm393, %v389, 0.0
      %v450 = vadd.f32 %v448, %v449
      %v451 = vsel %vm393, %v390, 0.0
      %v452 = vadd.f32 %v450, %v451
      %v453 = vsel %vm393, %v391, 0.0
      %v454 = vadd.f32 %v452, %v453
      %v455 = vsel %vm393, %v392, 0.0
      %v456 = vadd.f32 %v454, %v455
      %457 = vadd.xlane.f32.xlu0 %v456
      %v458 = vpop.xlane.xlu0 %457
      %v459 = vrot.slane %v458, 4
      %v460 = vadd.f32 %v458, %v459
      %v461 = vrot.slane %v460, 2
      %v462 = vadd.f32 %v460, %v461
      %v463 = vrot.slane %v462, 1
      %v464 = vadd.f32 %v462, %v463
      %s465 = vtos %v464
      %v466 = vrcp.pop 16384.0
      %v467 = vmul.f32 16384.0, %v466
      %v468 = vsub.f32 1.0, %v467
      %v469 = vmul.f32 %v466, %v468
      %v470 = vadd.f32 %v466, %v469
      %vm471 = vweird.f32 %v466
      %v472 = vsel %vm471, %v466, %v470
      %s473 = vtos %v472
      %s474 = smul.f32 %s465, %s473
      %v475 = vstv %s474
      %v476 = vsub.f32 %v361, %v475
      %v477 = vsub.f32 %v362, %v475
      %v478 = vsub.f32 %v363, %v475
      %v479 = vsub.f32 %v364, %v475
      %v480 = vsub.f32 %v365, %v475
      %v481 = vsub.f32 %v366, %v475
      %v482 = vsub.f32 %v367, %v475
      %v483 = vsub.f32 %v368, %v475
      %v484 = vsub.f32 %v369, %v475
      %v485 = vsub.f32 %v370, %v475
      %v486 = vsub.f32 %v371, %v475
      %v487 = vsub.f32 %v372, %v475
      %v488 = vsub.f32 %v373, %v475
      %v489 = vsub.f32 %v374, %v475
      %v490 = vsub.f32 %v375, %v475
      %v491 = vsub.f32 %v376, %v475
      %v492 = vsub.f32 %v377, %v475
      %v493 = vsub.f32 %v378, %v475
      %v494 = vsub.f32 %v379, %v475
      %v495 = vsub.f32 %v380, %v475
      %v496 = vsub.f32 %v381, %v475
      %v497 = vsub.f32 %v382, %v475
      %v498 = vsub.f32 %v383, %v475
      %v499 = vsub.f32 %v384, %v475
      %v500 = vsub.f32 %v385, %v475
      %v501 = vsub.f32 %v386, %v475
      %v502 = vsub.f32 %v387, %v475
      %v503 = vsub.f32 %v388, %v475
      %v504 = vsub.f32 %v389, %v475
      %v505 = vsub.f32 %v390, %v475
      %v506 = vsub.f32 %v391, %v475
      %v507 = vsub.f32 %v392, %v475
      %v508 = vmul.f32 %v476, %v476
      %v509 = vmul.f32 %v477, %v477
      %v510 = vmul.f32 %v478, %v478
      %v511 = vmul.f32 %v479, %v479
      %v512 = vmul.f32 %v480, %v480
      %v513 = vmul.f32 %v481, %v481
      %v514 = vmul.f32 %v482, %v482
      %v515 = vmul.f32 %v483, %v483
      %v516 = vmul.f32 %v484, %v484
      %v517 = vmul.f32 %v485, %v485
      %v518 = vmul.f32 %v486, %v486
      %v519 = vmul.f32 %v487, %v487
      %v520 = vmul.f32 %v488, %v488
      %v521 = vmul.f32 %v489, %v489
      %v522 = vmul.f32 %v490, %v490
      %v523 = vmul.f32 %v491, %v491
      %v524 = vmul.f32 %v492, %v492
      %v525 = vmul.f32 %v493, %v493
      %v526 = vmul.f32 %v494, %v494
      %v527 = vmul.f32 %v495, %v495
      %v528 = vmul.f32 %v496, %v496
      %v529 = vmul.f32 %v497, %v497
      %v530 = vmul.f32 %v498, %v498
      %v531 = vmul.f32 %v499, %v499
      %v532 = vmul.f32 %v500, %v500
      %v533 = vmul.f32 %v501, %v501
      %v534 = vmul.f32 %v502, %v502
      %v535 = vmul.f32 %v503, %v503
      %v536 = vmul.f32 %v504, %v504
      %v537 = vmul.f32 %v505, %v505
      %v538 = vmul.f32 %v506, %v506
      %v539 = vmul.f32 %v507, %v507
      %v540 = vsel %vm393, %v508, 0.0
      %v541 = vsel %vm393, %v509, 0.0
      %v542 = vadd.f32 %v540, %v541
      %v543 = vsel %vm393, %v510, 0.0
      %v544 = vadd.f32 %v542, %v543
      %v545 = vsel %vm393, %v511, 0.0
      %v546 = vadd.f32 %v544, %v545
      %v547 = vsel %vm393, %v512, 0.0
      %v548 = vadd.f32 %v546, %v547
      %v549 = vsel %vm393, %v513, 0.0
      %v550 = vadd.f32 %v548, %v549
      %v551 = vsel %vm393, %v514, 0.0
      %v552 = vadd.f32 %v550, %v551
      %v553 = vsel %vm393, %v515, 0.0
      %v554 = vadd.f32 %v552, %v553
      %v555 = vsel %vm393, %v516, 0.0
      %v556 = vadd.f32 %v554, %v555
      %v557 = vsel %vm393, %v517, 0.0
      %v558 = vadd.f32 %v556, %v557
      %v559 = vsel %vm393, %v518, 0.0
      %v560 = vadd.f32 %v558, %v559
      %v561 = vsel %vm393, %v519, 0.0
      %v562 = vadd.f32 %v560, %v561
      %v563 = vsel %vm393, %v520, 0.0
      %v564 = vadd.f32 %v562, %v563
      %v565 = vsel %vm393, %v521, 0.0
      %v566 = vadd.f32 %v564, %v565
      %v567 = vsel %vm393, %v522, 0.0
      %v568 = vadd.f32 %v566, %v567
      %v569 = vsel %vm393, %v523, 0.0
      %v570 = vadd.f32 %v568, %v569
      %v571 = vsel %vm393, %v524, 0.0
      %v572 = vadd.f32 %v570, %v571
      %v573 = vsel %vm393, %v525, 0.0
      %v574 = vadd.f32 %v572, %v573
      %v575 = vsel %vm393, %v526, 0.0
      %v576 = vadd.f32 %v574, %v575
      %v577 = vsel %vm393, %v527, 0.0
      %v578 = vadd.f32 %v576, %v577
      %v579 = vsel %vm393, %v528, 0.0
      %v580 = vadd.f32 %v578, %v579
      %v581 = vsel %vm393, %v529, 0.0
      %v582 = vadd.f32 %v580, %v581
      %v583 = vsel %vm393, %v530, 0.0
      %v584 = vadd.f32 %v582, %v583
      %v585 = vsel %vm393, %v531, 0.0
      %v586 = vadd.f32 %v584, %v585
      %v587 = vsel %vm393, %v532, 0.0
      %v588 = vadd.f32 %v586, %v587
      %v589 = vsel %vm393, %v533, 0.0
      %v590 = vadd.f32 %v588, %v589
      %v591 = vsel %vm393, %v534, 0.0
      %v592 = vadd.f32 %v590, %v591
      %v593 = vsel %vm393, %v535, 0.0
      %v594 = vadd.f32 %v592, %v593
      %v595 = vsel %vm393, %v536, 0.0
      %v596 = vadd.f32 %v594, %v595
      %v597 = vsel %vm393, %v537, 0.0
      %v598 = vadd.f32 %v596, %v597
      %v599 = vsel %vm393, %v538, 0.0
      %v600 = vadd.f32 %v598, %v599
      %v601 = vsel %vm393, %v539, 0.0
      %v602 = vadd.f32 %v600, %v601
      %603 = vadd.xlane.f32.xlu0 %v602
      %v604 = vpop.xlane.xlu0 %603
      %v605 = vrot.slane %v604, 4
      %v606 = vadd.f32 %v604, %v605
      %v607 = vrot.slane %v606, 2
      %v608 = vadd.f32 %v606, %v607
      %v609 = vrot.slane %v608, 1
      %v610 = vadd.f32 %v608, %v609
      %s611 = vtos %v610
      %v612 = vrcp.pop 16384.0
      %v613 = vmul.f32 16384.0, %v612
      %v614 = vsub.f32 1.0, %v613
      %v615 = vmul.f32 %v612, %v614
      %v616 = vadd.f32 %v612, %v615
      %vm617 = vweird.f32 %v612
      %v618 = vsel %vm617, %v612, %v616
      %s619 = vtos %v618
      %s620 = smul.f32 %s611, %s619
      %s621 = sadd.f32 %s620, 1e-05
      %v622 = vstv %s621
      %v623 = vrsqrt.pop %v622
      %v624 = vmul.f32 %v623, %v622
      %v625 = vmul.f32 %v624, %v623
      %v626 = vmul.f32 0.5, %v625
      %v627 = vsub.f32 1.5, %v626
      %v628 = vmul.f32 %v623, %v627
      %v629 = vmul.f32 %v622, %v628
      %vm630 = vcmp.eq.f32.partialorder %v622, inf
      %v631 = vsel %vm630, %v622, %v629
      %vm632 = vcmp.eq.f32.partialorder %v622, 0.0
      %v633 = vand.u32 %v622, 2147483648
      %v634 = vsel %vm632, %v633, %v631
      %s635 = vtos %v634
      %v636 = vstv %s635
      %v637 = vrcp.pop %v636
      %v638 = vmul.f32 %v636, %v637
      %v639 = vsub.f32 1.0, %v638
      %v640 = vmul.f32 %v637, %v639
      %v641 = vadd.f32 %v637, %v640
      %vm642 = vweird.f32 %v636
      %vm643 = vweird.f32 %v637
      %vm644 = vmor %vm642, %vm643
      %v645 = vsel %vm644, %v637, %v641
      %v646 = vand.u32 2147483647, %v636
      %vm647 = vcmp.eq.f32.partialorder %v646, 8.507059e+37
      %v648 = vand.u32 %v636, 2147483648
      %v649 = vor.u32 1.1754944e-38, %v648
      %v650 = vsel %vm647, %v649, %v645
      %s651 = vtos %v650
      %v652 = vstv %s651
      %v653 = vmul.f32 %v476, %v652
      %v654 = vmul.f32 %v477, %v652
      %v655 = vmul.f32 %v478, %v652
      %v656 = vmul.f32 %v479, %v652
      %v657 = vmul.f32 %v480, %v652
      %v658 = vmul.f32 %v481, %v652
      %v659 = vmul.f32 %v482, %v652
      %v660 = vmul.f32 %v483, %v652
      %v661 = vmul.f32 %v484, %v652
      %v662 = vmul.f32 %v485, %v652
      %v663 = vmul.f32 %v486, %v652
      %v664 = vmul.f32 %v487, %v652
      %v665 = vmul.f32 %v488, %v652
      %v666 = vmul.f32 %v489, %v652
      %v667 = vmul.f32 %v490, %v652
      %v668 = vmul.f32 %v491, %v652
      %v669 = vmul.f32 %v492, %v652
      %v670 = vmul.f32 %v493, %v652
      %v671 = vmul.f32 %v494, %v652
      %v672 = vmul.f32 %v495, %v652
      %v673 = vmul.f32 %v496, %v652
      %v674 = vmul.f32 %v497, %v652
      %v675 = vmul.f32 %v498, %v652
      %v676 = vmul.f32 %v499, %v652
      %v677 = vmul.f32 %v500, %v652
      %v678 = vmul.f32 %v501, %v652
      %v679 = vmul.f32 %v502, %v652
      %v680 = vmul.f32 %v503, %v652
      %v681 = vmul.f32 %v504, %v652
      %v682 = vmul.f32 %v505, %v652
      %v683 = vmul.f32 %v506, %v652
      %v684 = vmul.f32 %v507, %v652
      %v685 = vld [vmem:[%s3] sm:$0x1]
      %v686 = vperm.slane %v685, 0
      %v687 = vmul.f32 %v653, %v686
      %v688 = vmul.f32 %v654, %v686
      %v689 = vmul.f32 %v655, %v686
      %v690 = vmul.f32 %v656, %v686
      %v691 = vmul.f32 %v657, %v686
      %v692 = vmul.f32 %v658, %v686
      %v693 = vmul.f32 %v659, %v686
      %v694 = vmul.f32 %v660, %v686
      %v695 = vmul.f32 %v661, %v686
      %v696 = vmul.f32 %v662, %v686
      %v697 = vmul.f32 %v663, %v686
      %v698 = vmul.f32 %v664, %v686
      %v699 = vmul.f32 %v665, %v686
      %v700 = vmul.f32 %v666, %v686
      %v701 = vmul.f32 %v667, %v686
      %v702 = vmul.f32 %v668, %v686
      %v703 = vmul.f32 %v669, %v686
      %v704 = vmul.f32 %v670, %v686
      %v705 = vmul.f32 %v671, %v686
      %v706 = vmul.f32 %v672, %v686
      %v707 = vmul.f32 %v673, %v686
      %v708 = vmul.f32 %v674, %v686
      %v709 = vmul.f32 %v675, %v686
      %v710 = vmul.f32 %v676, %v686
      %v711 = vmul.f32 %v677, %v686
      %v712 = vmul.f32 %v678, %v686
      %v713 = vmul.f32 %v679, %v686
      %v714 = vmul.f32 %v680, %v686
      %v715 = vmul.f32 %v681, %v686
      %v716 = vmul.f32 %v682, %v686
      %v717 = vmul.f32 %v683, %v686
      %v718 = vmul.f32 %v684, %v686
      %v719 = vld [vmem:[%s3 + $0x1] sm:$0x1]
      %v720 = vperm.slane %v719, 0
      %v721 = vadd.f32 %v687, %v720
      %v722 = vadd.f32 %v688, %v720
      %v723 = vadd.f32 %v689, %v720
      %v724 = vadd.f32 %v690, %v720
      %v725 = vadd.f32 %v691, %v720
      %v726 = vadd.f32 %v692, %v720
      %v727 = vadd.f32 %v693, %v720
      %v728 = vadd.f32 %v694, %v720
      %v729 = vadd.f32 %v695, %v720
      %v730 = vadd.f32 %v696, %v720
      %v731 = vadd.f32 %v697, %v720
      %v732 = vadd.f32 %v698, %v720
      %v733 = vadd.f32 %v699, %v720
      %v734 = vadd.f32 %v700, %v720
      %v735 = vadd.f32 %v701, %v720
      %v736 = vadd.f32 %v702, %v720
      %v737 = vadd.f32 %v703, %v720
      %v738 = vadd.f32 %v704, %v720
      %v739 = vadd.f32 %v705, %v720
      %v740 = vadd.f32 %v706, %v720
      %v741 = vadd.f32 %v707, %v720
      %v742 = vadd.f32 %v708, %v720
      %v743 = vadd.f32 %v709, %v720
      %v744 = vadd.f32 %v710, %v720
      %v745 = vadd.f32 %v711, %v720
      %v746 = vadd.f32 %v712, %v720
      %v747 = vadd.f32 %v713, %v720
      %v748 = vadd.f32 %v714, %v720
      %v749 = vadd.f32 %v715, %v720
      %v750 = vadd.f32 %v716, %v720
      %v751 = vadd.f32 %v717, %v720
      %v752 = vadd.f32 %v718, %v720
      %v753 = vld [vmem:[%s3 + $0x2] sm:$0x1]
      %v754 = vstv %s635
      %v755 = vmul.f32 %v753, %v754
      %v756 = vld [vmem:[%s3 + $0x3] sm:$0x1]
      %v757 = vadd.f32 %v755, %v756
      %v758 = vld [vmem:[%s3 + $0x4] sm:$0x1]
      %v759 = vmul.f32 %v758, %v475
      %v760 = vld [vmem:[%s3 + $0x5] sm:$0x1]
      %v761 = vadd.f32 %v759, %v760
      %v762 = vpack.c.bf16 %v722, %v721
      %v763 = vpack.c.bf16 %v724, %v723
      %v764 = vpack.c.bf16 %v726, %v725
      %v765 = vpack.c.bf16 %v728, %v727
      %v766 = vpack.c.bf16 %v730, %v729
      %v767 = vpack.c.bf16 %v732, %v731
      %v768 = vpack.c.bf16 %v734, %v733
      %v769 = vpack.c.bf16 %v736, %v735
      %v770 = vpack.c.bf16 %v738, %v737
      %v771 = vpack.c.bf16 %v740, %v739
      %v772 = vpack.c.bf16 %v742, %v741
      %v773 = vpack.c.bf16 %v744, %v743
      %v774 = vpack.c.bf16 %v746, %v745
      %v775 = vpack.c.bf16 %v748, %v747
      %v776 = vpack.c.bf16 %v750, %v749
      %v777 = vpack.c.bf16 %v752, %v751
      %v778 = vld [vmem:[%s4] sm:$0xff]
      %v779 = vld [vmem:[%s4 + $0x8] sm:$0xff]
      %v780 = vld [vmem:[%s4 + $0x10] sm:$0xff]
      %v781 = vld [vmem:[%s4 + $0x18] sm:$0xff]
      %v782 = vld [vmem:[%s4 + $0x20] sm:$0xff]
      %v783 = vld [vmem:[%s4 + $0x28] sm:$0xff]
      %v784 = vld [vmem:[%s4 + $0x30] sm:$0xff]
      %v785 = vld [vmem:[%s4 + $0x38] sm:$0xff]
      %v786 = vld [vmem:[%s5] sm:$0x3]
      %v788 = vperm.slane %v786, 0
      %v789 = vperm.slane %v786, 1
      %v800 = vunpack.c.l.b16 %v778
      %v801 = vunpack.c.h.b16 %v778
      %v802 = vunpack.c.l.b16 %v779
      %v803 = vunpack.c.h.b16 %v779
      %v804 = vunpack.c.l.b16 %v780
      %v805 = vunpack.c.h.b16 %v780
      %v806 = vunpack.c.l.b16 %v781
      %v807 = vunpack.c.h.b16 %v781
      %v808 = vunpack.c.l.b16 %v782
      %v809 = vunpack.c.h.b16 %v782
      %v810 = vunpack.c.l.b16 %v783
      %v811 = vunpack.c.h.b16 %v783
      %v812 = vunpack.c.l.b16 %v784
      %v813 = vunpack.c.h.b16 %v784
      %v814 = vunpack.c.l.b16 %v785
      %v815 = vunpack.c.h.b16 %v785
      %v816 = vpack.c.b16 %v802, %v800
      %v817 = vpack.c.b16 %v803, %v801
      %v818 = vpack.c.b16 %v806, %v804
      %v819 = vpack.c.b16 %v807, %v805
      %v820 = vpack.c.b16 %v810, %v808
      %v821 = vpack.c.b16 %v811, %v809
      %v822 = vpack.c.b16 %v814, %v812
      %v823 = vpack.c.b16 %v815, %v813
      %v833 = vsel %vm393, %v762, 0
      %v836 = vsel %vm393, %v763, 0
      %v839 = vsel %vm393, %v764, 0
      %v842 = vsel %vm393, %v765, 0
      %v845 = vsel %vm393, %v766, 0
      %v848 = vsel %vm393, %v767, 0
      %v851 = vsel %vm393, %v768, 0
      %v854 = vsel %vm393, %v769, 0
      %v857 = vsel %vm393, %v770, 0
      %v860 = vsel %vm393, %v771, 0
      %v863 = vsel %vm393, %v772, 0
      %v866 = vsel %vm393, %v773, 0
      %v869 = vsel %vm393, %v774, 0
      %v872 = vsel %vm393, %v775, 0
      %v875 = vsel %vm393, %v776, 0
      %v878 = vsel %vm393, %v777, 0
      %880 = vmatpush.bf16.msra.mxu0 0
      %881 = vmatpush.bf16.msra.mxu0 0
      %882 = vmatpush.bf16.msra.mxu0 0
      %883 = vmatpush.bf16.msra.mxu0 0
      %884 = vmatpush.bf16.msra.mxu0 %v822
      %885 = vmatpush.bf16.msra.mxu0 %v820
      %886 = vmatpush.bf16.msra.mxu0 %v818
      %887 = vmatpush.bf16.msra.mxu0 %v816
      %888 = vmatmul.bf16.gmra.mxu0 %v833
      %v889 = vpop.f32.mrf.mxu0
      %v890 = vadd.f32 %v788, %v889
      %v891 = vpop.f32.mrf.mxu0
      %v892 = vadd.f32 %v788, %v891
      %893 = vmatmul.bf16.gmra.mxu0 %v836
      %v894 = vpop.f32.mrf.mxu0
      %v895 = vadd.f32 %v788, %v894
      %v896 = vpop.f32.mrf.mxu0
      %v897 = vadd.f32 %v788, %v896
      %898 = vmatmul.bf16.gmra.mxu0 %v839
      %v899 = vpop.f32.mrf.mxu0
      %v900 = vadd.f32 %v788, %v899
      %v901 = vpop.f32.mrf.mxu0
      %v902 = vadd.f32 %v788, %v901
      %903 = vmatmul.bf16.gmra.mxu0 %v842
      %v904 = vpop.f32.mrf.mxu0
      %v905 = vadd.f32 %v788, %v904
      %v906 = vpop.f32.mrf.mxu0
      %v907 = vadd.f32 %v788, %v906
      %908 = vmatmul.bf16.gmra.mxu0 %v845
      %v909 = vpop.f32.mrf.mxu0
      %v910 = vadd.f32 %v788, %v909
      %v911 = vpop.f32.mrf.mxu0
      %v912 = vadd.f32 %v788, %v911
      %913 = vmatmul.bf16.gmra.mxu0 %v848
      %v914 = vpop.f32.mrf.mxu0
      %v915 = vadd.f32 %v788, %v914
      %v916 = vpop.f32.mrf.mxu0
      %v917 = vadd.f32 %v788, %v916
      %918 = vmatmul.bf16.gmra.mxu0 %v851
      %v919 = vpop.f32.mrf.mxu0
      %v920 = vadd.f32 %v788, %v919
      %v921 = vpop.f32.mrf.mxu0
      %v922 = vadd.f32 %v788, %v921
      %923 = vmatmul.bf16.gmra.mxu0 %v854
      %v924 = vpop.f32.mrf.mxu0
      %v925 = vadd.f32 %v788, %v924
      %v926 = vpop.f32.mrf.mxu0
      %v927 = vadd.f32 %v788, %v926
      %928 = vmatmul.bf16.gmra.mxu0 %v857
      %v929 = vpop.f32.mrf.mxu0
      %v930 = vadd.f32 %v788, %v929
      %v931 = vpop.f32.mrf.mxu0
      %v932 = vadd.f32 %v788, %v931
      %933 = vmatmul.bf16.gmra.mxu0 %v860
      %v934 = vpop.f32.mrf.mxu0
      %v935 = vadd.f32 %v788, %v934
      %v936 = vpop.f32.mrf.mxu0
      %v937 = vadd.f32 %v788, %v936
      %938 = vmatmul.bf16.gmra.mxu0 %v863
      %v939 = vpop.f32.mrf.mxu0
      %v940 = vadd.f32 %v788, %v939
      %v941 = vpop.f32.mrf.mxu0
      %v942 = vadd.f32 %v788, %v941
      %943 = vmatmul.bf16.gmra.mxu0 %v866
      %v944 = vpop.f32.mrf.mxu0
      %v945 = vadd.f32 %v788, %v944
      %v946 = vpop.f32.mrf.mxu0
      %v947 = vadd.f32 %v788, %v946
      %948 = vmatmul.bf16.gmra.mxu0 %v869
      %v949 = vpop.f32.mrf.mxu0
      %v950 = vadd.f32 %v788, %v949
      %v951 = vpop.f32.mrf.mxu0
      %v952 = vadd.f32 %v788, %v951
      %953 = vmatmul.bf16.gmra.mxu0 %v872
      %v954 = vpop.f32.mrf.mxu0
      %v955 = vadd.f32 %v788, %v954
      %v956 = vpop.f32.mrf.mxu0
      %v957 = vadd.f32 %v788, %v956
      %958 = vmatmul.bf16.gmra.mxu0 %v875
      %v959 = vpop.f32.mrf.mxu0
      %v960 = vadd.f32 %v788, %v959
      %v961 = vpop.f32.mrf.mxu0
      %v962 = vadd.f32 %v788, %v961
      %963 = vmatmul.bf16.gmra.mxu0 %v878
      %v964 = vpop.f32.mrf.mxu0
      %v965 = vadd.f32 %v788, %v964
      %v966 = vpop.f32.mrf.mxu0
      %v967 = vadd.f32 %v788, %v966
      %968 = vdwg.mxu0
      %969 = vmatpush.bf16.msra.mxu0 0
      %970 = vmatpush.bf16.msra.mxu0 0
      %971 = vmatpush.bf16.msra.mxu0 0
      %972 = vmatpush.bf16.msra.mxu0 0
      %973 = vmatpush.bf16.msra.mxu0 %v823
      %974 = vmatpush.bf16.msra.mxu0 %v821
      %975 = vmatpush.bf16.msra.mxu0 %v819
      %976 = vmatpush.bf16.msra.mxu0 %v817
      %977 = vmatmul.bf16.gmra.mxu0 %v833
      %v978 = vpop.f32.mrf.mxu0
      %v979 = vadd.f32 %v789, %v978
      %v980 = vpop.f32.mrf.mxu0
      %v981 = vadd.f32 %v789, %v980
      %982 = vmatmul.bf16.gmra.mxu0 %v836
      %v983 = vpop.f32.mrf.mxu0
      %v984 = vadd.f32 %v789, %v983
      %v985 = vpop.f32.mrf.mxu0
      %v986 = vadd.f32 %v789, %v985
      %987 = vmatmul.bf16.gmra.mxu0 %v839
      %v988 = vpop.f32.mrf.mxu0
      %v989 = vadd.f32 %v789, %v988
      %v990 = vpop.f32.mrf.mxu0
      %v991 = vadd.f32 %v789, %v990
      %992 = vmatmul.bf16.gmra.mxu0 %v842
      %v993 = vpop.f32.mrf.mxu0
      %v994 = vadd.f32 %v789, %v993
      %v995 = vpop.f32.mrf.mxu0
      %v996 = vadd.f32 %v789, %v995
      %997 = vmatmul.bf16.gmra.mxu0 %v845
      %v998 = vpop.f32.mrf.mxu0
      %v999 = vadd.f32 %v789, %v998
      %v1000 = vpop.f32.mrf.mxu0
      %v1001 = vadd.f32 %v789, %v1000
      %1002 = vmatmul.bf16.gmra.mxu0 %v848
      %v1003 = vpop.f32.mrf.mxu0
      %v1004 = vadd.f32 %v789, %v1003
      %v1005 = vpop.f32.mrf.mxu0
      %v1006 = vadd.f32 %v789, %v1005
      %1007 = vmatmul.bf16.gmra.mxu0 %v851
      %v1008 = vpop.f32.mrf.mxu0
      %v1009 = vadd.f32 %v789, %v1008
      %v1010 = vpop.f32.mrf.mxu0
      %v1011 = vadd.f32 %v789, %v1010
      %1012 = vmatmul.bf16.gmra.mxu0 %v854
      %v1013 = vpop.f32.mrf.mxu0
      %v1014 = vadd.f32 %v789, %v1013
      %v1015 = vpop.f32.mrf.mxu0
      %v1016 = vadd.f32 %v789, %v1015
      %1017 = vmatmul.bf16.gmra.mxu0 %v857
      %v1018 = vpop.f32.mrf.mxu0
      %v1019 = vadd.f32 %v789, %v1018
      %v1020 = vpop.f32.mrf.mxu0
      %v1021 = vadd.f32 %v789, %v1020
      %1022 = vmatmul.bf16.gmra.mxu0 %v860
      %v1023 = vpop.f32.mrf.mxu0
      %v1024 = vadd.f32 %v789, %v1023
      %v1025 = vpop.f32.mrf.mxu0
      %v1026 = vadd.f32 %v789, %v1025
      %1027 = vmatmul.bf16.gmra.mxu0 %v863
      %v1028 = vpop.f32.mrf.mxu0
      %v1029 = vadd.f32 %v789, %v1028
      %v1030 = vpop.f32.mrf.mxu0
      %v1031 = vadd.f32 %v789, %v1030
      %1032 = vmatmul.bf16.gmra.mxu0 %v866
      %v1033 = vpop.f32.mrf.mxu0
      %v1034 = vadd.f32 %v789, %v1033
      %v1035 = vpop.f32.mrf.mxu0
      %v1036 = vadd.f32 %v789, %v1035
      %1037 = vmatmul.bf16.gmra.mxu0 %v869
      %v1038 = vpop.f32.mrf.mxu0
      %v1039 = vadd.f32 %v789, %v1038
      %v1040 = vpop.f32.mrf.mxu0
      %v1041 = vadd.f32 %v789, %v1040
      %1042 = vmatmul.bf16.gmra.mxu0 %v872
      %v1043 = vpop.f32.mrf.mxu0
      %v1044 = vadd.f32 %v789, %v1043
      %v1045 = vpop.f32.mrf.mxu0
      %v1046 = vadd.f32 %v789, %v1045
      %1047 = vmatmul.bf16.gmra.mxu0 %v875
      %v1048 = vpop.f32.mrf.mxu0
      %v1049 = vadd.f32 %v789, %v1048
      %v1050 = vpop.f32.mrf.mxu0
      %v1051 = vadd.f32 %v789, %v1050
      %1052 = vmatmul.bf16.gmra.mxu0 %v878
      %v1053 = vpop.f32.mrf.mxu0
      %v1054 = vadd.f32 %v789, %v1053
      %v1055 = vpop.f32.mrf.mxu0
      %v1056 = vadd.f32 %v789, %v1055
      %1057 = vdwg.mxu0
      %v1058 = vpack.c.bf16 %v979, %v890
      %v1059 = vpack.c.bf16 %v981, %v892
      %v1060 = vpack.c.bf16 %v984, %v895
      %v1061 = vpack.c.bf16 %v986, %v897
      %v1062 = vpack.c.bf16 %v989, %v900
      %v1063 = vpack.c.bf16 %v991, %v902
      %v1064 = vpack.c.bf16 %v994, %v905
      %v1065 = vpack.c.bf16 %v996, %v907
      %v1066 = vpack.c.bf16 %v999, %v910
      %v1067 = vpack.c.bf16 %v1001, %v912
      %v1068 = vpack.c.bf16 %v1004, %v915
      %v1069 = vpack.c.bf16 %v1006, %v917
      %v1070 = vpack.c.bf16 %v1009, %v920
      %v1071 = vpack.c.bf16 %v1011, %v922
      %v1072 = vpack.c.bf16 %v1014, %v925
      %v1073 = vpack.c.bf16 %v1016, %v927
      %v1074 = vpack.c.bf16 %v1019, %v930
      %v1075 = vpack.c.bf16 %v1021, %v932
      %v1076 = vpack.c.bf16 %v1024, %v935
      %v1077 = vpack.c.bf16 %v1026, %v937
      %v1078 = vpack.c.bf16 %v1029, %v940
      %v1079 = vpack.c.bf16 %v1031, %v942
      %v1080 = vpack.c.bf16 %v1034, %v945
      %v1081 = vpack.c.bf16 %v1036, %v947
      %v1082 = vpack.c.bf16 %v1039, %v950
      %v1083 = vpack.c.bf16 %v1041, %v952
      %v1084 = vpack.c.bf16 %v1044, %v955
      %v1085 = vpack.c.bf16 %v1046, %v957
      %v1086 = vpack.c.bf16 %v1049, %v960
      %v1087 = vpack.c.bf16 %v1051, %v962
      %v1088 = vpack.c.bf16 %v1054, %v965
      %v1089 = vpack.c.bf16 %v1056, %v967
      %v1090 = vld [vmem:[%s2] sm:$0xf]
      %v1091 = vld [vmem:[%s2 + $0x4] sm:$0xf]
      %v1092 = vld [vmem:[%s2 + $0x8] sm:$0xf]
      %v1093 = vld [vmem:[%s2 + $0xc] sm:$0xf]
      %v1094 = vld [vmem:[%s2 + $0x10] sm:$0xf]
      %v1095 = vld [vmem:[%s2 + $0x14] sm:$0xf]
      %v1096 = vld [vmem:[%s2 + $0x18] sm:$0xf]
      %v1097 = vld [vmem:[%s2 + $0x1c] sm:$0xf]
      %v1098 = vld [vmem:[%s2 + $0x20] sm:$0xf]
      %v1099 = vld [vmem:[%s2 + $0x24] sm:$0xf]
      %v1100 = vld [vmem:[%s2 + $0x28] sm:$0xf]
      %v1101 = vld [vmem:[%s2 + $0x2c] sm:$0xf]
      %v1102 = vld [vmem:[%s2 + $0x30] sm:$0xf]
      %v1103 = vld [vmem:[%s2 + $0x34] sm:$0xf]
      %v1104 = vld [vmem:[%s2 + $0x38] sm:$0xf]
      %v1105 = vld [vmem:[%s2 + $0x3c] sm:$0xf]
      %v1106 = vld [vmem:[%s2 + $0x40] sm:$0xf]
      %v1107 = vld [vmem:[%s2 + $0x44] sm:$0xf]
      %v1108 = vld [vmem:[%s2 + $0x48] sm:$0xf]
      %v1109 = vld [vmem:[%s2 + $0x4c] sm:$0xf]
      %v1110 = vld [vmem:[%s2 + $0x50] sm:$0xf]
      %v1111 = vld [vmem:[%s2 + $0x54] sm:$0xf]
      %v1112 = vld [vmem:[%s2 + $0x58] sm:$0xf]
      %v1113 = vld [vmem:[%s2 + $0x5c] sm:$0xf]
      %v1114 = vld [vmem:[%s2 + $0x60] sm:$0xf]
      %v1115 = vld [vmem:[%s2 + $0x64] sm:$0xf]
      %v1116 = vld [vmem:[%s2 + $0x68] sm:$0xf]
      %v1117 = vld [vmem:[%s2 + $0x6c] sm:$0xf]
      %v1118 = vld [vmem:[%s2 + $0x70] sm:$0xf]
      %v1119 = vld [vmem:[%s2 + $0x74] sm:$0xf]
      %v1120 = vld [vmem:[%s2 + $0x78] sm:$0xf]
      %v1121 = vld [vmem:[%s2 + $0x7c] sm:$0xf]
      %v1122 = vld [vmem:[%s2 + $0x80] sm:$0xf]
      %v1123 = vld [vmem:[%s2 + $0x84] sm:$0xf]
      %v1124 = vld [vmem:[%s2 + $0x88] sm:$0xf]
      %v1125 = vld [vmem:[%s2 + $0x8c] sm:$0xf]
      %v1126 = vld [vmem:[%s2 + $0x90] sm:$0xf]
      %v1127 = vld [vmem:[%s2 + $0x94] sm:$0xf]
      %v1128 = vld [vmem:[%s2 + $0x98] sm:$0xf]
      %v1129 = vld [vmem:[%s2 + $0x9c] sm:$0xf]
      %v1130 = vld [vmem:[%s2 + $0xa0] sm:$0xf]
      %v1131 = vld [vmem:[%s2 + $0xa4] sm:$0xf]
      %v1132 = vld [vmem:[%s2 + $0xa8] sm:$0xf]
      %v1133 = vld [vmem:[%s2 + $0xac] sm:$0xf]
      %v1134 = vld [vmem:[%s2 + $0xb0] sm:$0xf]
      %v1135 = vld [vmem:[%s2 + $0xb4] sm:$0xf]
      %v1136 = vld [vmem:[%s2 + $0xb8] sm:$0xf]
      %v1137 = vld [vmem:[%s2 + $0xbc] sm:$0xf]
      %v1138 = vld [vmem:[%s2 + $0xc0] sm:$0xf]
      %v1139 = vld [vmem:[%s2 + $0xc4] sm:$0xf]
      %v1140 = vld [vmem:[%s2 + $0xc8] sm:$0xf]
      %v1141 = vld [vmem:[%s2 + $0xcc] sm:$0xf]
      %v1142 = vld [vmem:[%s2 + $0xd0] sm:$0xf]
      %v1143 = vld [vmem:[%s2 + $0xd4] sm:$0xf]
      %v1144 = vld [vmem:[%s2 + $0xd8] sm:$0xf]
      %v1145 = vld [vmem:[%s2 + $0xdc] sm:$0xf]
      %v1146 = vld [vmem:[%s2 + $0xe0] sm:$0xf]
      %v1147 = vld [vmem:[%s2 + $0xe4] sm:$0xf]
      %v1148 = vld [vmem:[%s2 + $0xe8] sm:$0xf]
      %v1149 = vld [vmem:[%s2 + $0xec] sm:$0xf]
      %v1150 = vld [vmem:[%s2 + $0xf0] sm:$0xf]
      %v1151 = vld [vmem:[%s2 + $0xf4] sm:$0xf]
      %v1152 = vld [vmem:[%s2 + $0xf8] sm:$0xf]
      %v1153 = vld [vmem:[%s2 + $0xfc] sm:$0xf]
      %v1186 = vunpack.c.l.b16 %v1058
      %v1187 = vunpack.c.l.b16 %v1059
      %v1188 = vunpack.c.l.b16 %v1060
      %v1189 = vunpack.c.l.b16 %v1061
      %v1190 = vunpack.c.l.b16 %v1062
      %v1191 = vunpack.c.l.b16 %v1063
      %v1192 = vunpack.c.l.b16 %v1064
      %v1193 = vunpack.c.l.b16 %v1065
      %v1194 = vunpack.c.l.b16 %v1066
      %v1195 = vunpack.c.l.b16 %v1067
      %v1196 = vunpack.c.l.b16 %v1068
      %v1197 = vunpack.c.l.b16 %v1069
      %v1198 = vunpack.c.l.b16 %v1070
      %v1199 = vunpack.c.l.b16 %v1071
      %v1200 = vunpack.c.l.b16 %v1072
      %v1201 = vunpack.c.l.b16 %v1073
      %v1202 = vunpack.c.l.b16 %v1074
      %v1203 = vunpack.c.l.b16 %v1075
      %v1204 = vunpack.c.l.b16 %v1076
      %v1205 = vunpack.c.l.b16 %v1077
      %v1206 = vunpack.c.l.b16 %v1078
      %v1207 = vunpack.c.l.b16 %v1079
      %v1208 = vunpack.c.l.b16 %v1080
      %v1209 = vunpack.c.l.b16 %v1081
      %v1210 = vunpack.c.l.b16 %v1082
      %v1211 = vunpack.c.l.b16 %v1083
      %v1212 = vunpack.c.l.b16 %v1084
      %v1213 = vunpack.c.l.b16 %v1085
      %v1214 = vunpack.c.l.b16 %v1086
      %v1215 = vunpack.c.l.b16 %v1087
      %v1216 = vunpack.c.l.b16 %v1088
      %v1217 = vunpack.c.l.b16 %v1089
      %v1218 = vpack.c.b16 %v1187, %v1186
      %v1219 = vpack.c.b16 %v1189, %v1188
      %v1220 = vpack.c.b16 %v1191, %v1190
      %v1221 = vpack.c.b16 %v1193, %v1192
      %v1222 = vpack.c.b16 %v1195, %v1194
      %v1223 = vpack.c.b16 %v1197, %v1196
      %v1224 = vpack.c.b16 %v1199, %v1198
      %v1225 = vpack.c.b16 %v1201, %v1200
      %v1226 = vpack.c.b16 %v1203, %v1202
      %v1227 = vpack.c.b16 %v1205, %v1204
      %v1228 = vpack.c.b16 %v1207, %v1206
      %v1229 = vpack.c.b16 %v1209, %v1208
      %v1230 = vpack.c.b16 %v1211, %v1210
      %v1231 = vpack.c.b16 %v1213, %v1212
      %v1232 = vpack.c.b16 %v1215, %v1214
      %v1233 = vpack.c.b16 %v1217, %v1216
      %v1250 = vunpack.c.l.bf16 %v1218
      %v1251 = vunpack.c.h.bf16 %v1218
      %v1252 = vunpack.c.l.bf16 %v1219
      %v1253 = vunpack.c.h.bf16 %v1219
      %v1254 = vunpack.c.l.bf16 %v1220
      %v1255 = vunpack.c.h.bf16 %v1220
      %v1256 = vunpack.c.l.bf16 %v1221
      %v1257 = vunpack.c.h.bf16 %v1221
      %v1258 = vunpack.c.l.bf16 %v1222
      %v1259 = vunpack.c.h.bf16 %v1222
      %v1260 = vunpack.c.l.bf16 %v1223
      %v1261 = vunpack.c.h.bf16 %v1223
      %v1262 = vunpack.c.l.bf16 %v1224
      %v1263 = vunpack.c.h.bf16 %v1224
      %v1264 = vunpack.c.l.bf16 %v1225
      %v1265 = vunpack.c.h.bf16 %v1225
      %v1266 = vunpack.c.l.bf16 %v1226
      %v1267 = vunpack.c.h.bf16 %v1226
      %v1268 = vunpack.c.l.bf16 %v1227
      %v1269 = vunpack.c.h.bf16 %v1227
      %v1270 = vunpack.c.l.bf16 %v1228
      %v1271 = vunpack.c.h.bf16 %v1228
      %v1272 = vunpack.c.l.bf16 %v1229
      %v1273 = vunpack.c.h.bf16 %v1229
      %v1274 = vunpack.c.l.bf16 %v1230
      %v1275 = vunpack.c.h.bf16 %v1230
      %v1276 = vunpack.c.l.bf16 %v1231
      %v1277 = vunpack.c.h.bf16 %v1231
      %v1278 = vunpack.c.l.bf16 %v1232
      %v1279 = vunpack.c.h.bf16 %v1232
      %v1280 = vunpack.c.l.bf16 %v1233
      %v1281 = vunpack.c.h.bf16 %v1233
      %v1282 = vunpack.c.l.bf16 %v1090
      %v1283 = vunpack.c.l.bf16 %v1091
      %v1284 = vunpack.c.l.bf16 %v1092
      %v1285 = vunpack.c.l.bf16 %v1093
      %v1286 = vunpack.c.l.bf16 %v1094
      %v1287 = vunpack.c.l.bf16 %v1095
      %v1288 = vunpack.c.l.bf16 %v1096
      %v1289 = vunpack.c.l.bf16 %v1097
      %v1290 = vunpack.c.l.bf16 %v1098
      %v1291 = vunpack.c.l.bf16 %v1099
      %v1292 = vunpack.c.l.bf16 %v1100
      %v1293 = vunpack.c.l.bf16 %v1101
      %v1294 = vunpack.c.l.bf16 %v1102
      %v1295 = vunpack.c.l.bf16 %v1103
      %v1296 = vunpack.c.l.bf16 %v1104
      %v1297 = vunpack.c.l.bf16 %v1105
      %v1298 = vunpack.c.l.bf16 %v1106
      %v1299 = vunpack.c.l.bf16 %v1107
      %v1300 = vunpack.c.l.bf16 %v1108
      %v1301 = vunpack.c.l.bf16 %v1109
      %v1302 = vunpack.c.l.bf16 %v1110
      %v1303 = vunpack.c.l.bf16 %v1111
      %v1304 = vunpack.c.l.bf16 %v1112
      %v1305 = vunpack.c.l.bf16 %v1113
      %v1306 = vunpack.c.l.bf16 %v1114
      %v1307 = vunpack.c.l.bf16 %v1115
      %v1308 = vunpack.c.l.bf16 %v1116
      %v1309 = vunpack.c.l.bf16 %v1117
      %v1310 = vunpack.c.l.bf16 %v1118
      %v1311 = vunpack.c.l.bf16 %v1119
      %v1312 = vunpack.c.l.bf16 %v1120
      %v1313 = vunpack.c.l.bf16 %v1121
      %v1314 = vunpack.c.l.bf16 %v1122
      %v1315 = vunpack.c.l.bf16 %v1123
      %v1316 = vunpack.c.l.bf16 %v1124
      %v1317 = vunpack.c.l.bf16 %v1125
      %v1318 = vunpack.c.l.bf16 %v1126
      %v1319 = vunpack.c.l.bf16 %v1127
      %v1320 = vunpack.c.l.bf16 %v1128
      %v1321 = vunpack.c.l.bf16 %v1129
      %v1322 = vunpack.c.l.bf16 %v1130
      %v1323 = vunpack.c.l.bf16 %v1131
      %v1324 = vunpack.c.l.bf16 %v1132
      %v1325 = vunpack.c.l.bf16 %v1133
      %v1326 = vunpack.c.l.bf16 %v1134
      %v1327 = vunpack.c.l.bf16 %v1135
      %v1328 = vunpack.c.l.bf16 %v1136
      %v1329 = vunpack.c.l.bf16 %v1137
      %v1330 = vunpack.c.l.bf16 %v1138
      %v1331 = vunpack.c.l.bf16 %v1139
      %v1332 = vunpack.c.l.bf16 %v1140
      %v1333 = vunpack.c.l.bf16 %v1141
      %v1334 = vunpack.c.l.bf16 %v1142
      %v1335 = vunpack.c.l.bf16 %v1143
      %v1336 = vunpack.c.l.bf16 %v1144
      %v1337 = vunpack.c.l.bf16 %v1145
      %v1338 = vunpack.c.l.bf16 %v1146
      %v1339 = vunpack.c.l.bf16 %v1147
      %v1340 = vunpack.c.l.bf16 %v1148
      %v1341 = vunpack.c.l.bf16 %v1149
      %v1342 = vunpack.c.l.bf16 %v1150
      %v1343 = vunpack.c.l.bf16 %v1151
      %v1344 = vunpack.c.l.bf16 %v1152
      %v1345 = vunpack.c.l.bf16 %v1153
      %1410 = vrot.lane.b32.xlu0 %v1282, 64
      %v1411 = vpop.permute.xlu0 %1410
      %1412 = vrot.lane.b32.xlu0 %v1283, 64
      %v1413 = vpop.permute.xlu0 %1412
      %1414 = vrot.lane.b32.xlu0 %v1284, 64
      %v1415 = vpop.permute.xlu0 %1414
      %1416 = vrot.lane.b32.xlu0 %v1285, 64
      %v1417 = vpop.permute.xlu0 %1416
      %1418 = vrot.lane.b32.xlu0 %v1286, 64
      %v1419 = vpop.permute.xlu0 %1418
      %1420 = vrot.lane.b32.xlu0 %v1287, 64
      %v1421 = vpop.permute.xlu0 %1420
      %1422 = vrot.lane.b32.xlu0 %v1288, 64
      %v1423 = vpop.permute.xlu0 %1422
      %1424 = vrot.lane.b32.xlu0 %v1289, 64
      %v1425 = vpop.permute.xlu0 %1424
      %1426 = vrot.lane.b32.xlu0 %v1290, 64
      %v1427 = vpop.permute.xlu0 %1426
      %1428 = vrot.lane.b32.xlu0 %v1291, 64
      %v1429 = vpop.permute.xlu0 %1428
      %1430 = vrot.lane.b32.xlu0 %v1292, 64
      %v1431 = vpop.permute.xlu0 %1430
      %1432 = vrot.lane.b32.xlu0 %v1293, 64
      %v1433 = vpop.permute.xlu0 %1432
      %1434 = vrot.lane.b32.xlu0 %v1294, 64
      %v1435 = vpop.permute.xlu0 %1434
      %1436 = vrot.lane.b32.xlu0 %v1295, 64
      %v1437 = vpop.permute.xlu0 %1436
      %1438 = vrot.lane.b32.xlu0 %v1296, 64
      %v1439 = vpop.permute.xlu0 %1438
      %1440 = vrot.lane.b32.xlu0 %v1297, 64
      %v1441 = vpop.permute.xlu0 %1440
      %1442 = vrot.lane.b32.xlu0 %v1298, 64
      %v1443 = vpop.permute.xlu0 %1442
      %1444 = vrot.lane.b32.xlu0 %v1299, 64
      %v1445 = vpop.permute.xlu0 %1444
      %1446 = vrot.lane.b32.xlu0 %v1300, 64
      %v1447 = vpop.permute.xlu0 %1446
      %1448 = vrot.lane.b32.xlu0 %v1301, 64
      %v1449 = vpop.permute.xlu0 %1448
      %1450 = vrot.lane.b32.xlu0 %v1302, 64
      %v1451 = vpop.permute.xlu0 %1450
      %1452 = vrot.lane.b32.xlu0 %v1303, 64
      %v1453 = vpop.permute.xlu0 %1452
      %1454 = vrot.lane.b32.xlu0 %v1304, 64
      %v1455 = vpop.permute.xlu0 %1454
      %1456 = vrot.lane.b32.xlu0 %v1305, 64
      %v1457 = vpop.permute.xlu0 %1456
      %1458 = vrot.lane.b32.xlu0 %v1306, 64
      %v1459 = vpop.permute.xlu0 %1458
      %1460 = vrot.lane.b32.xlu0 %v1307, 64
      %v1461 = vpop.permute.xlu0 %1460
      %1462 = vrot.lane.b32.xlu0 %v1308, 64
      %v1463 = vpop.permute.xlu0 %1462
      %1464 = vrot.lane.b32.xlu0 %v1309, 64
      %v1465 = vpop.permute.xlu0 %1464
      %1466 = vrot.lane.b32.xlu0 %v1310, 64
      %v1467 = vpop.permute.xlu0 %1466
      %1468 = vrot.lane.b32.xlu0 %v1311, 64
      %v1469 = vpop.permute.xlu0 %1468
      %1470 = vrot.lane.b32.xlu0 %v1312, 64
      %v1471 = vpop.permute.xlu0 %1470
      %1472 = vrot.lane.b32.xlu0 %v1313, 64
      %v1473 = vpop.permute.xlu0 %1472
      %1474 = vrot.lane.b32.xlu0 %v1314, 64
      %v1475 = vpop.permute.xlu0 %1474
      %1476 = vrot.lane.b32.xlu0 %v1315, 64
      %v1477 = vpop.permute.xlu0 %1476
      %1478 = vrot.lane.b32.xlu0 %v1316, 64
      %v1479 = vpop.permute.xlu0 %1478
      %1480 = vrot.lane.b32.xlu0 %v1317, 64
      %v1481 = vpop.permute.xlu0 %1480
      %1482 = vrot.lane.b32.xlu0 %v1318, 64
      %v1483 = vpop.permute.xlu0 %1482
      %1484 = vrot.lane.b32.xlu0 %v1319, 64
      %v1485 = vpop.permute.xlu0 %1484
      %1486 = vrot.lane.b32.xlu0 %v1320, 64
      %v1487 = vpop.permute.xlu0 %1486
      %1488 = vrot.lane.b32.xlu0 %v1321, 64
      %v1489 = vpop.permute.xlu0 %1488
      %1490 = vrot.lane.b32.xlu0 %v1322, 64
      %v1491 = vpop.permute.xlu0 %1490
      %1492 = vrot.lane.b32.xlu0 %v1323, 64
      %v1493 = vpop.permute.xlu0 %1492
      %1494 = vrot.lane.b32.xlu0 %v1324, 64
      %v1495 = vpop.permute.xlu0 %1494
      %1496 = vrot.lane.b32.xlu0 %v1325, 64
      %v1497 = vpop.permute.xlu0 %1496
      %1498 = vrot.lane.b32.xlu0 %v1326, 64
      %v1499 = vpop.permute.xlu0 %1498
      %1500 = vrot.lane.b32.xlu0 %v1327, 64
      %v1501 = vpop.permute.xlu0 %1500
      %1502 = vrot.lane.b32.xlu0 %v1328, 64
      %v1503 = vpop.permute.xlu0 %1502
      %1504 = vrot.lane.b32.xlu0 %v1329, 64
      %v1505 = vpop.permute.xlu0 %1504
      %1506 = vrot.lane.b32.xlu0 %v1330, 64
      %v1507 = vpop.permute.xlu0 %1506
      %1508 = vrot.lane.b32.xlu0 %v1331, 64
      %v1509 = vpop.permute.xlu0 %1508
      %1510 = vrot.lane.b32.xlu0 %v1332, 64
      %v1511 = vpop.permute.xlu0 %1510
      %1512 = vrot.lane.b32.xlu0 %v1333, 64
      %v1513 = vpop.permute.xlu0 %1512
      %1514 = vrot.lane.b32.xlu0 %v1334, 64
      %v1515 = vpop.permute.xlu0 %1514
      %1516 = vrot.lane.b32.xlu0 %v1335, 64
      %v1517 = vpop.permute.xlu0 %1516
      %1518 = vrot.lane.b32.xlu0 %v1336, 64
      %v1519 = vpop.permute.xlu0 %1518
      %1520 = vrot.lane.b32.xlu0 %v1337, 64
      %v1521 = vpop.permute.xlu0 %1520
      %1522 = vrot.lane.b32.xlu0 %v1338, 64
      %v1523 = vpop.permute.xlu0 %1522
      %1524 = vrot.lane.b32.xlu0 %v1339, 64
      %v1525 = vpop.permute.xlu0 %1524
      %1526 = vrot.lane.b32.xlu0 %v1340, 64
      %v1527 = vpop.permute.xlu0 %1526
      %1528 = vrot.lane.b32.xlu0 %v1341, 64
      %v1529 = vpop.permute.xlu0 %1528
      %1530 = vrot.lane.b32.xlu0 %v1342, 64
      %v1531 = vpop.permute.xlu0 %1530
      %1532 = vrot.lane.b32.xlu0 %v1343, 64
      %v1533 = vpop.permute.xlu0 %1532
      %1534 = vrot.lane.b32.xlu0 %v1344, 64
      %v1535 = vpop.permute.xlu0 %1534
      %1536 = vrot.lane.b32.xlu0 %v1345, 64
      %v1537 = vpop.permute.xlu0 %1536
      %v1602 = vmul.f32 %v1250, %v1411
      %v1603 = vmul.f32 %v1251, %v1413
      %v1604 = vmul.f32 %v1252, %v1415
      %v1605 = vmul.f32 %v1253, %v1417
      %v1606 = vmul.f32 %v1254, %v1419
      %v1607 = vmul.f32 %v1255, %v1421
      %v1608 = vmul.f32 %v1256, %v1423
      %v1609 = vmul.f32 %v1257, %v1425
      %v1610 = vmul.f32 %v1250, %v1427
      %v1611 = vmul.f32 %v1251, %v1429
      %v1612 = vmul.f32 %v1252, %v1431
      %v1613 = vmul.f32 %v1253, %v1433
      %v1614 = vmul.f32 %v1254, %v1435
      %v1615 = vmul.f32 %v1255, %v1437
      %v1616 = vmul.f32 %v1256, %v1439
      %v1617 = vmul.f32 %v1257, %v1441
      %v1618 = vmul.f32 %v1250, %v1443
      %v1619 = vmul.f32 %v1251, %v1445
      %v1620 = vmul.f32 %v1252, %v1447
      %v1621 = vmul.f32 %v1253, %v1449
      %v1622 = vmul.f32 %v1254, %v1451
      %v1623 = vmul.f32 %v1255, %v1453
      %v1624 = vmul.f32 %v1256, %v1455
      %v1625 = vmul.f32 %v1257, %v1457
      %v1626 = vmul.f32 %v1250, %v1459
      %v1627 = vmul.f32 %v1251, %v1461
      %v1628 = vmul.f32 %v1252, %v1463
      %v1629 = vmul.f32 %v1253, %v1465
      %v1630 = vmul.f32 %v1254, %v1467
      %v1631 = vmul.f32 %v1255, %v1469
      %v1632 = vmul.f32 %v1256, %v1471
      %v1633 = vmul.f32 %v1257, %v1473
      %v1634 = vmul.f32 %v1250, %v1475
      %v1635 = vmul.f32 %v1251, %v1477
      %v1636 = vmul.f32 %v1252, %v1479
      %v1637 = vmul.f32 %v1253, %v1481
      %v1638 = vmul.f32 %v1254, %v1483
      %v1639 = vmul.f32 %v1255, %v1485
      %v1640 = vmul.f32 %v1256, %v1487
      %v1641 = vmul.f32 %v1257, %v1489
      %v1642 = vmul.f32 %v1250, %v1491
      %v1643 = vmul.f32 %v1251, %v1493
      %v1644 = vmul.f32 %v1252, %v1495
      %v1645 = vmul.f32 %v1253, %v1497
      %v1646 = vmul.f32 %v1254, %v1499
      %v1647 = vmul.f32 %v1255, %v1501
      %v1648 = vmul.f32 %v1256, %v1503
      %v1649 = vmul.f32 %v1257, %v1505
      %v1650 = vmul.f32 %v1250, %v1507
      %v1651 = vmul.f32 %v1251, %v1509
      %v1652 = vmul.f32 %v1252, %v1511
      %v1653 = vmul.f32 %v1253, %v1513
      %v1654 = vmul.f32 %v1254, %v1515
      %v1655 = vmul.f32 %v1255, %v1517
      %v1656 = vmul.f32 %v1256, %v1519
      %v1657 = vmul.f32 %v1257, %v1521
      %v1658 = vmul.f32 %v1250, %v1523
      %v1659 = vmul.f32 %v1251, %v1525
      %v1660 = vmul.f32 %v1252, %v1527
      %v1661 = vmul.f32 %v1253, %v1529
      %v1662 = vmul.f32 %v1254, %v1531
      %v1663 = vmul.f32 %v1255, %v1533
      %v1664 = vmul.f32 %v1256, %v1535
      %v1665 = vmul.f32 %v1257, %v1537
      %v1666 = vmul.f32 %v1258, %v1411
      %v1667 = vmul.f32 %v1259, %v1413
      %v1668 = vmul.f32 %v1260, %v1415
      %v1669 = vmul.f32 %v1261, %v1417
      %v1670 = vmul.f32 %v1262, %v1419
      %v1671 = vmul.f32 %v1263, %v1421
      %v1672 = vmul.f32 %v1264, %v1423
      %v1673 = vmul.f32 %v1265, %v1425
      %v1674 = vmul.f32 %v1258, %v1427
      %v1675 = vmul.f32 %v1259, %v1429
      %v1676 = vmul.f32 %v1260, %v1431
      %v1677 = vmul.f32 %v1261, %v1433
      %v1678 = vmul.f32 %v1262, %v1435
      %v1679 = vmul.f32 %v1263, %v1437
      %v1680 = vmul.f32 %v1264, %v1439
      %v1681 = vmul.f32 %v1265, %v1441
      %v1682 = vmul.f32 %v1258, %v1443
      %v1683 = vmul.f32 %v1259, %v1445
      %v1684 = vmul.f32 %v1260, %v1447
      %v1685 = vmul.f32 %v1261, %v1449
      %v1686 = vmul.f32 %v1262, %v1451
      %v1687 = vmul.f32 %v1263, %v1453
      %v1688 = vmul.f32 %v1264, %v1455
      %v1689 = vmul.f32 %v1265, %v1457
      %v1690 = vmul.f32 %v1258, %v1459
      %v1691 = vmul.f32 %v1259, %v1461
      %v1692 = vmul.f32 %v1260, %v1463
      %v1693 = vmul.f32 %v1261, %v1465
      %v1694 = vmul.f32 %v1262, %v1467
      %v1695 = vmul.f32 %v1263, %v1469
      %v1696 = vmul.f32 %v1264, %v1471
      %v1697 = vmul.f32 %v1265, %v1473
      %v1698 = vmul.f32 %v1258, %v1475
      %v1699 = vmul.f32 %v1259, %v1477
      %v1700 = vmul.f32 %v1260, %v1479
      %v1701 = vmul.f32 %v1261, %v1481
      %v1702 = vmul.f32 %v1262, %v1483
      %v1703 = vmul.f32 %v1263, %v1485
      %v1704 = vmul.f32 %v1264, %v1487
      %v1705 = vmul.f32 %v1265, %v1489
      %v1706 = vmul.f32 %v1258, %v1491
      %v1707 = vmul.f32 %v1259, %v1493
      %v1708 = vmul.f32 %v1260, %v1495
      %v1709 = vmul.f32 %v1261, %v1497
      %v1710 = vmul.f32 %v1262, %v1499
      %v1711 = vmul.f32 %v1263, %v1501
      %v1712 = vmul.f32 %v1264, %v1503
      %v1713 = vmul.f32 %v1265, %v1505
      %v1714 = vmul.f32 %v1258, %v1507
      %v1715 = vmul.f32 %v1259, %v1509
      %v1716 = vmul.f32 %v1260, %v1511
      %v1717 = vmul.f32 %v1261, %v1513
      %v1718 = vmul.f32 %v1262, %v1515
      %v1719 = vmul.f32 %v1263, %v1517
      %v1720 = vmul.f32 %v1264, %v1519
      %v1721 = vmul.f32 %v1265, %v1521
      %v1722 = vmul.f32 %v1258, %v1523
      %v1723 = vmul.f32 %v1259, %v1525
      %v1724 = vmul.f32 %v1260, %v1527
      %v1725 = vmul.f32 %v1261, %v1529
      %v1726 = vmul.f32 %v1262, %v1531
      %v1727 = vmul.f32 %v1263, %v1533
      %v1728 = vmul.f32 %v1264, %v1535
      %v1729 = vmul.f32 %v1265, %v1537
      %v1730 = vmul.f32 %v1266, %v1411
      %v1731 = vmul.f32 %v1267, %v1413
      %v1732 = vmul.f32 %v1268, %v1415
      %v1733 = vmul.f32 %v1269, %v1417
      %v1734 = vmul.f32 %v1270, %v1419
      %v1735 = vmul.f32 %v1271, %v1421
      %v1736 = vmul.f32 %v1272, %v1423
      %v1737 = vmul.f32 %v1273, %v1425
      %v1738 = vmul.f32 %v1266, %v1427
      %v1739 = vmul.f32 %v1267, %v1429
      %v1740 = vmul.f32 %v1268, %v1431
      %v1741 = vmul.f32 %v1269, %v1433
      %v1742 = vmul.f32 %v1270, %v1435
      %v1743 = vmul.f32 %v1271, %v1437
      %v1744 = vmul.f32 %v1272, %v1439
      %v1745 = vmul.f32 %v1273, %v1441
      %v1746 = vmul.f32 %v1266, %v1443
      %v1747 = vmul.f32 %v1267, %v1445
      %v1748 = vmul.f32 %v1268, %v1447
      %v1749 = vmul.f32 %v1269, %v1449
      %v1750 = vmul.f32 %v1270, %v1451
      %v1751 = vmul.f32 %v1271, %v1453
      %v1752 = vmul.f32 %v1272, %v1455
      %v1753 = vmul.f32 %v1273, %v1457
      %v1754 = vmul.f32 %v1266, %v1459
      %v1755 = vmul.f32 %v1267, %v1461
      %v1756 = vmul.f32 %v1268, %v1463
      %v1757 = vmul.f32 %v1269, %v1465
      %v1758 = vmul.f32 %v1270, %v1467
      %v1759 = vmul.f32 %v1271, %v1469
      %v1760 = vmul.f32 %v1272, %v1471
      %v1761 = vmul.f32 %v1273, %v1473
      %v1762 = vmul.f32 %v1266, %v1475
      %v1763 = vmul.f32 %v1267, %v1477
      %v1764 = vmul.f32 %v1268, %v1479
      %v1765 = vmul.f32 %v1269, %v1481
      %v1766 = vmul.f32 %v1270, %v1483
      %v1767 = vmul.f32 %v1271, %v1485
      %v1768 = vmul.f32 %v1272, %v1487
      %v1769 = vmul.f32 %v1273, %v1489
      %v1770 = vmul.f32 %v1266, %v1491
      %v1771 = vmul.f32 %v1267, %v1493
      %v1772 = vmul.f32 %v1268, %v1495
      %v1773 = vmul.f32 %v1269, %v1497
      %v1774 = vmul.f32 %v1270, %v1499
      %v1775 = vmul.f32 %v1271, %v1501
      %v1776 = vmul.f32 %v1272, %v1503
      %v1777 = vmul.f32 %v1273, %v1505
      %v1778 = vmul.f32 %v1266, %v1507
      %v1779 = vmul.f32 %v1267, %v1509
      %v1780 = vmul.f32 %v1268, %v1511
      %v1781 = vmul.f32 %v1269, %v1513
      %v1782 = vmul.f32 %v1270, %v1515
      %v1783 = vmul.f32 %v1271, %v1517
      %v1784 = vmul.f32 %v1272, %v1519
      %v1785 = vmul.f32 %v1273, %v1521
      %v1786 = vmul.f32 %v1266, %v1523
      %v1787 = vmul.f32 %v1267, %v1525
      %v1788 = vmul.f32 %v1268, %v1527
      %v1789 = vmul.f32 %v1269, %v1529
      %v1790 = vmul.f32 %v1270, %v1531
      %v1791 = vmul.f32 %v1271, %v1533
      %v1792 = vmul.f32 %v1272, %v1535
      %v1793 = vmul.f32 %v1273, %v1537
      %v1794 = vmul.f32 %v1274, %v1411
      %v1795 = vmul.f32 %v1275, %v1413
      %v1796 = vmul.f32 %v1276, %v1415
      %v1797 = vmul.f32 %v1277, %v1417
      %v1798 = vmul.f32 %v1278, %v1419
      %v1799 = vmul.f32 %v1279, %v1421
      %v1800 = vmul.f32 %v1280, %v1423
      %v1801 = vmul.f32 %v1281, %v1425
      %v1802 = vmul.f32 %v1274, %v1427
      %v1803 = vmul.f32 %v1275, %v1429
      %v1804 = vmul.f32 %v1276, %v1431
      %v1805 = vmul.f32 %v1277, %v1433
      %v1806 = vmul.f32 %v1278, %v1435
      %v1807 = vmul.f32 %v1279, %v1437
      %v1808 = vmul.f32 %v1280, %v1439
      %v1809 = vmul.f32 %v1281, %v1441
      %v1810 = vmul.f32 %v1274, %v1443
      %v1811 = vmul.f32 %v1275, %v1445
      %v1812 = vmul.f32 %v1276, %v1447
      %v1813 = vmul.f32 %v1277, %v1449
      %v1814 = vmul.f32 %v1278, %v1451
      %v1815 = vmul.f32 %v1279, %v1453
      %v1816 = vmul.f32 %v1280, %v1455
      %v1817 = vmul.f32 %v1281, %v1457
      %v1818 = vmul.f32 %v1274, %v1459
      %v1819 = vmul.f32 %v1275, %v1461
      %v1820 = vmul.f32 %v1276, %v1463
      %v1821 = vmul.f32 %v1277, %v1465
      %v1822 = vmul.f32 %v1278, %v1467
      %v1823 = vmul.f32 %v1279, %v1469
      %v1824 = vmul.f32 %v1280, %v1471
      %v1825 = vmul.f32 %v1281, %v1473
      %v1826 = vmul.f32 %v1274, %v1475
      %v1827 = vmul.f32 %v1275, %v1477
      %v1828 = vmul.f32 %v1276, %v1479
      %v1829 = vmul.f32 %v1277, %v1481
      %v1830 = vmul.f32 %v1278, %v1483
      %v1831 = vmul.f32 %v1279, %v1485
      %v1832 = vmul.f32 %v1280, %v1487
      %v1833 = vmul.f32 %v1281, %v1489
      %v1834 = vmul.f32 %v1274, %v1491
      %v1835 = vmul.f32 %v1275, %v1493
      %v1836 = vmul.f32 %v1276, %v1495
      %v1837 = vmul.f32 %v1277, %v1497
      %v1838 = vmul.f32 %v1278, %v1499
      %v1839 = vmul.f32 %v1279, %v1501
      %v1840 = vmul.f32 %v1280, %v1503
      %v1841 = vmul.f32 %v1281, %v1505
      %v1842 = vmul.f32 %v1274, %v1507
      %v1843 = vmul.f32 %v1275, %v1509
      %v1844 = vmul.f32 %v1276, %v1511
      %v1845 = vmul.f32 %v1277, %v1513
      %v1846 = vmul.f32 %v1278, %v1515
      %v1847 = vmul.f32 %v1279, %v1517
      %v1848 = vmul.f32 %v1280, %v1519
      %v1849 = vmul.f32 %v1281, %v1521
      %v1850 = vmul.f32 %v1274, %v1523
      %v1851 = vmul.f32 %v1275, %v1525
      %v1852 = vmul.f32 %v1276, %v1527
      %v1853 = vmul.f32 %v1277, %v1529
      %v1854 = vmul.f32 %v1278, %v1531
      %v1855 = vmul.f32 %v1279, %v1533
      %v1856 = vmul.f32 %v1280, %v1535
      %v1857 = vmul.f32 %v1281, %v1537
      %v1858 = vpack.c.bf16 %v1602, %v1602
      %v1859 = vpack.c.bf16 %v1603, %v1603
      %v1860 = vpack.c.bf16 %v1604, %v1604
      %v1861 = vpack.c.bf16 %v1605, %v1605
      %v1862 = vpack.c.bf16 %v1606, %v1606
      %v1863 = vpack.c.bf16 %v1607, %v1607
      %v1864 = vpack.c.bf16 %v1608, %v1608
      %v1865 = vpack.c.bf16 %v1609, %v1609
      %v1866 = vpack.c.bf16 %v1610, %v1610
      %v1867 = vpack.c.bf16 %v1611, %v1611
      %v1868 = vpack.c.bf16 %v1612, %v1612
      %v1869 = vpack.c.bf16 %v1613, %v1613
      %v1870 = vpack.c.bf16 %v1614, %v1614
      %v1871 = vpack.c.bf16 %v1615, %v1615
      %v1872 = vpack.c.bf16 %v1616, %v1616
      %v1873 = vpack.c.bf16 %v1617, %v1617
      %v1874 = vpack.c.bf16 %v1618, %v1618
      %v1875 = vpack.c.bf16 %v1619, %v1619
      %v1876 = vpack.c.bf16 %v1620, %v1620
      %v1877 = vpack.c.bf16 %v1621, %v1621
      %v1878 = vpack.c.bf16 %v1622, %v1622
      %v1879 = vpack.c.bf16 %v1623, %v1623
      %v1880 = vpack.c.bf16 %v1624, %v1624
      %v1881 = vpack.c.bf16 %v1625, %v1625
      %v1882 = vpack.c.bf16 %v1626, %v1626
      %v1883 = vpack.c.bf16 %v1627, %v1627
      %v1884 = vpack.c.bf16 %v1628, %v1628
      %v1885 = vpack.c.bf16 %v1629, %v1629
      %v1886 = vpack.c.bf16 %v1630, %v1630
      %v1887 = vpack.c.bf16 %v1631, %v1631
      %v1888 = vpack.c.bf16 %v1632, %v1632
      %v1889 = vpack.c.bf16 %v1633, %v1633
      %v1890 = vpack.c.bf16 %v1634, %v1634
      %v1891 = vpack.c.bf16 %v1635, %v1635
      %v1892 = vpack.c.bf16 %v1636, %v1636
      %v1893 = vpack.c.bf16 %v1637, %v1637
      %v1894 = vpack.c.bf16 %v1638, %v1638
      %v1895 = vpack.c.bf16 %v1639, %v1639
      %v1896 = vpack.c.bf16 %v1640, %v1640
      %v1897 = vpack.c.bf16 %v1641, %v1641
      %v1898 = vpack.c.bf16 %v1642, %v1642
      %v1899 = vpack.c.bf16 %v1643, %v1643
      %v1900 = vpack.c.bf16 %v1644, %v1644
      %v1901 = vpack.c.bf16 %v1645, %v1645
      %v1902 = vpack.c.bf16 %v1646, %v1646
      %v1903 = vpack.c.bf16 %v1647, %v1647
      %v1904 = vpack.c.bf16 %v1648, %v1648
      %v1905 = vpack.c.bf16 %v1649, %v1649
      %v1906 = vpack.c.bf16 %v1650, %v1650
      %v1907 = vpack.c.bf16 %v1651, %v1651
      %v1908 = vpack.c.bf16 %v1652, %v1652
      %v1909 = vpack.c.bf16 %v1653, %v1653
      %v1910 = vpack.c.bf16 %v1654, %v1654
      %v1911 = vpack.c.bf16 %v1655, %v1655
      %v1912 = vpack.c.bf16 %v1656, %v1656
      %v1913 = vpack.c.bf16 %v1657, %v1657
      %v1914 = vpack.c.bf16 %v1658, %v1658
      %v1915 = vpack.c.bf16 %v1659, %v1659
      %v1916 = vpack.c.bf16 %v1660, %v1660
      %v1917 = vpack.c.bf16 %v1661, %v1661
      %v1918 = vpack.c.bf16 %v1662, %v1662
      %v1919 = vpack.c.bf16 %v1663, %v1663
      %v1920 = vpack.c.bf16 %v1664, %v1664
      %v1921 = vpack.c.bf16 %v1665, %v1665
      %v1922 = vpack.c.bf16 %v1666, %v1666
      %v1923 = vpack.c.bf16 %v1667, %v1667
      %v1924 = vpack.c.bf16 %v1668, %v1668
      %v1925 = vpack.c.bf16 %v1669, %v1669
      %v1926 = vpack.c.bf16 %v1670, %v1670
      %v1927 = vpack.c.bf16 %v1671, %v1671
      %v1928 = vpack.c.bf16 %v1672, %v1672
      %v1929 = vpack.c.bf16 %v1673, %v1673
      %v1930 = vpack.c.bf16 %v1674, %v1674
      %v1931 = vpack.c.bf16 %v1675, %v1675
      %v1932 = vpack.c.bf16 %v1676, %v1676
      %v1933 = vpack.c.bf16 %v1677, %v1677
      %v1934 = vpack.c.bf16 %v1678, %v1678
      %v1935 = vpack.c.bf16 %v1679, %v1679
      %v1936 = vpack.c.bf16 %v1680, %v1680
      %v1937 = vpack.c.bf16 %v1681, %v1681
      %v1938 = vpack.c.bf16 %v1682, %v1682
      %v1939 = vpack.c.bf16 %v1683, %v1683
      %v1940 = vpack.c.bf16 %v1684, %v1684
      %v1941 = vpack.c.bf16 %v1685, %v1685
      %v1942 = vpack.c.bf16 %v1686, %v1686
      %v1943 = vpack.c.bf16 %v1687, %v1687
      %v1944 = vpack.c.bf16 %v1688, %v1688
      %v1945 = vpack.c.bf16 %v1689, %v1689
      %v1946 = vpack.c.bf16 %v1690, %v1690
      %v1947 = vpack.c.bf16 %v1691, %v1691
      %v1948 = vpack.c.bf16 %v1692, %v1692
      %v1949 = vpack.c.bf16 %v1693, %v1693
      %v1950 = vpack.c.bf16 %v1694, %v1694
      %v1951 = vpack.c.bf16 %v1695, %v1695
      %v1952 = vpack.c.bf16 %v1696, %v1696
      %v1953 = vpack.c.bf16 %v1697, %v1697
      %v1954 = vpack.c.bf16 %v1698, %v1698
      %v1955 = vpack.c.bf16 %v1699, %v1699
      %v1956 = vpack.c.bf16 %v1700, %v1700
      %v1957 = vpack.c.bf16 %v1701, %v1701
      %v1958 = vpack.c.bf16 %v1702, %v1702
      %v1959 = vpack.c.bf16 %v1703, %v1703
      %v1960 = vpack.c.bf16 %v1704, %v1704
      %v1961 = vpack.c.bf16 %v1705, %v1705
      %v1962 = vpack.c.bf16 %v1706, %v1706
      %v1963 = vpack.c.bf16 %v1707, %v1707
      %v1964 = vpack.c.bf16 %v1708, %v1708
      %v1965 = vpack.c.bf16 %v1709, %v1709
      %v1966 = vpack.c.bf16 %v1710, %v1710
      %v1967 = vpack.c.bf16 %v1711, %v1711
      %v1968 = vpack.c.bf16 %v1712, %v1712
      %v1969 = vpack.c.bf16 %v1713, %v1713
      %v1970 = vpack.c.bf16 %v1714, %v1714
      %v1971 = vpack.c.bf16 %v1715, %v1715
      %v1972 = vpack.c.bf16 %v1716, %v1716
      %v1973 = vpack.c.bf16 %v1717, %v1717
      %v1974 = vpack.c.bf16 %v1718, %v1718
      %v1975 = vpack.c.bf16 %v1719, %v1719
      %v1976 = vpack.c.bf16 %v1720, %v1720
      %v1977 = vpack.c.bf16 %v1721, %v1721
      %v1978 = vpack.c.bf16 %v1722, %v1722
      %v1979 = vpack.c.bf16 %v1723, %v1723
      %v1980 = vpack.c.bf16 %v1724, %v1724
      %v1981 = vpack.c.bf16 %v1725, %v1725
      %v1982 = vpack.c.bf16 %v1726, %v1726
      %v1983 = vpack.c.bf16 %v1727, %v1727
      %v1984 = vpack.c.bf16 %v1728, %v1728
      %v1985 = vpack.c.bf16 %v1729, %v1729
      %v1986 = vpack.c.bf16 %v1730, %v1730
      %v1987 = vpack.c.bf16 %v1731, %v1731
      %v1988 = vpack.c.bf16 %v1732, %v1732
      %v1989 = vpack.c.bf16 %v1733, %v1733
      %v1990 = vpack.c.bf16 %v1734, %v1734
      %v1991 = vpack.c.bf16 %v1735, %v1735
      %v1992 = vpack.c.bf16 %v1736, %v1736
      %v1993 = vpack.c.bf16 %v1737, %v1737
      %v1994 = vpack.c.bf16 %v1738, %v1738
      %v1995 = vpack.c.bf16 %v1739, %v1739
      %v1996 = vpack.c.bf16 %v1740, %v1740
      %v1997 = vpack.c.bf16 %v1741, %v1741
      %v1998 = vpack.c.bf16 %v1742, %v1742
      %v1999 = vpack.c.bf16 %v1743, %v1743
      %v2000 = vpack.c.bf16 %v1744, %v1744
      %v2001 = vpack.c.bf16 %v1745, %v1745
      %v2002 = vpack.c.bf16 %v1746, %v1746
      %v2003 = vpack.c.bf16 %v1747, %v1747
      %v2004 = vpack.c.bf16 %v1748, %v1748
      %v2005 = vpack.c.bf16 %v1749, %v1749
      %v2006 = vpack.c.bf16 %v1750, %v1750
      %v2007 = vpack.c.bf16 %v1751, %v1751
      %v2008 = vpack.c.bf16 %v1752, %v1752
      %v2009 = vpack.c.bf16 %v1753, %v1753
      %v2010 = vpack.c.bf16 %v1754, %v1754
      %v2011 = vpack.c.bf16 %v1755, %v1755
      %v2012 = vpack.c.bf16 %v1756, %v1756
      %v2013 = vpack.c.bf16 %v1757, %v1757
      %v2014 = vpack.c.bf16 %v1758, %v1758
      %v2015 = vpack.c.bf16 %v1759, %v1759
      %v2016 = vpack.c.bf16 %v1760, %v1760
      %v2017 = vpack.c.bf16 %v1761, %v1761
      %v2018 = vpack.c.bf16 %v1762, %v1762
      %v2019 = vpack.c.bf16 %v1763, %v1763
      %v2020 = vpack.c.bf16 %v1764, %v1764
      %v2021 = vpack.c.bf16 %v1765, %v1765
      %v2022 = vpack.c.bf16 %v1766, %v1766
      %v2023 = vpack.c.bf16 %v1767, %v1767
      %v2024 = vpack.c.bf16 %v1768, %v1768
      %v2025 = vpack.c.bf16 %v1769, %v1769
      %v2026 = vpack.c.bf16 %v1770, %v1770
      %v2027 = vpack.c.bf16 %v1771, %v1771
      %v2028 = vpack.c.bf16 %v1772, %v1772
      %v2029 = vpack.c.bf16 %v1773, %v1773
      %v2030 = vpack.c.bf16 %v1774, %v1774
      %v2031 = vpack.c.bf16 %v1775, %v1775
      %v2032 = vpack.c.bf16 %v1776, %v1776
      %v2033 = vpack.c.bf16 %v1777, %v1777
      %v2034 = vpack.c.bf16 %v1778, %v1778
      %v2035 = vpack.c.bf16 %v1779, %v1779
      %v2036 = vpack.c.bf16 %v1780, %v1780
      %v2037 = vpack.c.bf16 %v1781, %v1781
      %v2038 = vpack.c.bf16 %v1782, %v1782
      %v2039 = vpack.c.bf16 %v1783, %v1783
      %v2040 = vpack.c.bf16 %v1784, %v1784
      %v2041 = vpack.c.bf16 %v1785, %v1785
      %v2042 = vpack.c.bf16 %v1786, %v1786
      %v2043 = vpack.c.bf16 %v1787, %v1787
      %v2044 = vpack.c.bf16 %v1788, %v1788
      %v2045 = vpack.c.bf16 %v1789, %v1789
      %v2046 = vpack.c.bf16 %v1790, %v1790
      %v2047 = vpack.c.bf16 %v1791, %v1791
      %v2048 = vpack.c.bf16 %v1792, %v1792
      %v2049 = vpack.c.bf16 %v1793, %v1793
      %v2050 = vpack.c.bf16 %v1794, %v1794
      %v2051 = vpack.c.bf16 %v1795, %v1795
      %v2052 = vpack.c.bf16 %v1796, %v1796
      %v2053 = vpack.c.bf16 %v1797, %v1797
      %v2054 = vpack.c.bf16 %v1798, %v1798
      %v2055 = vpack.c.bf16 %v1799, %v1799
      %v2056 = vpack.c.bf16 %v1800, %v1800
      %v2057 = vpack.c.bf16 %v1801, %v1801
      %v2058 = vpack.c.bf16 %v1802, %v1802
      %v2059 = vpack.c.bf16 %v1803, %v1803
      %v2060 = vpack.c.bf16 %v1804, %v1804
      %v2061 = vpack.c.bf16 %v1805, %v1805
      %v2062 = vpack.c.bf16 %v1806, %v1806
      %v2063 = vpack.c.bf16 %v1807, %v1807
      %v2064 = vpack.c.bf16 %v1808, %v1808
      %v2065 = vpack.c.bf16 %v1809, %v1809
      %v2066 = vpack.c.bf16 %v1810, %v1810
      %v2067 = vpack.c.bf16 %v1811, %v1811
      %v2068 = vpack.c.bf16 %v1812, %v1812
      %v2069 = vpack.c.bf16 %v1813, %v1813
      %v2070 = vpack.c.bf16 %v1814, %v1814
      %v2071 = vpack.c.bf16 %v1815, %v1815
      %v2072 = vpack.c.bf16 %v1816, %v1816
      %v2073 = vpack.c.bf16 %v1817, %v1817
      %v2074 = vpack.c.bf16 %v1818, %v1818
      %v2075 = vpack.c.bf16 %v1819, %v1819
      %v2076 = vpack.c.bf16 %v1820, %v1820
      %v2077 = vpack.c.bf16 %v1821, %v1821
      %v2078 = vpack.c.bf16 %v1822, %v1822
      %v2079 = vpack.c.bf16 %v1823, %v1823
      %v2080 = vpack.c.bf16 %v1824, %v1824
      %v2081 = vpack.c.bf16 %v1825, %v1825
      %v2082 = vpack.c.bf16 %v1826, %v1826
      %v2083 = vpack.c.bf16 %v1827, %v1827
      %v2084 = vpack.c.bf16 %v1828, %v1828
      %v2085 = vpack.c.bf16 %v1829, %v1829
      %v2086 = vpack.c.bf16 %v1830, %v1830
      %v2087 = vpack.c.bf16 %v1831, %v1831
      %v2088 = vpack.c.bf16 %v1832, %v1832
      %v2089 = vpack.c.bf16 %v1833, %v1833
      %v2090 = vpack.c.bf16 %v1834, %v1834
      %v2091 = vpack.c.bf16 %v1835, %v1835
      %v2092 = vpack.c.bf16 %v1836, %v1836
      %v2093 = vpack.c.bf16 %v1837, %v1837
      %v2094 = vpack.c.bf16 %v1838, %v1838
      %v2095 = vpack.c.bf16 %v1839, %v1839
      %v2096 = vpack.c.bf16 %v1840, %v1840
      %v2097 = vpack.c.bf16 %v1841, %v1841
      %v2098 = vpack.c.bf16 %v1842, %v1842
      %v2099 = vpack.c.bf16 %v1843, %v1843
      %v2100 = vpack.c.bf16 %v1844, %v1844
      %v2101 = vpack.c.bf16 %v1845, %v1845
      %v2102 = vpack.c.bf16 %v1846, %v1846
      %v2103 = vpack.c.bf16 %v1847, %v1847
      %v2104 = vpack.c.bf16 %v1848, %v1848
      %v2105 = vpack.c.bf16 %v1849, %v1849
      %v2106 = vpack.c.bf16 %v1850, %v1850
      %v2107 = vpack.c.bf16 %v1851, %v1851
      %v2108 = vpack.c.bf16 %v1852, %v1852
      %v2109 = vpack.c.bf16 %v1853, %v1853
      %v2110 = vpack.c.bf16 %v1854, %v1854
      %v2111 = vpack.c.bf16 %v1855, %v1855
      %v2112 = vpack.c.bf16 %v1856, %v1856
      %v2113 = vpack.c.bf16 %v1857, %v1857
      %v2114 = vld [vmem:[%s1] sm:$0xff]
      %v2115 = vld [vmem:[%s1 + $0x8] sm:$0xff]
      %v2116 = vld [vmem:[%s1 + $0x10] sm:$0xff]
      %v2117 = vld [vmem:[%s1 + $0x18] sm:$0xff]
      %v2118 = vld [vmem:[%s1 + $0x20] sm:$0xff]
      %v2119 = vld [vmem:[%s1 + $0x28] sm:$0xff]
      %v2120 = vld [vmem:[%s1 + $0x30] sm:$0xff]
      %v2121 = vld [vmem:[%s1 + $0x38] sm:$0xff]
      %v2122 = vld [vmem:[%s1 + $0x40] sm:$0xff]
      %v2123 = vld [vmem:[%s1 + $0x48] sm:$0xff]
      %v2124 = vld [vmem:[%s1 + $0x50] sm:$0xff]
      %v2125 = vld [vmem:[%s1 + $0x58] sm:$0xff]
      %v2126 = vld [vmem:[%s1 + $0x60] sm:$0xff]
      %v2127 = vld [vmem:[%s1 + $0x68] sm:$0xff]
      %v2128 = vld [vmem:[%s1 + $0x70] sm:$0xff]
      %v2129 = vld [vmem:[%s1 + $0x78] sm:$0xff]
      %v2130 = vld [vmem:[%s1 + $0x80] sm:$0xff]
      %v2131 = vld [vmem:[%s1 + $0x88] sm:$0xff]
      %v2132 = vld [vmem:[%s1 + $0x90] sm:$0xff]
      %v2133 = vld [vmem:[%s1 + $0x98] sm:$0xff]
      %v2134 = vld [vmem:[%s1 + $0xa0] sm:$0xff]
      %v2135 = vld [vmem:[%s1 + $0xa8] sm:$0xff]
      %v2136 = vld [vmem:[%s1 + $0xb0] sm:$0xff]
      %v2137 = vld [vmem:[%s1 + $0xb8] sm:$0xff]
      %v2138 = vld [vmem:[%s1 + $0xc0] sm:$0xff]
      %v2139 = vld [vmem:[%s1 + $0xc8] sm:$0xff]
      %v2140 = vld [vmem:[%s1 + $0xd0] sm:$0xff]
      %v2141 = vld [vmem:[%s1 + $0xd8] sm:$0xff]
      %v2142 = vld [vmem:[%s1 + $0xe0] sm:$0xff]
      %v2143 = vld [vmem:[%s1 + $0xe8] sm:$0xff]
      %v2144 = vld [vmem:[%s1 + $0xf0] sm:$0xff]
      %v2145 = vld [vmem:[%s1 + $0xf8] sm:$0xff]
      %v2210 = vunpack.c.l.b16 %v1858
      %v2211 = vunpack.c.l.b16 %v1859
      %v2212 = vunpack.c.l.b16 %v1860
      %v2213 = vunpack.c.l.b16 %v1861
      %v2214 = vunpack.c.l.b16 %v1862
      %v2215 = vunpack.c.l.b16 %v1863
      %v2216 = vunpack.c.l.b16 %v1864
      %v2217 = vunpack.c.l.b16 %v1865
      %v2218 = vunpack.c.l.b16 %v1866
      %v2219 = vunpack.c.l.b16 %v1867
      %v2220 = vunpack.c.l.b16 %v1868
      %v2221 = vunpack.c.l.b16 %v1869
      %v2222 = vunpack.c.l.b16 %v1870
      %v2223 = vunpack.c.l.b16 %v1871
      %v2224 = vunpack.c.l.b16 %v1872
      %v2225 = vunpack.c.l.b16 %v1873
      %v2226 = vunpack.c.l.b16 %v1874
      %v2227 = vunpack.c.l.b16 %v1875
      %v2228 = vunpack.c.l.b16 %v1876
      %v2229 = vunpack.c.l.b16 %v1877
      %v2230 = vunpack.c.l.b16 %v1878
      %v2231 = vunpack.c.l.b16 %v1879
      %v2232 = vunpack.c.l.b16 %v1880
      %v2233 = vunpack.c.l.b16 %v1881
      %v2234 = vunpack.c.l.b16 %v1882
      %v2235 = vunpack.c.l.b16 %v1883
      %v2236 = vunpack.c.l.b16 %v1884
      %v2237 = vunpack.c.l.b16 %v1885
      %v2238 = vunpack.c.l.b16 %v1886
      %v2239 = vunpack.c.l.b16 %v1887
      %v2240 = vunpack.c.l.b16 %v1888
      %v2241 = vunpack.c.l.b16 %v1889
      %v2242 = vunpack.c.l.b16 %v1890
      %v2243 = vunpack.c.l.b16 %v1891
      %v2244 = vunpack.c.l.b16 %v1892
      %v2245 = vunpack.c.l.b16 %v1893
      %v2246 = vunpack.c.l.b16 %v1894
      %v2247 = vunpack.c.l.b16 %v1895
      %v2248 = vunpack.c.l.b16 %v1896
      %v2249 = vunpack.c.l.b16 %v1897
      %v2250 = vunpack.c.l.b16 %v1898
      %v2251 = vunpack.c.l.b16 %v1899
      %v2252 = vunpack.c.l.b16 %v1900
      %v2253 = vunpack.c.l.b16 %v1901
      %v2254 = vunpack.c.l.b16 %v1902
      %v2255 = vunpack.c.l.b16 %v1903
      %v2256 = vunpack.c.l.b16 %v1904
      %v2257 = vunpack.c.l.b16 %v1905
      %v2258 = vunpack.c.l.b16 %v1906
      %v2259 = vunpack.c.l.b16 %v1907
      %v2260 = vunpack.c.l.b16 %v1908
      %v2261 = vunpack.c.l.b16 %v1909
      %v2262 = vunpack.c.l.b16 %v1910
      %v2263 = vunpack.c.l.b16 %v1911
      %v2264 = vunpack.c.l.b16 %v1912
      %v2265 = vunpack.c.l.b16 %v1913
      %v2266 = vunpack.c.l.b16 %v1914
      %v2267 = vunpack.c.l.b16 %v1915
      %v2268 = vunpack.c.l.b16 %v1916
      %v2269 = vunpack.c.l.b16 %v1917
      %v2270 = vunpack.c.l.b16 %v1918
      %v2271 = vunpack.c.l.b16 %v1919
      %v2272 = vunpack.c.l.b16 %v1920
      %v2273 = vunpack.c.l.b16 %v1921
      %v2274 = vpack.c.b16 %v2211, %v2210
      %v2275 = vpack.c.b16 %v2213, %v2212
      %v2276 = vpack.c.b16 %v2215, %v2214
      %v2277 = vpack.c.b16 %v2217, %v2216
      %v2278 = vpack.c.b16 %v2219, %v2218
      %v2279 = vpack.c.b16 %v2221, %v2220
      %v2280 = vpack.c.b16 %v2223, %v2222
      %v2281 = vpack.c.b16 %v2225, %v2224
      %v2282 = vpack.c.b16 %v2227, %v2226
      %v2283 = vpack.c.b16 %v2229, %v2228
      %v2284 = vpack.c.b16 %v2231, %v2230
      %v2285 = vpack.c.b16 %v2233, %v2232
      %v2286 = vpack.c.b16 %v2235, %v2234
      %v2287 = vpack.c.b16 %v2237, %v2236
      %v2288 = vpack.c.b16 %v2239, %v2238
      %v2289 = vpack.c.b16 %v2241, %v2240
      %v2290 = vpack.c.b16 %v2243, %v2242
      %v2291 = vpack.c.b16 %v2245, %v2244
      %v2292 = vpack.c.b16 %v2247, %v2246
      %v2293 = vpack.c.b16 %v2249, %v2248
      %v2294 = vpack.c.b16 %v2251, %v2250
      %v2295 = vpack.c.b16 %v2253, %v2252
      %v2296 = vpack.c.b16 %v2255, %v2254
      %v2297 = vpack.c.b16 %v2257, %v2256
      %v2298 = vpack.c.b16 %v2259, %v2258
      %v2299 = vpack.c.b16 %v2261, %v2260
      %v2300 = vpack.c.b16 %v2263, %v2262
      %v2301 = vpack.c.b16 %v2265, %v2264
      %v2302 = vpack.c.b16 %v2267, %v2266
      %v2303 = vpack.c.b16 %v2269, %v2268
      %v2304 = vpack.c.b16 %v2271, %v2270
      %v2305 = vpack.c.b16 %v2273, %v2272
      %2306 = vrot.lane.b32.xlu0 %v2274, 64
      %v2307 = vpop.permute.xlu0 %2306
      %2308 = vrot.lane.b32.xlu0 %v2275, 64
      %v2309 = vpop.permute.xlu0 %2308
      %2310 = vrot.lane.b32.xlu0 %v2276, 64
      %v2311 = vpop.permute.xlu0 %2310
      %2312 = vrot.lane.b32.xlu0 %v2277, 64
      %v2313 = vpop.permute.xlu0 %2312
      %2314 = vrot.lane.b32.xlu0 %v2278, 64
      %v2315 = vpop.permute.xlu0 %2314
      %2316 = vrot.lane.b32.xlu0 %v2279, 64
      %v2317 = vpop.permute.xlu0 %2316
      %2318 = vrot.lane.b32.xlu0 %v2280, 64
      %v2319 = vpop.permute.xlu0 %2318
      %2320 = vrot.lane.b32.xlu0 %v2281, 64
      %v2321 = vpop.permute.xlu0 %2320
      %2322 = vrot.lane.b32.xlu0 %v2282, 64
      %v2323 = vpop.permute.xlu0 %2322
      %2324 = vrot.lane.b32.xlu0 %v2283, 64
      %v2325 = vpop.permute.xlu0 %2324
      %2326 = vrot.lane.b32.xlu0 %v2284, 64
      %v2327 = vpop.permute.xlu0 %2326
      %2328 = vrot.lane.b32.xlu0 %v2285, 64
      %v2329 = vpop.permute.xlu0 %2328
      %2330 = vrot.lane.b32.xlu0 %v2286, 64
      %v2331 = vpop.permute.xlu0 %2330
      %2332 = vrot.lane.b32.xlu0 %v2287, 64
      %v2333 = vpop.permute.xlu0 %2332
      %2334 = vrot.lane.b32.xlu0 %v2288, 64
      %v2335 = vpop.permute.xlu0 %2334
      %2336 = vrot.lane.b32.xlu0 %v2289, 64
      %v2337 = vpop.permute.xlu0 %2336
      %2338 = vrot.lane.b32.xlu0 %v2290, 64
      %v2339 = vpop.permute.xlu0 %2338
      %2340 = vrot.lane.b32.xlu0 %v2291, 64
      %v2341 = vpop.permute.xlu0 %2340
      %2342 = vrot.lane.b32.xlu0 %v2292, 64
      %v2343 = vpop.permute.xlu0 %2342
      %2344 = vrot.lane.b32.xlu0 %v2293, 64
      %v2345 = vpop.permute.xlu0 %2344
      %2346 = vrot.lane.b32.xlu0 %v2294, 64
      %v2347 = vpop.permute.xlu0 %2346
      %2348 = vrot.lane.b32.xlu0 %v2295, 64
      %v2349 = vpop.permute.xlu0 %2348
      %2350 = vrot.lane.b32.xlu0 %v2296, 64
      %v2351 = vpop.permute.xlu0 %2350
      %2352 = vrot.lane.b32.xlu0 %v2297, 64
      %v2353 = vpop.permute.xlu0 %2352
      %2354 = vrot.lane.b32.xlu0 %v2298, 64
      %v2355 = vpop.permute.xlu0 %2354
      %2356 = vrot.lane.b32.xlu0 %v2299, 64
      %v2357 = vpop.permute.xlu0 %2356
      %2358 = vrot.lane.b32.xlu0 %v2300, 64
      %v2359 = vpop.permute.xlu0 %2358
      %2360 = vrot.lane.b32.xlu0 %v2301, 64
      %v2361 = vpop.permute.xlu0 %2360
      %2362 = vrot.lane.b32.xlu0 %v2302, 64
      %v2363 = vpop.permute.xlu0 %2362
      %2364 = vrot.lane.b32.xlu0 %v2303, 64
      %v2365 = vpop.permute.xlu0 %2364
      %2366 = vrot.lane.b32.xlu0 %v2304, 64
      %v2367 = vpop.permute.xlu0 %2366
      %2368 = vrot.lane.b32.xlu0 %v2305, 64
      %v2369 = vpop.permute.xlu0 %2368
      %v2371 = vsel %vm393, %v1218, 0
      %v2374 = vsel %vm393, %v1219, 0
      %v2377 = vsel %vm393, %v1220, 0
      %v2380 = vsel %vm393, %v1221, 0
      %v2383 = vsel %vm393, %v2307, 0
      %v2386 = vsel %vm393, %v2309, 0
      %v2389 = vsel %vm393, %v2311, 0
      %v2392 = vsel %vm393, %v2313, 0
      %v2395 = vsel %vm393, %v2315, 0
      %v2398 = vsel %vm393, %v2317, 0
      %v2401 = vsel %vm393, %v2319, 0
      %v2404 = vsel %vm393, %v2321, 0
      %v2407 = vsel %vm393, %v2323, 0
      %v2410 = vsel %vm393, %v2325, 0
      %v2413 = vsel %vm393, %v2327, 0
      %v2416 = vsel %vm393, %v2329, 0
      %v2419 = vsel %vm393, %v2331, 0
      %v2422 = vsel %vm393, %v2333, 0
      %v2425 = vsel %vm393, %v2335, 0
      %v2428 = vsel %vm393, %v2337, 0
      %v2431 = vsel %vm393, %v2339, 0
      %v2434 = vsel %vm393, %v2341, 0
      %v2437 = vsel %vm393, %v2343, 0
      %v2440 = vsel %vm393, %v2345, 0
      %v2443 = vsel %vm393, %v2347, 0
      %v2446 = vsel %vm393, %v2349, 0
      %v2449 = vsel %vm393, %v2351, 0
      %v2452 = vsel %vm393, %v2353, 0
      %v2455 = vsel %vm393, %v2355, 0
      %v2458 = vsel %vm393, %v2357, 0
      %v2461 = vsel %vm393, %v2359, 0
      %v2464 = vsel %vm393, %v2361, 0
      %v2467 = vsel %vm393, %v2363, 0
      %v2470 = vsel %vm393, %v2365, 0
      %v2473 = vsel %vm393, %v2367, 0
      %v2476 = vsel %vm393, %v2369, 0
      %2478 = vmatpush.bf16.xpose.msra.mxu0 %v2404
      %2479 = vmatpush.bf16.xpose.msra.mxu0 %v2401
      %2480 = vmatpush.bf16.xpose.msra.mxu0 %v2398
      %2481 = vmatpush.bf16.xpose.msra.mxu0 %v2395
      %2482 = vmatpush.bf16.xpose.msra.mxu0 %v2392
      %2483 = vmatpush.bf16.xpose.msra.mxu0 %v2389
      %2484 = vmatpush.bf16.xpose.msra.mxu0 %v2386
      %2485 = vmatpush.bf16.xpose.msra.mxu0 %v2383
      %2486 = vmatmul.bf16.gmra.mxu0 %v2371
      %v2487 = vpop.f32.mrf.mxu0
      %v2488 = vadd.f32 %v2114, %v2487
      %v2489 = vpop.f32.mrf.mxu0
      %v2490 = vadd.f32 %v2118, %v2489
      %2491 = vmatmul.bf16.gmra.mxu0 %v2374
      %v2492 = vpop.f32.mrf.mxu0
      %v2493 = vadd.f32 %v2122, %v2492
      %v2494 = vpop.f32.mrf.mxu0
      %v2495 = vadd.f32 %v2126, %v2494
      %2496 = vmatmul.bf16.gmra.mxu0 %v2377
      %v2497 = vpop.f32.mrf.mxu0
      %v2498 = vadd.f32 %v2130, %v2497
      %v2499 = vpop.f32.mrf.mxu0
      %v2500 = vadd.f32 %v2134, %v2499
      %2501 = vmatmul.bf16.gmra.mxu0 %v2380
      %v2502 = vpop.f32.mrf.mxu0
      %v2503 = vadd.f32 %v2138, %v2502
      %v2504 = vpop.f32.mrf.mxu0
      %v2505 = vadd.f32 %v2142, %v2504
      %2506 = vdwg.mxu0
      %2507 = vmatpush.bf16.xpose.msra.mxu0 %v2428
      %2508 = vmatpush.bf16.xpose.msra.mxu0 %v2425
      %2509 = vmatpush.bf16.xpose.msra.mxu0 %v2422
      %2510 = vmatpush.bf16.xpose.msra.mxu0 %v2419
      %2511 = vmatpush.bf16.xpose.msra.mxu0 %v2416
      %2512 = vmatpush.bf16.xpose.msra.mxu0 %v2413
      %2513 = vmatpush.bf16.xpose.msra.mxu0 %v2410
      %2514 = vmatpush.bf16.xpose.msra.mxu0 %v2407
      %2515 = vmatmul.bf16.gmra.mxu0 %v2371
      %v2516 = vpop.f32.mrf.mxu0
      %v2517 = vadd.f32 %v2115, %v2516
      %v2518 = vpop.f32.mrf.mxu0
      %v2519 = vadd.f32 %v2119, %v2518
      %2520 = vmatmul.bf16.gmra.mxu0 %v2374
      %v2521 = vpop.f32.mrf.mxu0
      %v2522 = vadd.f32 %v2123, %v2521
      %v2523 = vpop.f32.mrf.mxu0
      %v2524 = vadd.f32 %v2127, %v2523
      %2525 = vmatmul.bf16.gmra.mxu0 %v2377
      %v2526 = vpop.f32.mrf.mxu0
      %v2527 = vadd.f32 %v2131, %v2526
      %v2528 = vpop.f32.mrf.mxu0
      %v2529 = vadd.f32 %v2135, %v2528
      %2530 = vmatmul.bf16.gmra.mxu0 %v2380
      %v2531 = vpop.f32.mrf.mxu0
      %v2532 = vadd.f32 %v2139, %v2531
      %v2533 = vpop.f32.mrf.mxu0
      %v2534 = vadd.f32 %v2143, %v2533
      %2535 = vdwg.mxu0
      %2536 = vmatpush.bf16.xpose.msra.mxu0 %v2452
      %2537 = vmatpush.bf16.xpose.msra.mxu0 %v2449
      %2538 = vmatpush.bf16.xpose.msra.mxu0 %v2446
      %2539 = vmatpush.bf16.xpose.msra.mxu0 %v2443
      %2540 = vmatpush.bf16.xpose.msra.mxu0 %v2440
      %2541 = vmatpush.bf16.xpose.msra.mxu0 %v2437
      %2542 = vmatpush.bf16.xpose.msra.mxu0 %v2434
      %2543 = vmatpush.bf16.xpose.msra.mxu0 %v2431
      %2544 = vmatmul.bf16.gmra.mxu0 %v2371
      %v2545 = vpop.f32.mrf.mxu0
      %v2546 = vadd.f32 %v2116, %v2545
      %v2547 = vpop.f32.mrf.mxu0
      %v2548 = vadd.f32 %v2120, %v2547
      %2549 = vmatmul.bf16.gmra.mxu0 %v2374
      %v2550 = vpop.f32.mrf.mxu0
      %v2551 = vadd.f32 %v2124, %v2550
      %v2552 = vpop.f32.mrf.mxu0
      %v2553 = vadd.f32 %v2128, %v2552
      %2554 = vmatmul.bf16.gmra.mxu0 %v2377
      %v2555 = vpop.f32.mrf.mxu0
      %v2556 = vadd.f32 %v2132, %v2555
      %v2557 = vpop.f32.mrf.mxu0
      %v2558 = vadd.f32 %v2136, %v2557
      %2559 = vmatmul.bf16.gmra.mxu0 %v2380
      %v2560 = vpop.f32.mrf.mxu0
      %v2561 = vadd.f32 %v2140, %v2560
      %v2562 = vpop.f32.mrf.mxu0
      %v2563 = vadd.f32 %v2144, %v2562
      %2564 = vdwg.mxu0
      %2565 = vmatpush.bf16.xpose.msra.mxu0 %v2476
      %2566 = vmatpush.bf16.xpose.msra.mxu0 %v2473
      %2567 = vmatpush.bf16.xpose.msra.mxu0 %v2470
      %2568 = vmatpush.bf16.xpose.msra.mxu0 %v2467
      %2569 = vmatpush.bf16.xpose.msra.mxu0 %v2464
      %2570 = vmatpush.bf16.xpose.msra.mxu0 %v2461
      %2571 = vmatpush.bf16.xpose.msra.mxu0 %v2458
      %2572 = vmatpush.bf16.xpose.msra.mxu0 %v2455
      %2573 = vmatmul.bf16.gmra.mxu0 %v2371
      %v2574 = vpop.f32.mrf.mxu0
      %v2575 = vadd.f32 %v2117, %v2574
      %v2576 = vpop.f32.mrf.mxu0
      %v2577 = vadd.f32 %v2121, %v2576
      %2578 = vmatmul.bf16.gmra.mxu0 %v2374
      %v2579 = vpop.f32.mrf.mxu0
      %v2580 = vadd.f32 %v2125, %v2579
      %v2581 = vpop.f32.mrf.mxu0
      %v2582 = vadd.f32 %v2129, %v2581
      %2583 = vmatmul.bf16.gmra.mxu0 %v2377
      %v2584 = vpop.f32.mrf.mxu0
      %v2585 = vadd.f32 %v2133, %v2584
      %v2586 = vpop.f32.mrf.mxu0
      %v2587 = vadd.f32 %v2137, %v2586
      %2588 = vmatmul.bf16.gmra.mxu0 %v2380
      %v2589 = vpop.f32.mrf.mxu0
      %v2590 = vadd.f32 %v2141, %v2589
      %v2591 = vpop.f32.mrf.mxu0
      %v2592 = vadd.f32 %v2145, %v2591
      %2593 = vdwg.mxu0
      %v2658 = vunpack.c.l.b16 %v1922
      %v2659 = vunpack.c.l.b16 %v1923
      %v2660 = vunpack.c.l.b16 %v1924
      %v2661 = vunpack.c.l.b16 %v1925
      %v2662 = vunpack.c.l.b16 %v1926
      %v2663 = vunpack.c.l.b16 %v1927
      %v2664 = vunpack.c.l.b16 %v1928
      %v2665 = vunpack.c.l.b16 %v1929
      %v2666 = vunpack.c.l.b16 %v1930
      %v2667 = vunpack.c.l.b16 %v1931
      %v2668 = vunpack.c.l.b16 %v1932
      %v2669 = vunpack.c.l.b16 %v1933
      %v2670 = vunpack.c.l.b16 %v1934
      %v2671 = vunpack.c.l.b16 %v1935
      %v2672 = vunpack.c.l.b16 %v1936
      %v2673 = vunpack.c.l.b16 %v1937
      %v2674 = vunpack.c.l.b16 %v1938
      %v2675 = vunpack.c.l.b16 %v1939
      %v2676 = vunpack.c.l.b16 %v1940
      %v2677 = vunpack.c.l.b16 %v1941
      %v2678 = vunpack.c.l.b16 %v1942
      %v2679 = vunpack.c.l.b16 %v1943
      %v2680 = vunpack.c.l.b16 %v1944
      %v2681 = vunpack.c.l.b16 %v1945
      %v2682 = vunpack.c.l.b16 %v1946
      %v2683 = vunpack.c.l.b16 %v1947
      %v2684 = vunpack.c.l.b16 %v1948
      %v2685 = vunpack.c.l.b16 %v1949
      %v2686 = vunpack.c.l.b16 %v1950
      %v2687 = vunpack.c.l.b16 %v1951
      %v2688 = vunpack.c.l.b16 %v1952
      %v2689 = vunpack.c.l.b16 %v1953
      %v2690 = vunpack.c.l.b16 %v1954
      %v2691 = vunpack.c.l.b16 %v1955
      %v2692 = vunpack.c.l.b16 %v1956
      %v2693 = vunpack.c.l.b16 %v1957
      %v2694 = vunpack.c.l.b16 %v1958
      %v2695 = vunpack.c.l.b16 %v1959
      %v2696 = vunpack.c.l.b16 %v1960
      %v2697 = vunpack.c.l.b16 %v1961
      %v2698 = vunpack.c.l.b16 %v1962
      %v2699 = vunpack.c.l.b16 %v1963
      %v2700 = vunpack.c.l.b16 %v1964
      %v2701 = vunpack.c.l.b16 %v1965
      %v2702 = vunpack.c.l.b16 %v1966
      %v2703 = vunpack.c.l.b16 %v1967
      %v2704 = vunpack.c.l.b16 %v1968
      %v2705 = vunpack.c.l.b16 %v1969
      %v2706 = vunpack.c.l.b16 %v1970
      %v2707 = vunpack.c.l.b16 %v1971
      %v2708 = vunpack.c.l.b16 %v1972
      %v2709 = vunpack.c.l.b16 %v1973
      %v2710 = vunpack.c.l.b16 %v1974
      %v2711 = vunpack.c.l.b16 %v1975
      %v2712 = vunpack.c.l.b16 %v1976
      %v2713 = vunpack.c.l.b16 %v1977
      %v2714 = vunpack.c.l.b16 %v1978
      %v2715 = vunpack.c.l.b16 %v1979
      %v2716 = vunpack.c.l.b16 %v1980
      %v2717 = vunpack.c.l.b16 %v1981
      %v2718 = vunpack.c.l.b16 %v1982
      %v2719 = vunpack.c.l.b16 %v1983
      %v2720 = vunpack.c.l.b16 %v1984
      %v2721 = vunpack.c.l.b16 %v1985
      %v2722 = vpack.c.b16 %v2659, %v2658
      %v2723 = vpack.c.b16 %v2661, %v2660
      %v2724 = vpack.c.b16 %v2663, %v2662
      %v2725 = vpack.c.b16 %v2665, %v2664
      %v2726 = vpack.c.b16 %v2667, %v2666
      %v2727 = vpack.c.b16 %v2669, %v2668
      %v2728 = vpack.c.b16 %v2671, %v2670
      %v2729 = vpack.c.b16 %v2673, %v2672
      %v2730 = vpack.c.b16 %v2675, %v2674
      %v2731 = vpack.c.b16 %v2677, %v2676
      %v2732 = vpack.c.b16 %v2679, %v2678
      %v2733 = vpack.c.b16 %v2681, %v2680
      %v2734 = vpack.c.b16 %v2683, %v2682
      %v2735 = vpack.c.b16 %v2685, %v2684
      %v2736 = vpack.c.b16 %v2687, %v2686
      %v2737 = vpack.c.b16 %v2689, %v2688
      %v2738 = vpack.c.b16 %v2691, %v2690
      %v2739 = vpack.c.b16 %v2693, %v2692
      %v2740 = vpack.c.b16 %v2695, %v2694
      %v2741 = vpack.c.b16 %v2697, %v2696
      %v2742 = vpack.c.b16 %v2699, %v2698
      %v2743 = vpack.c.b16 %v2701, %v2700
      %v2744 = vpack.c.b16 %v2703, %v2702
      %v2745 = vpack.c.b16 %v2705, %v2704
      %v2746 = vpack.c.b16 %v2707, %v2706
      %v2747 = vpack.c.b16 %v2709, %v2708
      %v2748 = vpack.c.b16 %v2711, %v2710
      %v2749 = vpack.c.b16 %v2713, %v2712
      %v2750 = vpack.c.b16 %v2715, %v2714
      %v2751 = vpack.c.b16 %v2717, %v2716
      %v2752 = vpack.c.b16 %v2719, %v2718
      %v2753 = vpack.c.b16 %v2721, %v2720
      %2754 = vrot.lane.b32.xlu0 %v2722, 64
      %v2755 = vpop.permute.xlu0 %2754
      %2756 = vrot.lane.b32.xlu0 %v2723, 64
      %v2757 = vpop.permute.xlu0 %2756
      %2758 = vrot.lane.b32.xlu0 %v2724, 64
      %v2759 = vpop.permute.xlu0 %2758
      %2760 = vrot.lane.b32.xlu0 %v2725, 64
      %v2761 = vpop.permute.xlu0 %2760
      %2762 = vrot.lane.b32.xlu0 %v2726, 64
      %v2763 = vpop.permute.xlu0 %2762
      %2764 = vrot.lane.b32.xlu0 %v2727, 64
      %v2765 = vpop.permute.xlu0 %2764
      %2766 = vrot.lane.b32.xlu0 %v2728, 64
      %v2767 = vpop.permute.xlu0 %2766
      %2768 = vrot.lane.b32.xlu0 %v2729, 64
      %v2769 = vpop.permute.xlu0 %2768
      %2770 = vrot.lane.b32.xlu0 %v2730, 64
      %v2771 = vpop.permute.xlu0 %2770
      %2772 = vrot.lane.b32.xlu0 %v2731, 64
      %v2773 = vpop.permute.xlu0 %2772
      %2774 = vrot.lane.b32.xlu0 %v2732, 64
      %v2775 = vpop.permute.xlu0 %2774
      %2776 = vrot.lane.b32.xlu0 %v2733, 64
      %v2777 = vpop.permute.xlu0 %2776
      %2778 = vrot.lane.b32.xlu0 %v2734, 64
      %v2779 = vpop.permute.xlu0 %2778
      %2780 = vrot.lane.b32.xlu0 %v2735, 64
      %v2781 = vpop.permute.xlu0 %2780
      %2782 = vrot.lane.b32.xlu0 %v2736, 64
      %v2783 = vpop.permute.xlu0 %2782
      %2784 = vrot.lane.b32.xlu0 %v2737, 64
      %v2785 = vpop.permute.xlu0 %2784
      %2786 = vrot.lane.b32.xlu0 %v2738, 64
      %v2787 = vpop.permute.xlu0 %2786
      %2788 = vrot.lane.b32.xlu0 %v2739, 64
      %v2789 = vpop.permute.xlu0 %2788
      %2790 = vrot.lane.b32.xlu0 %v2740, 64
      %v2791 = vpop.permute.xlu0 %2790
      %2792 = vrot.lane.b32.xlu0 %v2741, 64
      %v2793 = vpop.permute.xlu0 %2792
      %2794 = vrot.lane.b32.xlu0 %v2742, 64
      %v2795 = vpop.permute.xlu0 %2794
      %2796 = vrot.lane.b32.xlu0 %v2743, 64
      %v2797 = vpop.permute.xlu0 %2796
      %2798 = vrot.lane.b32.xlu0 %v2744, 64
      %v2799 = vpop.permute.xlu0 %2798
      %2800 = vrot.lane.b32.xlu0 %v2745, 64
      %v2801 = vpop.permute.xlu0 %2800
      %2802 = vrot.lane.b32.xlu0 %v2746, 64
      %v2803 = vpop.permute.xlu0 %2802
      %2804 = vrot.lane.b32.xlu0 %v2747, 64
      %v2805 = vpop.permute.xlu0 %2804
      %2806 = vrot.lane.b32.xlu0 %v2748, 64
      %v2807 = vpop.permute.xlu0 %2806
      %2808 = vrot.lane.b32.xlu0 %v2749, 64
      %v2809 = vpop.permute.xlu0 %2808
      %2810 = vrot.lane.b32.xlu0 %v2750, 64
      %v2811 = vpop.permute.xlu0 %2810
      %2812 = vrot.lane.b32.xlu0 %v2751, 64
      %v2813 = vpop.permute.xlu0 %2812
      %2814 = vrot.lane.b32.xlu0 %v2752, 64
      %v2815 = vpop.permute.xlu0 %2814
      %2816 = vrot.lane.b32.xlu0 %v2753, 64
      %v2817 = vpop.permute.xlu0 %2816
      %v2819 = vsel %vm393, %v1222, 0
      %v2822 = vsel %vm393, %v1223, 0
      %v2825 = vsel %vm393, %v1224, 0
      %v2828 = vsel %vm393, %v1225, 0
      %v2831 = vsel %vm393, %v2755, 0
      %v2834 = vsel %vm393, %v2757, 0
      %v2837 = vsel %vm393, %v2759, 0
      %v2840 = vsel %vm393, %v2761, 0
      %v2843 = vsel %vm393, %v2763, 0
      %v2846 = vsel %vm393, %v2765, 0
      %v2849 = vsel %vm393, %v2767, 0
      %v2852 = vsel %vm393, %v2769, 0
      %v2855 = vsel %vm393, %v2771, 0
      %v2858 = vsel %vm393, %v2773, 0
      %v2861 = vsel %vm393, %v2775, 0
      %v2864 = vsel %vm393, %v2777, 0
      %v2867 = vsel %vm393, %v2779, 0
      %v2870 = vsel %vm393, %v2781, 0
      %v2873 = vsel %vm393, %v2783, 0
      %v2876 = vsel %vm393, %v2785, 0
      %v2879 = vsel %vm393, %v2787, 0
      %v2882 = vsel %vm393, %v2789, 0
      %v2885 = vsel %vm393, %v2791, 0
      %v2888 = vsel %vm393, %v2793, 0
      %v2891 = vsel %vm393, %v2795, 0
      %v2894 = vsel %vm393, %v2797, 0
      %v2897 = vsel %vm393, %v2799, 0
      %v2900 = vsel %vm393, %v2801, 0
      %v2903 = vsel %vm393, %v2803, 0
      %v2906 = vsel %vm393, %v2805, 0
      %v2909 = vsel %vm393, %v2807, 0
      %v2912 = vsel %vm393, %v2809, 0
      %v2915 = vsel %vm393, %v2811, 0
      %v2918 = vsel %vm393, %v2813, 0
      %v2921 = vsel %vm393, %v2815, 0
      %v2924 = vsel %vm393, %v2817, 0
      %2926 = vmatpush.bf16.xpose.msra.mxu0 %v2852
      %2927 = vmatpush.bf16.xpose.msra.mxu0 %v2849
      %2928 = vmatpush.bf16.xpose.msra.mxu0 %v2846
      %2929 = vmatpush.bf16.xpose.msra.mxu0 %v2843
      %2930 = vmatpush.bf16.xpose.msra.mxu0 %v2840
      %2931 = vmatpush.bf16.xpose.msra.mxu0 %v2837
      %2932 = vmatpush.bf16.xpose.msra.mxu0 %v2834
      %2933 = vmatpush.bf16.xpose.msra.mxu0 %v2831
      %2934 = vmatmul.bf16.gmra.mxu0 %v2819
      %v2935 = vpop.f32.mrf.mxu0
      %v2936 = vadd.f32 %v2114, %v2935
      %v2937 = vpop.f32.mrf.mxu0
      %v2938 = vadd.f32 %v2118, %v2937
      %2939 = vmatmul.bf16.gmra.mxu0 %v2822
      %v2940 = vpop.f32.mrf.mxu0
      %v2941 = vadd.f32 %v2122, %v2940
      %v2942 = vpop.f32.mrf.mxu0
      %v2943 = vadd.f32 %v2126, %v2942
      %2944 = vmatmul.bf16.gmra.mxu0 %v2825
      %v2945 = vpop.f32.mrf.mxu0
      %v2946 = vadd.f32 %v2130, %v2945
      %v2947 = vpop.f32.mrf.mxu0
      %v2948 = vadd.f32 %v2134, %v2947
      %2949 = vmatmul.bf16.gmra.mxu0 %v2828
      %v2950 = vpop.f32.mrf.mxu0
      %v2951 = vadd.f32 %v2138, %v2950
      %v2952 = vpop.f32.mrf.mxu0
      %v2953 = vadd.f32 %v2142, %v2952
      %2954 = vdwg.mxu0
      %2955 = vmatpush.bf16.xpose.msra.mxu0 %v2876
      %2956 = vmatpush.bf16.xpose.msra.mxu0 %v2873
      %2957 = vmatpush.bf16.xpose.msra.mxu0 %v2870
      %2958 = vmatpush.bf16.xpose.msra.mxu0 %v2867
      %2959 = vmatpush.bf16.xpose.msra.mxu0 %v2864
      %2960 = vmatpush.bf16.xpose.msra.mxu0 %v2861
      %2961 = vmatpush.bf16.xpose.msra.mxu0 %v2858
      %2962 = vmatpush.bf16.xpose.msra.mxu0 %v2855
      %2963 = vmatmul.bf16.gmra.mxu0 %v2819
      %v2964 = vpop.f32.mrf.mxu0
      %v2965 = vadd.f32 %v2115, %v2964
      %v2966 = vpop.f32.mrf.mxu0
      %v2967 = vadd.f32 %v2119, %v2966
      %2968 = vmatmul.bf16.gmra.mxu0 %v2822
      %v2969 = vpop.f32.mrf.mxu0
      %v2970 = vadd.f32 %v2123, %v2969
      %v2971 = vpop.f32.mrf.mxu0
      %v2972 = vadd.f32 %v2127, %v2971
      %2973 = vmatmul.bf16.gmra.mxu0 %v2825
      %v2974 = vpop.f32.mrf.mxu0
      %v2975 = vadd.f32 %v2131, %v2974
      %v2976 = vpop.f32.mrf.mxu0
      %v2977 = vadd.f32 %v2135, %v2976
      %2978 = vmatmul.bf16.gmra.mxu0 %v2828
      %v2979 = vpop.f32.mrf.mxu0
      %v2980 = vadd.f32 %v2139, %v2979
      %v2981 = vpop.f32.mrf.mxu0
      %v2982 = vadd.f32 %v2143, %v2981
      %2983 = vdwg.mxu0
      %2984 = vmatpush.bf16.xpose.msra.mxu0 %v2900
      %2985 = vmatpush.bf16.xpose.msra.mxu0 %v2897
      %2986 = vmatpush.bf16.xpose.msra.mxu0 %v2894
      %2987 = vmatpush.bf16.xpose.msra.mxu0 %v2891
      %2988 = vmatpush.bf16.xpose.msra.mxu0 %v2888
      %2989 = vmatpush.bf16.xpose.msra.mxu0 %v2885
      %2990 = vmatpush.bf16.xpose.msra.mxu0 %v2882
      %2991 = vmatpush.bf16.xpose.msra.mxu0 %v2879
      %2992 = vmatmul.bf16.gmra.mxu0 %v2819
      %v2993 = vpop.f32.mrf.mxu0
      %v2994 = vadd.f32 %v2116, %v2993
      %v2995 = vpop.f32.mrf.mxu0
      %v2996 = vadd.f32 %v2120, %v2995
      %2997 = vmatmul.bf16.gmra.mxu0 %v2822
      %v2998 = vpop.f32.mrf.mxu0
      %v2999 = vadd.f32 %v2124, %v2998
      %v3000 = vpop.f32.mrf.mxu0
      %v3001 = vadd.f32 %v2128, %v3000
      %3002 = vmatmul.bf16.gmra.mxu0 %v2825
      %v3003 = vpop.f32.mrf.mxu0
      %v3004 = vadd.f32 %v2132, %v3003
      %v3005 = vpop.f32.mrf.mxu0
      %v3006 = vadd.f32 %v2136, %v3005
      %3007 = vmatmul.bf16.gmra.mxu0 %v2828
      %v3008 = vpop.f32.mrf.mxu0
      %v3009 = vadd.f32 %v2140, %v3008
      %v3010 = vpop.f32.mrf.mxu0
      %v3011 = vadd.f32 %v2144, %v3010
      %3012 = vdwg.mxu0
      %3013 = vmatpush.bf16.xpose.msra.mxu0 %v2924
      %3014 = vmatpush.bf16.xpose.msra.mxu0 %v2921
      %3015 = vmatpush.bf16.xpose.msra.mxu0 %v2918
      %3016 = vmatpush.bf16.xpose.msra.mxu0 %v2915
      %3017 = vmatpush.bf16.xpose.msra.mxu0 %v2912
      %3018 = vmatpush.bf16.xpose.msra.mxu0 %v2909
      %3019 = vmatpush.bf16.xpose.msra.mxu0 %v2906
      %3020 = vmatpush.bf16.xpose.msra.mxu0 %v2903
      %3021 = vmatmul.bf16.gmra.mxu0 %v2819
      %v3022 = vpop.f32.mrf.mxu0
      %v3023 = vadd.f32 %v2117, %v3022
      %v3024 = vpop.f32.mrf.mxu0
      %v3025 = vadd.f32 %v2121, %v3024
      %3026 = vmatmul.bf16.gmra.mxu0 %v2822
      %v3027 = vpop.f32.mrf.mxu0
      %v3028 = vadd.f32 %v2125, %v3027
      %v3029 = vpop.f32.mrf.mxu0
      %v3030 = vadd.f32 %v2129, %v3029
      %3031 = vmatmul.bf16.gmra.mxu0 %v2825
      %v3032 = vpop.f32.mrf.mxu0
      %v3033 = vadd.f32 %v2133, %v3032
      %v3034 = vpop.f32.mrf.mxu0
      %v3035 = vadd.f32 %v2137, %v3034
      %3036 = vmatmul.bf16.gmra.mxu0 %v2828
      %v3037 = vpop.f32.mrf.mxu0
      %v3038 = vadd.f32 %v2141, %v3037
      %v3039 = vpop.f32.mrf.mxu0
      %v3040 = vadd.f32 %v2145, %v3039
      %3041 = vdwg.mxu0
      %v3106 = vunpack.c.l.b16 %v1986
      %v3107 = vunpack.c.l.b16 %v1987
      %v3108 = vunpack.c.l.b16 %v1988
      %v3109 = vunpack.c.l.b16 %v1989
      %v3110 = vunpack.c.l.b16 %v1990
      %v3111 = vunpack.c.l.b16 %v1991
      %v3112 = vunpack.c.l.b16 %v1992
      %v3113 = vunpack.c.l.b16 %v1993
      %v3114 = vunpack.c.l.b16 %v1994
      %v3115 = vunpack.c.l.b16 %v1995
      %v3116 = vunpack.c.l.b16 %v1996
      %v3117 = vunpack.c.l.b16 %v1997
      %v3118 = vunpack.c.l.b16 %v1998
      %v3119 = vunpack.c.l.b16 %v1999
      %v3120 = vunpack.c.l.b16 %v2000
      %v3121 = vunpack.c.l.b16 %v2001
      %v3122 = vunpack.c.l.b16 %v2002
      %v3123 = vunpack.c.l.b16 %v2003
      %v3124 = vunpack.c.l.b16 %v2004
      %v3125 = vunpack.c.l.b16 %v2005
      %v3126 = vunpack.c.l.b16 %v2006
      %v3127 = vunpack.c.l.b16 %v2007
      %v3128 = vunpack.c.l.b16 %v2008
      %v3129 = vunpack.c.l.b16 %v2009
      %v3130 = vunpack.c.l.b16 %v2010
      %v3131 = vunpack.c.l.b16 %v2011
      %v3132 = vunpack.c.l.b16 %v2012
      %v3133 = vunpack.c.l.b16 %v2013
      %v3134 = vunpack.c.l.b16 %v2014
      %v3135 = vunpack.c.l.b16 %v2015
      %v3136 = vunpack.c.l.b16 %v2016
      %v3137 = vunpack.c.l.b16 %v2017
      %v3138 = vunpack.c.l.b16 %v2018
      %v3139 = vunpack.c.l.b16 %v2019
      %v3140 = vunpack.c.l.b16 %v2020
      %v3141 = vunpack.c.l.b16 %v2021
      %v3142 = vunpack.c.l.b16 %v2022
      %v3143 = vunpack.c.l.b16 %v2023
      %v3144 = vunpack.c.l.b16 %v2024
      %v3145 = vunpack.c.l.b16 %v2025
      %v3146 = vunpack.c.l.b16 %v2026
      %v3147 = vunpack.c.l.b16 %v2027
      %v3148 = vunpack.c.l.b16 %v2028
      %v3149 = vunpack.c.l.b16 %v2029
      %v3150 = vunpack.c.l.b16 %v2030
      %v3151 = vunpack.c.l.b16 %v2031
      %v3152 = vunpack.c.l.b16 %v2032
      %v3153 = vunpack.c.l.b16 %v2033
      %v3154 = vunpack.c.l.b16 %v2034
      %v3155 = vunpack.c.l.b16 %v2035
      %v3156 = vunpack.c.l.b16 %v2036
      %v3157 = vunpack.c.l.b16 %v2037
      %v3158 = vunpack.c.l.b16 %v2038
      %v3159 = vunpack.c.l.b16 %v2039
      %v3160 = vunpack.c.l.b16 %v2040
      %v3161 = vunpack.c.l.b16 %v2041
      %v3162 = vunpack.c.l.b16 %v2042
      %v3163 = vunpack.c.l.b16 %v2043
      %v3164 = vunpack.c.l.b16 %v2044
      %v3165 = vunpack.c.l.b16 %v2045
      %v3166 = vunpack.c.l.b16 %v2046
      %v3167 = vunpack.c.l.b16 %v2047
      %v3168 = vunpack.c.l.b16 %v2048
      %v3169 = vunpack.c.l.b16 %v2049
      %v3170 = vpack.c.b16 %v3107, %v3106
      %v3171 = vpack.c.b16 %v3109, %v3108
      %v3172 = vpack.c.b16 %v3111, %v3110
      %v3173 = vpack.c.b16 %v3113, %v3112
      %v3174 = vpack.c.b16 %v3115, %v3114
      %v3175 = vpack.c.b16 %v3117, %v3116
      %v3176 = vpack.c.b16 %v3119, %v3118
      %v3177 = vpack.c.b16 %v3121, %v3120
      %v3178 = vpack.c.b16 %v3123, %v3122
      %v3179 = vpack.c.b16 %v3125, %v3124
      %v3180 = vpack.c.b16 %v3127, %v3126
      %v3181 = vpack.c.b16 %v3129, %v3128
      %v3182 = vpack.c.b16 %v3131, %v3130
      %v3183 = vpack.c.b16 %v3133, %v3132
      %v3184 = vpack.c.b16 %v3135, %v3134
      %v3185 = vpack.c.b16 %v3137, %v3136
      %v3186 = vpack.c.b16 %v3139, %v3138
      %v3187 = vpack.c.b16 %v3141, %v3140
      %v3188 = vpack.c.b16 %v3143, %v3142
      %v3189 = vpack.c.b16 %v3145, %v3144
      %v3190 = vpack.c.b16 %v3147, %v3146
      %v3191 = vpack.c.b16 %v3149, %v3148
      %v3192 = vpack.c.b16 %v3151, %v3150
      %v3193 = vpack.c.b16 %v3153, %v3152
      %v3194 = vpack.c.b16 %v3155, %v3154
      %v3195 = vpack.c.b16 %v3157, %v3156
      %v3196 = vpack.c.b16 %v3159, %v3158
      %v3197 = vpack.c.b16 %v3161, %v3160
      %v3198 = vpack.c.b16 %v3163, %v3162
      %v3199 = vpack.c.b16 %v3165, %v3164
      %v3200 = vpack.c.b16 %v3167, %v3166
      %v3201 = vpack.c.b16 %v3169, %v3168
      %3202 = vrot.lane.b32.xlu0 %v3170, 64
      %v3203 = vpop.permute.xlu0 %3202
      %3204 = vrot.lane.b32.xlu0 %v3171, 64
      %v3205 = vpop.permute.xlu0 %3204
      %3206 = vrot.lane.b32.xlu0 %v3172, 64
      %v3207 = vpop.permute.xlu0 %3206
      %3208 = vrot.lane.b32.xlu0 %v3173, 64
      %v3209 = vpop.permute.xlu0 %3208
      %3210 = vrot.lane.b32.xlu0 %v3174, 64
      %v3211 = vpop.permute.xlu0 %3210
      %3212 = vrot.lane.b32.xlu0 %v3175, 64
      %v3213 = vpop.permute.xlu0 %3212
      %3214 = vrot.lane.b32.xlu0 %v3176, 64
      %v3215 = vpop.permute.xlu0 %3214
      %3216 = vrot.lane.b32.xlu0 %v3177, 64
      %v3217 = vpop.permute.xlu0 %3216
      %3218 = vrot.lane.b32.xlu0 %v3178, 64
      %v3219 = vpop.permute.xlu0 %3218
      %3220 = vrot.lane.b32.xlu0 %v3179, 64
      %v3221 = vpop.permute.xlu0 %3220
      %3222 = vrot.lane.b32.xlu0 %v3180, 64
      %v3223 = vpop.permute.xlu0 %3222
      %3224 = vrot.lane.b32.xlu0 %v3181, 64
      %v3225 = vpop.permute.xlu0 %3224
      %3226 = vrot.lane.b32.xlu0 %v3182, 64
      %v3227 = vpop.permute.xlu0 %3226
      %3228 = vrot.lane.b32.xlu0 %v3183, 64
      %v3229 = vpop.permute.xlu0 %3228
      %3230 = vrot.lane.b32.xlu0 %v3184, 64
      %v3231 = vpop.permute.xlu0 %3230
      %3232 = vrot.lane.b32.xlu0 %v3185, 64
      %v3233 = vpop.permute.xlu0 %3232
      %3234 = vrot.lane.b32.xlu0 %v3186, 64
      %v3235 = vpop.permute.xlu0 %3234
      %3236 = vrot.lane.b32.xlu0 %v3187, 64
      %v3237 = vpop.permute.xlu0 %3236
      %3238 = vrot.lane.b32.xlu0 %v3188, 64
      %v3239 = vpop.permute.xlu0 %3238
      %3240 = vrot.lane.b32.xlu0 %v3189, 64
      %v3241 = vpop.permute.xlu0 %3240
      %3242 = vrot.lane.b32.xlu0 %v3190, 64
      %v3243 = vpop.permute.xlu0 %3242
      %3244 = vrot.lane.b32.xlu0 %v3191, 64
      %v3245 = vpop.permute.xlu0 %3244
      %3246 = vrot.lane.b32.xlu0 %v3192, 64
      %v3247 = vpop.permute.xlu0 %3246
      %3248 = vrot.lane.b32.xlu0 %v3193, 64
      %v3249 = vpop.permute.xlu0 %3248
      %3250 = vrot.lane.b32.xlu0 %v3194, 64
      %v3251 = vpop.permute.xlu0 %3250
      %3252 = vrot.lane.b32.xlu0 %v3195, 64
      %v3253 = vpop.permute.xlu0 %3252
      %3254 = vrot.lane.b32.xlu0 %v3196, 64
      %v3255 = vpop.permute.xlu0 %3254
      %3256 = vrot.lane.b32.xlu0 %v3197, 64
      %v3257 = vpop.permute.xlu0 %3256
      %3258 = vrot.lane.b32.xlu0 %v3198, 64
      %v3259 = vpop.permute.xlu0 %3258
      %3260 = vrot.lane.b32.xlu0 %v3199, 64
      %v3261 = vpop.permute.xlu0 %3260
      %3262 = vrot.lane.b32.xlu0 %v3200, 64
      %v3263 = vpop.permute.xlu0 %3262
      %3264 = vrot.lane.b32.xlu0 %v3201, 64
      %v3265 = vpop.permute.xlu0 %3264
      %v3267 = vsel %vm393, %v1226, 0
      %v3270 = vsel %vm393, %v1227, 0
      %v3273 = vsel %vm393, %v1228, 0
      %v3276 = vsel %vm393, %v1229, 0
      %v3279 = vsel %vm393, %v3203, 0
      %v3282 = vsel %vm393, %v3205, 0
      %v3285 = vsel %vm393, %v3207, 0
      %v3288 = vsel %vm393, %v3209, 0
      %v3291 = vsel %vm393, %v3211, 0
      %v3294 = vsel %vm393, %v3213, 0
      %v3297 = vsel %vm393, %v3215, 0
      %v3300 = vsel %vm393, %v3217, 0
      %v3303 = vsel %vm393, %v3219, 0
      %v3306 = vsel %vm393, %v3221, 0
      %v3309 = vsel %vm393, %v3223, 0
      %v3312 = vsel %vm393, %v3225, 0
      %v3315 = vsel %vm393, %v3227, 0
      %v3318 = vsel %vm393, %v3229, 0
      %v3321 = vsel %vm393, %v3231, 0
      %v3324 = vsel %vm393, %v3233, 0
      %v3327 = vsel %vm393, %v3235, 0
      %v3330 = vsel %vm393, %v3237, 0
      %v3333 = vsel %vm393, %v3239, 0
      %v3336 = vsel %vm393, %v3241, 0
      %v3339 = vsel %vm393, %v3243, 0
      %v3342 = vsel %vm393, %v3245, 0
      %v3345 = vsel %vm393, %v3247, 0
      %v3348 = vsel %vm393, %v3249, 0
      %v3351 = vsel %vm393, %v3251, 0
      %v3354 = vsel %vm393, %v3253, 0
      %v3357 = vsel %vm393, %v3255, 0
      %v3360 = vsel %vm393, %v3257, 0
      %v3363 = vsel %vm393, %v3259, 0
      %v3366 = vsel %vm393, %v3261, 0
      %v3369 = vsel %vm393, %v3263, 0
      %v3372 = vsel %vm393, %v3265, 0
      %3374 = vmatpush.bf16.xpose.msra.mxu0 %v3300
      %3375 = vmatpush.bf16.xpose.msra.mxu0 %v3297
      %3376 = vmatpush.bf16.xpose.msra.mxu0 %v3294
      %3377 = vmatpush.bf16.xpose.msra.mxu0 %v3291
      %3378 = vmatpush.bf16.xpose.msra.mxu0 %v3288
      %3379 = vmatpush.bf16.xpose.msra.mxu0 %v3285
      %3380 = vmatpush.bf16.xpose.msra.mxu0 %v3282
      %3381 = vmatpush.bf16.xpose.msra.mxu0 %v3279
      %3382 = vmatmul.bf16.gmra.mxu0 %v3267
      %v3383 = vpop.f32.mrf.mxu0
      %v3384 = vadd.f32 %v2114, %v3383
      %v3385 = vpop.f32.mrf.mxu0
      %v3386 = vadd.f32 %v2118, %v3385
      %3387 = vmatmul.bf16.gmra.mxu0 %v3270
      %v3388 = vpop.f32.mrf.mxu0
      %v3389 = vadd.f32 %v2122, %v3388
      %v3390 = vpop.f32.mrf.mxu0
      %v3391 = vadd.f32 %v2126, %v3390
      %3392 = vmatmul.bf16.gmra.mxu0 %v3273
      %v3393 = vpop.f32.mrf.mxu0
      %v3394 = vadd.f32 %v2130, %v3393
      %v3395 = vpop.f32.mrf.mxu0
      %v3396 = vadd.f32 %v2134, %v3395
      %3397 = vmatmul.bf16.gmra.mxu0 %v3276
      %v3398 = vpop.f32.mrf.mxu0
      %v3399 = vadd.f32 %v2138, %v3398
      %v3400 = vpop.f32.mrf.mxu0
      %v3401 = vadd.f32 %v2142, %v3400
      %3402 = vdwg.mxu0
      %3403 = vmatpush.bf16.xpose.msra.mxu0 %v3324
      %3404 = vmatpush.bf16.xpose.msra.mxu0 %v3321
      %3405 = vmatpush.bf16.xpose.msra.mxu0 %v3318
      %3406 = vmatpush.bf16.xpose.msra.mxu0 %v3315
      %3407 = vmatpush.bf16.xpose.msra.mxu0 %v3312
      %3408 = vmatpush.bf16.xpose.msra.mxu0 %v3309
      %3409 = vmatpush.bf16.xpose.msra.mxu0 %v3306
      %3410 = vmatpush.bf16.xpose.msra.mxu0 %v3303
      %3411 = vmatmul.bf16.gmra.mxu0 %v3267
      %v3412 = vpop.f32.mrf.mxu0
      %v3413 = vadd.f32 %v2115, %v3412
      %v3414 = vpop.f32.mrf.mxu0
      %v3415 = vadd.f32 %v2119, %v3414
      %3416 = vmatmul.bf16.gmra.mxu0 %v3270
      %v3417 = vpop.f32.mrf.mxu0
      %v3418 = vadd.f32 %v2123, %v3417
      %v3419 = vpop.f32.mrf.mxu0
      %v3420 = vadd.f32 %v2127, %v3419
      %3421 = vmatmul.bf16.gmra.mxu0 %v3273
      %v3422 = vpop.f32.mrf.mxu0
      %v3423 = vadd.f32 %v2131, %v3422
      %v3424 = vpop.f32.mrf.mxu0
      %v3425 = vadd.f32 %v2135, %v3424
      %3426 = vmatmul.bf16.gmra.mxu0 %v3276
      %v3427 = vpop.f32.mrf.mxu0
      %v3428 = vadd.f32 %v2139, %v3427
      %v3429 = vpop.f32.mrf.mxu0
      %v3430 = vadd.f32 %v2143, %v3429
      %3431 = vdwg.mxu0
      %3432 = vmatpush.bf16.xpose.msra.mxu0 %v3348
      %3433 = vmatpush.bf16.xpose.msra.mxu0 %v3345
      %3434 = vmatpush.bf16.xpose.msra.mxu0 %v3342
      %3435 = vmatpush.bf16.xpose.msra.mxu0 %v3339
      %3436 = vmatpush.bf16.xpose.msra.mxu0 %v3336
      %3437 = vmatpush.bf16.xpose.msra.mxu0 %v3333
      %3438 = vmatpush.bf16.xpose.msra.mxu0 %v3330
      %3439 = vmatpush.bf16.xpose.msra.mxu0 %v3327
      %3440 = vmatmul.bf16.gmra.mxu0 %v3267
      %v3441 = vpop.f32.mrf.mxu0
      %v3442 = vadd.f32 %v2116, %v3441
      %v3443 = vpop.f32.mrf.mxu0
      %v3444 = vadd.f32 %v2120, %v3443
      %3445 = vmatmul.bf16.gmra.mxu0 %v3270
      %v3446 = vpop.f32.mrf.mxu0
      %v3447 = vadd.f32 %v2124, %v3446
      %v3448 = vpop.f32.mrf.mxu0
      %v3449 = vadd.f32 %v2128, %v3448
      %3450 = vmatmul.bf16.gmra.mxu0 %v3273
      %v3451 = vpop.f32.mrf.mxu0
      %v3452 = vadd.f32 %v2132, %v3451
      %v3453 = vpop.f32.mrf.mxu0
      %v3454 = vadd.f32 %v2136, %v3453
      %3455 = vmatmul.bf16.gmra.mxu0 %v3276
      %v3456 = vpop.f32.mrf.mxu0
      %v3457 = vadd.f32 %v2140, %v3456
      %v3458 = vpop.f32.mrf.mxu0
      %v3459 = vadd.f32 %v2144, %v3458
      %3460 = vdwg.mxu0
      %3461 = vmatpush.bf16.xpose.msra.mxu0 %v3372
      %3462 = vmatpush.bf16.xpose.msra.mxu0 %v3369
      %3463 = vmatpush.bf16.xpose.msra.mxu0 %v3366
      %3464 = vmatpush.bf16.xpose.msra.mxu0 %v3363
      %3465 = vmatpush.bf16.xpose.msra.mxu0 %v3360
      %3466 = vmatpush.bf16.xpose.msra.mxu0 %v3357
      %3467 = vmatpush.bf16.xpose.msra.mxu0 %v3354
      %3468 = vmatpush.bf16.xpose.msra.mxu0 %v3351
      %3469 = vmatmul.bf16.gmra.mxu0 %v3267
      %v3470 = vpop.f32.mrf.mxu0
      %v3471 = vadd.f32 %v2117, %v3470
      %v3472 = vpop.f32.mrf.mxu0
      %v3473 = vadd.f32 %v2121, %v3472
      %3474 = vmatmul.bf16.gmra.mxu0 %v3270
      %v3475 = vpop.f32.mrf.mxu0
      %v3476 = vadd.f32 %v2125, %v3475
      %v3477 = vpop.f32.mrf.mxu0
      %v3478 = vadd.f32 %v2129, %v3477
      %3479 = vmatmul.bf16.gmra.mxu0 %v3273
      %v3480 = vpop.f32.mrf.mxu0
      %v3481 = vadd.f32 %v2133, %v3480
      %v3482 = vpop.f32.mrf.mxu0
      %v3483 = vadd.f32 %v2137, %v3482
      %3484 = vmatmul.bf16.gmra.mxu0 %v3276
      %v3485 = vpop.f32.mrf.mxu0
      %v3486 = vadd.f32 %v2141, %v3485
      %v3487 = vpop.f32.mrf.mxu0
      %v3488 = vadd.f32 %v2145, %v3487
      %3489 = vdwg.mxu0
      %v3554 = vunpack.c.l.b16 %v2050
      %v3555 = vunpack.c.l.b16 %v2051
      %v3556 = vunpack.c.l.b16 %v2052
      %v3557 = vunpack.c.l.b16 %v2053
      %v3558 = vunpack.c.l.b16 %v2054
      %v3559 = vunpack.c.l.b16 %v2055
      %v3560 = vunpack.c.l.b16 %v2056
      %v3561 = vunpack.c.l.b16 %v2057
      %v3562 = vunpack.c.l.b16 %v2058
      %v3563 = vunpack.c.l.b16 %v2059
      %v3564 = vunpack.c.l.b16 %v2060
      %v3565 = vunpack.c.l.b16 %v2061
      %v3566 = vunpack.c.l.b16 %v2062
      %v3567 = vunpack.c.l.b16 %v2063
      %v3568 = vunpack.c.l.b16 %v2064
      %v3569 = vunpack.c.l.b16 %v2065
      %v3570 = vunpack.c.l.b16 %v2066
      %v3571 = vunpack.c.l.b16 %v2067
      %v3572 = vunpack.c.l.b16 %v2068
      %v3573 = vunpack.c.l.b16 %v2069
      %v3574 = vunpack.c.l.b16 %v2070
      %v3575 = vunpack.c.l.b16 %v2071
      %v3576 = vunpack.c.l.b16 %v2072
      %v3577 = vunpack.c.l.b16 %v2073
      %v3578 = vunpack.c.l.b16 %v2074
      %v3579 = vunpack.c.l.b16 %v2075
      %v3580 = vunpack.c.l.b16 %v2076
      %v3581 = vunpack.c.l.b16 %v2077
      %v3582 = vunpack.c.l.b16 %v2078
      %v3583 = vunpack.c.l.b16 %v2079
      %v3584 = vunpack.c.l.b16 %v2080
      %v3585 = vunpack.c.l.b16 %v2081
      %v3586 = vunpack.c.l.b16 %v2082
      %v3587 = vunpack.c.l.b16 %v2083
      %v3588 = vunpack.c.l.b16 %v2084
      %v3589 = vunpack.c.l.b16 %v2085
      %v3590 = vunpack.c.l.b16 %v2086
      %v3591 = vunpack.c.l.b16 %v2087
      %v3592 = vunpack.c.l.b16 %v2088
      %v3593 = vunpack.c.l.b16 %v2089
      %v3594 = vunpack.c.l.b16 %v2090
      %v3595 = vunpack.c.l.b16 %v2091
      %v3596 = vunpack.c.l.b16 %v2092
      %v3597 = vunpack.c.l.b16 %v2093
      %v3598 = vunpack.c.l.b16 %v2094
      %v3599 = vunpack.c.l.b16 %v2095
      %v3600 = vunpack.c.l.b16 %v2096
      %v3601 = vunpack.c.l.b16 %v2097
      %v3602 = vunpack.c.l.b16 %v2098
      %v3603 = vunpack.c.l.b16 %v2099
      %v3604 = vunpack.c.l.b16 %v2100
      %v3605 = vunpack.c.l.b16 %v2101
      %v3606 = vunpack.c.l.b16 %v2102
      %v3607 = vunpack.c.l.b16 %v2103
      %v3608 = vunpack.c.l.b16 %v2104
      %v3609 = vunpack.c.l.b16 %v2105
      %v3610 = vunpack.c.l.b16 %v2106
      %v3611 = vunpack.c.l.b16 %v2107
      %v3612 = vunpack.c.l.b16 %v2108
      %v3613 = vunpack.c.l.b16 %v2109
      %v3614 = vunpack.c.l.b16 %v2110
      %v3615 = vunpack.c.l.b16 %v2111
      %v3616 = vunpack.c.l.b16 %v2112
      %v3617 = vunpack.c.l.b16 %v2113
      %v3618 = vpack.c.b16 %v3555, %v3554
      %v3619 = vpack.c.b16 %v3557, %v3556
      %v3620 = vpack.c.b16 %v3559, %v3558
      %v3621 = vpack.c.b16 %v3561, %v3560
      %v3622 = vpack.c.b16 %v3563, %v3562
      %v3623 = vpack.c.b16 %v3565, %v3564
      %v3624 = vpack.c.b16 %v3567, %v3566
      %v3625 = vpack.c.b16 %v3569, %v3568
      %v3626 = vpack.c.b16 %v3571, %v3570
      %v3627 = vpack.c.b16 %v3573, %v3572
      %v3628 = vpack.c.b16 %v3575, %v3574
      %v3629 = vpack.c.b16 %v3577, %v3576
      %v3630 = vpack.c.b16 %v3579, %v3578
      %v3631 = vpack.c.b16 %v3581, %v3580
      %v3632 = vpack.c.b16 %v3583, %v3582
      %v3633 = vpack.c.b16 %v3585, %v3584
      %v3634 = vpack.c.b16 %v3587, %v3586
      %v3635 = vpack.c.b16 %v3589, %v3588
      %v3636 = vpack.c.b16 %v3591, %v3590
      %v3637 = vpack.c.b16 %v3593, %v3592
      %v3638 = vpack.c.b16 %v3595, %v3594
      %v3639 = vpack.c.b16 %v3597, %v3596
      %v3640 = vpack.c.b16 %v3599, %v3598
      %v3641 = vpack.c.b16 %v3601, %v3600
      %v3642 = vpack.c.b16 %v3603, %v3602
      %v3643 = vpack.c.b16 %v3605, %v3604
      %v3644 = vpack.c.b16 %v3607, %v3606
      %v3645 = vpack.c.b16 %v3609, %v3608
      %v3646 = vpack.c.b16 %v3611, %v3610
      %v3647 = vpack.c.b16 %v3613, %v3612
      %v3648 = vpack.c.b16 %v3615, %v3614
      %v3649 = vpack.c.b16 %v3617, %v3616
      %3650 = vrot.lane.b32.xlu0 %v3618, 64
      %v3651 = vpop.permute.xlu0 %3650
      %3652 = vrot.lane.b32.xlu0 %v3619, 64
      %v3653 = vpop.permute.xlu0 %3652
      %3654 = vrot.lane.b32.xlu0 %v3620, 64
      %v3655 = vpop.permute.xlu0 %3654
      %3656 = vrot.lane.b32.xlu0 %v3621, 64
      %v3657 = vpop.permute.xlu0 %3656
      %3658 = vrot.lane.b32.xlu0 %v3622, 64
      %v3659 = vpop.permute.xlu0 %3658
      %3660 = vrot.lane.b32.xlu0 %v3623, 64
      %v3661 = vpop.permute.xlu0 %3660
      %3662 = vrot.lane.b32.xlu0 %v3624, 64
      %v3663 = vpop.permute.xlu0 %3662
      %3664 = vrot.lane.b32.xlu0 %v3625, 64
      %v3665 = vpop.permute.xlu0 %3664
      %3666 = vrot.lane.b32.xlu0 %v3626, 64
      %v3667 = vpop.permute.xlu0 %3666
      %3668 = vrot.lane.b32.xlu0 %v3627, 64
      %v3669 = vpop.permute.xlu0 %3668
      %3670 = vrot.lane.b32.xlu0 %v3628, 64
      %v3671 = vpop.permute.xlu0 %3670
      %3672 = vrot.lane.b32.xlu0 %v3629, 64
      %v3673 = vpop.permute.xlu0 %3672
      %3674 = vrot.lane.b32.xlu0 %v3630, 64
      %v3675 = vpop.permute.xlu0 %3674
      %3676 = vrot.lane.b32.xlu0 %v3631, 64
      %v3677 = vpop.permute.xlu0 %3676
      %3678 = vrot.lane.b32.xlu0 %v3632, 64
      %v3679 = vpop.permute.xlu0 %3678
      %3680 = vrot.lane.b32.xlu0 %v3633, 64
      %v3681 = vpop.permute.xlu0 %3680
      %3682 = vrot.lane.b32.xlu0 %v3634, 64
      %v3683 = vpop.permute.xlu0 %3682
      %3684 = vrot.lane.b32.xlu0 %v3635, 64
      %v3685 = vpop.permute.xlu0 %3684
      %3686 = vrot.lane.b32.xlu0 %v3636, 64
      %v3687 = vpop.permute.xlu0 %3686
      %3688 = vrot.lane.b32.xlu0 %v3637, 64
      %v3689 = vpop.permute.xlu0 %3688
      %3690 = vrot.lane.b32.xlu0 %v3638, 64
      %v3691 = vpop.permute.xlu0 %3690
      %3692 = vrot.lane.b32.xlu0 %v3639, 64
      %v3693 = vpop.permute.xlu0 %3692
      %3694 = vrot.lane.b32.xlu0 %v3640, 64
      %v3695 = vpop.permute.xlu0 %3694
      %3696 = vrot.lane.b32.xlu0 %v3641, 64
      %v3697 = vpop.permute.xlu0 %3696
      %3698 = vrot.lane.b32.xlu0 %v3642, 64
      %v3699 = vpop.permute.xlu0 %3698
      %3700 = vrot.lane.b32.xlu0 %v3643, 64
      %v3701 = vpop.permute.xlu0 %3700
      %3702 = vrot.lane.b32.xlu0 %v3644, 64
      %v3703 = vpop.permute.xlu0 %3702
      %3704 = vrot.lane.b32.xlu0 %v3645, 64
      %v3705 = vpop.permute.xlu0 %3704
      %3706 = vrot.lane.b32.xlu0 %v3646, 64
      %v3707 = vpop.permute.xlu0 %3706
      %3708 = vrot.lane.b32.xlu0 %v3647, 64
      %v3709 = vpop.permute.xlu0 %3708
      %3710 = vrot.lane.b32.xlu0 %v3648, 64
      %v3711 = vpop.permute.xlu0 %3710
      %3712 = vrot.lane.b32.xlu0 %v3649, 64
      %v3713 = vpop.permute.xlu0 %3712
      %v3715 = vsel %vm393, %v1230, 0
      %v3718 = vsel %vm393, %v1231, 0
      %v3721 = vsel %vm393, %v1232, 0
      %v3724 = vsel %vm393, %v1233, 0
      %v3727 = vsel %vm393, %v3651, 0
      %v3730 = vsel %vm393, %v3653, 0
      %v3733 = vsel %vm393, %v3655, 0
      %v3736 = vsel %vm393, %v3657, 0
      %v3739 = vsel %vm393, %v3659, 0
      %v3742 = vsel %vm393, %v3661, 0
      %v3745 = vsel %vm393, %v3663, 0
      %v3748 = vsel %vm393, %v3665, 0
      %v3751 = vsel %vm393, %v3667, 0
      %v3754 = vsel %vm393, %v3669, 0
      %v3757 = vsel %vm393, %v3671, 0
      %v3760 = vsel %vm393, %v3673, 0
      %v3763 = vsel %vm393, %v3675, 0
      %v3766 = vsel %vm393, %v3677, 0
      %v3769 = vsel %vm393, %v3679, 0
      %v3772 = vsel %vm393, %v3681, 0
      %v3775 = vsel %vm393, %v3683, 0
      %v3778 = vsel %vm393, %v3685, 0
      %v3781 = vsel %vm393, %v3687, 0
      %v3784 = vsel %vm393, %v3689, 0
      %v3787 = vsel %vm393, %v3691, 0
      %v3790 = vsel %vm393, %v3693, 0
      %v3793 = vsel %vm393, %v3695, 0
      %v3796 = vsel %vm393, %v3697, 0
      %v3799 = vsel %vm393, %v3699, 0
      %v3802 = vsel %vm393, %v3701, 0
      %v3805 = vsel %vm393, %v3703, 0
      %v3808 = vsel %vm393, %v3705, 0
      %v3811 = vsel %vm393, %v3707, 0
      %v3814 = vsel %vm393, %v3709, 0
      %v3817 = vsel %vm393, %v3711, 0
      %v3820 = vsel %vm393, %v3713, 0
      %3822 = vmatpush.bf16.xpose.msra.mxu0 %v3748
      %3823 = vmatpush.bf16.xpose.msra.mxu0 %v3745
      %3824 = vmatpush.bf16.xpose.msra.mxu0 %v3742
      %3825 = vmatpush.bf16.xpose.msra.mxu0 %v3739
      %3826 = vmatpush.bf16.xpose.msra.mxu0 %v3736
      %3827 = vmatpush.bf16.xpose.msra.mxu0 %v3733
      %3828 = vmatpush.bf16.xpose.msra.mxu0 %v3730
      %3829 = vmatpush.bf16.xpose.msra.mxu0 %v3727
      %3830 = vmatmul.bf16.gmra.mxu0 %v3715
      %v3831 = vpop.f32.mrf.mxu0
      %v3832 = vadd.f32 %v2114, %v3831
      %v3833 = vpop.f32.mrf.mxu0
      %v3834 = vadd.f32 %v2118, %v3833
      %3835 = vmatmul.bf16.gmra.mxu0 %v3718
      %v3836 = vpop.f32.mrf.mxu0
      %v3837 = vadd.f32 %v2122, %v3836
      %v3838 = vpop.f32.mrf.mxu0
      %v3839 = vadd.f32 %v2126, %v3838
      %3840 = vmatmul.bf16.gmra.mxu0 %v3721
      %v3841 = vpop.f32.mrf.mxu0
      %v3842 = vadd.f32 %v2130, %v3841
      %v3843 = vpop.f32.mrf.mxu0
      %v3844 = vadd.f32 %v2134, %v3843
      %3845 = vmatmul.bf16.gmra.mxu0 %v3724
      %v3846 = vpop.f32.mrf.mxu0
      %v3847 = vadd.f32 %v2138, %v3846
      %v3848 = vpop.f32.mrf.mxu0
      %v3849 = vadd.f32 %v2142, %v3848
      %3850 = vdwg.mxu0
      %3851 = vmatpush.bf16.xpose.msra.mxu0 %v3772
      %3852 = vmatpush.bf16.xpose.msra.mxu0 %v3769
      %3853 = vmatpush.bf16.xpose.msra.mxu0 %v3766
      %3854 = vmatpush.bf16.xpose.msra.mxu0 %v3763
      %3855 = vmatpush.bf16.xpose.msra.mxu0 %v3760
      %3856 = vmatpush.bf16.xpose.msra.mxu0 %v3757
      %3857 = vmatpush.bf16.xpose.msra.mxu0 %v3754
      %3858 = vmatpush.bf16.xpose.msra.mxu0 %v3751
      %3859 = vmatmul.bf16.gmra.mxu0 %v3715
      %v3860 = vpop.f32.mrf.mxu0
      %v3861 = vadd.f32 %v2115, %v3860
      %v3862 = vpop.f32.mrf.mxu0
      %v3863 = vadd.f32 %v2119, %v3862
      %3864 = vmatmul.bf16.gmra.mxu0 %v3718
      %v3865 = vpop.f32.mrf.mxu0
      %v3866 = vadd.f32 %v2123, %v3865
      %v3867 = vpop.f32.mrf.mxu0
      %v3868 = vadd.f32 %v2127, %v3867
      %3869 = vmatmul.bf16.gmra.mxu0 %v3721
      %v3870 = vpop.f32.mrf.mxu0
      %v3871 = vadd.f32 %v2131, %v3870
      %v3872 = vpop.f32.mrf.mxu0
      %v3873 = vadd.f32 %v2135, %v3872
      %3874 = vmatmul.bf16.gmra.mxu0 %v3724
      %v3875 = vpop.f32.mrf.mxu0
      %v3876 = vadd.f32 %v2139, %v3875
      %v3877 = vpop.f32.mrf.mxu0
      %v3878 = vadd.f32 %v2143, %v3877
      %3879 = vdwg.mxu0
      %3880 = vmatpush.bf16.xpose.msra.mxu0 %v3796
      %3881 = vmatpush.bf16.xpose.msra.mxu0 %v3793
      %3882 = vmatpush.bf16.xpose.msra.mxu0 %v3790
      %3883 = vmatpush.bf16.xpose.msra.mxu0 %v3787
      %3884 = vmatpush.bf16.xpose.msra.mxu0 %v3784
      %3885 = vmatpush.bf16.xpose.msra.mxu0 %v3781
      %3886 = vmatpush.bf16.xpose.msra.mxu0 %v3778
      %3887 = vmatpush.bf16.xpose.msra.mxu0 %v3775
      %3888 = vmatmul.bf16.gmra.mxu0 %v3715
      %v3889 = vpop.f32.mrf.mxu0
      %v3890 = vadd.f32 %v2116, %v3889
      %v3891 = vpop.f32.mrf.mxu0
      %v3892 = vadd.f32 %v2120, %v3891
      %3893 = vmatmul.bf16.gmra.mxu0 %v3718
      %v3894 = vpop.f32.mrf.mxu0
      %v3895 = vadd.f32 %v2124, %v3894
      %v3896 = vpop.f32.mrf.mxu0
      %v3897 = vadd.f32 %v2128, %v3896
      %3898 = vmatmul.bf16.gmra.mxu0 %v3721
      %v3899 = vpop.f32.mrf.mxu0
      %v3900 = vadd.f32 %v2132, %v3899
      %v3901 = vpop.f32.mrf.mxu0
      %v3902 = vadd.f32 %v2136, %v3901
      %3903 = vmatmul.bf16.gmra.mxu0 %v3724
      %v3904 = vpop.f32.mrf.mxu0
      %v3905 = vadd.f32 %v2140, %v3904
      %v3906 = vpop.f32.mrf.mxu0
      %v3907 = vadd.f32 %v2144, %v3906
      %3908 = vdwg.mxu0
      %3909 = vmatpush.bf16.xpose.msra.mxu0 %v3820
      %3910 = vmatpush.bf16.xpose.msra.mxu0 %v3817
      %3911 = vmatpush.bf16.xpose.msra.mxu0 %v3814
      %3912 = vmatpush.bf16.xpose.msra.mxu0 %v3811
      %3913 = vmatpush.bf16.xpose.msra.mxu0 %v3808
      %3914 = vmatpush.bf16.xpose.msra.mxu0 %v3805
      %3915 = vmatpush.bf16.xpose.msra.mxu0 %v3802
      %3916 = vmatpush.bf16.xpose.msra.mxu0 %v3799
      %3917 = vmatmul.bf16.gmra.mxu0 %v3715
      %v3918 = vpop.f32.mrf.mxu0
      %v3919 = vadd.f32 %v2117, %v3918
      %v3920 = vpop.f32.mrf.mxu0
      %v3921 = vadd.f32 %v2121, %v3920
      %3922 = vmatmul.bf16.gmra.mxu0 %v3718
      %v3923 = vpop.f32.mrf.mxu0
      %v3924 = vadd.f32 %v2125, %v3923
      %v3925 = vpop.f32.mrf.mxu0
      %v3926 = vadd.f32 %v2129, %v3925
      %3927 = vmatmul.bf16.gmra.mxu0 %v3721
      %v3928 = vpop.f32.mrf.mxu0
      %v3929 = vadd.f32 %v2133, %v3928
      %v3930 = vpop.f32.mrf.mxu0
      %v3931 = vadd.f32 %v2137, %v3930
      %3932 = vmatmul.bf16.gmra.mxu0 %v3724
      %v3933 = vpop.f32.mrf.mxu0
      %v3934 = vadd.f32 %v2141, %v3933
      %v3935 = vpop.f32.mrf.mxu0
      %v3936 = vadd.f32 %v2145, %v3935
      %3937 = vdwg.mxu0
      %v3938 = vmax.f32 %v2488, %v2517
      %v3939 = vmax.f32 %v3938, %v2546
      %v3940 = vmax.f32 %v3939, %v2575
      %3941 = vmax.xlane.f32.xlu0 %v3940
      %v3942 = vpop.xlane.xlu0 %3941
      %v3943 = vmax.f32 %v2490, %v2519
      %v3944 = vmax.f32 %v3943, %v2548
      %v3945 = vmax.f32 %v3944, %v2577
      %3946 = vmax.xlane.f32.xlu0 %v3945
      %v3947 = vpop.xlane.xlu0 %3946
      %v3948 = vmax.f32 %v2493, %v2522
      %v3949 = vmax.f32 %v3948, %v2551
      %v3950 = vmax.f32 %v3949, %v2580
      %3951 = vmax.xlane.f32.xlu0 %v3950
      %v3952 = vpop.xlane.xlu0 %3951
      %v3953 = vmax.f32 %v2495, %v2524
      %v3954 = vmax.f32 %v3953, %v2553
      %v3955 = vmax.f32 %v3954, %v2582
      %3956 = vmax.xlane.f32.xlu0 %v3955
      %v3957 = vpop.xlane.xlu0 %3956
      %v3958 = vmax.f32 %v2498, %v2527
      %v3959 = vmax.f32 %v3958, %v2556
      %v3960 = vmax.f32 %v3959, %v2585
      %3961 = vmax.xlane.f32.xlu0 %v3960
      %v3962 = vpop.xlane.xlu0 %3961
      %v3963 = vmax.f32 %v2500, %v2529
      %v3964 = vmax.f32 %v3963, %v2558
      %v3965 = vmax.f32 %v3964, %v2587
      %3966 = vmax.xlane.f32.xlu0 %v3965
      %v3967 = vpop.xlane.xlu0 %3966
      %v3968 = vmax.f32 %v2503, %v2532
      %v3969 = vmax.f32 %v3968, %v2561
      %v3970 = vmax.f32 %v3969, %v2590
      %3971 = vmax.xlane.f32.xlu0 %v3970
      %v3972 = vpop.xlane.xlu0 %3971
      %v3973 = vmax.f32 %v2505, %v2534
      %v3974 = vmax.f32 %v3973, %v2563
      %v3975 = vmax.f32 %v3974, %v2592
      %3976 = vmax.xlane.f32.xlu0 %v3975
      %v3977 = vpop.xlane.xlu0 %3976
      %v3978 = vmax.f32 %v2936, %v2965
      %v3979 = vmax.f32 %v3978, %v2994
      %v3980 = vmax.f32 %v3979, %v3023
      %3981 = vmax.xlane.f32.xlu0 %v3980
      %v3982 = vpop.xlane.xlu0 %3981
      %v3983 = vmax.f32 %v2938, %v2967
      %v3984 = vmax.f32 %v3983, %v2996
      %v3985 = vmax.f32 %v3984, %v3025
      %3986 = vmax.xlane.f32.xlu0 %v3985
      %v3987 = vpop.xlane.xlu0 %3986
      %v3988 = vmax.f32 %v2941, %v2970
      %v3989 = vmax.f32 %v3988, %v2999
      %v3990 = vmax.f32 %v3989, %v3028
      %3991 = vmax.xlane.f32.xlu0 %v3990
      %v3992 = vpop.xlane.xlu0 %3991
      %v3993 = vmax.f32 %v2943, %v2972
      %v3994 = vmax.f32 %v3993, %v3001
      %v3995 = vmax.f32 %v3994, %v3030
      %3996 = vmax.xlane.f32.xlu0 %v3995
      %v3997 = vpop.xlane.xlu0 %3996
      %v3998 = vmax.f32 %v2946, %v2975
      %v3999 = vmax.f32 %v3998, %v3004
      %v4000 = vmax.f32 %v3999, %v3033
      %4001 = vmax.xlane.f32.xlu0 %v4000
      %v4002 = vpop.xlane.xlu0 %4001
      %v4003 = vmax.f32 %v2948, %v2977
      %v4004 = vmax.f32 %v4003, %v3006
      %v4005 = vmax.f32 %v4004, %v3035
      %4006 = vmax.xlane.f32.xlu0 %v4005
      %v4007 = vpop.xlane.xlu0 %4006
      %v4008 = vmax.f32 %v2951, %v2980
      %v4009 = vmax.f32 %v4008, %v3009
      %v4010 = vmax.f32 %v4009, %v3038
      %4011 = vmax.xlane.f32.xlu0 %v4010
      %v4012 = vpop.xlane.xlu0 %4011
      %v4013 = vmax.f32 %v2953, %v2982
      %v4014 = vmax.f32 %v4013, %v3011
      %v4015 = vmax.f32 %v4014, %v3040
      %4016 = vmax.xlane.f32.xlu0 %v4015
      %v4017 = vpop.xlane.xlu0 %4016
      %v4018 = vmax.f32 %v3384, %v3413
      %v4019 = vmax.f32 %v4018, %v3442
      %v4020 = vmax.f32 %v4019, %v3471
      %4021 = vmax.xlane.f32.xlu0 %v4020
      %v4022 = vpop.xlane.xlu0 %4021
      %v4023 = vmax.f32 %v3386, %v3415
      %v4024 = vmax.f32 %v4023, %v3444
      %v4025 = vmax.f32 %v4024, %v3473
      %4026 = vmax.xlane.f32.xlu0 %v4025
      %v4027 = vpop.xlane.xlu0 %4026
      %v4028 = vmax.f32 %v3389, %v3418
      %v4029 = vmax.f32 %v4028, %v3447
      %v4030 = vmax.f32 %v4029, %v3476
      %4031 = vmax.xlane.f32.xlu0 %v4030
      %v4032 = vpop.xlane.xlu0 %4031
      %v4033 = vmax.f32 %v3391, %v3420
      %v4034 = vmax.f32 %v4033, %v3449
      %v4035 = vmax.f32 %v4034, %v3478
      %4036 = vmax.xlane.f32.xlu0 %v4035
      %v4037 = vpop.xlane.xlu0 %4036
      %v4038 = vmax.f32 %v3394, %v3423
      %v4039 = vmax.f32 %v4038, %v3452
      %v4040 = vmax.f32 %v4039, %v3481
      %4041 = vmax.xlane.f32.xlu0 %v4040
      %v4042 = vpop.xlane.xlu0 %4041
      %v4043 = vmax.f32 %v3396, %v3425
      %v4044 = vmax.f32 %v4043, %v3454
      %v4045 = vmax.f32 %v4044, %v3483
      %4046 = vmax.xlane.f32.xlu0 %v4045
      %v4047 = vpop.xlane.xlu0 %4046
      %v4048 = vmax.f32 %v3399, %v3428
      %v4049 = vmax.f32 %v4048, %v3457
      %v4050 = vmax.f32 %v4049, %v3486
      %4051 = vmax.xlane.f32.xlu0 %v4050
      %v4052 = vpop.xlane.xlu0 %4051
      %v4053 = vmax.f32 %v3401, %v3430
      %v4054 = vmax.f32 %v4053, %v3459
      %v4055 = vmax.f32 %v4054, %v3488
      %4056 = vmax.xlane.f32.xlu0 %v4055
      %v4057 = vpop.xlane.xlu0 %4056
      %v4058 = vmax.f32 %v3832, %v3861
      %v4059 = vmax.f32 %v4058, %v3890
      %v4060 = vmax.f32 %v4059, %v3919
      %4061 = vmax.xlane.f32.xlu0 %v4060
      %v4062 = vpop.xlane.xlu0 %4061
      %v4063 = vmax.f32 %v3834, %v3863
      %v4064 = vmax.f32 %v4063, %v3892
      %v4065 = vmax.f32 %v4064, %v3921
      %4066 = vmax.xlane.f32.xlu0 %v4065
      %v4067 = vpop.xlane.xlu0 %4066
      %v4068 = vmax.f32 %v3837, %v3866
      %v4069 = vmax.f32 %v4068, %v3895
      %v4070 = vmax.f32 %v4069, %v3924
      %4071 = vmax.xlane.f32.xlu0 %v4070
      %v4072 = vpop.xlane.xlu0 %4071
      %v4073 = vmax.f32 %v3839, %v3868
      %v4074 = vmax.f32 %v4073, %v3897
      %v4075 = vmax.f32 %v4074, %v3926
      %4076 = vmax.xlane.f32.xlu0 %v4075
      %v4077 = vpop.xlane.xlu0 %4076
      %v4078 = vmax.f32 %v3842, %v3871
      %v4079 = vmax.f32 %v4078, %v3900
      %v4080 = vmax.f32 %v4079, %v3929
      %4081 = vmax.xlane.f32.xlu0 %v4080
      %v4082 = vpop.xlane.xlu0 %4081
      %v4083 = vmax.f32 %v3844, %v3873
      %v4084 = vmax.f32 %v4083, %v3902
      %v4085 = vmax.f32 %v4084, %v3931
      %4086 = vmax.xlane.f32.xlu0 %v4085
      %v4087 = vpop.xlane.xlu0 %4086
      %v4088 = vmax.f32 %v3847, %v3876
      %v4089 = vmax.f32 %v4088, %v3905
      %v4090 = vmax.f32 %v4089, %v3934
      %4091 = vmax.xlane.f32.xlu0 %v4090
      %v4092 = vpop.xlane.xlu0 %4091
      %v4093 = vmax.f32 %v3849, %v3878
      %v4094 = vmax.f32 %v4093, %v3907
      %v4095 = vmax.f32 %v4094, %v3936
      %4096 = vmax.xlane.f32.xlu0 %v4095
      %v4097 = vpop.xlane.xlu0 %4096
      %v4098 = vsub.f32 %v2488, %v3942
      %v4099 = vsub.f32 %v2517, %v3942
      %v4100 = vsub.f32 %v2546, %v3942
      %v4101 = vsub.f32 %v2575, %v3942
      %v4102 = vsub.f32 %v2490, %v3947
      %v4103 = vsub.f32 %v2519, %v3947
      %v4104 = vsub.f32 %v2548, %v3947
      %v4105 = vsub.f32 %v2577, %v3947
      %v4106 = vsub.f32 %v2493, %v3952
      %v4107 = vsub.f32 %v2522, %v3952
      %v4108 = vsub.f32 %v2551, %v3952
      %v4109 = vsub.f32 %v2580, %v3952
      %v4110 = vsub.f32 %v2495, %v3957
      %v4111 = vsub.f32 %v2524, %v3957
      %v4112 = vsub.f32 %v2553, %v3957
      %v4113 = vsub.f32 %v2582, %v3957
      %v4114 = vsub.f32 %v2498, %v3962
      %v4115 = vsub.f32 %v2527, %v3962
      %v4116 = vsub.f32 %v2556, %v3962
      %v4117 = vsub.f32 %v2585, %v3962
      %v4118 = vsub.f32 %v2500, %v3967
      %v4119 = vsub.f32 %v2529, %v3967
      %v4120 = vsub.f32 %v2558, %v3967
      %v4121 = vsub.f32 %v2587, %v3967
      %v4122 = vsub.f32 %v2503, %v3972
      %v4123 = vsub.f32 %v2532, %v3972
      %v4124 = vsub.f32 %v2561, %v3972
      %v4125 = vsub.f32 %v2590, %v3972
      %v4126 = vsub.f32 %v2505, %v3977
      %v4127 = vsub.f32 %v2534, %v3977
      %v4128 = vsub.f32 %v2563, %v3977
      %v4129 = vsub.f32 %v2592, %v3977
      %v4130 = vsub.f32 %v2936, %v3982
      %v4131 = vsub.f32 %v2965, %v3982
      %v4132 = vsub.f32 %v2994, %v3982
      %v4133 = vsub.f32 %v3023, %v3982
      %v4134 = vsub.f32 %v2938, %v3987
      %v4135 = vsub.f32 %v2967, %v3987
      %v4136 = vsub.f32 %v2996, %v3987
      %v4137 = vsub.f32 %v3025, %v3987
      %v4138 = vsub.f32 %v2941, %v3992
      %v4139 = vsub.f32 %v2970, %v3992
      %v4140 = vsub.f32 %v2999, %v3992
      %v4141 = vsub.f32 %v3028, %v3992
      %v4142 = vsub.f32 %v2943, %v3997
      %v4143 = vsub.f32 %v2972, %v3997
      %v4144 = vsub.f32 %v3001, %v3997
      %v4145 = vsub.f32 %v3030, %v3997
      %v4146 = vsub.f32 %v2946, %v4002
      %v4147 = vsub.f32 %v2975, %v4002
      %v4148 = vsub.f32 %v3004, %v4002
      %v4149 = vsub.f32 %v3033, %v4002
      %v4150 = vsub.f32 %v2948, %v4007
      %v4151 = vsub.f32 %v2977, %v4007
      %v4152 = vsub.f32 %v3006, %v4007
      %v4153 = vsub.f32 %v3035, %v4007
      %v4154 = vsub.f32 %v2951, %v4012
      %v4155 = vsub.f32 %v2980, %v4012
      %v4156 = vsub.f32 %v3009, %v4012
      %v4157 = vsub.f32 %v3038, %v4012
      %v4158 = vsub.f32 %v2953, %v4017
      %v4159 = vsub.f32 %v2982, %v4017
      %v4160 = vsub.f32 %v3011, %v4017
      %v4161 = vsub.f32 %v3040, %v4017
      %v4162 = vsub.f32 %v3384, %v4022
      %v4163 = vsub.f32 %v3413, %v4022
      %v4164 = vsub.f32 %v3442, %v4022
      %v4165 = vsub.f32 %v3471, %v4022
      %v4166 = vsub.f32 %v3386, %v4027
      %v4167 = vsub.f32 %v3415, %v4027
      %v4168 = vsub.f32 %v3444, %v4027
      %v4169 = vsub.f32 %v3473, %v4027
      %v4170 = vsub.f32 %v3389, %v4032
      %v4171 = vsub.f32 %v3418, %v4032
      %v4172 = vsub.f32 %v3447, %v4032
      %v4173 = vsub.f32 %v3476, %v4032
      %v4174 = vsub.f32 %v3391, %v4037
      %v4175 = vsub.f32 %v3420, %v4037
      %v4176 = vsub.f32 %v3449, %v4037
      %v4177 = vsub.f32 %v3478, %v4037
      %v4178 = vsub.f32 %v3394, %v4042
      %v4179 = vsub.f32 %v3423, %v4042
      %v4180 = vsub.f32 %v3452, %v4042
      %v4181 = vsub.f32 %v3481, %v4042
      %v4182 = vsub.f32 %v3396, %v4047
      %v4183 = vsub.f32 %v3425, %v4047
      %v4184 = vsub.f32 %v3454, %v4047
      %v4185 = vsub.f32 %v3483, %v4047
      %v4186 = vsub.f32 %v3399, %v4052
      %v4187 = vsub.f32 %v3428, %v4052
      %v4188 = vsub.f32 %v3457, %v4052
      %v4189 = vsub.f32 %v3486, %v4052
      %v4190 = vsub.f32 %v3401, %v4057
      %v4191 = vsub.f32 %v3430, %v4057
      %v4192 = vsub.f32 %v3459, %v4057
      %v4193 = vsub.f32 %v3488, %v4057
      %v4194 = vsub.f32 %v3832, %v4062
      %v4195 = vsub.f32 %v3861, %v4062
      %v4196 = vsub.f32 %v3890, %v4062
      %v4197 = vsub.f32 %v3919, %v4062
      %v4198 = vsub.f32 %v3834, %v4067
      %v4199 = vsub.f32 %v3863, %v4067
      %v4200 = vsub.f32 %v3892, %v4067
      %v4201 = vsub.f32 %v3921, %v4067
      %v4202 = vsub.f32 %v3837, %v4072
      %v4203 = vsub.f32 %v3866, %v4072
      %v4204 = vsub.f32 %v3895, %v4072
      %v4205 = vsub.f32 %v3924, %v4072
      %v4206 = vsub.f32 %v3839, %v4077
      %v4207 = vsub.f32 %v3868, %v4077
      %v4208 = vsub.f32 %v3897, %v4077
      %v4209 = vsub.f32 %v3926, %v4077
      %v4210 = vsub.f32 %v3842, %v4082
      %v4211 = vsub.f32 %v3871, %v4082
      %v4212 = vsub.f32 %v3900, %v4082
      %v4213 = vsub.f32 %v3929, %v4082
      %v4214 = vsub.f32 %v3844, %v4087
      %v4215 = vsub.f32 %v3873, %v4087
      %v4216 = vsub.f32 %v3902, %v4087
      %v4217 = vsub.f32 %v3931, %v4087
      %v4218 = vsub.f32 %v3847, %v4092
      %v4219 = vsub.f32 %v3876, %v4092
      %v4220 = vsub.f32 %v3905, %v4092
      %v4221 = vsub.f32 %v3934, %v4092
      %v4222 = vsub.f32 %v3849, %v4097
      %v4223 = vsub.f32 %v3878, %v4097
      %v4224 = vsub.f32 %v3907, %v4097
      %v4225 = vsub.f32 %v3936, %v4097
      %v4226 = vmul.f32 %v4098, 1.442695
      %v4227 = vpow.pop %v4226
      %v4228 = vmul.f32 %v4099, 1.442695
      %v4229 = vpow.pop %v4228
      %v4230 = vmul.f32 %v4100, 1.442695
      %v4231 = vpow.pop %v4230
      %v4232 = vmul.f32 %v4101, 1.442695
      %v4233 = vpow.pop %v4232
      %v4234 = vmul.f32 %v4102, 1.442695
      %v4235 = vpow.pop %v4234
      %v4236 = vmul.f32 %v4103, 1.442695
      %v4237 = vpow.pop %v4236
      %v4238 = vmul.f32 %v4104, 1.442695
      %v4239 = vpow.pop %v4238
      %v4240 = vmul.f32 %v4105, 1.442695
      %v4241 = vpow.pop %v4240
      %v4242 = vmul.f32 %v4106, 1.442695
      %v4243 = vpow.pop %v4242
      %v4244 = vmul.f32 %v4107, 1.442695
      %v4245 = vpow.pop %v4244
      %v4246 = vmul.f32 %v4108, 1.442695
      %v4247 = vpow.pop %v4246
      %v4248 = vmul.f32 %v4109, 1.442695
      %v4249 = vpow.pop %v4248
      %v4250 = vmul.f32 %v4110, 1.442695
      %v4251 = vpow.pop %v4250
      %v4252 = vmul.f32 %v4111, 1.442695
      %v4253 = vpow.pop %v4252
      %v4254 = vmul.f32 %v4112, 1.442695
      %v4255 = vpow.pop %v4254
      %v4256 = vmul.f32 %v4113, 1.442695
      %v4257 = vpow.pop %v4256
      %v4258 = vmul.f32 %v4114, 1.442695
      %v4259 = vpow.pop %v4258
      %v4260 = vmul.f32 %v4115, 1.442695
      %v4261 = vpow.pop %v4260
      %v4262 = vmul.f32 %v4116, 1.442695
      %v4263 = vpow.pop %v4262
      %v4264 = vmul.f32 %v4117, 1.442695
      %v4265 = vpow.pop %v4264
      %v4266 = vmul.f32 %v4118, 1.442695
      %v4267 = vpow.pop %v4266
      %v4268 = vmul.f32 %v4119, 1.442695
      %v4269 = vpow.pop %v4268
      %v4270 = vmul.f32 %v4120, 1.442695
      %v4271 = vpow.pop %v4270
      %v4272 = vmul.f32 %v4121, 1.442695
      %v4273 = vpow.pop %v4272
      %v4274 = vmul.f32 %v4122, 1.442695
      %v4275 = vpow.pop %v4274
      %v4276 = vmul.f32 %v4123, 1.442695
      %v4277 = vpow.pop %v4276
      %v4278 = vmul.f32 %v4124, 1.442695
      %v4279 = vpow.pop %v4278
      %v4280 = vmul.f32 %v4125, 1.442695
      %v4281 = vpow.pop %v4280
      %v4282 = vmul.f32 %v4126, 1.442695
      %v4283 = vpow.pop %v4282
      %v4284 = vmul.f32 %v4127, 1.442695
      %v4285 = vpow.pop %v4284
      %v4286 = vmul.f32 %v4128, 1.442695
      %v4287 = vpow.pop %v4286
      %v4288 = vmul.f32 %v4129, 1.442695
      %v4289 = vpow.pop %v4288
      %v4290 = vmul.f32 %v4130, 1.442695
      %v4291 = vpow.pop %v4290
      %v4292 = vmul.f32 %v4131, 1.442695
      %v4293 = vpow.pop %v4292
      %v4294 = vmul.f32 %v4132, 1.442695
      %v4295 = vpow.pop %v4294
      %v4296 = vmul.f32 %v4133, 1.442695
      %v4297 = vpow.pop %v4296
      %v4298 = vmul.f32 %v4134, 1.442695
      %v4299 = vpow.pop %v4298
      %v4300 = vmul.f32 %v4135, 1.442695
      %v4301 = vpow.pop %v4300
      %v4302 = vmul.f32 %v4136, 1.442695
      %v4303 = vpow.pop %v4302
      %v4304 = vmul.f32 %v4137, 1.442695
      %v4305 = vpow.pop %v4304
      %v4306 = vmul.f32 %v4138, 1.442695
      %v4307 = vpow.pop %v4306
      %v4308 = vmul.f32 %v4139, 1.442695
      %v4309 = vpow.pop %v4308
      %v4310 = vmul.f32 %v4140, 1.442695
      %v4311 = vpow.pop %v4310
      %v4312 = vmul.f32 %v4141, 1.442695
      %v4313 = vpow.pop %v4312
      %v4314 = vmul.f32 %v4142, 1.442695
      %v4315 = vpow.pop %v4314
      %v4316 = vmul.f32 %v4143, 1.442695
      %v4317 = vpow.pop %v4316
      %v4318 = vmul.f32 %v4144, 1.442695
      %v4319 = vpow.pop %v4318
      %v4320 = vmul.f32 %v4145, 1.442695
      %v4321 = vpow.pop %v4320
      %v4322 = vmul.f32 %v4146, 1.442695
      %v4323 = vpow.pop %v4322
      %v4324 = vmul.f32 %v4147, 1.442695
      %v4325 = vpow.pop %v4324
      %v4326 = vmul.f32 %v4148, 1.442695
      %v4327 = vpow.pop %v4326
      %v4328 = vmul.f32 %v4149, 1.442695
      %v4329 = vpow.pop %v4328
      %v4330 = vmul.f32 %v4150, 1.442695
      %v4331 = vpow.pop %v4330
      %v4332 = vmul.f32 %v4151, 1.442695
      %v4333 = vpow.pop %v4332
      %v4334 = vmul.f32 %v4152, 1.442695
      %v4335 = vpow.pop %v4334
      %v4336 = vmul.f32 %v4153, 1.442695
      %v4337 = vpow.pop %v4336
      %v4338 = vmul.f32 %v4154, 1.442695
      %v4339 = vpow.pop %v4338
      %v4340 = vmul.f32 %v4155, 1.442695
      %v4341 = vpow.pop %v4340
      %v4342 = vmul.f32 %v4156, 1.442695
      %v4343 = vpow.pop %v4342
      %v4344 = vmul.f32 %v4157, 1.442695
      %v4345 = vpow.pop %v4344
      %v4346 = vmul.f32 %v4158, 1.442695
      %v4347 = vpow.pop %v4346
      %v4348 = vmul.f32 %v4159, 1.442695
      %v4349 = vpow.pop %v4348
      %v4350 = vmul.f32 %v4160, 1.442695
      %v4351 = vpow.pop %v4350
      %v4352 = vmul.f32 %v4161, 1.442695
      %v4353 = vpow.pop %v4352
      %v4354 = vmul.f32 %v4162, 1.442695
      %v4355 = vpow.pop %v4354
      %v4356 = vmul.f32 %v4163, 1.442695
      %v4357 = vpow.pop %v4356
      %v4358 = vmul.f32 %v4164, 1.442695
      %v4359 = vpow.pop %v4358
      %v4360 = vmul.f32 %v4165, 1.442695
      %v4361 = vpow.pop %v4360
      %v4362 = vmul.f32 %v4166, 1.442695
      %v4363 = vpow.pop %v4362
      %v4364 = vmul.f32 %v4167, 1.442695
      %v4365 = vpow.pop %v4364
      %v4366 = vmul.f32 %v4168, 1.442695
      %v4367 = vpow.pop %v4366
      %v4368 = vmul.f32 %v4169, 1.442695
      %v4369 = vpow.pop %v4368
      %v4370 = vmul.f32 %v4170, 1.442695
      %v4371 = vpow.pop %v4370
      %v4372 = vmul.f32 %v4171, 1.442695
      %v4373 = vpow.pop %v4372
      %v4374 = vmul.f32 %v4172, 1.442695
      %v4375 = vpow.pop %v4374
      %v4376 = vmul.f32 %v4173, 1.442695
      %v4377 = vpow.pop %v4376
      %v4378 = vmul.f32 %v4174, 1.442695
      %v4379 = vpow.pop %v4378
      %v4380 = vmul.f32 %v4175, 1.442695
      %v4381 = vpow.pop %v4380
      %v4382 = vmul.f32 %v4176, 1.442695
      %v4383 = vpow.pop %v4382
      %v4384 = vmul.f32 %v4177, 1.442695
      %v4385 = vpow.pop %v4384
      %v4386 = vmul.f32 %v4178, 1.442695
      %v4387 = vpow.pop %v4386
      %v4388 = vmul.f32 %v4179, 1.442695
      %v4389 = vpow.pop %v4388
      %v4390 = vmul.f32 %v4180, 1.442695
      %v4391 = vpow.pop %v4390
      %v4392 = vmul.f32 %v4181, 1.442695
      %v4393 = vpow.pop %v4392
      %v4394 = vmul.f32 %v4182, 1.442695
      %v4395 = vpow.pop %v4394
      %v4396 = vmul.f32 %v4183, 1.442695
      %v4397 = vpow.pop %v4396
      %v4398 = vmul.f32 %v4184, 1.442695
      %v4399 = vpow.pop %v4398
      %v4400 = vmul.f32 %v4185, 1.442695
      %v4401 = vpow.pop %v4400
      %v4402 = vmul.f32 %v4186, 1.442695
      %v4403 = vpow.pop %v4402
      %v4404 = vmul.f32 %v4187, 1.442695
      %v4405 = vpow.pop %v4404
      %v4406 = vmul.f32 %v4188, 1.442695
      %v4407 = vpow.pop %v4406
      %v4408 = vmul.f32 %v4189, 1.442695
      %v4409 = vpow.pop %v4408
      %v4410 = vmul.f32 %v4190, 1.442695
      %v4411 = vpow.pop %v4410
      %v4412 = vmul.f32 %v4191, 1.442695
      %v4413 = vpow.pop %v4412
      %v4414 = vmul.f32 %v4192, 1.442695
      %v4415 = vpow.pop %v4414
      %v4416 = vmul.f32 %v4193, 1.442695
      %v4417 = vpow.pop %v4416
      %v4418 = vmul.f32 %v4194, 1.442695
      %v4419 = vpow.pop %v4418
      %v4420 = vmul.f32 %v4195, 1.442695
      %v4421 = vpow.pop %v4420
      %v4422 = vmul.f32 %v4196, 1.442695
      %v4423 = vpow.pop %v4422
      %v4424 = vmul.f32 %v4197, 1.442695
      %v4425 = vpow.pop %v4424
      %v4426 = vmul.f32 %v4198, 1.442695
      %v4427 = vpow.pop %v4426
      %v4428 = vmul.f32 %v4199, 1.442695
      %v4429 = vpow.pop %v4428
      %v4430 = vmul.f32 %v4200, 1.442695
      %v4431 = vpow.pop %v4430
      %v4432 = vmul.f32 %v4201, 1.442695
      %v4433 = vpow.pop %v4432
      %v4434 = vmul.f32 %v4202, 1.442695
      %v4435 = vpow.pop %v4434
      %v4436 = vmul.f32 %v4203, 1.442695
      %v4437 = vpow.pop %v4436
      %v4438 = vmul.f32 %v4204, 1.442695
      %v4439 = vpow.pop %v4438
      %v4440 = vmul.f32 %v4205, 1.442695
      %v4441 = vpow.pop %v4440
      %v4442 = vmul.f32 %v4206, 1.442695
      %v4443 = vpow.pop %v4442
      %v4444 = vmul.f32 %v4207, 1.442695
      %v4445 = vpow.pop %v4444
      %v4446 = vmul.f32 %v4208, 1.442695
      %v4447 = vpow.pop %v4446
      %v4448 = vmul.f32 %v4209, 1.442695
      %v4449 = vpow.pop %v4448
      %v4450 = vmul.f32 %v4210, 1.442695
      %v4451 = vpow.pop %v4450
      %v4452 = vmul.f32 %v4211, 1.442695
      %v4453 = vpow.pop %v4452
      %v4454 = vmul.f32 %v4212, 1.442695
      %v4455 = vpow.pop %v4454
      %v4456 = vmul.f32 %v4213, 1.442695
      %v4457 = vpow.pop %v4456
      %v4458 = vmul.f32 %v4214, 1.442695
      %v4459 = vpow.pop %v4458
      %v4460 = vmul.f32 %v4215, 1.442695
      %v4461 = vpow.pop %v4460
      %v4462 = vmul.f32 %v4216, 1.442695
      %v4463 = vpow.pop %v4462
      %v4464 = vmul.f32 %v4217, 1.442695
      %v4465 = vpow.pop %v4464
      %v4466 = vmul.f32 %v4218, 1.442695
      %v4467 = vpow.pop %v4466
      %v4468 = vmul.f32 %v4219, 1.442695
      %v4469 = vpow.pop %v4468
      %v4470 = vmul.f32 %v4220, 1.442695
      %v4471 = vpow.pop %v4470
      %v4472 = vmul.f32 %v4221, 1.442695
      %v4473 = vpow.pop %v4472
      %v4474 = vmul.f32 %v4222, 1.442695
      %v4475 = vpow.pop %v4474
      %v4476 = vmul.f32 %v4223, 1.442695
      %v4477 = vpow.pop %v4476
      %v4478 = vmul.f32 %v4224, 1.442695
      %v4479 = vpow.pop %v4478
      %v4480 = vmul.f32 %v4225, 1.442695
      %v4481 = vpow.pop %v4480
      %v4482 = vpack.c.bf16 %v4229, %v4227
      %v4483 = vpack.c.bf16 %v4233, %v4231
      %v4484 = vpack.c.bf16 %v4237, %v4235
      %v4485 = vpack.c.bf16 %v4241, %v4239
      %v4486 = vpack.c.bf16 %v4245, %v4243
      %v4487 = vpack.c.bf16 %v4249, %v4247
      %v4488 = vpack.c.bf16 %v4253, %v4251
      %v4489 = vpack.c.bf16 %v4257, %v4255
      %v4490 = vpack.c.bf16 %v4261, %v4259
      %v4491 = vpack.c.bf16 %v4265, %v4263
      %v4492 = vpack.c.bf16 %v4269, %v4267
      %v4493 = vpack.c.bf16 %v4273, %v4271
      %v4494 = vpack.c.bf16 %v4277, %v4275
      %v4495 = vpack.c.bf16 %v4281, %v4279
      %v4496 = vpack.c.bf16 %v4285, %v4283
      %v4497 = vpack.c.bf16 %v4289, %v4287
      %v4498 = vpack.c.bf16 %v4293, %v4291
      %v4499 = vpack.c.bf16 %v4297, %v4295
      %v4500 = vpack.c.bf16 %v4301, %v4299
      %v4501 = vpack.c.bf16 %v4305, %v4303
      %v4502 = vpack.c.bf16 %v4309, %v4307
      %v4503 = vpack.c.bf16 %v4313, %v4311
      %v4504 = vpack.c.bf16 %v4317, %v4315
      %v4505 = vpack.c.bf16 %v4321, %v4319
      %v4506 = vpack.c.bf16 %v4325, %v4323
      %v4507 = vpack.c.bf16 %v4329, %v4327
      %v4508 = vpack.c.bf16 %v4333, %v4331
      %v4509 = vpack.c.bf16 %v4337, %v4335
      %v4510 = vpack.c.bf16 %v4341, %v4339
      %v4511 = vpack.c.bf16 %v4345, %v4343
      %v4512 = vpack.c.bf16 %v4349, %v4347
      %v4513 = vpack.c.bf16 %v4353, %v4351
      %v4514 = vpack.c.bf16 %v4357, %v4355
      %v4515 = vpack.c.bf16 %v4361, %v4359
      %v4516 = vpack.c.bf16 %v4365, %v4363
      %v4517 = vpack.c.bf16 %v4369, %v4367
      %v4518 = vpack.c.bf16 %v4373, %v4371
      %v4519 = vpack.c.bf16 %v4377, %v4375
      %v4520 = vpack.c.bf16 %v4381, %v4379
      %v4521 = vpack.c.bf16 %v4385, %v4383
      %v4522 = vpack.c.bf16 %v4389, %v4387
      %v4523 = vpack.c.bf16 %v4393, %v4391
      %v4524 = vpack.c.bf16 %v4397, %v4395
      %v4525 = vpack.c.bf16 %v4401, %v4399
      %v4526 = vpack.c.bf16 %v4405, %v4403
      %v4527 = vpack.c.bf16 %v4409, %v4407
      %v4528 = vpack.c.bf16 %v4413, %v4411
      %v4529 = vpack.c.bf16 %v4417, %v4415
      %v4530 = vpack.c.bf16 %v4421, %v4419
      %v4531 = vpack.c.bf16 %v4425, %v4423
      %v4532 = vpack.c.bf16 %v4429, %v4427
      %v4533 = vpack.c.bf16 %v4433, %v4431
      %v4534 = vpack.c.bf16 %v4437, %v4435
      %v4535 = vpack.c.bf16 %v4441, %v4439
      %v4536 = vpack.c.bf16 %v4445, %v4443
      %v4537 = vpack.c.bf16 %v4449, %v4447
      %v4538 = vpack.c.bf16 %v4453, %v4451
      %v4539 = vpack.c.bf16 %v4457, %v4455
      %v4540 = vpack.c.bf16 %v4461, %v4459
      %v4541 = vpack.c.bf16 %v4465, %v4463
      %v4542 = vpack.c.bf16 %v4469, %v4467
      %v4543 = vpack.c.bf16 %v4473, %v4471
      %v4544 = vpack.c.bf16 %v4477, %v4475
      %v4545 = vpack.c.bf16 %v4481, %v4479
      %v4546 = vunpack.c.h.b16 %v1058
      %v4547 = vunpack.c.h.b16 %v1059
      %v4548 = vunpack.c.h.b16 %v1060
      %v4549 = vunpack.c.h.b16 %v1061
      %v4550 = vunpack.c.h.b16 %v1062
      %v4551 = vunpack.c.h.b16 %v1063
      %v4552 = vunpack.c.h.b16 %v1064
      %v4553 = vunpack.c.h.b16 %v1065
      %v4554 = vunpack.c.h.b16 %v1066
      %v4555 = vunpack.c.h.b16 %v1067
      %v4556 = vunpack.c.h.b16 %v1068
      %v4557 = vunpack.c.h.b16 %v1069
      %v4558 = vunpack.c.h.b16 %v1070
      %v4559 = vunpack.c.h.b16 %v1071
      %v4560 = vunpack.c.h.b16 %v1072
      %v4561 = vunpack.c.h.b16 %v1073
      %v4562 = vunpack.c.h.b16 %v1074
      %v4563 = vunpack.c.h.b16 %v1075
      %v4564 = vunpack.c.h.b16 %v1076
      %v4565 = vunpack.c.h.b16 %v1077
      %v4566 = vunpack.c.h.b16 %v1078
      %v4567 = vunpack.c.h.b16 %v1079
      %v4568 = vunpack.c.h.b16 %v1080
      %v4569 = vunpack.c.h.b16 %v1081
      %v4570 = vunpack.c.h.b16 %v1082
      %v4571 = vunpack.c.h.b16 %v1083
      %v4572 = vunpack.c.h.b16 %v1084
      %v4573 = vunpack.c.h.b16 %v1085
      %v4574 = vunpack.c.h.b16 %v1086
      %v4575 = vunpack.c.h.b16 %v1087
      %v4576 = vunpack.c.h.b16 %v1088
      %v4577 = vunpack.c.h.b16 %v1089
      %v4578 = vpack.c.b16 %v4547, %v4546
      %v4579 = vpack.c.b16 %v4549, %v4548
      %v4580 = vpack.c.b16 %v4551, %v4550
      %v4581 = vpack.c.b16 %v4553, %v4552
      %v4582 = vpack.c.b16 %v4555, %v4554
      %v4583 = vpack.c.b16 %v4557, %v4556
      %v4584 = vpack.c.b16 %v4559, %v4558
      %v4585 = vpack.c.b16 %v4561, %v4560
      %v4586 = vpack.c.b16 %v4563, %v4562
      %v4587 = vpack.c.b16 %v4565, %v4564
      %v4588 = vpack.c.b16 %v4567, %v4566
      %v4589 = vpack.c.b16 %v4569, %v4568
      %v4590 = vpack.c.b16 %v4571, %v4570
      %v4591 = vpack.c.b16 %v4573, %v4572
      %v4592 = vpack.c.b16 %v4575, %v4574
      %v4593 = vpack.c.b16 %v4577, %v4576
      %v4610 = vunpack.c.l.bf16 %v4578
      %v4611 = vunpack.c.h.bf16 %v4578
      %v4612 = vunpack.c.l.bf16 %v4579
      %v4613 = vunpack.c.h.bf16 %v4579
      %v4614 = vunpack.c.l.bf16 %v4580
      %v4615 = vunpack.c.h.bf16 %v4580
      %v4616 = vunpack.c.l.bf16 %v4581
      %v4617 = vunpack.c.h.bf16 %v4581
      %v4618 = vunpack.c.l.bf16 %v4582
      %v4619 = vunpack.c.h.bf16 %v4582
      %v4620 = vunpack.c.l.bf16 %v4583
      %v4621 = vunpack.c.h.bf16 %v4583
      %v4622 = vunpack.c.l.bf16 %v4584
      %v4623 = vunpack.c.h.bf16 %v4584
      %v4624 = vunpack.c.l.bf16 %v4585
      %v4625 = vunpack.c.h.bf16 %v4585
      %v4626 = vunpack.c.l.bf16 %v4586
      %v4627 = vunpack.c.h.bf16 %v4586
      %v4628 = vunpack.c.l.bf16 %v4587
      %v4629 = vunpack.c.h.bf16 %v4587
      %v4630 = vunpack.c.l.bf16 %v4588
      %v4631 = vunpack.c.h.bf16 %v4588
      %v4632 = vunpack.c.l.bf16 %v4589
      %v4633 = vunpack.c.h.bf16 %v4589
      %v4634 = vunpack.c.l.bf16 %v4590
      %v4635 = vunpack.c.h.bf16 %v4590
      %v4636 = vunpack.c.l.bf16 %v4591
      %v4637 = vunpack.c.h.bf16 %v4591
      %v4638 = vunpack.c.l.bf16 %v4592
      %v4639 = vunpack.c.h.bf16 %v4592
      %v4640 = vunpack.c.l.bf16 %v4593
      %v4641 = vunpack.c.h.bf16 %v4593
      %v4642 = vmul.f32 %v4610, %v1282
      %v4643 = vmul.f32 %v4611, %v1283
      %v4644 = vmul.f32 %v4612, %v1284
      %v4645 = vmul.f32 %v4613, %v1285
      %v4646 = vmul.f32 %v4614, %v1286
      %v4647 = vmul.f32 %v4615, %v1287
      %v4648 = vmul.f32 %v4616, %v1288
      %v4649 = vmul.f32 %v4617, %v1289
      %v4650 = vmul.f32 %v4610, %v1290
      %v4651 = vmul.f32 %v4611, %v1291
      %v4652 = vmul.f32 %v4612, %v1292
      %v4653 = vmul.f32 %v4613, %v1293
      %v4654 = vmul.f32 %v4614, %v1294
      %v4655 = vmul.f32 %v4615, %v1295
      %v4656 = vmul.f32 %v4616, %v1296
      %v4657 = vmul.f32 %v4617, %v1297
      %v4658 = vmul.f32 %v4610, %v1298
      %v4659 = vmul.f32 %v4611, %v1299
      %v4660 = vmul.f32 %v4612, %v1300
      %v4661 = vmul.f32 %v4613, %v1301
      %v4662 = vmul.f32 %v4614, %v1302
      %v4663 = vmul.f32 %v4615, %v1303
      %v4664 = vmul.f32 %v4616, %v1304
      %v4665 = vmul.f32 %v4617, %v1305
      %v4666 = vmul.f32 %v4610, %v1306
      %v4667 = vmul.f32 %v4611, %v1307
      %v4668 = vmul.f32 %v4612, %v1308
      %v4669 = vmul.f32 %v4613, %v1309
      %v4670 = vmul.f32 %v4614, %v1310
      %v4671 = vmul.f32 %v4615, %v1311
      %v4672 = vmul.f32 %v4616, %v1312
      %v4673 = vmul.f32 %v4617, %v1313
      %v4674 = vmul.f32 %v4610, %v1314
      %v4675 = vmul.f32 %v4611, %v1315
      %v4676 = vmul.f32 %v4612, %v1316
      %v4677 = vmul.f32 %v4613, %v1317
      %v4678 = vmul.f32 %v4614, %v1318
      %v4679 = vmul.f32 %v4615, %v1319
      %v4680 = vmul.f32 %v4616, %v1320
      %v4681 = vmul.f32 %v4617, %v1321
      %v4682 = vmul.f32 %v4610, %v1322
      %v4683 = vmul.f32 %v4611, %v1323
      %v4684 = vmul.f32 %v4612, %v1324
      %v4685 = vmul.f32 %v4613, %v1325
      %v4686 = vmul.f32 %v4614, %v1326
      %v4687 = vmul.f32 %v4615, %v1327
      %v4688 = vmul.f32 %v4616, %v1328
      %v4689 = vmul.f32 %v4617, %v1329
      %v4690 = vmul.f32 %v4610, %v1330
      %v4691 = vmul.f32 %v4611, %v1331
      %v4692 = vmul.f32 %v4612, %v1332
      %v4693 = vmul.f32 %v4613, %v1333
      %v4694 = vmul.f32 %v4614, %v1334
      %v4695 = vmul.f32 %v4615, %v1335
      %v4696 = vmul.f32 %v4616, %v1336
      %v4697 = vmul.f32 %v4617, %v1337
      %v4698 = vmul.f32 %v4610, %v1338
      %v4699 = vmul.f32 %v4611, %v1339
      %v4700 = vmul.f32 %v4612, %v1340
      %v4701 = vmul.f32 %v4613, %v1341
      %v4702 = vmul.f32 %v4614, %v1342
      %v4703 = vmul.f32 %v4615, %v1343
      %v4704 = vmul.f32 %v4616, %v1344
      %v4705 = vmul.f32 %v4617, %v1345
      %v4706 = vmul.f32 %v4618, %v1282
      %v4707 = vmul.f32 %v4619, %v1283
      %v4708 = vmul.f32 %v4620, %v1284
      %v4709 = vmul.f32 %v4621, %v1285
      %v4710 = vmul.f32 %v4622, %v1286
      %v4711 = vmul.f32 %v4623, %v1287
      %v4712 = vmul.f32 %v4624, %v1288
      %v4713 = vmul.f32 %v4625, %v1289
      %v4714 = vmul.f32 %v4618, %v1290
      %v4715 = vmul.f32 %v4619, %v1291
      %v4716 = vmul.f32 %v4620, %v1292
      %v4717 = vmul.f32 %v4621, %v1293
      %v4718 = vmul.f32 %v4622, %v1294
      %v4719 = vmul.f32 %v4623, %v1295
      %v4720 = vmul.f32 %v4624, %v1296
      %v4721 = vmul.f32 %v4625, %v1297
      %v4722 = vmul.f32 %v4618, %v1298
      %v4723 = vmul.f32 %v4619, %v1299
      %v4724 = vmul.f32 %v4620, %v1300
      %v4725 = vmul.f32 %v4621, %v1301
      %v4726 = vmul.f32 %v4622, %v1302
      %v4727 = vmul.f32 %v4623, %v1303
      %v4728 = vmul.f32 %v4624, %v1304
      %v4729 = vmul.f32 %v4625, %v1305
      %v4730 = vmul.f32 %v4618, %v1306
      %v4731 = vmul.f32 %v4619, %v1307
      %v4732 = vmul.f32 %v4620, %v1308
      %v4733 = vmul.f32 %v4621, %v1309
      %v4734 = vmul.f32 %v4622, %v1310
      %v4735 = vmul.f32 %v4623, %v1311
      %v4736 = vmul.f32 %v4624, %v1312
      %v4737 = vmul.f32 %v4625, %v1313
      %v4738 = vmul.f32 %v4618, %v1314
      %v4739 = vmul.f32 %v4619, %v1315
      %v4740 = vmul.f32 %v4620, %v1316
      %v4741 = vmul.f32 %v4621, %v1317
      %v4742 = vmul.f32 %v4622, %v1318
      %v4743 = vmul.f32 %v4623, %v1319
      %v4744 = vmul.f32 %v4624, %v1320
      %v4745 = vmul.f32 %v4625, %v1321
      %v4746 = vmul.f32 %v4618, %v1322
      %v4747 = vmul.f32 %v4619, %v1323
      %v4748 = vmul.f32 %v4620, %v1324
      %v4749 = vmul.f32 %v4621, %v1325
      %v4750 = vmul.f32 %v4622, %v1326
      %v4751 = vmul.f32 %v4623, %v1327
      %v4752 = vmul.f32 %v4624, %v1328
      %v4753 = vmul.f32 %v4625, %v1329
      %v4754 = vmul.f32 %v4618, %v1330
      %v4755 = vmul.f32 %v4619, %v1331
      %v4756 = vmul.f32 %v4620, %v1332
      %v4757 = vmul.f32 %v4621, %v1333
      %v4758 = vmul.f32 %v4622, %v1334
      %v4759 = vmul.f32 %v4623, %v1335
      %v4760 = vmul.f32 %v4624, %v1336
      %v4761 = vmul.f32 %v4625, %v1337
      %v4762 = vmul.f32 %v4618, %v1338
      %v4763 = vmul.f32 %v4619, %v1339
      %v4764 = vmul.f32 %v4620, %v1340
      %v4765 = vmul.f32 %v4621, %v1341
      %v4766 = vmul.f32 %v4622, %v1342
      %v4767 = vmul.f32 %v4623, %v1343
      %v4768 = vmul.f32 %v4624, %v1344
      %v4769 = vmul.f32 %v4625, %v1345
      %v4770 = vmul.f32 %v4626, %v1282
      %v4771 = vmul.f32 %v4627, %v1283
      %v4772 = vmul.f32 %v4628, %v1284
      %v4773 = vmul.f32 %v4629, %v1285
      %v4774 = vmul.f32 %v4630, %v1286
      %v4775 = vmul.f32 %v4631, %v1287
      %v4776 = vmul.f32 %v4632, %v1288
      %v4777 = vmul.f32 %v4633, %v1289
      %v4778 = vmul.f32 %v4626, %v1290
      %v4779 = vmul.f32 %v4627, %v1291
      %v4780 = vmul.f32 %v4628, %v1292
      %v4781 = vmul.f32 %v4629, %v1293
      %v4782 = vmul.f32 %v4630, %v1294
      %v4783 = vmul.f32 %v4631, %v1295
      %v4784 = vmul.f32 %v4632, %v1296
      %v4785 = vmul.f32 %v4633, %v1297
      %v4786 = vmul.f32 %v4626, %v1298
      %v4787 = vmul.f32 %v4627, %v1299
      %v4788 = vmul.f32 %v4628, %v1300
      %v4789 = vmul.f32 %v4629, %v1301
      %v4790 = vmul.f32 %v4630, %v1302
      %v4791 = vmul.f32 %v4631, %v1303
      %v4792 = vmul.f32 %v4632, %v1304
      %v4793 = vmul.f32 %v4633, %v1305
      %v4794 = vmul.f32 %v4626, %v1306
      %v4795 = vmul.f32 %v4627, %v1307
      %v4796 = vmul.f32 %v4628, %v1308
      %v4797 = vmul.f32 %v4629, %v1309
      %v4798 = vmul.f32 %v4630, %v1310
      %v4799 = vmul.f32 %v4631, %v1311
      %v4800 = vmul.f32 %v4632, %v1312
      %v4801 = vmul.f32 %v4633, %v1313
      %v4802 = vmul.f32 %v4626, %v1314
      %v4803 = vmul.f32 %v4627, %v1315
      %v4804 = vmul.f32 %v4628, %v1316
      %v4805 = vmul.f32 %v4629, %v1317
      %v4806 = vmul.f32 %v4630, %v1318
      %v4807 = vmul.f32 %v4631, %v1319
      %v4808 = vmul.f32 %v4632, %v1320
      %v4809 = vmul.f32 %v4633, %v1321
      %v4810 = vmul.f32 %v4626, %v1322
      %v4811 = vmul.f32 %v4627, %v1323
      %v4812 = vmul.f32 %v4628, %v1324
      %v4813 = vmul.f32 %v4629, %v1325
      %v4814 = vmul.f32 %v4630, %v1326
      %v4815 = vmul.f32 %v4631, %v1327
      %v4816 = vmul.f32 %v4632, %v1328
      %v4817 = vmul.f32 %v4633, %v1329
      %v4818 = vmul.f32 %v4626, %v1330
      %v4819 = vmul.f32 %v4627, %v1331
      %v4820 = vmul.f32 %v4628, %v1332
      %v4821 = vmul.f32 %v4629, %v1333
      %v4822 = vmul.f32 %v4630, %v1334
      %v4823 = vmul.f32 %v4631, %v1335
      %v4824 = vmul.f32 %v4632, %v1336
      %v4825 = vmul.f32 %v4633, %v1337
      %v4826 = vmul.f32 %v4626, %v1338
      %v4827 = vmul.f32 %v4627, %v1339
      %v4828 = vmul.f32 %v4628, %v1340
      %v4829 = vmul.f32 %v4629, %v1341
      %v4830 = vmul.f32 %v4630, %v1342
      %v4831 = vmul.f32 %v4631, %v1343
      %v4832 = vmul.f32 %v4632, %v1344
      %v4833 = vmul.f32 %v4633, %v1345
      %v4834 = vmul.f32 %v4634, %v1282
      %v4835 = vmul.f32 %v4635, %v1283
      %v4836 = vmul.f32 %v4636, %v1284
      %v4837 = vmul.f32 %v4637, %v1285
      %v4838 = vmul.f32 %v4638, %v1286
      %v4839 = vmul.f32 %v4639, %v1287
      %v4840 = vmul.f32 %v4640, %v1288
      %v4841 = vmul.f32 %v4641, %v1289
      %v4842 = vmul.f32 %v4634, %v1290
      %v4843 = vmul.f32 %v4635, %v1291
      %v4844 = vmul.f32 %v4636, %v1292
      %v4845 = vmul.f32 %v4637, %v1293
      %v4846 = vmul.f32 %v4638, %v1294
      %v4847 = vmul.f32 %v4639, %v1295
      %v4848 = vmul.f32 %v4640, %v1296
      %v4849 = vmul.f32 %v4641, %v1297
      %v4850 = vmul.f32 %v4634, %v1298
      %v4851 = vmul.f32 %v4635, %v1299
      %v4852 = vmul.f32 %v4636, %v1300
      %v4853 = vmul.f32 %v4637, %v1301
      %v4854 = vmul.f32 %v4638, %v1302
      %v4855 = vmul.f32 %v4639, %v1303
      %v4856 = vmul.f32 %v4640, %v1304
      %v4857 = vmul.f32 %v4641, %v1305
      %v4858 = vmul.f32 %v4634, %v1306
      %v4859 = vmul.f32 %v4635, %v1307
      %v4860 = vmul.f32 %v4636, %v1308
      %v4861 = vmul.f32 %v4637, %v1309
      %v4862 = vmul.f32 %v4638, %v1310
      %v4863 = vmul.f32 %v4639, %v1311
      %v4864 = vmul.f32 %v4640, %v1312
      %v4865 = vmul.f32 %v4641, %v1313
      %v4866 = vmul.f32 %v4634, %v1314
      %v4867 = vmul.f32 %v4635, %v1315
      %v4868 = vmul.f32 %v4636, %v1316
      %v4869 = vmul.f32 %v4637, %v1317
      %v4870 = vmul.f32 %v4638, %v1318
      %v4871 = vmul.f32 %v4639, %v1319
      %v4872 = vmul.f32 %v4640, %v1320
      %v4873 = vmul.f32 %v4641, %v1321
      %v4874 = vmul.f32 %v4634, %v1322
      %v4875 = vmul.f32 %v4635, %v1323
      %v4876 = vmul.f32 %v4636, %v1324
      %v4877 = vmul.f32 %v4637, %v1325
      %v4878 = vmul.f32 %v4638, %v1326
      %v4879 = vmul.f32 %v4639, %v1327
      %v4880 = vmul.f32 %v4640, %v1328
      %v4881 = vmul.f32 %v4641, %v1329
      %v4882 = vmul.f32 %v4634, %v1330
      %v4883 = vmul.f32 %v4635, %v1331
      %v4884 = vmul.f32 %v4636, %v1332
      %v4885 = vmul.f32 %v4637, %v1333
      %v4886 = vmul.f32 %v4638, %v1334
      %v4887 = vmul.f32 %v4639, %v1335
      %v4888 = vmul.f32 %v4640, %v1336
      %v4889 = vmul.f32 %v4641, %v1337
      %v4890 = vmul.f32 %v4634, %v1338
      %v4891 = vmul.f32 %v4635, %v1339
      %v4892 = vmul.f32 %v4636, %v1340
      %v4893 = vmul.f32 %v4637, %v1341
      %v4894 = vmul.f32 %v4638, %v1342
      %v4895 = vmul.f32 %v4639, %v1343
      %v4896 = vmul.f32 %v4640, %v1344
      %v4897 = vmul.f32 %v4641, %v1345
      %v4898 = vpack.c.bf16 %v4642, %v4642
      %v4899 = vpack.c.bf16 %v4643, %v4643
      %v4900 = vpack.c.bf16 %v4644, %v4644
      %v4901 = vpack.c.bf16 %v4645, %v4645
      %v4902 = vpack.c.bf16 %v4646, %v4646
      %v4903 = vpack.c.bf16 %v4647, %v4647
      %v4904 = vpack.c.bf16 %v4648, %v4648
      %v4905 = vpack.c.bf16 %v4649, %v4649
      %v4906 = vpack.c.bf16 %v4650, %v4650
      %v4907 = vpack.c.bf16 %v4651, %v4651
      %v4908 = vpack.c.bf16 %v4652, %v4652
      %v4909 = vpack.c.bf16 %v4653, %v4653
      %v4910 = vpack.c.bf16 %v4654, %v4654
      %v4911 = vpack.c.bf16 %v4655, %v4655
      %v4912 = vpack.c.bf16 %v4656, %v4656
      %v4913 = vpack.c.bf16 %v4657, %v4657
      %v4914 = vpack.c.bf16 %v4658, %v4658
      %v4915 = vpack.c.bf16 %v4659, %v4659
      %v4916 = vpack.c.bf16 %v4660, %v4660
      %v4917 = vpack.c.bf16 %v4661, %v4661
      %v4918 = vpack.c.bf16 %v4662, %v4662
      %v4919 = vpack.c.bf16 %v4663, %v4663
      %v4920 = vpack.c.bf16 %v4664, %v4664
      %v4921 = vpack.c.bf16 %v4665, %v4665
      %v4922 = vpack.c.bf16 %v4666, %v4666
      %v4923 = vpack.c.bf16 %v4667, %v4667
      %v4924 = vpack.c.bf16 %v4668, %v4668
      %v4925 = vpack.c.bf16 %v4669, %v4669
      %v4926 = vpack.c.bf16 %v4670, %v4670
      %v4927 = vpack.c.bf16 %v4671, %v4671
      %v4928 = vpack.c.bf16 %v4672, %v4672
      %v4929 = vpack.c.bf16 %v4673, %v4673
      %v4930 = vpack.c.bf16 %v4674, %v4674
      %v4931 = vpack.c.bf16 %v4675, %v4675
      %v4932 = vpack.c.bf16 %v4676, %v4676
      %v4933 = vpack.c.bf16 %v4677, %v4677
      %v4934 = vpack.c.bf16 %v4678, %v4678
      %v4935 = vpack.c.bf16 %v4679, %v4679
      %v4936 = vpack.c.bf16 %v4680, %v4680
      %v4937 = vpack.c.bf16 %v4681, %v4681
      %v4938 = vpack.c.bf16 %v4682, %v4682
      %v4939 = vpack.c.bf16 %v4683, %v4683
      %v4940 = vpack.c.bf16 %v4684, %v4684
      %v4941 = vpack.c.bf16 %v4685, %v4685
      %v4942 = vpack.c.bf16 %v4686, %v4686
      %v4943 = vpack.c.bf16 %v4687, %v4687
      %v4944 = vpack.c.bf16 %v4688, %v4688
      %v4945 = vpack.c.bf16 %v4689, %v4689
      %v4946 = vpack.c.bf16 %v4690, %v4690
      %v4947 = vpack.c.bf16 %v4691, %v4691
      %v4948 = vpack.c.bf16 %v4692, %v4692
      %v4949 = vpack.c.bf16 %v4693, %v4693
      %v4950 = vpack.c.bf16 %v4694, %v4694
      %v4951 = vpack.c.bf16 %v4695, %v4695
      %v4952 = vpack.c.bf16 %v4696, %v4696
      %v4953 = vpack.c.bf16 %v4697, %v4697
      %v4954 = vpack.c.bf16 %v4698, %v4698
      %v4955 = vpack.c.bf16 %v4699, %v4699
      %v4956 = vpack.c.bf16 %v4700, %v4700
      %v4957 = vpack.c.bf16 %v4701, %v4701
      %v4958 = vpack.c.bf16 %v4702, %v4702
      %v4959 = vpack.c.bf16 %v4703, %v4703
      %v4960 = vpack.c.bf16 %v4704, %v4704
      %v4961 = vpack.c.bf16 %v4705, %v4705
      %v4962 = vpack.c.bf16 %v4706, %v4706
      %v4963 = vpack.c.bf16 %v4707, %v4707
      %v4964 = vpack.c.bf16 %v4708, %v4708
      %v4965 = vpack.c.bf16 %v4709, %v4709
      %v4966 = vpack.c.bf16 %v4710, %v4710
      %v4967 = vpack.c.bf16 %v4711, %v4711
      %v4968 = vpack.c.bf16 %v4712, %v4712
      %v4969 = vpack.c.bf16 %v4713, %v4713
      %v4970 = vpack.c.bf16 %v4714, %v4714
      %v4971 = vpack.c.bf16 %v4715, %v4715
      %v4972 = vpack.c.bf16 %v4716, %v4716
      %v4973 = vpack.c.bf16 %v4717, %v4717
      %v4974 = vpack.c.bf16 %v4718, %v4718
      %v4975 = vpack.c.bf16 %v4719, %v4719
      %v4976 = vpack.c.bf16 %v4720, %v4720
      %v4977 = vpack.c.bf16 %v4721, %v4721
      %v4978 = vpack.c.bf16 %v4722, %v4722
      %v4979 = vpack.c.bf16 %v4723, %v4723
      %v4980 = vpack.c.bf16 %v4724, %v4724
      %v4981 = vpack.c.bf16 %v4725, %v4725
      %v4982 = vpack.c.bf16 %v4726, %v4726
      %v4983 = vpack.c.bf16 %v4727, %v4727
      %v4984 = vpack.c.bf16 %v4728, %v4728
      %v4985 = vpack.c.bf16 %v4729, %v4729
      %v4986 = vpack.c.bf16 %v4730, %v4730
      %v4987 = vpack.c.bf16 %v4731, %v4731
      %v4988 = vpack.c.bf16 %v4732, %v4732
      %v4989 = vpack.c.bf16 %v4733, %v4733
      %v4990 = vpack.c.bf16 %v4734, %v4734
      %v4991 = vpack.c.bf16 %v4735, %v4735
      %v4992 = vpack.c.bf16 %v4736, %v4736
      %v4993 = vpack.c.bf16 %v4737, %v4737
      %v4994 = vpack.c.bf16 %v4738, %v4738
      %v4995 = vpack.c.bf16 %v4739, %v4739
      %v4996 = vpack.c.bf16 %v4740, %v4740
      %v4997 = vpack.c.bf16 %v4741, %v4741
      %v4998 = vpack.c.bf16 %v4742, %v4742
      %v4999 = vpack.c.bf16 %v4743, %v4743
      %v5000 = vpack.c.bf16 %v4744, %v4744
      %v5001 = vpack.c.bf16 %v4745, %v4745
      %v5002 = vpack.c.bf16 %v4746, %v4746
      %v5003 = vpack.c.bf16 %v4747, %v4747
      %v5004 = vpack.c.bf16 %v4748, %v4748
      %v5005 = vpack.c.bf16 %v4749, %v4749
      %v5006 = vpack.c.bf16 %v4750, %v4750
      %v5007 = vpack.c.bf16 %v4751, %v4751
      %v5008 = vpack.c.bf16 %v4752, %v4752
      %v5009 = vpack.c.bf16 %v4753, %v4753
      %v5010 = vpack.c.bf16 %v4754, %v4754
      %v5011 = vpack.c.bf16 %v4755, %v4755
      %v5012 = vpack.c.bf16 %v4756, %v4756
      %v5013 = vpack.c.bf16 %v4757, %v4757
      %v5014 = vpack.c.bf16 %v4758, %v4758
      %v5015 = vpack.c.bf16 %v4759, %v4759
      %v5016 = vpack.c.bf16 %v4760, %v4760
      %v5017 = vpack.c.bf16 %v4761, %v4761
      %v5018 = vpack.c.bf16 %v4762, %v4762
      %v5019 = vpack.c.bf16 %v4763, %v4763
      %v5020 = vpack.c.bf16 %v4764, %v4764
      %v5021 = vpack.c.bf16 %v4765, %v4765
      %v5022 = vpack.c.bf16 %v4766, %v4766
      %v5023 = vpack.c.bf16 %v4767, %v4767
      %v5024 = vpack.c.bf16 %v4768, %v4768
      %v5025 = vpack.c.bf16 %v4769, %v4769
      %v5026 = vpack.c.bf16 %v4770, %v4770
      %v5027 = vpack.c.bf16 %v4771, %v4771
      %v5028 = vpack.c.bf16 %v4772, %v4772
      %v5029 = vpack.c.bf16 %v4773, %v4773
      %v5030 = vpack.c.bf16 %v4774, %v4774
      %v5031 = vpack.c.bf16 %v4775, %v4775
      %v5032 = vpack.c.bf16 %v4776, %v4776
      %v5033 = vpack.c.bf16 %v4777, %v4777
      %v5034 = vpack.c.bf16 %v4778, %v4778
      %v5035 = vpack.c.bf16 %v4779, %v4779
      %v5036 = vpack.c.bf16 %v4780, %v4780
      %v5037 = vpack.c.bf16 %v4781, %v4781
      %v5038 = vpack.c.bf16 %v4782, %v4782
      %v5039 = vpack.c.bf16 %v4783, %v4783
      %v5040 = vpack.c.bf16 %v4784, %v4784
      %v5041 = vpack.c.bf16 %v4785, %v4785
      %v5042 = vpack.c.bf16 %v4786, %v4786
      %v5043 = vpack.c.bf16 %v4787, %v4787
      %v5044 = vpack.c.bf16 %v4788, %v4788
      %v5045 = vpack.c.bf16 %v4789, %v4789
      %v5046 = vpack.c.bf16 %v4790, %v4790
      %v5047 = vpack.c.bf16 %v4791, %v4791
      %v5048 = vpack.c.bf16 %v4792, %v4792
      %v5049 = vpack.c.bf16 %v4793, %v4793
      %v5050 = vpack.c.bf16 %v4794, %v4794
      %v5051 = vpack.c.bf16 %v4795, %v4795
      %v5052 = vpack.c.bf16 %v4796, %v4796
      %v5053 = vpack.c.bf16 %v4797, %v4797
      %v5054 = vpack.c.bf16 %v4798, %v4798
      %v5055 = vpack.c.bf16 %v4799, %v4799
      %v5056 = vpack.c.bf16 %v4800, %v4800
      %v5057 = vpack.c.bf16 %v4801, %v4801
      %v5058 = vpack.c.bf16 %v4802, %v4802
      %v5059 = vpack.c.bf16 %v4803, %v4803
      %v5060 = vpack.c.bf16 %v4804, %v4804
      %v5061 = vpack.c.bf16 %v4805, %v4805
      %v5062 = vpack.c.bf16 %v4806, %v4806
      %v5063 = vpack.c.bf16 %v4807, %v4807
      %v5064 = vpack.c.bf16 %v4808, %v4808
      %v5065 = vpack.c.bf16 %v4809, %v4809
      %v5066 = vpack.c.bf16 %v4810, %v4810
      %v5067 = vpack.c.bf16 %v4811, %v4811
      %v5068 = vpack.c.bf16 %v4812, %v4812
      %v5069 = vpack.c.bf16 %v4813, %v4813
      %v5070 = vpack.c.bf16 %v4814, %v4814
      %v5071 = vpack.c.bf16 %v4815, %v4815
      %v5072 = vpack.c.bf16 %v4816, %v4816
      %v5073 = vpack.c.bf16 %v4817, %v4817
      %v5074 = vpack.c.bf16 %v4818, %v4818
      %v5075 = vpack.c.bf16 %v4819, %v4819
      %v5076 = vpack.c.bf16 %v4820, %v4820
      %v5077 = vpack.c.bf16 %v4821, %v4821
      %v5078 = vpack.c.bf16 %v4822, %v4822
      %v5079 = vpack.c.bf16 %v4823, %v4823
      %v5080 = vpack.c.bf16 %v4824, %v4824
      %v5081 = vpack.c.bf16 %v4825, %v4825
      %v5082 = vpack.c.bf16 %v4826, %v4826
      %v5083 = vpack.c.bf16 %v4827, %v4827
      %v5084 = vpack.c.bf16 %v4828, %v4828
      %v5085 = vpack.c.bf16 %v4829, %v4829
      %v5086 = vpack.c.bf16 %v4830, %v4830
      %v5087 = vpack.c.bf16 %v4831, %v4831
      %v5088 = vpack.c.bf16 %v4832, %v4832
      %v5089 = vpack.c.bf16 %v4833, %v4833
      %v5090 = vpack.c.bf16 %v4834, %v4834
      %v5091 = vpack.c.bf16 %v4835, %v4835
      %v5092 = vpack.c.bf16 %v4836, %v4836
      %v5093 = vpack.c.bf16 %v4837, %v4837
      %v5094 = vpack.c.bf16 %v4838, %v4838
      %v5095 = vpack.c.bf16 %v4839, %v4839
      %v5096 = vpack.c.bf16 %v4840, %v4840
      %v5097 = vpack.c.bf16 %v4841, %v4841
      %v5098 = vpack.c.bf16 %v4842, %v4842
      %v5099 = vpack.c.bf16 %v4843, %v4843
      %v5100 = vpack.c.bf16 %v4844, %v4844
      %v5101 = vpack.c.bf16 %v4845, %v4845
      %v5102 = vpack.c.bf16 %v4846, %v4846
      %v5103 = vpack.c.bf16 %v4847, %v4847
      %v5104 = vpack.c.bf16 %v4848, %v4848
      %v5105 = vpack.c.bf16 %v4849, %v4849
      %v5106 = vpack.c.bf16 %v4850, %v4850
      %v5107 = vpack.c.bf16 %v4851, %v4851
      %v5108 = vpack.c.bf16 %v4852, %v4852
      %v5109 = vpack.c.bf16 %v4853, %v4853
      %v5110 = vpack.c.bf16 %v4854, %v4854
      %v5111 = vpack.c.bf16 %v4855, %v4855
      %v5112 = vpack.c.bf16 %v4856, %v4856
      %v5113 = vpack.c.bf16 %v4857, %v4857
      %v5114 = vpack.c.bf16 %v4858, %v4858
      %v5115 = vpack.c.bf16 %v4859, %v4859
      %v5116 = vpack.c.bf16 %v4860, %v4860
      %v5117 = vpack.c.bf16 %v4861, %v4861
      %v5118 = vpack.c.bf16 %v4862, %v4862
      %v5119 = vpack.c.bf16 %v4863, %v4863
      %v5120 = vpack.c.bf16 %v4864, %v4864
      %v5121 = vpack.c.bf16 %v4865, %v4865
      %v5122 = vpack.c.bf16 %v4866, %v4866
      %v5123 = vpack.c.bf16 %v4867, %v4867
      %v5124 = vpack.c.bf16 %v4868, %v4868
      %v5125 = vpack.c.bf16 %v4869, %v4869
      %v5126 = vpack.c.bf16 %v4870, %v4870
      %v5127 = vpack.c.bf16 %v4871, %v4871
      %v5128 = vpack.c.bf16 %v4872, %v4872
      %v5129 = vpack.c.bf16 %v4873, %v4873
      %v5130 = vpack.c.bf16 %v4874, %v4874
      %v5131 = vpack.c.bf16 %v4875, %v4875
      %v5132 = vpack.c.bf16 %v4876, %v4876
      %v5133 = vpack.c.bf16 %v4877, %v4877
      %v5134 = vpack.c.bf16 %v4878, %v4878
      %v5135 = vpack.c.bf16 %v4879, %v4879
      %v5136 = vpack.c.bf16 %v4880, %v4880
      %v5137 = vpack.c.bf16 %v4881, %v4881
      %v5138 = vpack.c.bf16 %v4882, %v4882
      %v5139 = vpack.c.bf16 %v4883, %v4883
      %v5140 = vpack.c.bf16 %v4884, %v4884
      %v5141 = vpack.c.bf16 %v4885, %v4885
      %v5142 = vpack.c.bf16 %v4886, %v4886
      %v5143 = vpack.c.bf16 %v4887, %v4887
      %v5144 = vpack.c.bf16 %v4888, %v4888
      %v5145 = vpack.c.bf16 %v4889, %v4889
      %v5146 = vpack.c.bf16 %v4890, %v4890
      %v5147 = vpack.c.bf16 %v4891, %v4891
      %v5148 = vpack.c.bf16 %v4892, %v4892
      %v5149 = vpack.c.bf16 %v4893, %v4893
      %v5150 = vpack.c.bf16 %v4894, %v4894
      %v5151 = vpack.c.bf16 %v4895, %v4895
      %v5152 = vpack.c.bf16 %v4896, %v4896
      %v5153 = vpack.c.bf16 %v4897, %v4897
      %v5170 = vunpack.c.l.b16 %v4482
      %v5171 = vunpack.c.h.b16 %v4482
      %v5172 = vunpack.c.l.b16 %v4483
      %v5173 = vunpack.c.h.b16 %v4483
      %v5174 = vunpack.c.l.b16 %v4484
      %v5175 = vunpack.c.h.b16 %v4484
      %v5176 = vunpack.c.l.b16 %v4485
      %v5177 = vunpack.c.h.b16 %v4485
      %v5178 = vunpack.c.l.b16 %v4486
      %v5179 = vunpack.c.h.b16 %v4486
      %v5180 = vunpack.c.l.b16 %v4487
      %v5181 = vunpack.c.h.b16 %v4487
      %v5182 = vunpack.c.l.b16 %v4488
      %v5183 = vunpack.c.h.b16 %v4488
      %v5184 = vunpack.c.l.b16 %v4489
      %v5185 = vunpack.c.h.b16 %v4489
      %v5186 = vunpack.c.l.b16 %v4490
      %v5187 = vunpack.c.h.b16 %v4490
      %v5188 = vunpack.c.l.b16 %v4491
      %v5189 = vunpack.c.h.b16 %v4491
      %v5190 = vunpack.c.l.b16 %v4492
      %v5191 = vunpack.c.h.b16 %v4492
      %v5192 = vunpack.c.l.b16 %v4493
      %v5193 = vunpack.c.h.b16 %v4493
      %v5194 = vunpack.c.l.b16 %v4494
      %v5195 = vunpack.c.h.b16 %v4494
      %v5196 = vunpack.c.l.b16 %v4495
      %v5197 = vunpack.c.h.b16 %v4495
      %v5198 = vunpack.c.l.b16 %v4496
      %v5199 = vunpack.c.h.b16 %v4496
      %v5200 = vunpack.c.l.b16 %v4497
      %v5201 = vunpack.c.h.b16 %v4497
      %v5202 = vpack.c.b16 %v5174, %v5170
      %v5203 = vpack.c.b16 %v5175, %v5171
      %v5204 = vpack.c.b16 %v5176, %v5172
      %v5205 = vpack.c.b16 %v5177, %v5173
      %v5206 = vpack.c.b16 %v5182, %v5178
      %v5207 = vpack.c.b16 %v5183, %v5179
      %v5208 = vpack.c.b16 %v5184, %v5180
      %v5209 = vpack.c.b16 %v5185, %v5181
      %v5210 = vpack.c.b16 %v5190, %v5186
      %v5211 = vpack.c.b16 %v5191, %v5187
      %v5212 = vpack.c.b16 %v5192, %v5188
      %v5213 = vpack.c.b16 %v5193, %v5189
      %v5214 = vpack.c.b16 %v5198, %v5194
      %v5215 = vpack.c.b16 %v5199, %v5195
      %v5216 = vpack.c.b16 %v5200, %v5196
      %v5217 = vpack.c.b16 %v5201, %v5197
      %v5298 = vunpack.c.l.b16 %v4898
      %v5299 = vunpack.c.l.b16 %v4899
      %v5300 = vunpack.c.l.b16 %v4900
      %v5301 = vunpack.c.l.b16 %v4901
      %v5302 = vunpack.c.l.b16 %v4902
      %v5303 = vunpack.c.l.b16 %v4903
      %v5304 = vunpack.c.l.b16 %v4904
      %v5305 = vunpack.c.l.b16 %v4905
      %v5306 = vunpack.c.l.b16 %v4906
      %v5307 = vunpack.c.l.b16 %v4907
      %v5308 = vunpack.c.l.b16 %v4908
      %v5309 = vunpack.c.l.b16 %v4909
      %v5310 = vunpack.c.l.b16 %v4910
      %v5311 = vunpack.c.l.b16 %v4911
      %v5312 = vunpack.c.l.b16 %v4912
      %v5313 = vunpack.c.l.b16 %v4913
      %v5314 = vunpack.c.l.b16 %v4914
      %v5315 = vunpack.c.l.b16 %v4915
      %v5316 = vunpack.c.l.b16 %v4916
      %v5317 = vunpack.c.l.b16 %v4917
      %v5318 = vunpack.c.l.b16 %v4918
      %v5319 = vunpack.c.l.b16 %v4919
      %v5320 = vunpack.c.l.b16 %v4920
      %v5321 = vunpack.c.l.b16 %v4921
      %v5322 = vunpack.c.l.b16 %v4922
      %v5323 = vunpack.c.l.b16 %v4923
      %v5324 = vunpack.c.l.b16 %v4924
      %v5325 = vunpack.c.l.b16 %v4925
      %v5326 = vunpack.c.l.b16 %v4926
      %v5327 = vunpack.c.l.b16 %v4927
      %v5328 = vunpack.c.l.b16 %v4928
      %v5329 = vunpack.c.l.b16 %v4929
      %v5330 = vunpack.c.l.b16 %v4930
      %v5331 = vunpack.c.l.b16 %v4931
      %v5332 = vunpack.c.l.b16 %v4932
      %v5333 = vunpack.c.l.b16 %v4933
      %v5334 = vunpack.c.l.b16 %v4934
      %v5335 = vunpack.c.l.b16 %v4935
      %v5336 = vunpack.c.l.b16 %v4936
      %v5337 = vunpack.c.l.b16 %v4937
      %v5338 = vunpack.c.l.b16 %v4938
      %v5339 = vunpack.c.l.b16 %v4939
      %v5340 = vunpack.c.l.b16 %v4940
      %v5341 = vunpack.c.l.b16 %v4941
      %v5342 = vunpack.c.l.b16 %v4942
      %v5343 = vunpack.c.l.b16 %v4943
      %v5344 = vunpack.c.l.b16 %v4944
      %v5345 = vunpack.c.l.b16 %v4945
      %v5346 = vunpack.c.l.b16 %v4946
      %v5347 = vunpack.c.l.b16 %v4947
      %v5348 = vunpack.c.l.b16 %v4948
      %v5349 = vunpack.c.l.b16 %v4949
      %v5350 = vunpack.c.l.b16 %v4950
      %v5351 = vunpack.c.l.b16 %v4951
      %v5352 = vunpack.c.l.b16 %v4952
      %v5353 = vunpack.c.l.b16 %v4953
      %v5354 = vunpack.c.l.b16 %v4954
      %v5355 = vunpack.c.l.b16 %v4955
      %v5356 = vunpack.c.l.b16 %v4956
      %v5357 = vunpack.c.l.b16 %v4957
      %v5358 = vunpack.c.l.b16 %v4958
      %v5359 = vunpack.c.l.b16 %v4959
      %v5360 = vunpack.c.l.b16 %v4960
      %v5361 = vunpack.c.l.b16 %v4961
      %v5362 = vpack.c.b16 %v5299, %v5298
      %v5363 = vpack.c.b16 %v5301, %v5300
      %v5364 = vpack.c.b16 %v5303, %v5302
      %v5365 = vpack.c.b16 %v5305, %v5304
      %v5366 = vpack.c.b16 %v5307, %v5306
      %v5367 = vpack.c.b16 %v5309, %v5308
      %v5368 = vpack.c.b16 %v5311, %v5310
      %v5369 = vpack.c.b16 %v5313, %v5312
      %v5370 = vpack.c.b16 %v5315, %v5314
      %v5371 = vpack.c.b16 %v5317, %v5316
      %v5372 = vpack.c.b16 %v5319, %v5318
      %v5373 = vpack.c.b16 %v5321, %v5320
      %v5374 = vpack.c.b16 %v5323, %v5322
      %v5375 = vpack.c.b16 %v5325, %v5324
      %v5376 = vpack.c.b16 %v5327, %v5326
      %v5377 = vpack.c.b16 %v5329, %v5328
      %v5378 = vpack.c.b16 %v5331, %v5330
      %v5379 = vpack.c.b16 %v5333, %v5332
      %v5380 = vpack.c.b16 %v5335, %v5334
      %v5381 = vpack.c.b16 %v5337, %v5336
      %v5382 = vpack.c.b16 %v5339, %v5338
      %v5383 = vpack.c.b16 %v5341, %v5340
      %v5384 = vpack.c.b16 %v5343, %v5342
      %v5385 = vpack.c.b16 %v5345, %v5344
      %v5386 = vpack.c.b16 %v5347, %v5346
      %v5387 = vpack.c.b16 %v5349, %v5348
      %v5388 = vpack.c.b16 %v5351, %v5350
      %v5389 = vpack.c.b16 %v5353, %v5352
      %v5390 = vpack.c.b16 %v5355, %v5354
      %v5391 = vpack.c.b16 %v5357, %v5356
      %v5392 = vpack.c.b16 %v5359, %v5358
      %v5393 = vpack.c.b16 %v5361, %v5360
      %5426 = vmatpush.bf16.msra.mxu0 %v5369
      %5427 = vmatpush.bf16.msra.mxu0 %v5368
      %5428 = vmatpush.bf16.msra.mxu0 %v5367
      %5429 = vmatpush.bf16.msra.mxu0 %v5366
      %5430 = vmatpush.bf16.msra.mxu0 %v5365
      %5431 = vmatpush.bf16.msra.mxu0 %v5364
      %5432 = vmatpush.bf16.msra.mxu0 %v5363
      %5433 = vmatpush.bf16.msra.mxu0 %v5362
      %5434 = vmatmul.bf16.gmra.mxu0 %v5202
      %v5435 = vpop.f32.mrf.mxu0
      %v5436 = vadd.f32 0.0, %v5435
      %v5437 = vpop.f32.mrf.mxu0
      %v5438 = vadd.f32 0.0, %v5437
      %5439 = vmatmul.bf16.gmra.mxu0 %v5206
      %v5440 = vpop.f32.mrf.mxu0
      %v5441 = vadd.f32 0.0, %v5440
      %v5442 = vpop.f32.mrf.mxu0
      %v5443 = vadd.f32 0.0, %v5442
      %5444 = vmatmul.bf16.gmra.mxu0 %v5210
      %v5445 = vpop.f32.mrf.mxu0
      %v5446 = vadd.f32 0.0, %v5445
      %v5447 = vpop.f32.mrf.mxu0
      %v5448 = vadd.f32 0.0, %v5447
      %5449 = vmatmul.bf16.gmra.mxu0 %v5214
      %v5450 = vpop.f32.mrf.mxu0
      %v5451 = vadd.f32 0.0, %v5450
      %v5452 = vpop.f32.mrf.mxu0
      %v5453 = vadd.f32 0.0, %v5452
      %5454 = vdwg.mxu0
      %5455 = vmatpush.bf16.msra.mxu0 %v5377
      %5456 = vmatpush.bf16.msra.mxu0 %v5376
      %5457 = vmatpush.bf16.msra.mxu0 %v5375
      %5458 = vmatpush.bf16.msra.mxu0 %v5374
      %5459 = vmatpush.bf16.msra.mxu0 %v5373
      %5460 = vmatpush.bf16.msra.mxu0 %v5372
      %5461 = vmatpush.bf16.msra.mxu0 %v5371
      %5462 = vmatpush.bf16.msra.mxu0 %v5370
      %5463 = vmatmul.bf16.gmra.mxu0 %v5203
      %v5464 = vpop.f32.mrf.mxu0
      %v5465 = vadd.f32 %v5436, %v5464
      %v5466 = vpop.f32.mrf.mxu0
      %v5467 = vadd.f32 %v5438, %v5466
      %5468 = vmatmul.bf16.gmra.mxu0 %v5207
      %v5469 = vpop.f32.mrf.mxu0
      %v5470 = vadd.f32 %v5441, %v5469
      %v5471 = vpop.f32.mrf.mxu0
      %v5472 = vadd.f32 %v5443, %v5471
      %5473 = vmatmul.bf16.gmra.mxu0 %v5211
      %v5474 = vpop.f32.mrf.mxu0
      %v5475 = vadd.f32 %v5446, %v5474
      %v5476 = vpop.f32.mrf.mxu0
      %v5477 = vadd.f32 %v5448, %v5476
      %5478 = vmatmul.bf16.gmra.mxu0 %v5215
      %v5479 = vpop.f32.mrf.mxu0
      %v5480 = vadd.f32 %v5451, %v5479
      %v5481 = vpop.f32.mrf.mxu0
      %v5482 = vadd.f32 %v5453, %v5481
      %5483 = vdwg.mxu0
      %5484 = vmatpush.bf16.msra.mxu0 %v5385
      %5485 = vmatpush.bf16.msra.mxu0 %v5384
      %5486 = vmatpush.bf16.msra.mxu0 %v5383
      %5487 = vmatpush.bf16.msra.mxu0 %v5382
      %5488 = vmatpush.bf16.msra.mxu0 %v5381
      %5489 = vmatpush.bf16.msra.mxu0 %v5380
      %5490 = vmatpush.bf16.msra.mxu0 %v5379
      %5491 = vmatpush.bf16.msra.mxu0 %v5378
      %5492 = vmatmul.bf16.gmra.mxu0 %v5204
      %v5493 = vpop.f32.mrf.mxu0
      %v5494 = vadd.f32 %v5465, %v5493
      %v5495 = vpop.f32.mrf.mxu0
      %v5496 = vadd.f32 %v5467, %v5495
      %5497 = vmatmul.bf16.gmra.mxu0 %v5208
      %v5498 = vpop.f32.mrf.mxu0
      %v5499 = vadd.f32 %v5470, %v5498
      %v5500 = vpop.f32.mrf.mxu0
      %v5501 = vadd.f32 %v5472, %v5500
      %5502 = vmatmul.bf16.gmra.mxu0 %v5212
      %v5503 = vpop.f32.mrf.mxu0
      %v5504 = vadd.f32 %v5475, %v5503
      %v5505 = vpop.f32.mrf.mxu0
      %v5506 = vadd.f32 %v5477, %v5505
      %5507 = vmatmul.bf16.gmra.mxu0 %v5216
      %v5508 = vpop.f32.mrf.mxu0
      %v5509 = vadd.f32 %v5480, %v5508
      %v5510 = vpop.f32.mrf.mxu0
      %v5511 = vadd.f32 %v5482, %v5510
      %5512 = vdwg.mxu0
      %5513 = vmatpush.bf16.msra.mxu0 %v5393
      %5514 = vmatpush.bf16.msra.mxu0 %v5392
      %5515 = vmatpush.bf16.msra.mxu0 %v5391
      %5516 = vmatpush.bf16.msra.mxu0 %v5390
      %5517 = vmatpush.bf16.msra.mxu0 %v5389
      %5518 = vmatpush.bf16.msra.mxu0 %v5388
      %5519 = vmatpush.bf16.msra.mxu0 %v5387
      %5520 = vmatpush.bf16.msra.mxu0 %v5386
      %5521 = vmatmul.bf16.gmra.mxu0 %v5205
      %v5522 = vpop.f32.mrf.mxu0
      %v5523 = vadd.f32 %v5494, %v5522
      %v5524 = vpop.f32.mrf.mxu0
      %v5525 = vadd.f32 %v5496, %v5524
      %5526 = vmatmul.bf16.gmra.mxu0 %v5209
      %v5527 = vpop.f32.mrf.mxu0
      %v5528 = vadd.f32 %v5499, %v5527
      %v5529 = vpop.f32.mrf.mxu0
      %v5530 = vadd.f32 %v5501, %v5529
      %5531 = vmatmul.bf16.gmra.mxu0 %v5213
      %v5532 = vpop.f32.mrf.mxu0
      %v5533 = vadd.f32 %v5504, %v5532
      %v5534 = vpop.f32.mrf.mxu0
      %v5535 = vadd.f32 %v5506, %v5534
      %5536 = vmatmul.bf16.gmra.mxu0 %v5217
      %v5537 = vpop.f32.mrf.mxu0
      %v5538 = vadd.f32 %v5509, %v5537
      %v5539 = vpop.f32.mrf.mxu0
      %v5540 = vadd.f32 %v5511, %v5539
      %5541 = vdwg.mxu0
      %v5558 = vunpack.c.l.b16 %v4498
      %v5559 = vunpack.c.h.b16 %v4498
      %v5560 = vunpack.c.l.b16 %v4499
      %v5561 = vunpack.c.h.b16 %v4499
      %v5562 = vunpack.c.l.b16 %v4500
      %v5563 = vunpack.c.h.b16 %v4500
      %v5564 = vunpack.c.l.b16 %v4501
      %v5565 = vunpack.c.h.b16 %v4501
      %v5566 = vunpack.c.l.b16 %v4502
      %v5567 = vunpack.c.h.b16 %v4502
      %v5568 = vunpack.c.l.b16 %v4503
      %v5569 = vunpack.c.h.b16 %v4503
      %v5570 = vunpack.c.l.b16 %v4504
      %v5571 = vunpack.c.h.b16 %v4504
      %v5572 = vunpack.c.l.b16 %v4505
      %v5573 = vunpack.c.h.b16 %v4505
      %v5574 = vunpack.c.l.b16 %v4506
      %v5575 = vunpack.c.h.b16 %v4506
      %v5576 = vunpack.c.l.b16 %v4507
      %v5577 = vunpack.c.h.b16 %v4507
      %v5578 = vunpack.c.l.b16 %v4508
      %v5579 = vunpack.c.h.b16 %v4508
      %v5580 = vunpack.c.l.b16 %v4509
      %v5581 = vunpack.c.h.b16 %v4509
      %v5582 = vunpack.c.l.b16 %v4510
      %v5583 = vunpack.c.h.b16 %v4510
      %v5584 = vunpack.c.l.b16 %v4511
      %v5585 = vunpack.c.h.b16 %v4511
      %v5586 = vunpack.c.l.b16 %v4512
      %v5587 = vunpack.c.h.b16 %v4512
      %v5588 = vunpack.c.l.b16 %v4513
      %v5589 = vunpack.c.h.b16 %v4513
      %v5590 = vpack.c.b16 %v5562, %v5558
      %v5591 = vpack.c.b16 %v5563, %v5559
      %v5592 = vpack.c.b16 %v5564, %v5560
      %v5593 = vpack.c.b16 %v5565, %v5561
      %v5594 = vpack.c.b16 %v5570, %v5566
      %v5595 = vpack.c.b16 %v5571, %v5567
      %v5596 = vpack.c.b16 %v5572, %v5568
      %v5597 = vpack.c.b16 %v5573, %v5569
      %v5598 = vpack.c.b16 %v5578, %v5574
      %v5599 = vpack.c.b16 %v5579, %v5575
      %v5600 = vpack.c.b16 %v5580, %v5576
      %v5601 = vpack.c.b16 %v5581, %v5577
      %v5602 = vpack.c.b16 %v5586, %v5582
      %v5603 = vpack.c.b16 %v5587, %v5583
      %v5604 = vpack.c.b16 %v5588, %v5584
      %v5605 = vpack.c.b16 %v5589, %v5585
      %v5686 = vunpack.c.l.b16 %v4962
      %v5687 = vunpack.c.l.b16 %v4963
      %v5688 = vunpack.c.l.b16 %v4964
      %v5689 = vunpack.c.l.b16 %v4965
      %v5690 = vunpack.c.l.b16 %v4966
      %v5691 = vunpack.c.l.b16 %v4967
      %v5692 = vunpack.c.l.b16 %v4968
      %v5693 = vunpack.c.l.b16 %v4969
      %v5694 = vunpack.c.l.b16 %v4970
      %v5695 = vunpack.c.l.b16 %v4971
      %v5696 = vunpack.c.l.b16 %v4972
      %v5697 = vunpack.c.l.b16 %v4973
      %v5698 = vunpack.c.l.b16 %v4974
      %v5699 = vunpack.c.l.b16 %v4975
      %v5700 = vunpack.c.l.b16 %v4976
      %v5701 = vunpack.c.l.b16 %v4977
      %v5702 = vunpack.c.l.b16 %v4978
      %v5703 = vunpack.c.l.b16 %v4979
      %v5704 = vunpack.c.l.b16 %v4980
      %v5705 = vunpack.c.l.b16 %v4981
      %v5706 = vunpack.c.l.b16 %v4982
      %v5707 = vunpack.c.l.b16 %v4983
      %v5708 = vunpack.c.l.b16 %v4984
      %v5709 = vunpack.c.l.b16 %v4985
      %v5710 = vunpack.c.l.b16 %v4986
      %v5711 = vunpack.c.l.b16 %v4987
      %v5712 = vunpack.c.l.b16 %v4988
      %v5713 = vunpack.c.l.b16 %v4989
      %v5714 = vunpack.c.l.b16 %v4990
      %v5715 = vunpack.c.l.b16 %v4991
      %v5716 = vunpack.c.l.b16 %v4992
      %v5717 = vunpack.c.l.b16 %v4993
      %v5718 = vunpack.c.l.b16 %v4994
      %v5719 = vunpack.c.l.b16 %v4995
      %v5720 = vunpack.c.l.b16 %v4996
      %v5721 = vunpack.c.l.b16 %v4997
      %v5722 = vunpack.c.l.b16 %v4998
      %v5723 = vunpack.c.l.b16 %v4999
      %v5724 = vunpack.c.l.b16 %v5000
      %v5725 = vunpack.c.l.b16 %v5001
      %v5726 = vunpack.c.l.b16 %v5002
      %v5727 = vunpack.c.l.b16 %v5003
      %v5728 = vunpack.c.l.b16 %v5004
      %v5729 = vunpack.c.l.b16 %v5005
      %v5730 = vunpack.c.l.b16 %v5006
      %v5731 = vunpack.c.l.b16 %v5007
      %v5732 = vunpack.c.l.b16 %v5008
      %v5733 = vunpack.c.l.b16 %v5009
      %v5734 = vunpack.c.l.b16 %v5010
      %v5735 = vunpack.c.l.b16 %v5011
      %v5736 = vunpack.c.l.b16 %v5012
      %v5737 = vunpack.c.l.b16 %v5013
      %v5738 = vunpack.c.l.b16 %v5014
      %v5739 = vunpack.c.l.b16 %v5015
      %v5740 = vunpack.c.l.b16 %v5016
      %v5741 = vunpack.c.l.b16 %v5017
      %v5742 = vunpack.c.l.b16 %v5018
      %v5743 = vunpack.c.l.b16 %v5019
      %v5744 = vunpack.c.l.b16 %v5020
      %v5745 = vunpack.c.l.b16 %v5021
      %v5746 = vunpack.c.l.b16 %v5022
      %v5747 = vunpack.c.l.b16 %v5023
      %v5748 = vunpack.c.l.b16 %v5024
      %v5749 = vunpack.c.l.b16 %v5025
      %v5750 = vpack.c.b16 %v5687, %v5686
      %v5751 = vpack.c.b16 %v5689, %v5688
      %v5752 = vpack.c.b16 %v5691, %v5690
      %v5753 = vpack.c.b16 %v5693, %v5692
      %v5754 = vpack.c.b16 %v5695, %v5694
      %v5755 = vpack.c.b16 %v5697, %v5696
      %v5756 = vpack.c.b16 %v5699, %v5698
      %v5757 = vpack.c.b16 %v5701, %v5700
      %v5758 = vpack.c.b16 %v5703, %v5702
      %v5759 = vpack.c.b16 %v5705, %v5704
      %v5760 = vpack.c.b16 %v5707, %v5706
      %v5761 = vpack.c.b16 %v5709, %v5708
      %v5762 = vpack.c.b16 %v5711, %v5710
      %v5763 = vpack.c.b16 %v5713, %v5712
      %v5764 = vpack.c.b16 %v5715, %v5714
      %v5765 = vpack.c.b16 %v5717, %v5716
      %v5766 = vpack.c.b16 %v5719, %v5718
      %v5767 = vpack.c.b16 %v5721, %v5720
      %v5768 = vpack.c.b16 %v5723, %v5722
      %v5769 = vpack.c.b16 %v5725, %v5724
      %v5770 = vpack.c.b16 %v5727, %v5726
      %v5771 = vpack.c.b16 %v5729, %v5728
      %v5772 = vpack.c.b16 %v5731, %v5730
      %v5773 = vpack.c.b16 %v5733, %v5732
      %v5774 = vpack.c.b16 %v5735, %v5734
      %v5775 = vpack.c.b16 %v5737, %v5736
      %v5776 = vpack.c.b16 %v5739, %v5738
      %v5777 = vpack.c.b16 %v5741, %v5740
      %v5778 = vpack.c.b16 %v5743, %v5742
      %v5779 = vpack.c.b16 %v5745, %v5744
      %v5780 = vpack.c.b16 %v5747, %v5746
      %v5781 = vpack.c.b16 %v5749, %v5748
      %5814 = vmatpush.bf16.msra.mxu0 %v5757
      %5815 = vmatpush.bf16.msra.mxu0 %v5756
      %5816 = vmatpush.bf16.msra.mxu0 %v5755
      %5817 = vmatpush.bf16.msra.mxu0 %v5754
      %5818 = vmatpush.bf16.msra.mxu0 %v5753
      %5819 = vmatpush.bf16.msra.mxu0 %v5752
      %5820 = vmatpush.bf16.msra.mxu0 %v5751
      %5821 = vmatpush.bf16.msra.mxu0 %v5750
      %5822 = vmatmul.bf16.gmra.mxu0 %v5590
      %v5823 = vpop.f32.mrf.mxu0
      %v5824 = vadd.f32 0.0, %v5823
      %v5825 = vpop.f32.mrf.mxu0
      %v5826 = vadd.f32 0.0, %v5825
      %5827 = vmatmul.bf16.gmra.mxu0 %v5594
      %v5828 = vpop.f32.mrf.mxu0
      %v5829 = vadd.f32 0.0, %v5828
      %v5830 = vpop.f32.mrf.mxu0
      %v5831 = vadd.f32 0.0, %v5830
      %5832 = vmatmul.bf16.gmra.mxu0 %v5598
      %v5833 = vpop.f32.mrf.mxu0
      %v5834 = vadd.f32 0.0, %v5833
      %v5835 = vpop.f32.mrf.mxu0
      %v5836 = vadd.f32 0.0, %v5835
      %5837 = vmatmul.bf16.gmra.mxu0 %v5602
      %v5838 = vpop.f32.mrf.mxu0
      %v5839 = vadd.f32 0.0, %v5838
      %v5840 = vpop.f32.mrf.mxu0
      %v5841 = vadd.f32 0.0, %v5840
      %5842 = vdwg.mxu0
      %5843 = vmatpush.bf16.msra.mxu0 %v5765
      %5844 = vmatpush.bf16.msra.mxu0 %v5764
      %5845 = vmatpush.bf16.msra.mxu0 %v5763
      %5846 = vmatpush.bf16.msra.mxu0 %v5762
      %5847 = vmatpush.bf16.msra.mxu0 %v5761
      %5848 = vmatpush.bf16.msra.mxu0 %v5760
      %5849 = vmatpush.bf16.msra.mxu0 %v5759
      %5850 = vmatpush.bf16.msra.mxu0 %v5758
      %5851 = vmatmul.bf16.gmra.mxu0 %v5591
      %v5852 = vpop.f32.mrf.mxu0
      %v5853 = vadd.f32 %v5824, %v5852
      %v5854 = vpop.f32.mrf.mxu0
      %v5855 = vadd.f32 %v5826, %v5854
      %5856 = vmatmul.bf16.gmra.mxu0 %v5595
      %v5857 = vpop.f32.mrf.mxu0
      %v5858 = vadd.f32 %v5829, %v5857
      %v5859 = vpop.f32.mrf.mxu0
      %v5860 = vadd.f32 %v5831, %v5859
      %5861 = vmatmul.bf16.gmra.mxu0 %v5599
      %v5862 = vpop.f32.mrf.mxu0
      %v5863 = vadd.f32 %v5834, %v5862
      %v5864 = vpop.f32.mrf.mxu0
      %v5865 = vadd.f32 %v5836, %v5864
      %5866 = vmatmul.bf16.gmra.mxu0 %v5603
      %v5867 = vpop.f32.mrf.mxu0
      %v5868 = vadd.f32 %v5839, %v5867
      %v5869 = vpop.f32.mrf.mxu0
      %v5870 = vadd.f32 %v5841, %v5869
      %5871 = vdwg.mxu0
      %5872 = vmatpush.bf16.msra.mxu0 %v5773
      %5873 = vmatpush.bf16.msra.mxu0 %v5772
      %5874 = vmatpush.bf16.msra.mxu0 %v5771
      %5875 = vmatpush.bf16.msra.mxu0 %v5770
      %5876 = vmatpush.bf16.msra.mxu0 %v5769
      %5877 = vmatpush.bf16.msra.mxu0 %v5768
      %5878 = vmatpush.bf16.msra.mxu0 %v5767
      %5879 = vmatpush.bf16.msra.mxu0 %v5766
      %5880 = vmatmul.bf16.gmra.mxu0 %v5592
      %v5881 = vpop.f32.mrf.mxu0
      %v5882 = vadd.f32 %v5853, %v5881
      %v5883 = vpop.f32.mrf.mxu0
      %v5884 = vadd.f32 %v5855, %v5883
      %5885 = vmatmul.bf16.gmra.mxu0 %v5596
      %v5886 = vpop.f32.mrf.mxu0
      %v5887 = vadd.f32 %v5858, %v5886
      %v5888 = vpop.f32.mrf.mxu0
      %v5889 = vadd.f32 %v5860, %v5888
      %5890 = vmatmul.bf16.gmra.mxu0 %v5600
      %v5891 = vpop.f32.mrf.mxu0
      %v5892 = vadd.f32 %v5863, %v5891
      %v5893 = vpop.f32.mrf.mxu0
      %v5894 = vadd.f32 %v5865, %v5893
      %5895 = vmatmul.bf16.gmra.mxu0 %v5604
      %v5896 = vpop.f32.mrf.mxu0
      %v5897 = vadd.f32 %v5868, %v5896
      %v5898 = vpop.f32.mrf.mxu0
      %v5899 = vadd.f32 %v5870, %v5898
      %5900 = vdwg.mxu0
      %5901 = vmatpush.bf16.msra.mxu0 %v5781
      %5902 = vmatpush.bf16.msra.mxu0 %v5780
      %5903 = vmatpush.bf16.msra.mxu0 %v5779
      %5904 = vmatpush.bf16.msra.mxu0 %v5778
      %5905 = vmatpush.bf16.msra.mxu0 %v5777
      %5906 = vmatpush.bf16.msra.mxu0 %v5776
      %5907 = vmatpush.bf16.msra.mxu0 %v5775
      %5908 = vmatpush.bf16.msra.mxu0 %v5774
      %5909 = vmatmul.bf16.gmra.mxu0 %v5593
      %v5910 = vpop.f32.mrf.mxu0
      %v5911 = vadd.f32 %v5882, %v5910
      %v5912 = vpop.f32.mrf.mxu0
      %v5913 = vadd.f32 %v5884, %v5912
      %5914 = vmatmul.bf16.gmra.mxu0 %v5597
      %v5915 = vpop.f32.mrf.mxu0
      %v5916 = vadd.f32 %v5887, %v5915
      %v5917 = vpop.f32.mrf.mxu0
      %v5918 = vadd.f32 %v5889, %v5917
      %5919 = vmatmul.bf16.gmra.mxu0 %v5601
      %v5920 = vpop.f32.mrf.mxu0
      %v5921 = vadd.f32 %v5892, %v5920
      %v5922 = vpop.f32.mrf.mxu0
      %v5923 = vadd.f32 %v5894, %v5922
      %5924 = vmatmul.bf16.gmra.mxu0 %v5605
      %v5925 = vpop.f32.mrf.mxu0
      %v5926 = vadd.f32 %v5897, %v5925
      %v5927 = vpop.f32.mrf.mxu0
      %v5928 = vadd.f32 %v5899, %v5927
      %5929 = vdwg.mxu0
      %v5946 = vunpack.c.l.b16 %v4514
      %v5947 = vunpack.c.h.b16 %v4514
      %v5948 = vunpack.c.l.b16 %v4515
      %v5949 = vunpack.c.h.b16 %v4515
      %v5950 = vunpack.c.l.b16 %v4516
      %v5951 = vunpack.c.h.b16 %v4516
      %v5952 = vunpack.c.l.b16 %v4517
      %v5953 = vunpack.c.h.b16 %v4517
      %v5954 = vunpack.c.l.b16 %v4518
      %v5955 = vunpack.c.h.b16 %v4518
      %v5956 = vunpack.c.l.b16 %v4519
      %v5957 = vunpack.c.h.b16 %v4519
      %v5958 = vunpack.c.l.b16 %v4520
      %v5959 = vunpack.c.h.b16 %v4520
      %v5960 = vunpack.c.l.b16 %v4521
      %v5961 = vunpack.c.h.b16 %v4521
      %v5962 = vunpack.c.l.b16 %v4522
      %v5963 = vunpack.c.h.b16 %v4522
      %v5964 = vunpack.c.l.b16 %v4523
      %v5965 = vunpack.c.h.b16 %v4523
      %v5966 = vunpack.c.l.b16 %v4524
      %v5967 = vunpack.c.h.b16 %v4524
      %v5968 = vunpack.c.l.b16 %v4525
      %v5969 = vunpack.c.h.b16 %v4525
      %v5970 = vunpack.c.l.b16 %v4526
      %v5971 = vunpack.c.h.b16 %v4526
      %v5972 = vunpack.c.l.b16 %v4527
      %v5973 = vunpack.c.h.b16 %v4527
      %v5974 = vunpack.c.l.b16 %v4528
      %v5975 = vunpack.c.h.b16 %v4528
      %v5976 = vunpack.c.l.b16 %v4529
      %v5977 = vunpack.c.h.b16 %v4529
      %v5978 = vpack.c.b16 %v5950, %v5946
      %v5979 = vpack.c.b16 %v5951, %v5947
      %v5980 = vpack.c.b16 %v5952, %v5948
      %v5981 = vpack.c.b16 %v5953, %v5949
      %v5982 = vpack.c.b16 %v5958, %v5954
      %v5983 = vpack.c.b16 %v5959, %v5955
      %v5984 = vpack.c.b16 %v5960, %v5956
      %v5985 = vpack.c.b16 %v5961, %v5957
      %v5986 = vpack.c.b16 %v5966, %v5962
      %v5987 = vpack.c.b16 %v5967, %v5963
      %v5988 = vpack.c.b16 %v5968, %v5964
      %v5989 = vpack.c.b16 %v5969, %v5965
      %v5990 = vpack.c.b16 %v5974, %v5970
      %v5991 = vpack.c.b16 %v5975, %v5971
      %v5992 = vpack.c.b16 %v5976, %v5972
      %v5993 = vpack.c.b16 %v5977, %v5973
      %v6074 = vunpack.c.l.b16 %v5026
      %v6075 = vunpack.c.l.b16 %v5027
      %v6076 = vunpack.c.l.b16 %v5028
      %v6077 = vunpack.c.l.b16 %v5029
      %v6078 = vunpack.c.l.b16 %v5030
      %v6079 = vunpack.c.l.b16 %v5031
      %v6080 = vunpack.c.l.b16 %v5032
      %v6081 = vunpack.c.l.b16 %v5033
      %v6082 = vunpack.c.l.b16 %v5034
      %v6083 = vunpack.c.l.b16 %v5035
      %v6084 = vunpack.c.l.b16 %v5036
      %v6085 = vunpack.c.l.b16 %v5037
      %v6086 = vunpack.c.l.b16 %v5038
      %v6087 = vunpack.c.l.b16 %v5039
      %v6088 = vunpack.c.l.b16 %v5040
      %v6089 = vunpack.c.l.b16 %v5041
      %v6090 = vunpack.c.l.b16 %v5042
      %v6091 = vunpack.c.l.b16 %v5043
      %v6092 = vunpack.c.l.b16 %v5044
      %v6093 = vunpack.c.l.b16 %v5045
      %v6094 = vunpack.c.l.b16 %v5046
      %v6095 = vunpack.c.l.b16 %v5047
      %v6096 = vunpack.c.l.b16 %v5048
      %v6097 = vunpack.c.l.b16 %v5049
      %v6098 = vunpack.c.l.b16 %v5050
      %v6099 = vunpack.c.l.b16 %v5051
      %v6100 = vunpack.c.l.b16 %v5052
      %v6101 = vunpack.c.l.b16 %v5053
      %v6102 = vunpack.c.l.b16 %v5054
      %v6103 = vunpack.c.l.b16 %v5055
      %v6104 = vunpack.c.l.b16 %v5056
      %v6105 = vunpack.c.l.b16 %v5057
      %v6106 = vunpack.c.l.b16 %v5058
      %v6107 = vunpack.c.l.b16 %v5059
      %v6108 = vunpack.c.l.b16 %v5060
      %v6109 = vunpack.c.l.b16 %v5061
      %v6110 = vunpack.c.l.b16 %v5062
      %v6111 = vunpack.c.l.b16 %v5063
      %v6112 = vunpack.c.l.b16 %v5064
      %v6113 = vunpack.c.l.b16 %v5065
      %v6114 = vunpack.c.l.b16 %v5066
      %v6115 = vunpack.c.l.b16 %v5067
      %v6116 = vunpack.c.l.b16 %v5068
      %v6117 = vunpack.c.l.b16 %v5069
      %v6118 = vunpack.c.l.b16 %v5070
      %v6119 = vunpack.c.l.b16 %v5071
      %v6120 = vunpack.c.l.b16 %v5072
      %v6121 = vunpack.c.l.b16 %v5073
      %v6122 = vunpack.c.l.b16 %v5074
      %v6123 = vunpack.c.l.b16 %v5075
      %v6124 = vunpack.c.l.b16 %v5076
      %v6125 = vunpack.c.l.b16 %v5077
      %v6126 = vunpack.c.l.b16 %v5078
      %v6127 = vunpack.c.l.b16 %v5079
      %v6128 = vunpack.c.l.b16 %v5080
      %v6129 = vunpack.c.l.b16 %v5081
      %v6130 = vunpack.c.l.b16 %v5082
      %v6131 = vunpack.c.l.b16 %v5083
      %v6132 = vunpack.c.l.b16 %v5084
      %v6133 = vunpack.c.l.b16 %v5085
      %v6134 = vunpack.c.l.b16 %v5086
      %v6135 = vunpack.c.l.b16 %v5087
      %v6136 = vunpack.c.l.b16 %v5088
      %v6137 = vunpack.c.l.b16 %v5089
      %v6138 = vpack.c.b16 %v6075, %v6074
      %v6139 = vpack.c.b16 %v6077, %v6076
      %v6140 = vpack.c.b16 %v6079, %v6078
      %v6141 = vpack.c.b16 %v6081, %v6080
      %v6142 = vpack.c.b16 %v6083, %v6082
      %v6143 = vpack.c.b16 %v6085, %v6084
      %v6144 = vpack.c.b16 %v6087, %v6086
      %v6145 = vpack.c.b16 %v6089, %v6088
      %v6146 = vpack.c.b16 %v6091, %v6090
      %v6147 = vpack.c.b16 %v6093, %v6092
      %v6148 = vpack.c.b16 %v6095, %v6094
      %v6149 = vpack.c.b16 %v6097, %v6096
      %v6150 = vpack.c.b16 %v6099, %v6098
      %v6151 = vpack.c.b16 %v6101, %v6100
      %v6152 = vpack.c.b16 %v6103, %v6102
      %v6153 = vpack.c.b16 %v6105, %v6104
      %v6154 = vpack.c.b16 %v6107, %v6106
      %v6155 = vpack.c.b16 %v6109, %v6108
      %v6156 = vpack.c.b16 %v6111, %v6110
      %v6157 = vpack.c.b16 %v6113, %v6112
      %v6158 = vpack.c.b16 %v6115, %v6114
      %v6159 = vpack.c.b16 %v6117, %v6116
      %v6160 = vpack.c.b16 %v6119, %v6118
      %v6161 = vpack.c.b16 %v6121, %v6120
      %v6162 = vpack.c.b16 %v6123, %v6122
      %v6163 = vpack.c.b16 %v6125, %v6124
      %v6164 = vpack.c.b16 %v6127, %v6126
      %v6165 = vpack.c.b16 %v6129, %v6128
      %v6166 = vpack.c.b16 %v6131, %v6130
      %v6167 = vpack.c.b16 %v6133, %v6132
      %v6168 = vpack.c.b16 %v6135, %v6134
      %v6169 = vpack.c.b16 %v6137, %v6136
      %6202 = vmatpush.bf16.msra.mxu0 %v6145
      %6203 = vmatpush.bf16.msra.mxu0 %v6144
      %6204 = vmatpush.bf16.msra.mxu0 %v6143
      %6205 = vmatpush.bf16.msra.mxu0 %v6142
      %6206 = vmatpush.bf16.msra.mxu0 %v6141
      %6207 = vmatpush.bf16.msra.mxu0 %v6140
      %6208 = vmatpush.bf16.msra.mxu0 %v6139
      %6209 = vmatpush.bf16.msra.mxu0 %v6138
      %6210 = vmatmul.bf16.gmra.mxu0 %v5978
      %v6211 = vpop.f32.mrf.mxu0
      %v6212 = vadd.f32 0.0, %v6211
      %v6213 = vpop.f32.mrf.mxu0
      %v6214 = vadd.f32 0.0, %v6213
      %6215 = vmatmul.bf16.gmra.mxu0 %v5982
      %v6216 = vpop.f32.mrf.mxu0
      %v6217 = vadd.f32 0.0, %v6216
      %v6218 = vpop.f32.mrf.mxu0
      %v6219 = vadd.f32 0.0, %v6218
      %6220 = vmatmul.bf16.gmra.mxu0 %v5986
      %v6221 = vpop.f32.mrf.mxu0
      %v6222 = vadd.f32 0.0, %v6221
      %v6223 = vpop.f32.mrf.mxu0
      %v6224 = vadd.f32 0.0, %v6223
      %6225 = vmatmul.bf16.gmra.mxu0 %v5990
      %v6226 = vpop.f32.mrf.mxu0
      %v6227 = vadd.f32 0.0, %v6226
      %v6228 = vpop.f32.mrf.mxu0
      %v6229 = vadd.f32 0.0, %v6228
      %6230 = vdwg.mxu0
      %6231 = vmatpush.bf16.msra.mxu0 %v6153
      %6232 = vmatpush.bf16.msra.mxu0 %v6152
      %6233 = vmatpush.bf16.msra.mxu0 %v6151
      %6234 = vmatpush.bf16.msra.mxu0 %v6150
      %6235 = vmatpush.bf16.msra.mxu0 %v6149
      %6236 = vmatpush.bf16.msra.mxu0 %v6148
      %6237 = vmatpush.bf16.msra.mxu0 %v6147
      %6238 = vmatpush.bf16.msra.mxu0 %v6146
      %6239 = vmatmul.bf16.gmra.mxu0 %v5979
      %v6240 = vpop.f32.mrf.mxu0
      %v6241 = vadd.f32 %v6212, %v6240
      %v6242 = vpop.f32.mrf.mxu0
      %v6243 = vadd.f32 %v6214, %v6242
      %6244 = vmatmul.bf16.gmra.mxu0 %v5983
      %v6245 = vpop.f32.mrf.mxu0
      %v6246 = vadd.f32 %v6217, %v6245
      %v6247 = vpop.f32.mrf.mxu0
      %v6248 = vadd.f32 %v6219, %v6247
      %6249 = vmatmul.bf16.gmra.mxu0 %v5987
      %v6250 = vpop.f32.mrf.mxu0
      %v6251 = vadd.f32 %v6222, %v6250
      %v6252 = vpop.f32.mrf.mxu0
      %v6253 = vadd.f32 %v6224, %v6252
      %6254 = vmatmul.bf16.gmra.mxu0 %v5991
      %v6255 = vpop.f32.mrf.mxu0
      %v6256 = vadd.f32 %v6227, %v6255
      %v6257 = vpop.f32.mrf.mxu0
      %v6258 = vadd.f32 %v6229, %v6257
      %6259 = vdwg.mxu0
      %6260 = vmatpush.bf16.msra.mxu0 %v6161
      %6261 = vmatpush.bf16.msra.mxu0 %v6160
      %6262 = vmatpush.bf16.msra.mxu0 %v6159
      %6263 = vmatpush.bf16.msra.mxu0 %v6158
      %6264 = vmatpush.bf16.msra.mxu0 %v6157
      %6265 = vmatpush.bf16.msra.mxu0 %v6156
      %6266 = vmatpush.bf16.msra.mxu0 %v6155
      %6267 = vmatpush.bf16.msra.mxu0 %v6154
      %6268 = vmatmul.bf16.gmra.mxu0 %v5980
      %v6269 = vpop.f32.mrf.mxu0
      %v6270 = vadd.f32 %v6241, %v6269
      %v6271 = vpop.f32.mrf.mxu0
      %v6272 = vadd.f32 %v6243, %v6271
      %6273 = vmatmul.bf16.gmra.mxu0 %v5984
      %v6274 = vpop.f32.mrf.mxu0
      %v6275 = vadd.f32 %v6246, %v6274
      %v6276 = vpop.f32.mrf.mxu0
      %v6277 = vadd.f32 %v6248, %v6276
      %6278 = vmatmul.bf16.gmra.mxu0 %v5988
      %v6279 = vpop.f32.mrf.mxu0
      %v6280 = vadd.f32 %v6251, %v6279
      %v6281 = vpop.f32.mrf.mxu0
      %v6282 = vadd.f32 %v6253, %v6281
      %6283 = vmatmul.bf16.gmra.mxu0 %v5992
      %v6284 = vpop.f32.mrf.mxu0
      %v6285 = vadd.f32 %v6256, %v6284
      %v6286 = vpop.f32.mrf.mxu0
      %v6287 = vadd.f32 %v6258, %v6286
      %6288 = vdwg.mxu0
      %6289 = vmatpush.bf16.msra.mxu0 %v6169
      %6290 = vmatpush.bf16.msra.mxu0 %v6168
      %6291 = vmatpush.bf16.msra.mxu0 %v6167
      %6292 = vmatpush.bf16.msra.mxu0 %v6166
      %6293 = vmatpush.bf16.msra.mxu0 %v6165
      %6294 = vmatpush.bf16.msra.mxu0 %v6164
      %6295 = vmatpush.bf16.msra.mxu0 %v6163
      %6296 = vmatpush.bf16.msra.mxu0 %v6162
      %6297 = vmatmul.bf16.gmra.mxu0 %v5981
      %v6298 = vpop.f32.mrf.mxu0
      %v6299 = vadd.f32 %v6270, %v6298
      %v6300 = vpop.f32.mrf.mxu0
      %v6301 = vadd.f32 %v6272, %v6300
      %6302 = vmatmul.bf16.gmra.mxu0 %v5985
      %v6303 = vpop.f32.mrf.mxu0
      %v6304 = vadd.f32 %v6275, %v6303
      %v6305 = vpop.f32.mrf.mxu0
      %v6306 = vadd.f32 %v6277, %v6305
      %6307 = vmatmul.bf16.gmra.mxu0 %v5989
      %v6308 = vpop.f32.mrf.mxu0
      %v6309 = vadd.f32 %v6280, %v6308
      %v6310 = vpop.f32.mrf.mxu0
      %v6311 = vadd.f32 %v6282, %v6310
      %6312 = vmatmul.bf16.gmra.mxu0 %v5993
      %v6313 = vpop.f32.mrf.mxu0
      %v6314 = vadd.f32 %v6285, %v6313
      %v6315 = vpop.f32.mrf.mxu0
      %v6316 = vadd.f32 %v6287, %v6315
      %6317 = vdwg.mxu0
      %v6334 = vunpack.c.l.b16 %v4530
      %v6335 = vunpack.c.h.b16 %v4530
      %v6336 = vunpack.c.l.b16 %v4531
      %v6337 = vunpack.c.h.b16 %v4531
      %v6338 = vunpack.c.l.b16 %v4532
      %v6339 = vunpack.c.h.b16 %v4532
      %v6340 = vunpack.c.l.b16 %v4533
      %v6341 = vunpack.c.h.b16 %v4533
      %v6342 = vunpack.c.l.b16 %v4534
      %v6343 = vunpack.c.h.b16 %v4534
      %v6344 = vunpack.c.l.b16 %v4535
      %v6345 = vunpack.c.h.b16 %v4535
      %v6346 = vunpack.c.l.b16 %v4536
      %v6347 = vunpack.c.h.b16 %v4536
      %v6348 = vunpack.c.l.b16 %v4537
      %v6349 = vunpack.c.h.b16 %v4537
      %v6350 = vunpack.c.l.b16 %v4538
      %v6351 = vunpack.c.h.b16 %v4538
      %v6352 = vunpack.c.l.b16 %v4539
      %v6353 = vunpack.c.h.b16 %v4539
      %v6354 = vunpack.c.l.b16 %v4540
      %v6355 = vunpack.c.h.b16 %v4540
      %v6356 = vunpack.c.l.b16 %v4541
      %v6357 = vunpack.c.h.b16 %v4541
      %v6358 = vunpack.c.l.b16 %v4542
      %v6359 = vunpack.c.h.b16 %v4542
      %v6360 = vunpack.c.l.b16 %v4543
      %v6361 = vunpack.c.h.b16 %v4543
      %v6362 = vunpack.c.l.b16 %v4544
      %v6363 = vunpack.c.h.b16 %v4544
      %v6364 = vunpack.c.l.b16 %v4545
      %v6365 = vunpack.c.h.b16 %v4545
      %v6366 = vpack.c.b16 %v6338, %v6334
      %v6367 = vpack.c.b16 %v6339, %v6335
      %v6368 = vpack.c.b16 %v6340, %v6336
      %v6369 = vpack.c.b16 %v6341, %v6337
      %v6370 = vpack.c.b16 %v6346, %v6342
      %v6371 = vpack.c.b16 %v6347, %v6343
      %v6372 = vpack.c.b16 %v6348, %v6344
      %v6373 = vpack.c.b16 %v6349, %v6345
      %v6374 = vpack.c.b16 %v6354, %v6350
      %v6375 = vpack.c.b16 %v6355, %v6351
      %v6376 = vpack.c.b16 %v6356, %v6352
      %v6377 = vpack.c.b16 %v6357, %v6353
      %v6378 = vpack.c.b16 %v6362, %v6358
      %v6379 = vpack.c.b16 %v6363, %v6359
      %v6380 = vpack.c.b16 %v6364, %v6360
      %v6381 = vpack.c.b16 %v6365, %v6361
      %v6462 = vunpack.c.l.b16 %v5090
      %v6463 = vunpack.c.l.b16 %v5091
      %v6464 = vunpack.c.l.b16 %v5092
      %v6465 = vunpack.c.l.b16 %v5093
      %v6466 = vunpack.c.l.b16 %v5094
      %v6467 = vunpack.c.l.b16 %v5095
      %v6468 = vunpack.c.l.b16 %v5096
      %v6469 = vunpack.c.l.b16 %v5097
      %v6470 = vunpack.c.l.b16 %v5098
      %v6471 = vunpack.c.l.b16 %v5099
      %v6472 = vunpack.c.l.b16 %v5100
      %v6473 = vunpack.c.l.b16 %v5101
      %v6474 = vunpack.c.l.b16 %v5102
      %v6475 = vunpack.c.l.b16 %v5103
      %v6476 = vunpack.c.l.b16 %v5104
      %v6477 = vunpack.c.l.b16 %v5105
      %v6478 = vunpack.c.l.b16 %v5106
      %v6479 = vunpack.c.l.b16 %v5107
      %v6480 = vunpack.c.l.b16 %v5108
      %v6481 = vunpack.c.l.b16 %v5109
      %v6482 = vunpack.c.l.b16 %v5110
      %v6483 = vunpack.c.l.b16 %v5111
      %v6484 = vunpack.c.l.b16 %v5112
      %v6485 = vunpack.c.l.b16 %v5113
      %v6486 = vunpack.c.l.b16 %v5114
      %v6487 = vunpack.c.l.b16 %v5115
      %v6488 = vunpack.c.l.b16 %v5116
      %v6489 = vunpack.c.l.b16 %v5117
      %v6490 = vunpack.c.l.b16 %v5118
      %v6491 = vunpack.c.l.b16 %v5119
      %v6492 = vunpack.c.l.b16 %v5120
      %v6493 = vunpack.c.l.b16 %v5121
      %v6494 = vunpack.c.l.b16 %v5122
      %v6495 = vunpack.c.l.b16 %v5123
      %v6496 = vunpack.c.l.b16 %v5124
      %v6497 = vunpack.c.l.b16 %v5125
      %v6498 = vunpack.c.l.b16 %v5126
      %v6499 = vunpack.c.l.b16 %v5127
      %v6500 = vunpack.c.l.b16 %v5128
      %v6501 = vunpack.c.l.b16 %v5129
      %v6502 = vunpack.c.l.b16 %v5130
      %v6503 = vunpack.c.l.b16 %v5131
      %v6504 = vunpack.c.l.b16 %v5132
      %v6505 = vunpack.c.l.b16 %v5133
      %v6506 = vunpack.c.l.b16 %v5134
      %v6507 = vunpack.c.l.b16 %v5135
      %v6508 = vunpack.c.l.b16 %v5136
      %v6509 = vunpack.c.l.b16 %v5137
      %v6510 = vunpack.c.l.b16 %v5138
      %v6511 = vunpack.c.l.b16 %v5139
      %v6512 = vunpack.c.l.b16 %v5140
      %v6513 = vunpack.c.l.b16 %v5141
      %v6514 = vunpack.c.l.b16 %v5142
      %v6515 = vunpack.c.l.b16 %v5143
      %v6516 = vunpack.c.l.b16 %v5144
      %v6517 = vunpack.c.l.b16 %v5145
      %v6518 = vunpack.c.l.b16 %v5146
      %v6519 = vunpack.c.l.b16 %v5147
      %v6520 = vunpack.c.l.b16 %v5148
      %v6521 = vunpack.c.l.b16 %v5149
      %v6522 = vunpack.c.l.b16 %v5150
      %v6523 = vunpack.c.l.b16 %v5151
      %v6524 = vunpack.c.l.b16 %v5152
      %v6525 = vunpack.c.l.b16 %v5153
      %v6526 = vpack.c.b16 %v6463, %v6462
      %v6527 = vpack.c.b16 %v6465, %v6464
      %v6528 = vpack.c.b16 %v6467, %v6466
      %v6529 = vpack.c.b16 %v6469, %v6468
      %v6530 = vpack.c.b16 %v6471, %v6470
      %v6531 = vpack.c.b16 %v6473, %v6472
      %v6532 = vpack.c.b16 %v6475, %v6474
      %v6533 = vpack.c.b16 %v6477, %v6476
      %v6534 = vpack.c.b16 %v6479, %v6478
      %v6535 = vpack.c.b16 %v6481, %v6480
      %v6536 = vpack.c.b16 %v6483, %v6482
      %v6537 = vpack.c.b16 %v6485, %v6484
      %v6538 = vpack.c.b16 %v6487, %v6486
      %v6539 = vpack.c.b16 %v6489, %v6488
      %v6540 = vpack.c.b16 %v6491, %v6490
      %v6541 = vpack.c.b16 %v6493, %v6492
      %v6542 = vpack.c.b16 %v6495, %v6494
      %v6543 = vpack.c.b16 %v6497, %v6496
      %v6544 = vpack.c.b16 %v6499, %v6498
      %v6545 = vpack.c.b16 %v6501, %v6500
      %v6546 = vpack.c.b16 %v6503, %v6502
      %v6547 = vpack.c.b16 %v6505, %v6504
      %v6548 = vpack.c.b16 %v6507, %v6506
      %v6549 = vpack.c.b16 %v6509, %v6508
      %v6550 = vpack.c.b16 %v6511, %v6510
      %v6551 = vpack.c.b16 %v6513, %v6512
      %v6552 = vpack.c.b16 %v6515, %v6514
      %v6553 = vpack.c.b16 %v6517, %v6516
      %v6554 = vpack.c.b16 %v6519, %v6518
      %v6555 = vpack.c.b16 %v6521, %v6520
      %v6556 = vpack.c.b16 %v6523, %v6522
      %v6557 = vpack.c.b16 %v6525, %v6524
      %6590 = vmatpush.bf16.msra.mxu0 %v6533
      %6591 = vmatpush.bf16.msra.mxu0 %v6532
      %6592 = vmatpush.bf16.msra.mxu0 %v6531
      %6593 = vmatpush.bf16.msra.mxu0 %v6530
      %6594 = vmatpush.bf16.msra.mxu0 %v6529
      %6595 = vmatpush.bf16.msra.mxu0 %v6528
      %6596 = vmatpush.bf16.msra.mxu0 %v6527
      %6597 = vmatpush.bf16.msra.mxu0 %v6526
      %6598 = vmatmul.bf16.gmra.mxu0 %v6366
      %v6599 = vpop.f32.mrf.mxu0
      %v6600 = vadd.f32 0.0, %v6599
      %v6601 = vpop.f32.mrf.mxu0
      %v6602 = vadd.f32 0.0, %v6601
      %6603 = vmatmul.bf16.gmra.mxu0 %v6370
      %v6604 = vpop.f32.mrf.mxu0
      %v6605 = vadd.f32 0.0, %v6604
      %v6606 = vpop.f32.mrf.mxu0
      %v6607 = vadd.f32 0.0, %v6606
      %6608 = vmatmul.bf16.gmra.mxu0 %v6374
      %v6609 = vpop.f32.mrf.mxu0
      %v6610 = vadd.f32 0.0, %v6609
      %v6611 = vpop.f32.mrf.mxu0
      %v6612 = vadd.f32 0.0, %v6611
      %6613 = vmatmul.bf16.gmra.mxu0 %v6378
      %v6614 = vpop.f32.mrf.mxu0
      %v6615 = vadd.f32 0.0, %v6614
      %v6616 = vpop.f32.mrf.mxu0
      %v6617 = vadd.f32 0.0, %v6616
      %6618 = vdwg.mxu0
      %6619 = vmatpush.bf16.msra.mxu0 %v6541
      %6620 = vmatpush.bf16.msra.mxu0 %v6540
      %6621 = vmatpush.bf16.msra.mxu0 %v6539
      %6622 = vmatpush.bf16.msra.mxu0 %v6538
      %6623 = vmatpush.bf16.msra.mxu0 %v6537
      %6624 = vmatpush.bf16.msra.mxu0 %v6536
      %6625 = vmatpush.bf16.msra.mxu0 %v6535
      %6626 = vmatpush.bf16.msra.mxu0 %v6534
      %6627 = vmatmul.bf16.gmra.mxu0 %v6367
      %v6628 = vpop.f32.mrf.mxu0
      %v6629 = vadd.f32 %v6600, %v6628
      %v6630 = vpop.f32.mrf.mxu0
      %v6631 = vadd.f32 %v6602, %v6630
      %6632 = vmatmul.bf16.gmra.mxu0 %v6371
      %v6633 = vpop.f32.mrf.mxu0
      %v6634 = vadd.f32 %v6605, %v6633
      %v6635 = vpop.f32.mrf.mxu0
      %v6636 = vadd.f32 %v6607, %v6635
      %6637 = vmatmul.bf16.gmra.mxu0 %v6375
      %v6638 = vpop.f32.mrf.mxu0
      %v6639 = vadd.f32 %v6610, %v6638
      %v6640 = vpop.f32.mrf.mxu0
      %v6641 = vadd.f32 %v6612, %v6640
      %6642 = vmatmul.bf16.gmra.mxu0 %v6379
      %v6643 = vpop.f32.mrf.mxu0
      %v6644 = vadd.f32 %v6615, %v6643
      %v6645 = vpop.f32.mrf.mxu0
      %v6646 = vadd.f32 %v6617, %v6645
      %6647 = vdwg.mxu0
      %6648 = vmatpush.bf16.msra.mxu0 %v6549
      %6649 = vmatpush.bf16.msra.mxu0 %v6548
      %6650 = vmatpush.bf16.msra.mxu0 %v6547
      %6651 = vmatpush.bf16.msra.mxu0 %v6546
      %6652 = vmatpush.bf16.msra.mxu0 %v6545
      %6653 = vmatpush.bf16.msra.mxu0 %v6544
      %6654 = vmatpush.bf16.msra.mxu0 %v6543
      %6655 = vmatpush.bf16.msra.mxu0 %v6542
      %6656 = vmatmul.bf16.gmra.mxu0 %v6368
      %v6657 = vpop.f32.mrf.mxu0
      %v6658 = vadd.f32 %v6629, %v6657
      %v6659 = vpop.f32.mrf.mxu0
      %v6660 = vadd.f32 %v6631, %v6659
      %6661 = vmatmul.bf16.gmra.mxu0 %v6372
      %v6662 = vpop.f32.mrf.mxu0
      %v6663 = vadd.f32 %v6634, %v6662
      %v6664 = vpop.f32.mrf.mxu0
      %v6665 = vadd.f32 %v6636, %v6664
      %6666 = vmatmul.bf16.gmra.mxu0 %v6376
      %v6667 = vpop.f32.mrf.mxu0
      %v6668 = vadd.f32 %v6639, %v6667
      %v6669 = vpop.f32.mrf.mxu0
      %v6670 = vadd.f32 %v6641, %v6669
      %6671 = vmatmul.bf16.gmra.mxu0 %v6380
      %v6672 = vpop.f32.mrf.mxu0
      %v6673 = vadd.f32 %v6644, %v6672
      %v6674 = vpop.f32.mrf.mxu0
      %v6675 = vadd.f32 %v6646, %v6674
      %6676 = vdwg.mxu0
      %6677 = vmatpush.bf16.msra.mxu0 %v6557
      %6678 = vmatpush.bf16.msra.mxu0 %v6556
      %6679 = vmatpush.bf16.msra.mxu0 %v6555
      %6680 = vmatpush.bf16.msra.mxu0 %v6554
      %6681 = vmatpush.bf16.msra.mxu0 %v6553
      %6682 = vmatpush.bf16.msra.mxu0 %v6552
      %6683 = vmatpush.bf16.msra.mxu0 %v6551
      %6684 = vmatpush.bf16.msra.mxu0 %v6550
      %6685 = vmatmul.bf16.gmra.mxu0 %v6369
      %v6686 = vpop.f32.mrf.mxu0
      %v6687 = vadd.f32 %v6658, %v6686
      %v6688 = vpop.f32.mrf.mxu0
      %v6689 = vadd.f32 %v6660, %v6688
      %6690 = vmatmul.bf16.gmra.mxu0 %v6373
      %v6691 = vpop.f32.mrf.mxu0
      %v6692 = vadd.f32 %v6663, %v6691
      %v6693 = vpop.f32.mrf.mxu0
      %v6694 = vadd.f32 %v6665, %v6693
      %6695 = vmatmul.bf16.gmra.mxu0 %v6377
      %v6696 = vpop.f32.mrf.mxu0
      %v6697 = vadd.f32 %v6668, %v6696
      %v6698 = vpop.f32.mrf.mxu0
      %v6699 = vadd.f32 %v6670, %v6698
      %6700 = vmatmul.bf16.gmra.mxu0 %v6381
      %v6701 = vpop.f32.mrf.mxu0
      %v6702 = vadd.f32 %v6673, %v6701
      %v6703 = vpop.f32.mrf.mxu0
      %v6704 = vadd.f32 %v6675, %v6703
      %6705 = vdwg.mxu0
      %v6770 = vunpack.c.l.b16 %v1090
      %v6771 = vunpack.c.l.b16 %v1091
      %v6772 = vunpack.c.l.b16 %v1092
      %v6773 = vunpack.c.l.b16 %v1093
      %v6774 = vunpack.c.l.b16 %v1094
      %v6775 = vunpack.c.l.b16 %v1095
      %v6776 = vunpack.c.l.b16 %v1096
      %v6777 = vunpack.c.l.b16 %v1097
      %v6778 = vunpack.c.l.b16 %v1098
      %v6779 = vunpack.c.l.b16 %v1099
      %v6780 = vunpack.c.l.b16 %v1100
      %v6781 = vunpack.c.l.b16 %v1101
      %v6782 = vunpack.c.l.b16 %v1102
      %v6783 = vunpack.c.l.b16 %v1103
      %v6784 = vunpack.c.l.b16 %v1104
      %v6785 = vunpack.c.l.b16 %v1105
      %v6786 = vunpack.c.l.b16 %v1106
      %v6787 = vunpack.c.l.b16 %v1107
      %v6788 = vunpack.c.l.b16 %v1108
      %v6789 = vunpack.c.l.b16 %v1109
      %v6790 = vunpack.c.l.b16 %v1110
      %v6791 = vunpack.c.l.b16 %v1111
      %v6792 = vunpack.c.l.b16 %v1112
      %v6793 = vunpack.c.l.b16 %v1113
      %v6794 = vunpack.c.l.b16 %v1114
      %v6795 = vunpack.c.l.b16 %v1115
      %v6796 = vunpack.c.l.b16 %v1116
      %v6797 = vunpack.c.l.b16 %v1117
      %v6798 = vunpack.c.l.b16 %v1118
      %v6799 = vunpack.c.l.b16 %v1119
      %v6800 = vunpack.c.l.b16 %v1120
      %v6801 = vunpack.c.l.b16 %v1121
      %v6802 = vunpack.c.l.b16 %v1122
      %v6803 = vunpack.c.l.b16 %v1123
      %v6804 = vunpack.c.l.b16 %v1124
      %v6805 = vunpack.c.l.b16 %v1125
      %v6806 = vunpack.c.l.b16 %v1126
      %v6807 = vunpack.c.l.b16 %v1127
      %v6808 = vunpack.c.l.b16 %v1128
      %v6809 = vunpack.c.l.b16 %v1129
      %v6810 = vunpack.c.l.b16 %v1130
      %v6811 = vunpack.c.l.b16 %v1131
      %v6812 = vunpack.c.l.b16 %v1132
      %v6813 = vunpack.c.l.b16 %v1133
      %v6814 = vunpack.c.l.b16 %v1134
      %v6815 = vunpack.c.l.b16 %v1135
      %v6816 = vunpack.c.l.b16 %v1136
      %v6817 = vunpack.c.l.b16 %v1137
      %v6818 = vunpack.c.l.b16 %v1138
      %v6819 = vunpack.c.l.b16 %v1139
      %v6820 = vunpack.c.l.b16 %v1140
      %v6821 = vunpack.c.l.b16 %v1141
      %v6822 = vunpack.c.l.b16 %v1142
      %v6823 = vunpack.c.l.b16 %v1143
      %v6824 = vunpack.c.l.b16 %v1144
      %v6825 = vunpack.c.l.b16 %v1145
      %v6826 = vunpack.c.l.b16 %v1146
      %v6827 = vunpack.c.l.b16 %v1147
      %v6828 = vunpack.c.l.b16 %v1148
      %v6829 = vunpack.c.l.b16 %v1149
      %v6830 = vunpack.c.l.b16 %v1150
      %v6831 = vunpack.c.l.b16 %v1151
      %v6832 = vunpack.c.l.b16 %v1152
      %v6833 = vunpack.c.l.b16 %v1153
      %v6834 = vpack.c.b16 %v6771, %v6770
      %v6835 = vpack.c.b16 %v6773, %v6772
      %v6836 = vpack.c.b16 %v6775, %v6774
      %v6837 = vpack.c.b16 %v6777, %v6776
      %v6838 = vpack.c.b16 %v6779, %v6778
      %v6839 = vpack.c.b16 %v6781, %v6780
      %v6840 = vpack.c.b16 %v6783, %v6782
      %v6841 = vpack.c.b16 %v6785, %v6784
      %v6842 = vpack.c.b16 %v6787, %v6786
      %v6843 = vpack.c.b16 %v6789, %v6788
      %v6844 = vpack.c.b16 %v6791, %v6790
      %v6845 = vpack.c.b16 %v6793, %v6792
      %v6846 = vpack.c.b16 %v6795, %v6794
      %v6847 = vpack.c.b16 %v6797, %v6796
      %v6848 = vpack.c.b16 %v6799, %v6798
      %v6849 = vpack.c.b16 %v6801, %v6800
      %v6850 = vpack.c.b16 %v6803, %v6802
      %v6851 = vpack.c.b16 %v6805, %v6804
      %v6852 = vpack.c.b16 %v6807, %v6806
      %v6853 = vpack.c.b16 %v6809, %v6808
      %v6854 = vpack.c.b16 %v6811, %v6810
      %v6855 = vpack.c.b16 %v6813, %v6812
      %v6856 = vpack.c.b16 %v6815, %v6814
      %v6857 = vpack.c.b16 %v6817, %v6816
      %v6858 = vpack.c.b16 %v6819, %v6818
      %v6859 = vpack.c.b16 %v6821, %v6820
      %v6860 = vpack.c.b16 %v6823, %v6822
      %v6861 = vpack.c.b16 %v6825, %v6824
      %v6862 = vpack.c.b16 %v6827, %v6826
      %v6863 = vpack.c.b16 %v6829, %v6828
      %v6864 = vpack.c.b16 %v6831, %v6830
      %v6865 = vpack.c.b16 %v6833, %v6832
      %6898 = vmatpush.bf16.msra.mxu0 %v6841
      %6899 = vmatpush.bf16.msra.mxu0 %v6840
      %6900 = vmatpush.bf16.msra.mxu0 %v6839
      %6901 = vmatpush.bf16.msra.mxu0 %v6838
      %6902 = vmatpush.bf16.msra.mxu0 %v6837
      %6903 = vmatpush.bf16.msra.mxu0 %v6836
      %6904 = vmatpush.bf16.msra.mxu0 %v6835
      %6905 = vmatpush.bf16.msra.mxu0 %v6834
      %6906 = vmatmul.bf16.gmra.mxu0 %v5202
      %v6907 = vpop.f32.mrf.mxu0
      %v6908 = vadd.f32 0.0, %v6907
      %v6909 = vpop.f32.mrf.mxu0
      %v6910 = vadd.f32 0.0, %v6909
      %6911 = vmatmul.bf16.gmra.mxu0 %v5206
      %v6912 = vpop.f32.mrf.mxu0
      %v6913 = vadd.f32 0.0, %v6912
      %v6914 = vpop.f32.mrf.mxu0
      %v6915 = vadd.f32 0.0, %v6914
      %6916 = vmatmul.bf16.gmra.mxu0 %v5210
      %v6917 = vpop.f32.mrf.mxu0
      %v6918 = vadd.f32 0.0, %v6917
      %v6919 = vpop.f32.mrf.mxu0
      %v6920 = vadd.f32 0.0, %v6919
      %6921 = vmatmul.bf16.gmra.mxu0 %v5214
      %v6922 = vpop.f32.mrf.mxu0
      %v6923 = vadd.f32 0.0, %v6922
      %v6924 = vpop.f32.mrf.mxu0
      %v6925 = vadd.f32 0.0, %v6924
      %6926 = vmatmul.bf16.gmra.mxu0 %v5590
      %v6927 = vpop.f32.mrf.mxu0
      %v6928 = vadd.f32 0.0, %v6927
      %v6929 = vpop.f32.mrf.mxu0
      %v6930 = vadd.f32 0.0, %v6929
      %6931 = vmatmul.bf16.gmra.mxu0 %v5594
      %v6932 = vpop.f32.mrf.mxu0
      %v6933 = vadd.f32 0.0, %v6932
      %v6934 = vpop.f32.mrf.mxu0
      %v6935 = vadd.f32 0.0, %v6934
      %6936 = vmatmul.bf16.gmra.mxu0 %v5598
      %v6937 = vpop.f32.mrf.mxu0
      %v6938 = vadd.f32 0.0, %v6937
      %v6939 = vpop.f32.mrf.mxu0
      %v6940 = vadd.f32 0.0, %v6939
      %6941 = vmatmul.bf16.gmra.mxu0 %v5602
      %v6942 = vpop.f32.mrf.mxu0
      %v6943 = vadd.f32 0.0, %v6942
      %v6944 = vpop.f32.mrf.mxu0
      %v6945 = vadd.f32 0.0, %v6944
      %6946 = vmatmul.bf16.gmra.mxu0 %v5978
      %v6947 = vpop.f32.mrf.mxu0
      %v6948 = vadd.f32 0.0, %v6947
      %v6949 = vpop.f32.mrf.mxu0
      %v6950 = vadd.f32 0.0, %v6949
      %6951 = vmatmul.bf16.gmra.mxu0 %v5982
      %v6952 = vpop.f32.mrf.mxu0
      %v6953 = vadd.f32 0.0, %v6952
      %v6954 = vpop.f32.mrf.mxu0
      %v6955 = vadd.f32 0.0, %v6954
      %6956 = vmatmul.bf16.gmra.mxu0 %v5986
      %v6957 = vpop.f32.mrf.mxu0
      %v6958 = vadd.f32 0.0, %v6957
      %v6959 = vpop.f32.mrf.mxu0
      %v6960 = vadd.f32 0.0, %v6959
      %6961 = vmatmul.bf16.gmra.mxu0 %v5990
      %v6962 = vpop.f32.mrf.mxu0
      %v6963 = vadd.f32 0.0, %v6962
      %v6964 = vpop.f32.mrf.mxu0
      %v6965 = vadd.f32 0.0, %v6964
      %6966 = vmatmul.bf16.gmra.mxu0 %v6366
      %v6967 = vpop.f32.mrf.mxu0
      %v6968 = vadd.f32 0.0, %v6967
      %v6969 = vpop.f32.mrf.mxu0
      %v6970 = vadd.f32 0.0, %v6969
      %6971 = vmatmul.bf16.gmra.mxu0 %v6370
      %v6972 = vpop.f32.mrf.mxu0
      %v6973 = vadd.f32 0.0, %v6972
      %v6974 = vpop.f32.mrf.mxu0
      %v6975 = vadd.f32 0.0, %v6974
      %6976 = vmatmul.bf16.gmra.mxu0 %v6374
      %v6977 = vpop.f32.mrf.mxu0
      %v6978 = vadd.f32 0.0, %v6977
      %v6979 = vpop.f32.mrf.mxu0
      %v6980 = vadd.f32 0.0, %v6979
      %6981 = vmatmul.bf16.gmra.mxu0 %v6378
      %v6982 = vpop.f32.mrf.mxu0
      %v6983 = vadd.f32 0.0, %v6982
      %v6984 = vpop.f32.mrf.mxu0
      %v6985 = vadd.f32 0.0, %v6984
      %6986 = vdwg.mxu0
      %6987 = vmatpush.bf16.msra.mxu0 %v6849
      %6988 = vmatpush.bf16.msra.mxu0 %v6848
      %6989 = vmatpush.bf16.msra.mxu0 %v6847
      %6990 = vmatpush.bf16.msra.mxu0 %v6846
      %6991 = vmatpush.bf16.msra.mxu0 %v6845
      %6992 = vmatpush.bf16.msra.mxu0 %v6844
      %6993 = vmatpush.bf16.msra.mxu0 %v6843
      %6994 = vmatpush.bf16.msra.mxu0 %v6842
      %6995 = vmatmul.bf16.gmra.mxu0 %v5203
      %v6996 = vpop.f32.mrf.mxu0
      %v6997 = vadd.f32 %v6908, %v6996
      %v6998 = vpop.f32.mrf.mxu0
      %v6999 = vadd.f32 %v6910, %v6998
      %7000 = vmatmul.bf16.gmra.mxu0 %v5207
      %v7001 = vpop.f32.mrf.mxu0
      %v7002 = vadd.f32 %v6913, %v7001
      %v7003 = vpop.f32.mrf.mxu0
      %v7004 = vadd.f32 %v6915, %v7003
      %7005 = vmatmul.bf16.gmra.mxu0 %v5211
      %v7006 = vpop.f32.mrf.mxu0
      %v7007 = vadd.f32 %v6918, %v7006
      %v7008 = vpop.f32.mrf.mxu0
      %v7009 = vadd.f32 %v6920, %v7008
      %7010 = vmatmul.bf16.gmra.mxu0 %v5215
      %v7011 = vpop.f32.mrf.mxu0
      %v7012 = vadd.f32 %v6923, %v7011
      %v7013 = vpop.f32.mrf.mxu0
      %v7014 = vadd.f32 %v6925, %v7013
      %7015 = vmatmul.bf16.gmra.mxu0 %v5591
      %v7016 = vpop.f32.mrf.mxu0
      %v7017 = vadd.f32 %v6928, %v7016
      %v7018 = vpop.f32.mrf.mxu0
      %v7019 = vadd.f32 %v6930, %v7018
      %7020 = vmatmul.bf16.gmra.mxu0 %v5595
      %v7021 = vpop.f32.mrf.mxu0
      %v7022 = vadd.f32 %v6933, %v7021
      %v7023 = vpop.f32.mrf.mxu0
      %v7024 = vadd.f32 %v6935, %v7023
      %7025 = vmatmul.bf16.gmra.mxu0 %v5599
      %v7026 = vpop.f32.mrf.mxu0
      %v7027 = vadd.f32 %v6938, %v7026
      %v7028 = vpop.f32.mrf.mxu0
      %v7029 = vadd.f32 %v6940, %v7028
      %7030 = vmatmul.bf16.gmra.mxu0 %v5603
      %v7031 = vpop.f32.mrf.mxu0
      %v7032 = vadd.f32 %v6943, %v7031
      %v7033 = vpop.f32.mrf.mxu0
      %v7034 = vadd.f32 %v6945, %v7033
      %7035 = vmatmul.bf16.gmra.mxu0 %v5979
      %v7036 = vpop.f32.mrf.mxu0
      %v7037 = vadd.f32 %v6948, %v7036
      %v7038 = vpop.f32.mrf.mxu0
      %v7039 = vadd.f32 %v6950, %v7038
      %7040 = vmatmul.bf16.gmra.mxu0 %v5983
      %v7041 = vpop.f32.mrf.mxu0
      %v7042 = vadd.f32 %v6953, %v7041
      %v7043 = vpop.f32.mrf.mxu0
      %v7044 = vadd.f32 %v6955, %v7043
      %7045 = vmatmul.bf16.gmra.mxu0 %v5987
      %v7046 = vpop.f32.mrf.mxu0
      %v7047 = vadd.f32 %v6958, %v7046
      %v7048 = vpop.f32.mrf.mxu0
      %v7049 = vadd.f32 %v6960, %v7048
      %7050 = vmatmul.bf16.gmra.mxu0 %v5991
      %v7051 = vpop.f32.mrf.mxu0
      %v7052 = vadd.f32 %v6963, %v7051
      %v7053 = vpop.f32.mrf.mxu0
      %v7054 = vadd.f32 %v6965, %v7053
      %7055 = vmatmul.bf16.gmra.mxu0 %v6367
      %v7056 = vpop.f32.mrf.mxu0
      %v7057 = vadd.f32 %v6968, %v7056
      %v7058 = vpop.f32.mrf.mxu0
      %v7059 = vadd.f32 %v6970, %v7058
      %7060 = vmatmul.bf16.gmra.mxu0 %v6371
      %v7061 = vpop.f32.mrf.mxu0
      %v7062 = vadd.f32 %v6973, %v7061
      %v7063 = vpop.f32.mrf.mxu0
      %v7064 = vadd.f32 %v6975, %v7063
      %7065 = vmatmul.bf16.gmra.mxu0 %v6375
      %v7066 = vpop.f32.mrf.mxu0
      %v7067 = vadd.f32 %v6978, %v7066
      %v7068 = vpop.f32.mrf.mxu0
      %v7069 = vadd.f32 %v6980, %v7068
      %7070 = vmatmul.bf16.gmra.mxu0 %v6379
      %v7071 = vpop.f32.mrf.mxu0
      %v7072 = vadd.f32 %v6983, %v7071
      %v7073 = vpop.f32.mrf.mxu0
      %v7074 = vadd.f32 %v6985, %v7073
      %7075 = vdwg.mxu0
      %7076 = vmatpush.bf16.msra.mxu0 %v6857
      %7077 = vmatpush.bf16.msra.mxu0 %v6856
      %7078 = vmatpush.bf16.msra.mxu0 %v6855
      %7079 = vmatpush.bf16.msra.mxu0 %v6854
      %7080 = vmatpush.bf16.msra.mxu0 %v6853
      %7081 = vmatpush.bf16.msra.mxu0 %v6852
      %7082 = vmatpush.bf16.msra.mxu0 %v6851
      %7083 = vmatpush.bf16.msra.mxu0 %v6850
      %7084 = vmatmul.bf16.gmra.mxu0 %v5204
      %v7085 = vpop.f32.mrf.mxu0
      %v7086 = vadd.f32 %v6997, %v7085
      %v7087 = vpop.f32.mrf.mxu0
      %v7088 = vadd.f32 %v6999, %v7087
      %7089 = vmatmul.bf16.gmra.mxu0 %v5208
      %v7090 = vpop.f32.mrf.mxu0
      %v7091 = vadd.f32 %v7002, %v7090
      %v7092 = vpop.f32.mrf.mxu0
      %v7093 = vadd.f32 %v7004, %v7092
      %7094 = vmatmul.bf16.gmra.mxu0 %v5212
      %v7095 = vpop.f32.mrf.mxu0
      %v7096 = vadd.f32 %v7007, %v7095
      %v7097 = vpop.f32.mrf.mxu0
      %v7098 = vadd.f32 %v7009, %v7097
      %7099 = vmatmul.bf16.gmra.mxu0 %v5216
      %v7100 = vpop.f32.mrf.mxu0
      %v7101 = vadd.f32 %v7012, %v7100
      %v7102 = vpop.f32.mrf.mxu0
      %v7103 = vadd.f32 %v7014, %v7102
      %7104 = vmatmul.bf16.gmra.mxu0 %v5592
      %v7105 = vpop.f32.mrf.mxu0
      %v7106 = vadd.f32 %v7017, %v7105
      %v7107 = vpop.f32.mrf.mxu0
      %v7108 = vadd.f32 %v7019, %v7107
      %7109 = vmatmul.bf16.gmra.mxu0 %v5596
      %v7110 = vpop.f32.mrf.mxu0
      %v7111 = vadd.f32 %v7022, %v7110
      %v7112 = vpop.f32.mrf.mxu0
      %v7113 = vadd.f32 %v7024, %v7112
      %7114 = vmatmul.bf16.gmra.mxu0 %v5600
      %v7115 = vpop.f32.mrf.mxu0
      %v7116 = vadd.f32 %v7027, %v7115
      %v7117 = vpop.f32.mrf.mxu0
      %v7118 = vadd.f32 %v7029, %v7117
      %7119 = vmatmul.bf16.gmra.mxu0 %v5604
      %v7120 = vpop.f32.mrf.mxu0
      %v7121 = vadd.f32 %v7032, %v7120
      %v7122 = vpop.f32.mrf.mxu0
      %v7123 = vadd.f32 %v7034, %v7122
      %7124 = vmatmul.bf16.gmra.mxu0 %v5980
      %v7125 = vpop.f32.mrf.mxu0
      %v7126 = vadd.f32 %v7037, %v7125
      %v7127 = vpop.f32.mrf.mxu0
      %v7128 = vadd.f32 %v7039, %v7127
      %7129 = vmatmul.bf16.gmra.mxu0 %v5984
      %v7130 = vpop.f32.mrf.mxu0
      %v7131 = vadd.f32 %v7042, %v7130
      %v7132 = vpop.f32.mrf.mxu0
      %v7133 = vadd.f32 %v7044, %v7132
      %7134 = vmatmul.bf16.gmra.mxu0 %v5988
      %v7135 = vpop.f32.mrf.mxu0
      %v7136 = vadd.f32 %v7047, %v7135
      %v7137 = vpop.f32.mrf.mxu0
      %v7138 = vadd.f32 %v7049, %v7137
      %7139 = vmatmul.bf16.gmra.mxu0 %v5992
      %v7140 = vpop.f32.mrf.mxu0
      %v7141 = vadd.f32 %v7052, %v7140
      %v7142 = vpop.f32.mrf.mxu0
      %v7143 = vadd.f32 %v7054, %v7142
      %7144 = vmatmul.bf16.gmra.mxu0 %v6368
      %v7145 = vpop.f32.mrf.mxu0
      %v7146 = vadd.f32 %v7057, %v7145
      %v7147 = vpop.f32.mrf.mxu0
      %v7148 = vadd.f32 %v7059, %v7147
      %7149 = vmatmul.bf16.gmra.mxu0 %v6372
      %v7150 = vpop.f32.mrf.mxu0
      %v7151 = vadd.f32 %v7062, %v7150
      %v7152 = vpop.f32.mrf.mxu0
      %v7153 = vadd.f32 %v7064, %v7152
      %7154 = vmatmul.bf16.gmra.mxu0 %v6376
      %v7155 = vpop.f32.mrf.mxu0
      %v7156 = vadd.f32 %v7067, %v7155
      %v7157 = vpop.f32.mrf.mxu0
      %v7158 = vadd.f32 %v7069, %v7157
      %7159 = vmatmul.bf16.gmra.mxu0 %v6380
      %v7160 = vpop.f32.mrf.mxu0
      %v7161 = vadd.f32 %v7072, %v7160
      %v7162 = vpop.f32.mrf.mxu0
      %v7163 = vadd.f32 %v7074, %v7162
      %7164 = vdwg.mxu0
      %7165 = vmatpush.bf16.msra.mxu0 %v6865
      %7166 = vmatpush.bf16.msra.mxu0 %v6864
      %7167 = vmatpush.bf16.msra.mxu0 %v6863
      %7168 = vmatpush.bf16.msra.mxu0 %v6862
      %7169 = vmatpush.bf16.msra.mxu0 %v6861
      %7170 = vmatpush.bf16.msra.mxu0 %v6860
      %7171 = vmatpush.bf16.msra.mxu0 %v6859
      %7172 = vmatpush.bf16.msra.mxu0 %v6858
      %7173 = vmatmul.bf16.gmra.mxu0 %v5205
      %v7174 = vpop.f32.mrf.mxu0
      %v7175 = vadd.f32 %v7086, %v7174
      %v7176 = vpop.f32.mrf.mxu0
      %v7177 = vadd.f32 %v7088, %v7176
      %7178 = vmatmul.bf16.gmra.mxu0 %v5209
      %v7179 = vpop.f32.mrf.mxu0
      %v7180 = vadd.f32 %v7091, %v7179
      %v7181 = vpop.f32.mrf.mxu0
      %v7182 = vadd.f32 %v7093, %v7181
      %7183 = vmatmul.bf16.gmra.mxu0 %v5213
      %v7184 = vpop.f32.mrf.mxu0
      %v7185 = vadd.f32 %v7096, %v7184
      %v7186 = vpop.f32.mrf.mxu0
      %v7187 = vadd.f32 %v7098, %v7186
      %7188 = vmatmul.bf16.gmra.mxu0 %v5217
      %v7189 = vpop.f32.mrf.mxu0
      %v7190 = vadd.f32 %v7101, %v7189
      %v7191 = vpop.f32.mrf.mxu0
      %v7192 = vadd.f32 %v7103, %v7191
      %7193 = vmatmul.bf16.gmra.mxu0 %v5593
      %v7194 = vpop.f32.mrf.mxu0
      %v7195 = vadd.f32 %v7106, %v7194
      %v7196 = vpop.f32.mrf.mxu0
      %v7197 = vadd.f32 %v7108, %v7196
      %7198 = vmatmul.bf16.gmra.mxu0 %v5597
      %v7199 = vpop.f32.mrf.mxu0
      %v7200 = vadd.f32 %v7111, %v7199
      %v7201 = vpop.f32.mrf.mxu0
      %v7202 = vadd.f32 %v7113, %v7201
      %7203 = vmatmul.bf16.gmra.mxu0 %v5601
      %v7204 = vpop.f32.mrf.mxu0
      %v7205 = vadd.f32 %v7116, %v7204
      %v7206 = vpop.f32.mrf.mxu0
      %v7207 = vadd.f32 %v7118, %v7206
      %7208 = vmatmul.bf16.gmra.mxu0 %v5605
      %v7209 = vpop.f32.mrf.mxu0
      %v7210 = vadd.f32 %v7121, %v7209
      %v7211 = vpop.f32.mrf.mxu0
      %v7212 = vadd.f32 %v7123, %v7211
      %7213 = vmatmul.bf16.gmra.mxu0 %v5981
      %v7214 = vpop.f32.mrf.mxu0
      %v7215 = vadd.f32 %v7126, %v7214
      %v7216 = vpop.f32.mrf.mxu0
      %v7217 = vadd.f32 %v7128, %v7216
      %7218 = vmatmul.bf16.gmra.mxu0 %v5985
      %v7219 = vpop.f32.mrf.mxu0
      %v7220 = vadd.f32 %v7131, %v7219
      %v7221 = vpop.f32.mrf.mxu0
      %v7222 = vadd.f32 %v7133, %v7221
      %7223 = vmatmul.bf16.gmra.mxu0 %v5989
      %v7224 = vpop.f32.mrf.mxu0
      %v7225 = vadd.f32 %v7136, %v7224
      %v7226 = vpop.f32.mrf.mxu0
      %v7227 = vadd.f32 %v7138, %v7226
      %7228 = vmatmul.bf16.gmra.mxu0 %v5993
      %v7229 = vpop.f32.mrf.mxu0
      %v7230 = vadd.f32 %v7141, %v7229
      %v7231 = vpop.f32.mrf.mxu0
      %v7232 = vadd.f32 %v7143, %v7231
      %7233 = vmatmul.bf16.gmra.mxu0 %v6369
      %v7234 = vpop.f32.mrf.mxu0
      %v7235 = vadd.f32 %v7146, %v7234
      %v7236 = vpop.f32.mrf.mxu0
      %v7237 = vadd.f32 %v7148, %v7236
      %7238 = vmatmul.bf16.gmra.mxu0 %v6373
      %v7239 = vpop.f32.mrf.mxu0
      %v7240 = vadd.f32 %v7151, %v7239
      %v7241 = vpop.f32.mrf.mxu0
      %v7242 = vadd.f32 %v7153, %v7241
      %7243 = vmatmul.bf16.gmra.mxu0 %v6377
      %v7244 = vpop.f32.mrf.mxu0
      %v7245 = vadd.f32 %v7156, %v7244
      %v7246 = vpop.f32.mrf.mxu0
      %v7247 = vadd.f32 %v7158, %v7246
      %7248 = vmatmul.bf16.gmra.mxu0 %v6381
      %v7249 = vpop.f32.mrf.mxu0
      %v7250 = vadd.f32 %v7161, %v7249
      %v7251 = vpop.f32.mrf.mxu0
      %v7252 = vadd.f32 %v7163, %v7251
      %7253 = vdwg.mxu0
      %v7254 = vrcp.pop %v7175
      %v7255 = vrcp.pop %v7177
      %v7256 = vrcp.pop %v7180
      %v7257 = vrcp.pop %v7182
      %v7258 = vrcp.pop %v7185
      %v7259 = vrcp.pop %v7187
      %v7260 = vrcp.pop %v7190
      %v7261 = vrcp.pop %v7192
      %v7262 = vrcp.pop %v7195
      %v7263 = vrcp.pop %v7197
      %v7264 = vrcp.pop %v7200
      %v7265 = vrcp.pop %v7202
      %v7266 = vrcp.pop %v7205
      %v7267 = vrcp.pop %v7207
      %v7268 = vrcp.pop %v7210
      %v7269 = vrcp.pop %v7212
      %v7270 = vrcp.pop %v7215
      %v7271 = vrcp.pop %v7217
      %v7272 = vrcp.pop %v7220
      %v7273 = vrcp.pop %v7222
      %v7274 = vrcp.pop %v7225
      %v7275 = vrcp.pop %v7227
      %v7276 = vrcp.pop %v7230
      %v7277 = vrcp.pop %v7232
      %v7278 = vrcp.pop %v7235
      %v7279 = vrcp.pop %v7237
      %v7280 = vrcp.pop %v7240
      %v7281 = vrcp.pop %v7242
      %v7282 = vrcp.pop %v7245
      %v7283 = vrcp.pop %v7247
      %v7284 = vrcp.pop %v7250
      %v7285 = vrcp.pop %v7252
      %v7286 = vmul.f32 %v5523, %v7254
      %v7287 = vmul.f32 %v5525, %v7255
      %v7288 = vmul.f32 %v5528, %v7256
      %v7289 = vmul.f32 %v5530, %v7257
      %v7290 = vmul.f32 %v5533, %v7258
      %v7291 = vmul.f32 %v5535, %v7259
      %v7292 = vmul.f32 %v5538, %v7260
      %v7293 = vmul.f32 %v5540, %v7261
      %v7294 = vmul.f32 %v5911, %v7262
      %v7295 = vmul.f32 %v5913, %v7263
      %v7296 = vmul.f32 %v5916, %v7264
      %v7297 = vmul.f32 %v5918, %v7265
      %v7298 = vmul.f32 %v5921, %v7266
      %v7299 = vmul.f32 %v5923, %v7267
      %v7300 = vmul.f32 %v5926, %v7268
      %v7301 = vmul.f32 %v5928, %v7269
      %v7302 = vmul.f32 %v6299, %v7270
      %v7303 = vmul.f32 %v6301, %v7271
      %v7304 = vmul.f32 %v6304, %v7272
      %v7305 = vmul.f32 %v6306, %v7273
      %v7306 = vmul.f32 %v6309, %v7274
      %v7307 = vmul.f32 %v6311, %v7275
      %v7308 = vmul.f32 %v6314, %v7276
      %v7309 = vmul.f32 %v6316, %v7277
      %v7310 = vmul.f32 %v6687, %v7278
      %v7311 = vmul.f32 %v6689, %v7279
      %v7312 = vmul.f32 %v6692, %v7280
      %v7313 = vmul.f32 %v6694, %v7281
      %v7314 = vmul.f32 %v6697, %v7282
      %v7315 = vmul.f32 %v6699, %v7283
      %v7316 = vmul.f32 %v6702, %v7284
      %v7317 = vmul.f32 %v6704, %v7285
      %v7318 = vpack.c.bf16 %v7287, %v7286
      %v7319 = vpack.c.bf16 %v7289, %v7288
      %v7320 = vpack.c.bf16 %v7291, %v7290
      %v7321 = vpack.c.bf16 %v7293, %v7292
      %v7322 = vpack.c.bf16 %v7295, %v7294
      %v7323 = vpack.c.bf16 %v7297, %v7296
      %v7324 = vpack.c.bf16 %v7299, %v7298
      %v7325 = vpack.c.bf16 %v7301, %v7300
      %v7326 = vpack.c.bf16 %v7303, %v7302
      %v7327 = vpack.c.bf16 %v7305, %v7304
      %v7328 = vpack.c.bf16 %v7307, %v7306
      %v7329 = vpack.c.bf16 %v7309, %v7308
      %v7330 = vpack.c.bf16 %v7311, %v7310
      %v7331 = vpack.c.bf16 %v7313, %v7312
      %v7332 = vpack.c.bf16 %v7315, %v7314
      %v7333 = vpack.c.bf16 %v7317, %v7316
      %v7334 = vld [vmem:[%s6] sm:$0xf]
      %v7335 = vld [vmem:[%s6 + $0x4] sm:$0xf]
      %v7336 = vld [vmem:[%s6 + $0x8] sm:$0xf]
      %v7337 = vld [vmem:[%s6 + $0xc] sm:$0xf]
      %v7338 = vld [vmem:[%s6 + $0x10] sm:$0xf]
      %v7339 = vld [vmem:[%s6 + $0x14] sm:$0xf]
      %v7340 = vld [vmem:[%s6 + $0x18] sm:$0xf]
      %v7341 = vld [vmem:[%s6 + $0x1c] sm:$0xf]
      %v7342 = vld [vmem:[%s3 + $0x6] sm:$0x1]
      %v7343 = vperm.slane %v7342, 0
      %v7352 = vunpack.c.l.b16 %v7334
      %v7353 = vunpack.c.l.b16 %v7335
      %v7354 = vunpack.c.l.b16 %v7336
      %v7355 = vunpack.c.l.b16 %v7337
      %v7356 = vunpack.c.l.b16 %v7338
      %v7357 = vunpack.c.l.b16 %v7339
      %v7358 = vunpack.c.l.b16 %v7340
      %v7359 = vunpack.c.l.b16 %v7341
      %v7360 = vpack.c.b16 %v7353, %v7352
      %v7361 = vpack.c.b16 %v7355, %v7354
      %v7362 = vpack.c.b16 %v7357, %v7356
      %v7363 = vpack.c.b16 %v7359, %v7358
      %v7369 = vsel %vm393, %v7318, 0
      %v7372 = vsel %vm393, %v7319, 0
      %v7375 = vsel %vm393, %v7320, 0
      %v7378 = vsel %vm393, %v7321, 0
      %v7381 = vsel %vm393, %v7322, 0
      %v7384 = vsel %vm393, %v7323, 0
      %v7387 = vsel %vm393, %v7324, 0
      %v7390 = vsel %vm393, %v7325, 0
      %v7393 = vsel %vm393, %v7326, 0
      %v7396 = vsel %vm393, %v7327, 0
      %v7399 = vsel %vm393, %v7328, 0
      %v7402 = vsel %vm393, %v7329, 0
      %v7405 = vsel %vm393, %v7330, 0
      %v7408 = vsel %vm393, %v7331, 0
      %v7411 = vsel %vm393, %v7332, 0
      %v7414 = vsel %vm393, %v7333, 0
      %7416 = vmatpush.bf16.msra.mxu0 0
      %7417 = vmatpush.bf16.msra.mxu0 0
      %7418 = vmatpush.bf16.msra.mxu0 0
      %7419 = vmatpush.bf16.msra.mxu0 0
      %7420 = vmatpush.bf16.msra.mxu0 %v7363
      %7421 = vmatpush.bf16.msra.mxu0 %v7362
      %7422 = vmatpush.bf16.msra.mxu0 %v7361
      %7423 = vmatpush.bf16.msra.mxu0 %v7360
      %7424 = vmatmul.bf16.gmra.mxu0 %v7369
      %v7425 = vpop.f32.mrf.mxu0
      %v7426 = vadd.f32 %v7343, %v7425
      %v7427 = vpop.f32.mrf.mxu0
      %v7428 = vadd.f32 %v7343, %v7427
      %7429 = vmatmul.bf16.gmra.mxu0 %v7372
      %v7430 = vpop.f32.mrf.mxu0
      %v7431 = vadd.f32 %v7343, %v7430
      %v7432 = vpop.f32.mrf.mxu0
      %v7433 = vadd.f32 %v7343, %v7432
      %7434 = vmatmul.bf16.gmra.mxu0 %v7375
      %v7435 = vpop.f32.mrf.mxu0
      %v7436 = vadd.f32 %v7343, %v7435
      %v7437 = vpop.f32.mrf.mxu0
      %v7438 = vadd.f32 %v7343, %v7437
      %7439 = vmatmul.bf16.gmra.mxu0 %v7378
      %v7440 = vpop.f32.mrf.mxu0
      %v7441 = vadd.f32 %v7343, %v7440
      %v7442 = vpop.f32.mrf.mxu0
      %v7443 = vadd.f32 %v7343, %v7442
      %7444 = vmatmul.bf16.gmra.mxu0 %v7381
      %v7445 = vpop.f32.mrf.mxu0
      %v7446 = vadd.f32 %v7343, %v7445
      %v7447 = vpop.f32.mrf.mxu0
      %v7448 = vadd.f32 %v7343, %v7447
      %7449 = vmatmul.bf16.gmra.mxu0 %v7384
      %v7450 = vpop.f32.mrf.mxu0
      %v7451 = vadd.f32 %v7343, %v7450
      %v7452 = vpop.f32.mrf.mxu0
      %v7453 = vadd.f32 %v7343, %v7452
      %7454 = vmatmul.bf16.gmra.mxu0 %v7387
      %v7455 = vpop.f32.mrf.mxu0
      %v7456 = vadd.f32 %v7343, %v7455
      %v7457 = vpop.f32.mrf.mxu0
      %v7458 = vadd.f32 %v7343, %v7457
      %7459 = vmatmul.bf16.gmra.mxu0 %v7390
      %v7460 = vpop.f32.mrf.mxu0
      %v7461 = vadd.f32 %v7343, %v7460
      %v7462 = vpop.f32.mrf.mxu0
      %v7463 = vadd.f32 %v7343, %v7462
      %7464 = vmatmul.bf16.gmra.mxu0 %v7393
      %v7465 = vpop.f32.mrf.mxu0
      %v7466 = vadd.f32 %v7343, %v7465
      %v7467 = vpop.f32.mrf.mxu0
      %v7468 = vadd.f32 %v7343, %v7467
      %7469 = vmatmul.bf16.gmra.mxu0 %v7396
      %v7470 = vpop.f32.mrf.mxu0
      %v7471 = vadd.f32 %v7343, %v7470
      %v7472 = vpop.f32.mrf.mxu0
      %v7473 = vadd.f32 %v7343, %v7472
      %7474 = vmatmul.bf16.gmra.mxu0 %v7399
      %v7475 = vpop.f32.mrf.mxu0
      %v7476 = vadd.f32 %v7343, %v7475
      %v7477 = vpop.f32.mrf.mxu0
      %v7478 = vadd.f32 %v7343, %v7477
      %7479 = vmatmul.bf16.gmra.mxu0 %v7402
      %v7480 = vpop.f32.mrf.mxu0
      %v7481 = vadd.f32 %v7343, %v7480
      %v7482 = vpop.f32.mrf.mxu0
      %v7483 = vadd.f32 %v7343, %v7482
      %7484 = vmatmul.bf16.gmra.mxu0 %v7405
      %v7485 = vpop.f32.mrf.mxu0
      %v7486 = vadd.f32 %v7343, %v7485
      %v7487 = vpop.f32.mrf.mxu0
      %v7488 = vadd.f32 %v7343, %v7487
      %7489 = vmatmul.bf16.gmra.mxu0 %v7408
      %v7490 = vpop.f32.mrf.mxu0
      %v7491 = vadd.f32 %v7343, %v7490
      %v7492 = vpop.f32.mrf.mxu0
      %v7493 = vadd.f32 %v7343, %v7492
      %7494 = vmatmul.bf16.gmra.mxu0 %v7411
      %v7495 = vpop.f32.mrf.mxu0
      %v7496 = vadd.f32 %v7343, %v7495
      %v7497 = vpop.f32.mrf.mxu0
      %v7498 = vadd.f32 %v7343, %v7497
      %7499 = vmatmul.bf16.gmra.mxu0 %v7414
      %v7500 = vpop.f32.mrf.mxu0
      %v7501 = vadd.f32 %v7343, %v7500
      %v7502 = vpop.f32.mrf.mxu0
      %v7503 = vadd.f32 %v7343, %v7502
      %7504 = vdwg.mxu0
      %v7505 = vperm.slane %v757, 0
      %v7506 = vmul.f32 %v7426, %v7505
      %v7507 = vmul.f32 %v7428, %v7505
      %v7508 = vmul.f32 %v7431, %v7505
      %v7509 = vmul.f32 %v7433, %v7505
      %v7510 = vmul.f32 %v7436, %v7505
      %v7511 = vmul.f32 %v7438, %v7505
      %v7512 = vmul.f32 %v7441, %v7505
      %v7513 = vmul.f32 %v7443, %v7505
      %v7514 = vmul.f32 %v7446, %v7505
      %v7515 = vmul.f32 %v7448, %v7505
      %v7516 = vmul.f32 %v7451, %v7505
      %v7517 = vmul.f32 %v7453, %v7505
      %v7518 = vmul.f32 %v7456, %v7505
      %v7519 = vmul.f32 %v7458, %v7505
      %v7520 = vmul.f32 %v7461, %v7505
      %v7521 = vmul.f32 %v7463, %v7505
      %v7522 = vmul.f32 %v7466, %v7505
      %v7523 = vmul.f32 %v7468, %v7505
      %v7524 = vmul.f32 %v7471, %v7505
      %v7525 = vmul.f32 %v7473, %v7505
      %v7526 = vmul.f32 %v7476, %v7505
      %v7527 = vmul.f32 %v7478, %v7505
      %v7528 = vmul.f32 %v7481, %v7505
      %v7529 = vmul.f32 %v7483, %v7505
      %v7530 = vmul.f32 %v7486, %v7505
      %v7531 = vmul.f32 %v7488, %v7505
      %v7532 = vmul.f32 %v7491, %v7505
      %v7533 = vmul.f32 %v7493, %v7505
      %v7534 = vmul.f32 %v7496, %v7505
      %v7535 = vmul.f32 %v7498, %v7505
      %v7536 = vmul.f32 %v7501, %v7505
      %v7537 = vmul.f32 %v7503, %v7505
      %v7538 = vperm.slane %v761, 0
      %v7539 = vadd.f32 %v7506, %v7538
      %v7540 = vadd.f32 %v7507, %v7538
      %v7541 = vadd.f32 %v7508, %v7538
      %v7542 = vadd.f32 %v7509, %v7538
      %v7543 = vadd.f32 %v7510, %v7538
      %v7544 = vadd.f32 %v7511, %v7538
      %v7545 = vadd.f32 %v7512, %v7538
      %v7546 = vadd.f32 %v7513, %v7538
      %v7547 = vadd.f32 %v7514, %v7538
      %v7548 = vadd.f32 %v7515, %v7538
      %v7549 = vadd.f32 %v7516, %v7538
      %v7550 = vadd.f32 %v7517, %v7538
      %v7551 = vadd.f32 %v7518, %v7538
      %v7552 = vadd.f32 %v7519, %v7538
      %v7553 = vadd.f32 %v7520, %v7538
      %v7554 = vadd.f32 %v7521, %v7538
      %v7555 = vadd.f32 %v7522, %v7538
      %v7556 = vadd.f32 %v7523, %v7538
      %v7557 = vadd.f32 %v7524, %v7538
      %v7558 = vadd.f32 %v7525, %v7538
      %v7559 = vadd.f32 %v7526, %v7538
      %v7560 = vadd.f32 %v7527, %v7538
      %v7561 = vadd.f32 %v7528, %v7538
      %v7562 = vadd.f32 %v7529, %v7538
      %v7563 = vadd.f32 %v7530, %v7538
      %v7564 = vadd.f32 %v7531, %v7538
      %v7565 = vadd.f32 %v7532, %v7538
      %v7566 = vadd.f32 %v7533, %v7538
      %v7567 = vadd.f32 %v7534, %v7538
      %v7568 = vadd.f32 %v7535, %v7538
      %v7569 = vadd.f32 %v7536, %v7538
      %v7570 = vadd.f32 %v7537, %v7538
      %v7571 = vadd.f32 %v7539, %v361
      %v7572 = vadd.f32 %v7540, %v362
      %v7573 = vadd.f32 %v7541, %v363
      %v7574 = vadd.f32 %v7542, %v364
      %v7575 = vadd.f32 %v7543, %v365
      %v7576 = vadd.f32 %v7544, %v366
      %v7577 = vadd.f32 %v7545, %v367
      %v7578 = vadd.f32 %v7546, %v368
      %v7579 = vadd.f32 %v7547, %v369
      %v7580 = vadd.f32 %v7548, %v370
      %v7581 = vadd.f32 %v7549, %v371
      %v7582 = vadd.f32 %v7550, %v372
      %v7583 = vadd.f32 %v7551, %v373
      %v7584 = vadd.f32 %v7552, %v374
      %v7585 = vadd.f32 %v7553, %v375
      %v7586 = vadd.f32 %v7554, %v376
      %v7587 = vadd.f32 %v7555, %v377
      %v7588 = vadd.f32 %v7556, %v378
      %v7589 = vadd.f32 %v7557, %v379
      %v7590 = vadd.f32 %v7558, %v380
      %v7591 = vadd.f32 %v7559, %v381
      %v7592 = vadd.f32 %v7560, %v382
      %v7593 = vadd.f32 %v7561, %v383
      %v7594 = vadd.f32 %v7562, %v384
      %v7595 = vadd.f32 %v7563, %v385
      %v7596 = vadd.f32 %v7564, %v386
      %v7597 = vadd.f32 %v7565, %v387
      %v7598 = vadd.f32 %v7566, %v388
      %v7599 = vadd.f32 %v7567, %v389
      %v7600 = vadd.f32 %v7568, %v390
      %v7601 = vadd.f32 %v7569, %v391
      %v7602 = vadd.f32 %v7570, %v392
      %v7603 = vpack.c.bf16 %v7572, %v7571
      %v7604 = vpack.c.bf16 %v7574, %v7573
      %v7605 = vpack.c.bf16 %v7576, %v7575
      %v7606 = vpack.c.bf16 %v7578, %v7577
      %v7607 = vpack.c.bf16 %v7580, %v7579
      %v7608 = vpack.c.bf16 %v7582, %v7581
      %v7609 = vpack.c.bf16 %v7584, %v7583
      %v7610 = vpack.c.bf16 %v7586, %v7585
      %v7611 = vpack.c.bf16 %v7588, %v7587
      %v7612 = vpack.c.bf16 %v7590, %v7589
      %v7613 = vpack.c.bf16 %v7592, %v7591
      %v7614 = vpack.c.bf16 %v7594, %v7593
      %v7615 = vpack.c.bf16 %v7596, %v7595
      %v7616 = vpack.c.bf16 %v7598, %v7597
      %v7617 = vpack.c.bf16 %v7600, %v7599
      %v7618 = vpack.c.bf16 %v7602, %v7601
      %v7619 = vld [vmem:[%s7] sm:$0xff]
      %v7620 = vld [vmem:[%s7 + $0x8] sm:$0xff]
      %v7621 = vld [vmem:[%s7 + $0x10] sm:$0xff]
      %v7622 = vld [vmem:[%s7 + $0x18] sm:$0xff]
      %v7623 = vld [vmem:[%s7 + $0x20] sm:$0xff]
      %v7624 = vld [vmem:[%s7 + $0x28] sm:$0xff]
      %v7625 = vld [vmem:[%s7 + $0x30] sm:$0xff]
      %v7626 = vld [vmem:[%s7 + $0x38] sm:$0xff]
      %v7627 = vld [vmem:[%s8] sm:$0x3]
      %v7629 = vperm.slane %v7627, 0
      %v7630 = vperm.slane %v7627, 1
      %v7641 = vunpack.c.l.b16 %v7619
      %v7642 = vunpack.c.h.b16 %v7619
      %v7643 = vunpack.c.l.b16 %v7620
      %v7644 = vunpack.c.h.b16 %v7620
      %v7645 = vunpack.c.l.b16 %v7621
      %v7646 = vunpack.c.h.b16 %v7621
      %v7647 = vunpack.c.l.b16 %v7622
      %v7648 = vunpack.c.h.b16 %v7622
      %v7649 = vunpack.c.l.b16 %v7623
      %v7650 = vunpack.c.h.b16 %v7623
      %v7651 = vunpack.c.l.b16 %v7624
      %v7652 = vunpack.c.h.b16 %v7624
      %v7653 = vunpack.c.l.b16 %v7625
      %v7654 = vunpack.c.h.b16 %v7625
      %v7655 = vunpack.c.l.b16 %v7626
      %v7656 = vunpack.c.h.b16 %v7626
      %v7657 = vpack.c.b16 %v7643, %v7641
      %v7658 = vpack.c.b16 %v7644, %v7642
      %v7659 = vpack.c.b16 %v7647, %v7645
      %v7660 = vpack.c.b16 %v7648, %v7646
      %v7661 = vpack.c.b16 %v7651, %v7649
      %v7662 = vpack.c.b16 %v7652, %v7650
      %v7663 = vpack.c.b16 %v7655, %v7653
      %v7664 = vpack.c.b16 %v7656, %v7654
      %v7674 = vsel %vm393, %v7603, 0
      %v7677 = vsel %vm393, %v7604, 0
      %v7680 = vsel %vm393, %v7605, 0
      %v7683 = vsel %vm393, %v7606, 0
      %v7686 = vsel %vm393, %v7607, 0
      %v7689 = vsel %vm393, %v7608, 0
      %v7692 = vsel %vm393, %v7609, 0
      %v7695 = vsel %vm393, %v7610, 0
      %v7698 = vsel %vm393, %v7611, 0
      %v7701 = vsel %vm393, %v7612, 0
      %v7704 = vsel %vm393, %v7613, 0
      %v7707 = vsel %vm393, %v7614, 0
      %v7710 = vsel %vm393, %v7615, 0
      %v7713 = vsel %vm393, %v7616, 0
      %v7716 = vsel %vm393, %v7617, 0
      %v7719 = vsel %vm393, %v7618, 0
      %7721 = vmatpush.bf16.msra.mxu0 0
      %7722 = vmatpush.bf16.msra.mxu0 0
      %7723 = vmatpush.bf16.msra.mxu0 0
      %7724 = vmatpush.bf16.msra.mxu0 0
      %7725 = vmatpush.bf16.msra.mxu0 %v7663
      %7726 = vmatpush.bf16.msra.mxu0 %v7661
      %7727 = vmatpush.bf16.msra.mxu0 %v7659
      %7728 = vmatpush.bf16.msra.mxu0 %v7657
      %7729 = vmatmul.bf16.gmra.mxu0 %v7674
      %v7730 = vpop.f32.mrf.mxu0
      %v7731 = vadd.f32 %v7629, %v7730
      %v7732 = vpop.f32.mrf.mxu0
      %v7733 = vadd.f32 %v7629, %v7732
      %7734 = vmatmul.bf16.gmra.mxu0 %v7677
      %v7735 = vpop.f32.mrf.mxu0
      %v7736 = vadd.f32 %v7629, %v7735
      %v7737 = vpop.f32.mrf.mxu0
      %v7738 = vadd.f32 %v7629, %v7737
      %7739 = vmatmul.bf16.gmra.mxu0 %v7680
      %v7740 = vpop.f32.mrf.mxu0
      %v7741 = vadd.f32 %v7629, %v7740
      %v7742 = vpop.f32.mrf.mxu0
      %v7743 = vadd.f32 %v7629, %v7742
      %7744 = vmatmul.bf16.gmra.mxu0 %v7683
      %v7745 = vpop.f32.mrf.mxu0
      %v7746 = vadd.f32 %v7629, %v7745
      %v7747 = vpop.f32.mrf.mxu0
      %v7748 = vadd.f32 %v7629, %v7747
      %7749 = vmatmul.bf16.gmra.mxu0 %v7686
      %v7750 = vpop.f32.mrf.mxu0
      %v7751 = vadd.f32 %v7629, %v7750
      %v7752 = vpop.f32.mrf.mxu0
      %v7753 = vadd.f32 %v7629, %v7752
      %7754 = vmatmul.bf16.gmra.mxu0 %v7689
      %v7755 = vpop.f32.mrf.mxu0
      %v7756 = vadd.f32 %v7629, %v7755
      %v7757 = vpop.f32.mrf.mxu0
      %v7758 = vadd.f32 %v7629, %v7757
      %7759 = vmatmul.bf16.gmra.mxu0 %v7692
      %v7760 = vpop.f32.mrf.mxu0
      %v7761 = vadd.f32 %v7629, %v7760
      %v7762 = vpop.f32.mrf.mxu0
      %v7763 = vadd.f32 %v7629, %v7762
      %7764 = vmatmul.bf16.gmra.mxu0 %v7695
      %v7765 = vpop.f32.mrf.mxu0
      %v7766 = vadd.f32 %v7629, %v7765
      %v7767 = vpop.f32.mrf.mxu0
      %v7768 = vadd.f32 %v7629, %v7767
      %7769 = vmatmul.bf16.gmra.mxu0 %v7698
      %v7770 = vpop.f32.mrf.mxu0
      %v7771 = vadd.f32 %v7629, %v7770
      %v7772 = vpop.f32.mrf.mxu0
      %v7773 = vadd.f32 %v7629, %v7772
      %7774 = vmatmul.bf16.gmra.mxu0 %v7701
      %v7775 = vpop.f32.mrf.mxu0
      %v7776 = vadd.f32 %v7629, %v7775
      %v7777 = vpop.f32.mrf.mxu0
      %v7778 = vadd.f32 %v7629, %v7777
      %7779 = vmatmul.bf16.gmra.mxu0 %v7704
      %v7780 = vpop.f32.mrf.mxu0
      %v7781 = vadd.f32 %v7629, %v7780
      %v7782 = vpop.f32.mrf.mxu0
      %v7783 = vadd.f32 %v7629, %v7782
      %7784 = vmatmul.bf16.gmra.mxu0 %v7707
      %v7785 = vpop.f32.mrf.mxu0
      %v7786 = vadd.f32 %v7629, %v7785
      %v7787 = vpop.f32.mrf.mxu0
      %v7788 = vadd.f32 %v7629, %v7787
      %7789 = vmatmul.bf16.gmra.mxu0 %v7710
      %v7790 = vpop.f32.mrf.mxu0
      %v7791 = vadd.f32 %v7629, %v7790
      %v7792 = vpop.f32.mrf.mxu0
      %v7793 = vadd.f32 %v7629, %v7792
      %7794 = vmatmul.bf16.gmra.mxu0 %v7713
      %v7795 = vpop.f32.mrf.mxu0
      %v7796 = vadd.f32 %v7629, %v7795
      %v7797 = vpop.f32.mrf.mxu0
      %v7798 = vadd.f32 %v7629, %v7797
      %7799 = vmatmul.bf16.gmra.mxu0 %v7716
      %v7800 = vpop.f32.mrf.mxu0
      %v7801 = vadd.f32 %v7629, %v7800
      %v7802 = vpop.f32.mrf.mxu0
      %v7803 = vadd.f32 %v7629, %v7802
      %7804 = vmatmul.bf16.gmra.mxu0 %v7719
      %v7805 = vpop.f32.mrf.mxu0
      %v7806 = vadd.f32 %v7629, %v7805
      %v7807 = vpop.f32.mrf.mxu0
      %v7808 = vadd.f32 %v7629, %v7807
      %7809 = vdwg.mxu0
      %7810 = vmatpush.bf16.msra.mxu0 0
      %7811 = vmatpush.bf16.msra.mxu0 0
      %7812 = vmatpush.bf16.msra.mxu0 0
      %7813 = vmatpush.bf16.msra.mxu0 0
      %7814 = vmatpush.bf16.msra.mxu0 %v7664
      %7815 = vmatpush.bf16.msra.mxu0 %v7662
      %7816 = vmatpush.bf16.msra.mxu0 %v7660
      %7817 = vmatpush.bf16.msra.mxu0 %v7658
      %7818 = vmatmul.bf16.gmra.mxu0 %v7674
      %v7819 = vpop.f32.mrf.mxu0
      %v7820 = vadd.f32 %v7630, %v7819
      %v7821 = vpop.f32.mrf.mxu0
      %v7822 = vadd.f32 %v7630, %v7821
      %7823 = vmatmul.bf16.gmra.mxu0 %v7677
      %v7824 = vpop.f32.mrf.mxu0
      %v7825 = vadd.f32 %v7630, %v7824
      %v7826 = vpop.f32.mrf.mxu0
      %v7827 = vadd.f32 %v7630, %v7826
      %7828 = vmatmul.bf16.gmra.mxu0 %v7680
      %v7829 = vpop.f32.mrf.mxu0
      %v7830 = vadd.f32 %v7630, %v7829
      %v7831 = vpop.f32.mrf.mxu0
      %v7832 = vadd.f32 %v7630, %v7831
      %7833 = vmatmul.bf16.gmra.mxu0 %v7683
      %v7834 = vpop.f32.mrf.mxu0
      %v7835 = vadd.f32 %v7630, %v7834
      %v7836 = vpop.f32.mrf.mxu0
      %v7837 = vadd.f32 %v7630, %v7836
      %7838 = vmatmul.bf16.gmra.mxu0 %v7686
      %v7839 = vpop.f32.mrf.mxu0
      %v7840 = vadd.f32 %v7630, %v7839
      %v7841 = vpop.f32.mrf.mxu0
      %v7842 = vadd.f32 %v7630, %v7841
      %7843 = vmatmul.bf16.gmra.mxu0 %v7689
      %v7844 = vpop.f32.mrf.mxu0
      %v7845 = vadd.f32 %v7630, %v7844
      %v7846 = vpop.f32.mrf.mxu0
      %v7847 = vadd.f32 %v7630, %v7846
      %7848 = vmatmul.bf16.gmra.mxu0 %v7692
      %v7849 = vpop.f32.mrf.mxu0
      %v7850 = vadd.f32 %v7630, %v7849
      %v7851 = vpop.f32.mrf.mxu0
      %v7852 = vadd.f32 %v7630, %v7851
      %7853 = vmatmul.bf16.gmra.mxu0 %v7695
      %v7854 = vpop.f32.mrf.mxu0
      %v7855 = vadd.f32 %v7630, %v7854
      %v7856 = vpop.f32.mrf.mxu0
      %v7857 = vadd.f32 %v7630, %v7856
      %7858 = vmatmul.bf16.gmra.mxu0 %v7698
      %v7859 = vpop.f32.mrf.mxu0
      %v7860 = vadd.f32 %v7630, %v7859
      %v7861 = vpop.f32.mrf.mxu0
      %v7862 = vadd.f32 %v7630, %v7861
      %7863 = vmatmul.bf16.gmra.mxu0 %v7701
      %v7864 = vpop.f32.mrf.mxu0
      %v7865 = vadd.f32 %v7630, %v7864
      %v7866 = vpop.f32.mrf.mxu0
      %v7867 = vadd.f32 %v7630, %v7866
      %7868 = vmatmul.bf16.gmra.mxu0 %v7704
      %v7869 = vpop.f32.mrf.mxu0
      %v7870 = vadd.f32 %v7630, %v7869
      %v7871 = vpop.f32.mrf.mxu0
      %v7872 = vadd.f32 %v7630, %v7871
      %7873 = vmatmul.bf16.gmra.mxu0 %v7707
      %v7874 = vpop.f32.mrf.mxu0
      %v7875 = vadd.f32 %v7630, %v7874
      %v7876 = vpop.f32.mrf.mxu0
      %v7877 = vadd.f32 %v7630, %v7876
      %7878 = vmatmul.bf16.gmra.mxu0 %v7710
      %v7879 = vpop.f32.mrf.mxu0
      %v7880 = vadd.f32 %v7630, %v7879
      %v7881 = vpop.f32.mrf.mxu0
      %v7882 = vadd.f32 %v7630, %v7881
      %7883 = vmatmul.bf16.gmra.mxu0 %v7713
      %v7884 = vpop.f32.mrf.mxu0
      %v7885 = vadd.f32 %v7630, %v7884
      %v7886 = vpop.f32.mrf.mxu0
      %v7887 = vadd.f32 %v7630, %v7886
      %7888 = vmatmul.bf16.gmra.mxu0 %v7716
      %v7889 = vpop.f32.mrf.mxu0
      %v7890 = vadd.f32 %v7630, %v7889
      %v7891 = vpop.f32.mrf.mxu0
      %v7892 = vadd.f32 %v7630, %v7891
      %7893 = vmatmul.bf16.gmra.mxu0 %v7719
      %v7894 = vpop.f32.mrf.mxu0
      %v7895 = vadd.f32 %v7630, %v7894
      %v7896 = vpop.f32.mrf.mxu0
      %v7897 = vadd.f32 %v7630, %v7896
      %7898 = vdwg.mxu0
      %v7899 = vmax.f32 %v7731, 0.0
      %v7900 = vmax.f32 %v7820, 0.0
      %v7901 = vmax.f32 %v7733, 0.0
      %v7902 = vmax.f32 %v7822, 0.0
      %v7903 = vmax.f32 %v7736, 0.0
      %v7904 = vmax.f32 %v7825, 0.0
      %v7905 = vmax.f32 %v7738, 0.0
      %v7906 = vmax.f32 %v7827, 0.0
      %v7907 = vmax.f32 %v7741, 0.0
      %v7908 = vmax.f32 %v7830, 0.0
      %v7909 = vmax.f32 %v7743, 0.0
      %v7910 = vmax.f32 %v7832, 0.0
      %v7911 = vmax.f32 %v7746, 0.0
      %v7912 = vmax.f32 %v7835, 0.0
      %v7913 = vmax.f32 %v7748, 0.0
      %v7914 = vmax.f32 %v7837, 0.0
      %v7915 = vmax.f32 %v7751, 0.0
      %v7916 = vmax.f32 %v7840, 0.0
      %v7917 = vmax.f32 %v7753, 0.0
      %v7918 = vmax.f32 %v7842, 0.0
      %v7919 = vmax.f32 %v7756, 0.0
      %v7920 = vmax.f32 %v7845, 0.0
      %v7921 = vmax.f32 %v7758, 0.0
      %v7922 = vmax.f32 %v7847, 0.0
      %v7923 = vmax.f32 %v7761, 0.0
      %v7924 = vmax.f32 %v7850, 0.0
      %v7925 = vmax.f32 %v7763, 0.0
      %v7926 = vmax.f32 %v7852, 0.0
      %v7927 = vmax.f32 %v7766, 0.0
      %v7928 = vmax.f32 %v7855, 0.0
      %v7929 = vmax.f32 %v7768, 0.0
      %v7930 = vmax.f32 %v7857, 0.0
      %v7931 = vmax.f32 %v7771, 0.0
      %v7932 = vmax.f32 %v7860, 0.0
      %v7933 = vmax.f32 %v7773, 0.0
      %v7934 = vmax.f32 %v7862, 0.0
      %v7935 = vmax.f32 %v7776, 0.0
      %v7936 = vmax.f32 %v7865, 0.0
      %v7937 = vmax.f32 %v7778, 0.0
      %v7938 = vmax.f32 %v7867, 0.0
      %v7939 = vmax.f32 %v7781, 0.0
      %v7940 = vmax.f32 %v7870, 0.0
      %v7941 = vmax.f32 %v7783, 0.0
      %v7942 = vmax.f32 %v7872, 0.0
      %v7943 = vmax.f32 %v7786, 0.0
      %v7944 = vmax.f32 %v7875, 0.0
      %v7945 = vmax.f32 %v7788, 0.0
      %v7946 = vmax.f32 %v7877, 0.0
      %v7947 = vmax.f32 %v7791, 0.0
      %v7948 = vmax.f32 %v7880, 0.0
      %v7949 = vmax.f32 %v7793, 0.0
      %v7950 = vmax.f32 %v7882, 0.0
      %v7951 = vmax.f32 %v7796, 0.0
      %v7952 = vmax.f32 %v7885, 0.0
      %v7953 = vmax.f32 %v7798, 0.0
      %v7954 = vmax.f32 %v7887, 0.0
      %v7955 = vmax.f32 %v7801, 0.0
      %v7956 = vmax.f32 %v7890, 0.0
      %v7957 = vmax.f32 %v7803, 0.0
      %v7958 = vmax.f32 %v7892, 0.0
      %v7959 = vmax.f32 %v7806, 0.0
      %v7960 = vmax.f32 %v7895, 0.0
      %v7961 = vmax.f32 %v7808, 0.0
      %v7962 = vmax.f32 %v7897, 0.0
      %v7963 = vpack.c.bf16 %v7901, %v7899
      %v7964 = vpack.c.bf16 %v7902, %v7900
      %v7965 = vpack.c.bf16 %v7905, %v7903
      %v7966 = vpack.c.bf16 %v7906, %v7904
      %v7967 = vpack.c.bf16 %v7909, %v7907
      %v7968 = vpack.c.bf16 %v7910, %v7908
      %v7969 = vpack.c.bf16 %v7913, %v7911
      %v7970 = vpack.c.bf16 %v7914, %v7912
      %v7971 = vpack.c.bf16 %v7917, %v7915
      %v7972 = vpack.c.bf16 %v7918, %v7916
      %v7973 = vpack.c.bf16 %v7921, %v7919
      %v7974 = vpack.c.bf16 %v7922, %v7920
      %v7975 = vpack.c.bf16 %v7925, %v7923
      %v7976 = vpack.c.bf16 %v7926, %v7924
      %v7977 = vpack.c.bf16 %v7929, %v7927
      %v7978 = vpack.c.bf16 %v7930, %v7928
      %v7979 = vpack.c.bf16 %v7933, %v7931
      %v7980 = vpack.c.bf16 %v7934, %v7932
      %v7981 = vpack.c.bf16 %v7937, %v7935
      %v7982 = vpack.c.bf16 %v7938, %v7936
      %v7983 = vpack.c.bf16 %v7941, %v7939
      %v7984 = vpack.c.bf16 %v7942, %v7940
      %v7985 = vpack.c.bf16 %v7945, %v7943
      %v7986 = vpack.c.bf16 %v7946, %v7944
      %v7987 = vpack.c.bf16 %v7949, %v7947
      %v7988 = vpack.c.bf16 %v7950, %v7948
      %v7989 = vpack.c.bf16 %v7953, %v7951
      %v7990 = vpack.c.bf16 %v7954, %v7952
      %v7991 = vpack.c.bf16 %v7957, %v7955
      %v7992 = vpack.c.bf16 %v7958, %v7956
      %v7993 = vpack.c.bf16 %v7961, %v7959
      %v7994 = vpack.c.bf16 %v7962, %v7960
      %v7995 = vld [vmem:[%s9] sm:$0xf]
      %v7996 = vld [vmem:[%s9 + $0x4] sm:$0xf]
      %v7997 = vld [vmem:[%s9 + $0x8] sm:$0xf]
      %v7998 = vld [vmem:[%s9 + $0xc] sm:$0xf]
      %v7999 = vld [vmem:[%s9 + $0x10] sm:$0xf]
      %v8000 = vld [vmem:[%s9 + $0x14] sm:$0xf]
      %v8001 = vld [vmem:[%s9 + $0x18] sm:$0xf]
      %v8002 = vld [vmem:[%s9 + $0x1c] sm:$0xf]
      %v8003 = vld [vmem:[%s9 + $0x20] sm:$0xf]
      %v8004 = vld [vmem:[%s9 + $0x24] sm:$0xf]
      %v8005 = vld [vmem:[%s9 + $0x28] sm:$0xf]
      %v8006 = vld [vmem:[%s9 + $0x2c] sm:$0xf]
      %v8007 = vld [vmem:[%s9 + $0x30] sm:$0xf]
      %v8008 = vld [vmem:[%s9 + $0x34] sm:$0xf]
      %v8009 = vld [vmem:[%s9 + $0x38] sm:$0xf]
      %v8010 = vld [vmem:[%s9 + $0x3c] sm:$0xf]
      %v8011 = vld [vmem:[%s9 + $0x40] sm:$0xf]
      %v8012 = vld [vmem:[%s9 + $0x44] sm:$0xf]
      %v8013 = vld [vmem:[%s9 + $0x48] sm:$0xf]
      %v8014 = vld [vmem:[%s9 + $0x4c] sm:$0xf]
      %v8015 = vld [vmem:[%s9 + $0x50] sm:$0xf]
      %v8016 = vld [vmem:[%s9 + $0x54] sm:$0xf]
      %v8017 = vld [vmem:[%s9 + $0x58] sm:$0xf]
      %v8018 = vld [vmem:[%s9 + $0x5c] sm:$0xf]
      %v8019 = vld [vmem:[%s9 + $0x60] sm:$0xf]
      %v8020 = vld [vmem:[%s9 + $0x64] sm:$0xf]
      %v8021 = vld [vmem:[%s9 + $0x68] sm:$0xf]
      %v8022 = vld [vmem:[%s9 + $0x6c] sm:$0xf]
      %v8023 = vld [vmem:[%s9 + $0x70] sm:$0xf]
      %v8024 = vld [vmem:[%s9 + $0x74] sm:$0xf]
      %v8025 = vld [vmem:[%s9 + $0x78] sm:$0xf]
      %v8026 = vld [vmem:[%s9 + $0x7c] sm:$0xf]
      %v8059 = vunpack.c.l.b16 %v7995
      %v8060 = vunpack.c.l.b16 %v7996
      %v8061 = vunpack.c.l.b16 %v7997
      %v8062 = vunpack.c.l.b16 %v7998
      %v8063 = vunpack.c.l.b16 %v7999
      %v8064 = vunpack.c.l.b16 %v8000
      %v8065 = vunpack.c.l.b16 %v8001
      %v8066 = vunpack.c.l.b16 %v8002
      %v8067 = vunpack.c.l.b16 %v8003
      %v8068 = vunpack.c.l.b16 %v8004
      %v8069 = vunpack.c.l.b16 %v8005
      %v8070 = vunpack.c.l.b16 %v8006
      %v8071 = vunpack.c.l.b16 %v8007
      %v8072 = vunpack.c.l.b16 %v8008
      %v8073 = vunpack.c.l.b16 %v8009
      %v8074 = vunpack.c.l.b16 %v8010
      %v8075 = vunpack.c.l.b16 %v8011
      %v8076 = vunpack.c.l.b16 %v8012
      %v8077 = vunpack.c.l.b16 %v8013
      %v8078 = vunpack.c.l.b16 %v8014
      %v8079 = vunpack.c.l.b16 %v8015
      %v8080 = vunpack.c.l.b16 %v8016
      %v8081 = vunpack.c.l.b16 %v8017
      %v8082 = vunpack.c.l.b16 %v8018
      %v8083 = vunpack.c.l.b16 %v8019
      %v8084 = vunpack.c.l.b16 %v8020
      %v8085 = vunpack.c.l.b16 %v8021
      %v8086 = vunpack.c.l.b16 %v8022
      %v8087 = vunpack.c.l.b16 %v8023
      %v8088 = vunpack.c.l.b16 %v8024
      %v8089 = vunpack.c.l.b16 %v8025
      %v8090 = vunpack.c.l.b16 %v8026
      %v8091 = vpack.c.b16 %v8060, %v8059
      %v8092 = vpack.c.b16 %v8062, %v8061
      %v8093 = vpack.c.b16 %v8064, %v8063
      %v8094 = vpack.c.b16 %v8066, %v8065
      %v8095 = vpack.c.b16 %v8068, %v8067
      %v8096 = vpack.c.b16 %v8070, %v8069
      %v8097 = vpack.c.b16 %v8072, %v8071
      %v8098 = vpack.c.b16 %v8074, %v8073
      %v8099 = vpack.c.b16 %v8076, %v8075
      %v8100 = vpack.c.b16 %v8078, %v8077
      %v8101 = vpack.c.b16 %v8080, %v8079
      %v8102 = vpack.c.b16 %v8082, %v8081
      %v8103 = vpack.c.b16 %v8084, %v8083
      %v8104 = vpack.c.b16 %v8086, %v8085
      %v8105 = vpack.c.b16 %v8088, %v8087
      %v8106 = vpack.c.b16 %v8090, %v8089
      %8123 = vmatpush.bf16.msra.mxu0 %v8098
      %8124 = vmatpush.bf16.msra.mxu0 %v8097
      %8125 = vmatpush.bf16.msra.mxu0 %v8096
      %8126 = vmatpush.bf16.msra.mxu0 %v8095
      %8127 = vmatpush.bf16.msra.mxu0 %v8094
      %8128 = vmatpush.bf16.msra.mxu0 %v8093
      %8129 = vmatpush.bf16.msra.mxu0 %v8092
      %8130 = vmatpush.bf16.msra.mxu0 %v8091
      %8131 = vmatmul.bf16.gmra.mxu0 %v7963
      %v8132 = vpop.f32.mrf.mxu0
      %v8133 = vadd.f32 0.0, %v8132
      %v8134 = vpop.f32.mrf.mxu0
      %v8135 = vadd.f32 0.0, %v8134
      %8136 = vmatmul.bf16.gmra.mxu0 %v7965
      %v8137 = vpop.f32.mrf.mxu0
      %v8138 = vadd.f32 0.0, %v8137
      %v8139 = vpop.f32.mrf.mxu0
      %v8140 = vadd.f32 0.0, %v8139
      %8141 = vmatmul.bf16.gmra.mxu0 %v7967
      %v8142 = vpop.f32.mrf.mxu0
      %v8143 = vadd.f32 0.0, %v8142
      %v8144 = vpop.f32.mrf.mxu0
      %v8145 = vadd.f32 0.0, %v8144
      %8146 = vmatmul.bf16.gmra.mxu0 %v7969
      %v8147 = vpop.f32.mrf.mxu0
      %v8148 = vadd.f32 0.0, %v8147
      %v8149 = vpop.f32.mrf.mxu0
      %v8150 = vadd.f32 0.0, %v8149
      %8151 = vmatmul.bf16.gmra.mxu0 %v7971
      %v8152 = vpop.f32.mrf.mxu0
      %v8153 = vadd.f32 0.0, %v8152
      %v8154 = vpop.f32.mrf.mxu0
      %v8155 = vadd.f32 0.0, %v8154
      %8156 = vmatmul.bf16.gmra.mxu0 %v7973
      %v8157 = vpop.f32.mrf.mxu0
      %v8158 = vadd.f32 0.0, %v8157
      %v8159 = vpop.f32.mrf.mxu0
      %v8160 = vadd.f32 0.0, %v8159
      %8161 = vmatmul.bf16.gmra.mxu0 %v7975
      %v8162 = vpop.f32.mrf.mxu0
      %v8163 = vadd.f32 0.0, %v8162
      %v8164 = vpop.f32.mrf.mxu0
      %v8165 = vadd.f32 0.0, %v8164
      %8166 = vmatmul.bf16.gmra.mxu0 %v7977
      %v8167 = vpop.f32.mrf.mxu0
      %v8168 = vadd.f32 0.0, %v8167
      %v8169 = vpop.f32.mrf.mxu0
      %v8170 = vadd.f32 0.0, %v8169
      %8171 = vmatmul.bf16.gmra.mxu0 %v7979
      %v8172 = vpop.f32.mrf.mxu0
      %v8173 = vadd.f32 0.0, %v8172
      %v8174 = vpop.f32.mrf.mxu0
      %v8175 = vadd.f32 0.0, %v8174
      %8176 = vmatmul.bf16.gmra.mxu0 %v7981
      %v8177 = vpop.f32.mrf.mxu0
      %v8178 = vadd.f32 0.0, %v8177
      %v8179 = vpop.f32.mrf.mxu0
      %v8180 = vadd.f32 0.0, %v8179
      %8181 = vmatmul.bf16.gmra.mxu0 %v7983
      %v8182 = vpop.f32.mrf.mxu0
      %v8183 = vadd.f32 0.0, %v8182
      %v8184 = vpop.f32.mrf.mxu0
      %v8185 = vadd.f32 0.0, %v8184
      %8186 = vmatmul.bf16.gmra.mxu0 %v7985
      %v8187 = vpop.f32.mrf.mxu0
      %v8188 = vadd.f32 0.0, %v8187
      %v8189 = vpop.f32.mrf.mxu0
      %v8190 = vadd.f32 0.0, %v8189
      %8191 = vmatmul.bf16.gmra.mxu0 %v7987
      %v8192 = vpop.f32.mrf.mxu0
      %v8193 = vadd.f32 0.0, %v8192
      %v8194 = vpop.f32.mrf.mxu0
      %v8195 = vadd.f32 0.0, %v8194
      %8196 = vmatmul.bf16.gmra.mxu0 %v7989
      %v8197 = vpop.f32.mrf.mxu0
      %v8198 = vadd.f32 0.0, %v8197
      %v8199 = vpop.f32.mrf.mxu0
      %v8200 = vadd.f32 0.0, %v8199
      %8201 = vmatmul.bf16.gmra.mxu0 %v7991
      %v8202 = vpop.f32.mrf.mxu0
      %v8203 = vadd.f32 0.0, %v8202
      %v8204 = vpop.f32.mrf.mxu0
      %v8205 = vadd.f32 0.0, %v8204
      %8206 = vmatmul.bf16.gmra.mxu0 %v7993
      %v8207 = vpop.f32.mrf.mxu0
      %v8208 = vadd.f32 0.0, %v8207
      %v8209 = vpop.f32.mrf.mxu0
      %v8210 = vadd.f32 0.0, %v8209
      %8211 = vdwg.mxu0
      %8212 = vmatpush.bf16.msra.mxu0 %v8106
      %8213 = vmatpush.bf16.msra.mxu0 %v8105
      %8214 = vmatpush.bf16.msra.mxu0 %v8104
      %8215 = vmatpush.bf16.msra.mxu0 %v8103
      %8216 = vmatpush.bf16.msra.mxu0 %v8102
      %8217 = vmatpush.bf16.msra.mxu0 %v8101
      %8218 = vmatpush.bf16.msra.mxu0 %v8100
      %8219 = vmatpush.bf16.msra.mxu0 %v8099
      %8220 = vmatmul.bf16.gmra.mxu0 %v7964
      %v8221 = vpop.f32.mrf.mxu0
      %v8222 = vadd.f32 %v8133, %v8221
      %v8223 = vpop.f32.mrf.mxu0
      %v8224 = vadd.f32 %v8135, %v8223
      %8225 = vmatmul.bf16.gmra.mxu0 %v7966
      %v8226 = vpop.f32.mrf.mxu0
      %v8227 = vadd.f32 %v8138, %v8226
      %v8228 = vpop.f32.mrf.mxu0
      %v8229 = vadd.f32 %v8140, %v8228
      %8230 = vmatmul.bf16.gmra.mxu0 %v7968
      %v8231 = vpop.f32.mrf.mxu0
      %v8232 = vadd.f32 %v8143, %v8231
      %v8233 = vpop.f32.mrf.mxu0
      %v8234 = vadd.f32 %v8145, %v8233
      %8235 = vmatmul.bf16.gmra.mxu0 %v7970
      %v8236 = vpop.f32.mrf.mxu0
      %v8237 = vadd.f32 %v8148, %v8236
      %v8238 = vpop.f32.mrf.mxu0
      %v8239 = vadd.f32 %v8150, %v8238
      %8240 = vmatmul.bf16.gmra.mxu0 %v7972
      %v8241 = vpop.f32.mrf.mxu0
      %v8242 = vadd.f32 %v8153, %v8241
      %v8243 = vpop.f32.mrf.mxu0
      %v8244 = vadd.f32 %v8155, %v8243
      %8245 = vmatmul.bf16.gmra.mxu0 %v7974
      %v8246 = vpop.f32.mrf.mxu0
      %v8247 = vadd.f32 %v8158, %v8246
      %v8248 = vpop.f32.mrf.mxu0
      %v8249 = vadd.f32 %v8160, %v8248
      %8250 = vmatmul.bf16.gmra.mxu0 %v7976
      %v8251 = vpop.f32.mrf.mxu0
      %v8252 = vadd.f32 %v8163, %v8251
      %v8253 = vpop.f32.mrf.mxu0
      %v8254 = vadd.f32 %v8165, %v8253
      %8255 = vmatmul.bf16.gmra.mxu0 %v7978
      %v8256 = vpop.f32.mrf.mxu0
      %v8257 = vadd.f32 %v8168, %v8256
      %v8258 = vpop.f32.mrf.mxu0
      %v8259 = vadd.f32 %v8170, %v8258
      %8260 = vmatmul.bf16.gmra.mxu0 %v7980
      %v8261 = vpop.f32.mrf.mxu0
      %v8262 = vadd.f32 %v8173, %v8261
      %v8263 = vpop.f32.mrf.mxu0
      %v8264 = vadd.f32 %v8175, %v8263
      %8265 = vmatmul.bf16.gmra.mxu0 %v7982
      %v8266 = vpop.f32.mrf.mxu0
      %v8267 = vadd.f32 %v8178, %v8266
      %v8268 = vpop.f32.mrf.mxu0
      %v8269 = vadd.f32 %v8180, %v8268
      %8270 = vmatmul.bf16.gmra.mxu0 %v7984
      %v8271 = vpop.f32.mrf.mxu0
      %v8272 = vadd.f32 %v8183, %v8271
      %v8273 = vpop.f32.mrf.mxu0
      %v8274 = vadd.f32 %v8185, %v8273
      %8275 = vmatmul.bf16.gmra.mxu0 %v7986
      %v8276 = vpop.f32.mrf.mxu0
      %v8277 = vadd.f32 %v8188, %v8276
      %v8278 = vpop.f32.mrf.mxu0
      %v8279 = vadd.f32 %v8190, %v8278
      %8280 = vmatmul.bf16.gmra.mxu0 %v7988
      %v8281 = vpop.f32.mrf.mxu0
      %v8282 = vadd.f32 %v8193, %v8281
      %v8283 = vpop.f32.mrf.mxu0
      %v8284 = vadd.f32 %v8195, %v8283
      %8285 = vmatmul.bf16.gmra.mxu0 %v7990
      %v8286 = vpop.f32.mrf.mxu0
      %v8287 = vadd.f32 %v8198, %v8286
      %v8288 = vpop.f32.mrf.mxu0
      %v8289 = vadd.f32 %v8200, %v8288
      %8290 = vmatmul.bf16.gmra.mxu0 %v7992
      %v8291 = vpop.f32.mrf.mxu0
      %v8292 = vadd.f32 %v8203, %v8291
      %v8293 = vpop.f32.mrf.mxu0
      %v8294 = vadd.f32 %v8205, %v8293
      %8295 = vmatmul.bf16.gmra.mxu0 %v7994
      %v8296 = vpop.f32.mrf.mxu0
      %v8297 = vadd.f32 %v8208, %v8296
      %v8298 = vpop.f32.mrf.mxu0
      %v8299 = vadd.f32 %v8210, %v8298
      %8300 = vdwg.mxu0
      %v8301 = vadd.f32 %v7571, %v8222
      %v8302 = vadd.f32 %v7572, %v8224
      %v8303 = vadd.f32 %v7573, %v8227
      %v8304 = vadd.f32 %v7574, %v8229
      %v8305 = vadd.f32 %v7575, %v8232
      %v8306 = vadd.f32 %v7576, %v8234
      %v8307 = vadd.f32 %v7577, %v8237
      %v8308 = vadd.f32 %v7578, %v8239
      %v8309 = vadd.f32 %v7579, %v8242
      %v8310 = vadd.f32 %v7580, %v8244
      %v8311 = vadd.f32 %v7581, %v8247
      %v8312 = vadd.f32 %v7582, %v8249
      %v8313 = vadd.f32 %v7583, %v8252
      %v8314 = vadd.f32 %v7584, %v8254
      %v8315 = vadd.f32 %v7585, %v8257
      %v8316 = vadd.f32 %v7586, %v8259
      %v8317 = vadd.f32 %v7587, %v8262
      %v8318 = vadd.f32 %v7588, %v8264
      %v8319 = vadd.f32 %v7589, %v8267
      %v8320 = vadd.f32 %v7590, %v8269
      %v8321 = vadd.f32 %v7591, %v8272
      %v8322 = vadd.f32 %v7592, %v8274
      %v8323 = vadd.f32 %v7593, %v8277
      %v8324 = vadd.f32 %v7594, %v8279
      %v8325 = vadd.f32 %v7595, %v8282
      %v8326 = vadd.f32 %v7596, %v8284
      %v8327 = vadd.f32 %v7597, %v8287
      %v8328 = vadd.f32 %v7598, %v8289
      %v8329 = vadd.f32 %v7599, %v8292
      %v8330 = vadd.f32 %v7600, %v8294
      %v8331 = vadd.f32 %v7601, %v8297
      %v8332 = vadd.f32 %v7602, %v8299
      %v8333 = vld [vmem:[%s3 + $0x7] sm:$0x1]
      %v8334 = vperm.slane %v8333, 0
      %v8335 = vadd.f32 %v8301, %v8334
      %v8336 = vadd.f32 %v8302, %v8334
      %v8337 = vadd.f32 %v8303, %v8334
      %v8338 = vadd.f32 %v8304, %v8334
      %v8339 = vadd.f32 %v8305, %v8334
      %v8340 = vadd.f32 %v8306, %v8334
      %v8341 = vadd.f32 %v8307, %v8334
      %v8342 = vadd.f32 %v8308, %v8334
      %v8343 = vadd.f32 %v8309, %v8334
      %v8344 = vadd.f32 %v8310, %v8334
      %v8345 = vadd.f32 %v8311, %v8334
      %v8346 = vadd.f32 %v8312, %v8334
      %v8347 = vadd.f32 %v8313, %v8334
      %v8348 = vadd.f32 %v8314, %v8334
      %v8349 = vadd.f32 %v8315, %v8334
      %v8350 = vadd.f32 %v8316, %v8334
      %v8351 = vadd.f32 %v8317, %v8334
      %v8352 = vadd.f32 %v8318, %v8334
      %v8353 = vadd.f32 %v8319, %v8334
      %v8354 = vadd.f32 %v8320, %v8334
      %v8355 = vadd.f32 %v8321, %v8334
      %v8356 = vadd.f32 %v8322, %v8334
      %v8357 = vadd.f32 %v8323, %v8334
      %v8358 = vadd.f32 %v8324, %v8334
      %v8359 = vadd.f32 %v8325, %v8334
      %v8360 = vadd.f32 %v8326, %v8334
      %v8361 = vadd.f32 %v8327, %v8334
      %v8362 = vadd.f32 %v8328, %v8334
      %v8363 = vadd.f32 %v8329, %v8334
      %v8364 = vadd.f32 %v8330, %v8334
      %v8365 = vadd.f32 %v8331, %v8334
      %v8366 = vadd.f32 %v8332, %v8334
      %8367 = vst.msk [vmem:[%s359] sm:$0xff] %vm393, %v8335
      %8368 = vst.msk [vmem:[%s359 + $0x8] sm:$0xff] %vm393, %v8336
      %8369 = vst.msk [vmem:[%s359 + $0x10] sm:$0xff] %vm393, %v8337
      %8370 = vst.msk [vmem:[%s359 + $0x18] sm:$0xff] %vm393, %v8338
      %8371 = vst.msk [vmem:[%s359 + $0x20] sm:$0xff] %vm393, %v8339
      %8372 = vst.msk [vmem:[%s359 + $0x28] sm:$0xff] %vm393, %v8340
      %8373 = vst.msk [vmem:[%s359 + $0x30] sm:$0xff] %vm393, %v8341
      %8374 = vst.msk [vmem:[%s359 + $0x38] sm:$0xff] %vm393, %v8342
      %8375 = vst.msk [vmem:[%s359 + $0x40] sm:$0xff] %vm393, %v8343
      %8376 = vst.msk [vmem:[%s359 + $0x48] sm:$0xff] %vm393, %v8344
      %8377 = vst.msk [vmem:[%s359 + $0x50] sm:$0xff] %vm393, %v8345
      %8378 = vst.msk [vmem:[%s359 + $0x58] sm:$0xff] %vm393, %v8346
      %8379 = vst.msk [vmem:[%s359 + $0x60] sm:$0xff] %vm393, %v8347
      %8380 = vst.msk [vmem:[%s359 + $0x68] sm:$0xff] %vm393, %v8348
      %8381 = vst.msk [vmem:[%s359 + $0x70] sm:$0xff] %vm393, %v8349
      %8382 = vst.msk [vmem:[%s359 + $0x78] sm:$0xff] %vm393, %v8350
      %8383 = vst.msk [vmem:[%s359 + $0x80] sm:$0xff] %vm393, %v8351
      %8384 = vst.msk [vmem:[%s359 + $0x88] sm:$0xff] %vm393, %v8352
      %8385 = vst.msk [vmem:[%s359 + $0x90] sm:$0xff] %vm393, %v8353
      %8386 = vst.msk [vmem:[%s359 + $0x98] sm:$0xff] %vm393, %v8354
      %8387 = vst.msk [vmem:[%s359 + $0xa0] sm:$0xff] %vm393, %v8355
      %8388 = vst.msk [vmem:[%s359 + $0xa8] sm:$0xff] %vm393, %v8356
      %8389 = vst.msk [vmem:[%s359 + $0xb0] sm:$0xff] %vm393, %v8357
      %8390 = vst.msk [vmem:[%s359 + $0xb8] sm:$0xff] %vm393, %v8358
      %8391 = vst.msk [vmem:[%s359 + $0xc0] sm:$0xff] %vm393, %v8359
      %8392 = vst.msk [vmem:[%s359 + $0xc8] sm:$0xff] %vm393, %v8360
      %8393 = vst.msk [vmem:[%s359 + $0xd0] sm:$0xff] %vm393, %v8361
      %8394 = vst.msk [vmem:[%s359 + $0xd8] sm:$0xff] %vm393, %v8362
      %8395 = vst.msk [vmem:[%s359 + $0xe0] sm:$0xff] %vm393, %v8363
      %8396 = vst.msk [vmem:[%s359 + $0xe8] sm:$0xff] %vm393, %v8364
      %8397 = vst.msk [vmem:[%s359 + $0xf0] sm:$0xff] %vm393, %v8365
      %8398 = vst.msk [vmem:[%s359 + $0xf8] sm:$0xff] %vm393, %v8366
      %p8399 = scmp.lt.s32.totalorder %s21, 1
      %s8400 = scalar_select %p8399, %s21, 1
      %s8401 = smul.addr %s8400, 32
      %s8402 = smul.addr %s8401, 8
      %s8403 = scalar_lea.vmem %s10, %s8402
      // Predicated region
      $region61: #{legm_forward.1} parent=59 // pred_check
        %p8404 = pneg %p254
      $region62: #{legm_forward.1} parent=59 // pred_check_branch
        %8406 = sbr.rel (%p8404) target = $region64
      $region63: #{legm_forward.1} parent=59 // pred_region
        _
      $region64: #{legm_forward.1} parent=59 // pred_fallthru
        _
    $region60: #{legm_forward.1} parent=5 // pred_fallthru
      _
    %p8407 = scmp.le.s32.totalorder 2, %s16
    // Predicated region
    $region65: #{legm_forward.1} parent=5 // pred_check
      %p8408 = pneg %p8407
    $region66: #{legm_forward.1} parent=5 // pred_check_branch
      %8410 = sbr.rel (%p8408) target = $region68
    $region67: #{legm_forward.1} parent=5 // pred_region
      %s8411 = ssub.s32 %s16, 2
      // Predicated region
      $region69: #{legm_forward.1} parent=67 // pred_check
        %p8412 = pneg %p260
      $region70: #{legm_forward.1} parent=67 // pred_check_branch
        %8414 = sbr.rel (%p8412) target = $region72
      $region71: #{legm_forward.1} parent=67 // pred_region
        %p8415 = scmp.lt.s32.totalorder %s22, 1
        %s8416 = scalar_select %p8415, %s22, 1
        %s8417 = smul.addr %s8416, 32
        %s8418 = smul.addr %s8417, 8
        %s8419 = scalar_lea.vmem %s10, %s8418
      $region72: #{legm_forward.1} parent=67 // pred_fallthru
        _
    $region68: #{legm_forward.1} parent=5 // pred_fallthru
      _
  $region6: #{legm_forward.1} parent=0 // loop_footer
    %s20 = sadd.s32 1, %s16
  $region7: #{legm_forward.1} parent=0 // loop_footer_branch
    %15 = sbr.rel target = $region3
  $region8: #{legm_forward.1} parent=0 // loop_exit
    _

</llo_original>
